<compile_context>
chip_gen: v6e
topology: v6e:2x2x1
jax: 0.10.0
libtpu: 0.0.40
codegen_flags: <defaults>
</compile_context>

<pallas_src>
import functools

import jax
import jax.numpy as jnp
from jax.experimental import pallas as pl
from jax.experimental.pallas import tpu as pltpu


@functools.lru_cache(maxsize=None)
def _vmem_limit_bytes():
    """Generation-aware VMEM limit: ~75% of physical capacity so Mosaic keeps
    headroom for internal scratch/semaphores (v5e/v6e: ~96 MiB, v7x: ~48 MiB)."""
    cap = 128 * 1024 * 1024
    try:
        cap = int(getattr(pltpu.get_tpu_info(), "vmem_capacity_bytes", cap))
    except Exception:
        pass
    return (cap * 3) // 4


def _row_tile(n, target):
    """Row-tile size for the second-to-last block dim.

    Returns n itself when n <= target (a full-extent block is always layout
    legal).  Otherwise returns the largest divisor of n that is <= target,
    preferring 256-aligned tiles (MXU-friendly on v6e/v7x), falling back to the
    largest 8-aligned divisor, and finally to a single full tile."""
    if n <= target:
        return n
    best = 0
    for t in range(target - target % 8, 7, -8):
        if n % t == 0:
            if t % 256 == 0:
                return t
            if best == 0:
                best = t
    return best if best else n


# ----------------------------------------------------------------------------
# Fused resident-weight matmul:  out = [LN_out]( act(LN_in(x) @ W + bias) + res )
# Grid = (rows // tm,); W / bias / LN params have constant block indices and are
# therefore fetched into VMEM only once.
# ----------------------------------------------------------------------------
def _linear_kernel(*refs, has_ln, has_bias, has_res, has_out_ln, act, eps):
    refs = list(refs)
    x_ref = refs.pop(0)
    g_ref = refs.pop(0) if has_ln else None
    gb_ref = refs.pop(0) if has_ln else None
    w_ref = refs.pop(0)
    bias_ref = refs.pop(0) if has_bias else None
    res_ref = refs.pop(0) if has_res else None
    og_ref = refs.pop(0) if has_out_ln else None
    ob_ref = refs.pop(0) if has_out_ln else None
    o_ref = refs.pop(0)

    x = x_ref[...]
    if has_ln:
        xf = x.astype(jnp.float32)
        mu = jnp.mean(xf, axis=-1, keepdims=True)
        xc = xf - mu
        var = jnp.mean(xc * xc, axis=-1, keepdims=True)
        x = xc * jax.lax.rsqrt(var + eps) * g_ref[...] + gb_ref[...]

    y = jnp.dot(x.astype(jnp.bfloat16), w_ref[...].astype(jnp.bfloat16),
                preferred_element_type=jnp.float32)
    if has_bias:
        y = y + bias_ref[...].astype(jnp.float32)
    if act == "gelu":
        # TODO(synk): PyTorch nn.GELU defaults to exact erf GELU; tanh approximation
        # is used here because erf has no guaranteed Mosaic lowering.
        y = jax.nn.gelu(y, approximate=True)
    if has_res:
        y = y + res_ref[...].astype(jnp.float32)
    if has_out_ln:
        mu = jnp.mean(y, axis=-1, keepdims=True)
        yc = y - mu
        var = jnp.mean(yc * yc, axis=-1, keepdims=True)
        y = yc * jax.lax.rsqrt(var + eps) * og_ref[...] + ob_ref[...]
    o_ref[...] = y.astype(o_ref.dtype)


def linear_pallas(x, w, bias=None, residual=None, res_rows=None, act=None,
                  ln=None, out_ln=None, out_dtype=jnp.bfloat16, tm_target=512):
    """(N,K)@(K,M) with fused input-LN / bias / GELU / residual / output-LN."""
    N, K = x.shape
    M = w.shape[1]
    # Resident-weight path: the whole (K, M) weight lives in VMEM for the call.
    assert w.size * w.dtype.itemsize <= 24 * 1024 * 1024, "weight too large for resident path"

    has_ln, has_bias = ln is not None, bias is not None
    has_res, has_out_ln = residual is not None, out_ln is not None
    if has_res and res_rows is None:
        res_rows = residual.shape[0]
    if has_res:
        assert N % res_rows == 0
    row_dim = res_rows if (has_res and res_rows < N) else N
    tm = _row_tile(row_dim, tm_target)
    assert N % tm == 0
    gm = N // tm

    row = lambda i: (i, 0)
    rep = lambda i: (0, 0)
    in_specs = [pl.BlockSpec((tm, K), row)]
    args = [x]
    if has_ln:
        g, b_ = ln
        in_specs += [pl.BlockSpec((1, K), rep), pl.BlockSpec((1, K), rep)]
        args += [g.reshape(1, K).astype(jnp.float32),
                 b_.reshape(1, K).astype(jnp.float32)]
    in_specs.append(pl.BlockSpec((K, M), rep))   # constant index -> fetched once
    args.append(w)
    if has_bias:
        in_specs.append(pl.BlockSpec((1, M), rep))
        args.append(bias.reshape(1, M).astype(jnp.float32))
    if has_res:
        if res_rows == N:
            res_map = row
        else:
            rb = res_rows // tm
            res_map = lambda i: (i % rb, 0)      # rows reused across batch (pos-embed)
        in_specs.append(pl.BlockSpec((tm, M), res_map))
        args.append(residual)
    if has_out_ln:
        g2, b2 = out_ln
        in_specs += [pl.BlockSpec((1, M), rep), pl.BlockSpec((1, M), rep)]
        args += [g2.reshape(1, M).astype(jnp.float32),
                 b2.reshape(1, M).astype(jnp.float32)]

    kernel = functools.partial(_linear_kernel, has_ln=has_ln, has_bias=has_bias,
                               has_res=has_res, has_out_ln=has_out_ln, act=act,
                               eps=1e-6)
    return pl.pallas_call(
        kernel,
        out_shape=jax.ShapeDtypeStruct((N, M), out_dtype),
        grid=(gm,),
        in_specs=in_specs,
        out_specs=pl.BlockSpec((tm, M), row),
        compiler_params=pltpu.CompilerParams(
            dimension_semantics=("parallel",),
            vmem_limit_bytes=_vmem_limit_bytes()),
    )(*args)


# ----------------------------------------------------------------------------
# Fused LN -> q/k/v projection (three separate outputs, no packed-3C over-fetch)
# ----------------------------------------------------------------------------
def _qkv_kernel(x_ref, g_ref, gb_ref, wq_ref, bq_ref, wk_ref, bk_ref,
                wv_ref, bv_ref, q_ref, k_ref, v_ref, *, eps):
    xf = x_ref[...].astype(jnp.float32)
    mu = jnp.mean(xf, axis=-1, keepdims=True)
    xc = xf - mu
    var = jnp.mean(xc * xc, axis=-1, keepdims=True)
    xn = (xc * jax.lax.rsqrt(var + eps) * g_ref[...] + gb_ref[...]).astype(jnp.bfloat16)
    q_ref[...] = (jnp.dot(xn, wq_ref[...], preferred_element_type=jnp.float32)
                  + bq_ref[...]).astype(q_ref.dtype)
    k_ref[...] = (jnp.dot(xn, wk_ref[...], preferred_element_type=jnp.float32)
                  + bk_ref[...]).astype(k_ref.dtype)
    v_ref[...] = (jnp.dot(xn, wv_ref[...], preferred_element_type=jnp.float32)
                  + bv_ref[...]).astype(v_ref.dtype)


def qkv_proj_pallas(x, ln, wq, bq, wk, bk, wv, bv,
                    out_dtype=jnp.bfloat16, tm_target=512):
    N, K = x.shape
    C = wq.shape[1]
    tm = _row_tile(N, tm_target)
    assert N % tm == 0
    gm = N // tm
    g, b = ln
    row = lambda i: (i, 0)
    rep = lambda i: (0, 0)
    kernel = functools.partial(_qkv_kernel, eps=1e-6)
    return pl.pallas_call(
        kernel,
        out_shape=(jax.ShapeDtypeStruct((N, C), out_dtype),) * 3,
        grid=(gm,),
        in_specs=[pl.BlockSpec((tm, K), row),
                  pl.BlockSpec((1, K), rep), pl.BlockSpec((1, K), rep),
                  pl.BlockSpec((K, C), rep), pl.BlockSpec((1, C), rep),
                  pl.BlockSpec((K, C), rep), pl.BlockSpec((1, C), rep),
                  pl.BlockSpec((K, C), rep), pl.BlockSpec((1, C), rep)],
        out_specs=[pl.BlockSpec((tm, C), row)] * 3,
        compiler_params=pltpu.CompilerParams(
            dimension_semantics=("parallel",),
            vmem_limit_bytes=_vmem_limit_bytes()),
    )(x, g.reshape(1, K).astype(jnp.float32), b.reshape(1, K).astype(jnp.float32),
      wq, bq.reshape(1, C).astype(jnp.float32),
      wk, bk.reshape(1, C).astype(jnp.float32),
      wv, bv.reshape(1, C).astype(jnp.float32))


# ----------------------------------------------------------------------------
# Flash-style attention, heads folded into the leading (parallel) grid axis.
# Softmax scale is already folded into the q projection weights.
# ----------------------------------------------------------------------------
def _attn_kernel(q_ref, k_ref, v_ref, o_ref, m_sc, l_sc, acc_sc):
    ki = pl.program_id(2)

    @pl.when(ki == 0)
    def _init():
        m_sc[...] = jnp.full(m_sc.shape, -1e30, jnp.float32)
        l_sc[...] = jnp.zeros(l_sc.shape, jnp.float32)
        acc_sc[...] = jnp.zeros(acc_sc.shape, jnp.float32)

    q = q_ref[0]            # (tq, D)
    k = k_ref[0]            # (tkv, D)
    v = v_ref[0]            # (tkv, D)
    s = jax.lax.dot_general(q, k, (((1,), (1,)), ((), ())),
                            preferred_element_type=jnp.float32)
    m_prev = m_sc[...]
    m_new = jnp.maximum(m_prev, jnp.max(s, axis=-1, keepdims=True))
    alpha = jnp.exp(m_prev - m_new)
    p = jnp.exp(s - m_new)
    l_sc[...] = alpha * l_sc[...] + jnp.sum(p, axis=-1, keepdims=True)
    acc_sc[...] = alpha * acc_sc[...] + jnp.dot(p.astype(v.dtype), v,
                                                preferred_element_type=jnp.float32)
    m_sc[...] = m_new

    @pl.when(ki == pl.num_programs(2) - 1)
    def _finalize():
        o_ref[0] = (acc_sc[...] * pl.reciprocal(l_sc[...], approx=True)
                    ).astype(o_ref.dtype)


def attention_pallas(q, k, v, out_dtype=jnp.bfloat16, tq_target=256, tkv_target=256):
    """q, k, v: (B*heads, S, D) per-head tensors -> (B*heads, S, D) output."""
    BH, S, D = q.shape
    tq = _row_tile(S, tq_target)
    tkv = _row_tile(S, tkv_target)
    gq, gk = S // tq, S // tkv
    return pl.pallas_call(
        _attn_kernel,
        out_shape=jax.ShapeDtypeStruct((BH, S, D), out_dtype),
        grid=(BH, gq, gk),
        in_specs=[pl.BlockSpec((1, tq, D), lambda b, qi, ki: (b, qi, 0)),
                  pl.BlockSpec((1, tkv, D), lambda b, qi, ki: (b, ki, 0)),
                  pl.BlockSpec((1, tkv, D), lambda b, qi, ki: (b, ki, 0))],
        out_specs=pl.BlockSpec((1, tq, D), lambda b, qi, ki: (b, qi, 0)),
        scratch_shapes=[pltpu.VMEM((tq, 1), jnp.float32),
                        pltpu.VMEM((tq, 1), jnp.float32),
                        pltpu.VMEM((tq, D), jnp.float32)],
        compiler_params=pltpu.CompilerParams(
            dimension_semantics=("parallel", "parallel", "arbitrary"),
            vmem_limit_bytes=_vmem_limit_bytes()),
    )(q, k, v)


# ----------------------------------------------------------------------------
# Row-tiled 3x3 conv (pad=1, no bias) + LayerNorm2d
# ----------------------------------------------------------------------------
def _conv3x3_ln_kernel(x0_ref, x1_ref, x2_ref, w_ref, g_ref, b_ref, o_ref,
                       *, R, W, eps):
    Cin = x0_ref.shape[-1]
    Cout = o_ref.shape[-1]
    w_all = w_ref[...].astype(jnp.bfloat16)
    acc = jnp.zeros((R * W, Cout), jnp.float32)
    for di, x_ref in enumerate((x0_ref, x1_ref, x2_ref)):
        xp = x_ref[0]                                   # (R, W+2, Cin)
        for dj in range(3):
            t = di * 3 + dj
            xs = xp[:, dj:dj + W, :].reshape(R * W, Cin).astype(jnp.bfloat16)
            acc = acc + jnp.dot(xs, w_all[t * Cin:(t + 1) * Cin, :],
                                preferred_element_type=jnp.float32)
    mu = jnp.mean(acc, axis=-1, keepdims=True)
    xc = acc - mu
    var = jnp.mean(xc * xc, axis=-1, keepdims=True)
    y = xc * jax.lax.rsqrt(var + eps) * g_ref[...] + b_ref[...]
    o_ref[0] = y.reshape(R, W, Cout).astype(o_ref.dtype)


def conv3x3_ln_pallas(y, w, gamma, beta, eps=1e-6, rows_target=16):
    B, H, W, Cin = y.shape
    Cout = w.shape[1]
    yp = jnp.pad(y, ((0, 0), (1, 1), (1, 1), (0, 0)))
    # Three row-shifted views of the padded input so every output-row tile maps
    # to aligned, non-overlapping (R, W+2) blocks (halo handled outside the spec).
    taps = [jax.lax.slice_in_dim(yp, di, di + H, axis=1) for di in range(3)]
    R = _row_tile(H, rows_target)
    kernel = functools.partial(_conv3x3_ln_kernel, R=R, W=W, eps=eps)
    tap_spec = pl.BlockSpec((1, R, W + 2, Cin), lambda b, r: (b, r, 0, 0))
    rep = lambda b, r: (0, 0)
    return pl.pallas_call(
        kernel,
        out_shape=jax.ShapeDtypeStruct((B, H, W, Cout), jnp.float32),
        grid=(B, H // R),
        in_specs=[tap_spec, tap_spec, tap_spec,
                  pl.BlockSpec((9 * Cin, Cout), rep),
                  pl.BlockSpec((1, Cout), rep),
                  pl.BlockSpec((1, Cout), rep)],
        out_specs=pl.BlockSpec((1, R, W, Cout), lambda b, r: (b, r, 0, 0)),
        compiler_params=pltpu.CompilerParams(
            dimension_semantics=("parallel", "parallel"),
            vmem_limit_bytes=_vmem_limit_bytes()),
    )(*taps, w, gamma.reshape(1, Cout).astype(jnp.float32),
      beta.reshape(1, Cout).astype(jnp.float32))


# ----------------------------------------------------------------------------
# Model glue (window partitioning, block / stage composition)
# ----------------------------------------------------------------------------
def window_partition(x, win):
    B, H, W, C = x.shape
    nh, nw = H // win, W // win
    xw = (x.reshape(B, nh, win, nw, win, C)
           .transpose(0, 1, 3, 2, 4, 5)
           .reshape(B * nh * nw, win * win, C))
    return xw, (nh, nw)


def window_unpartition(xw, win, nh, nw, B, C):
    return (xw.reshape(B, nh, nw, win, win, C)
              .transpose(0, 1, 3, 2, 4, 5)
              .reshape(B, nh * win, nw * win, C))


def attn_block(x, p, num_heads, window_size):
    """ViT block: x + proj(attn(LN(x))) (windowed if window_size>0), then x + MLP(LN(x))."""
    # TODO(synk): decomposed relative position embeddings of the original SAM
    # attention blocks are not included (their class definitions were not provided).
    B, H, W, C = x.shape
    D = C // num_heads
    if window_size > 0:
        # TODO(synk): padding for grids not divisible by window_size is not implemented.
        xw, (nh, nw) = window_partition(x, window_size)              # (nB, S, C)
    else:
        xw = x.reshape(B, H * W, C)
        nh = nw = None
    nB, S, _ = xw.shape
    xw_flat = xw.reshape(nB * S, C)                                  # residual (f32)

    # LN1 fused into the q/k/v projections; softmax scale pre-folded into q_w/q_b.
    q, k, v = qkv_proj_pallas(xw_flat, (p["ln1_g"], p["ln1_b"]),
                              p["q_w"], p["q_b"], p["k_w"], p["k_b"],
                              p["v_w"], p["v_b"])

    def to_heads(t):   # (nB*S, C) -> (nB*heads, S, D)
        return (t.reshape(nB, S, num_heads, D).transpose(0, 2, 1, 3)
                 .reshape(nB * num_heads, S, D))

    o = attention_pallas(to_heads(q), to_heads(k), to_heads(v))
    o = (o.reshape(nB, num_heads, S, D).transpose(0, 2, 1, 3)
          .reshape(nB * S, C))

    # Output projection with the shortcut residual fused into its epilogue (f32 out).
    o = linear_pallas(o, p["proj_w"], bias=p["proj_b"], residual=xw_flat,
                      out_dtype=jnp.float32)

    if window_size > 0:
        x = window_unpartition(o.reshape(nB, window_size, window_size, C),
                               window_size, nh, nw, B, C)
    else:
        x = o.reshape(B, H, W, C)

    x_flat = x.reshape(B * H * W, C)
    # LN2 fused into fc1 (+GELU); shortcut residual fused into fc2 (f32 out).
    h1 = linear_pallas(x_flat, p["fc1_w"], bias=p["fc1_b"], act="gelu",
                       ln=(p["ln2_g"], p["ln2_b"]))
    out = linear_pallas(h1, p["fc2_w"], bias=p["fc2_b"], residual=x_flat,
                        out_dtype=jnp.float32)
    return out.reshape(B, H, W, C)


def channel_projection(x, p):
    """Conv1x1(no bias) -> LayerNorm2d -> Conv3x3(pad=1, no bias) -> LayerNorm2d."""
    B, H, W, C = x.shape
    Cout = p["cp1_w"].shape[1]
    # 1x1 conv with the first LayerNorm2d fused; bf16 intermediate halves writeback.
    y = linear_pallas(x.reshape(B * H * W, C), p["cp1_w"],
                      out_ln=(p["ln2d1_g"], p["ln2d1_b"]),
                      out_dtype=jnp.bfloat16)
    y = y.reshape(B, H, W, Cout)
    # Row-tiled 3x3 conv + second LayerNorm2d.
    return conv3x3_ln_pallas(y, p["cp3_w"], p["ln2d2_g"], p["ln2d2_b"])


def sam_v1_image_encoder(image_bchw, params, cfg):
    """Forward pass.  Input NCHW (like PyTorch); output NCHW (B, out_ch, H, W)."""
    x = jnp.transpose(image_bchw, (0, 2, 3, 1))                      # -> NHWC
    B, Hin, Win, Cin = x.shape
    P = cfg["patch_size"]
    H, W = Hin // P, Win // P
    C = cfg["features"]

    # Patch embedding: stride-P / kernel-P Conv2d == non-overlapping patch matmul.
    patches = (x.reshape(B, H, P, W, P, Cin)
                .transpose(0, 1, 3, 2, 4, 5)
                .reshape(B * H * W, P * P * Cin)).astype(jnp.bfloat16)
    # Position embedding fused as a residual whose rows are reused across the batch.
    # TODO(synk): bilinear-antialias rescaling of pos-embed for mismatched grids not implemented.
    tok = linear_pallas(patches, params["patch_w"], bias=params["patch_b"],
                        residual=params["pos"], res_rows=H * W,
                        out_dtype=jnp.float32)
    x = tok.reshape(B, H, W, C)

    # Transformer stages: (num_blocks-1) windowed blocks + 1 global block each.
    for stage in params["stages"]:
        for blk in stage["win_blocks"]:
            x = attn_block(x, blk, cfg["num_heads"], cfg["window_size"])
        x = attn_block(x, stage["global_block"], cfg["num_heads"], 0)

    y = channel_projection(x, params["cproj"])
    return jnp.transpose(y, (0, 3, 1, 2))                            # -> NCHW


# ----------------------------------------------------------------------------
# Deterministic parameter initialization (matmul weights in bf16, rest f32).
# q/k/v weights are split from a packed qkv weight at prep time, with the
# 1/sqrt(D) softmax scale folded into q_w/q_b (host-side, one-off).
# ----------------------------------------------------------------------------
def init_params(key, cfg):
    C = cfg["features"]
    P = cfg["patch_size"]
    Cin = cfg["in_channels"]
    gh, gw = cfg["grid_hw"]
    Cout = cfg["out_channels"]
    num_heads = cfg["num_heads"]
    scale = float(C // num_heads) ** -0.5
    keys = iter(jax.random.split(key, 256))

    def w(shape, s=0.02, dtype=jnp.bfloat16):
        return (s * jax.random.normal(next(keys), shape)).astype(dtype)

    def make_block():
        qkv_w = w((C, 3 * C))
        qkv_b = jnp.zeros((3 * C,), jnp.float32)
        return {
            "ln1_g": jnp.ones((C,), jnp.float32), "ln1_b": jnp.zeros((C,), jnp.float32),
            "q_w": (qkv_w[:, :C].astype(jnp.float32) * scale).astype(jnp.bfloat16),
            "q_b": qkv_b[:C] * scale,
            "k_w": qkv_w[:, C:2 * C], "k_b": qkv_b[C:2 * C],
            "v_w": qkv_w[:, 2 * C:], "v_b": qkv_b[2 * C:],
            "proj_w": w((C, C)), "proj_b": jnp.zeros((C,), jnp.float32),
            "ln2_g": jnp.ones((C,), jnp.float32), "ln2_b": jnp.zeros((C,), jnp.float32),
            "fc1_w": w((C, 4 * C)), "fc1_b": jnp.zeros((4 * C,), jnp.float32),
            "fc2_w": w((4 * C, C)), "fc2_b": jnp.zeros((C,), jnp.float32),
        }

    params = {
        "patch_w": w((P * P * Cin, C)),               # flattened Conv2d(P,P,stride=P) weight
        "patch_b": jnp.zeros((C,), jnp.float32),
        "pos": w((gh * gw, C), dtype=jnp.float32),    # position embedding (HW, C)
        "stages": [],
        "cproj": {
            "cp1_w": w((C, Cout)),                    # Conv1x1 (no bias)
            "ln2d1_g": jnp.ones((Cout,), jnp.float32),
            "ln2d1_b": jnp.zeros((Cout,), jnp.float32),
            "cp3_w": w((9 * Cout, Cout)),             # Conv3x3 (no bias), tap-major layout
            "ln2d2_g": jnp.ones((Cout,), jnp.float32),
            "ln2d2_b": jnp.zeros((Cout,), jnp.float32),
        },
    }
    n_win = max(0, cfg["blocks_per_stage"] - 1)
    for _ in range(cfg["num_stages"]):
        params["stages"].append({
            "win_blocks": [make_block() for _ in range(n_win)],
            "global_block": make_block(),
        })
    return params


# ----------------------------------------------------------------------------
if __name__ == "__main__":
    # Small synthetic config consistent with SAMV1ImageEncoder
    # (features_per_token=32, num_blocks=4, num_heads=4, window_size=4,
    #  base_patch_grid_hw=(8,8), output_channels=16, patch_size_px=4, num_stages=2)
    cfg = dict(
        features=32, num_heads=4, num_stages=2, blocks_per_stage=2,
        window_size=4, grid_hw=(8, 8), patch_size=4, in_channels=3,
        out_channels=16,
    )
    key = jax.random.PRNGKey(0)
    pkey, xkey = jax.random.split(key)
    params = init_params(pkey, cfg)

    B = 2
    Hin = cfg["grid_hw"][0] * cfg["patch_size"]   # 32
    Win = cfg["grid_hw"][1] * cfg["patch_size"]   # 32
    image_bchw = jax.random.normal(xkey, (B, cfg["in_channels"], Hin, Win), jnp.float32)

    fwd = jax.jit(functools.partial(sam_v1_image_encoder, cfg=cfg))
    out = fwd(image_bchw, params)
    out = jax.block_until_ready(out)

    assert out.shape == (B, cfg["out_channels"], cfg["grid_hw"][0], cfg["grid_hw"][1]), out.shape
    assert out.dtype == jnp.float32
    assert bool(jnp.all(jnp.isfinite(out)))
    print("KERNEL_OK")
</pallas_src>

<mosaic_0001>
module attributes {stable_mosaic.version = 11 : i64} {
  func.func @_linear_kernel(%arg0: i32, %arg1: memref<64x48xbf16, #tpu.memory_space<vmem>>, %arg2: memref<48x32xbf16, #tpu.memory_space<vmem>>, %arg3: memref<1x32xf32, #tpu.memory_space<vmem>>, %arg4: memref<64x32xf32, #tpu.memory_space<vmem>>, %arg5: memref<64x32xf32, #tpu.memory_space<vmem>>) attributes {dimension_semantics = [#tpu.dimension_semantics<parallel>], iteration_bounds = array<i64: 2>, scalar_prefetch = 0 : i64, scratch_operands = 0 : i64, tpu.core_type = #tpu.core_type<tc>, window_params = [{transform_indices = @transform_0, window_bounds = array<i64: 64, 48>}, {pipeline_mode = #tpu.pipeline_mode<synchronous>, transform_indices = @transform_1, window_bounds = array<i64: 48, 32>}, {pipeline_mode = #tpu.pipeline_mode<synchronous>, transform_indices = @transform_2, window_bounds = array<i64: 1, 32>}, {transform_indices = @transform_3, window_bounds = array<i64: 64, 32>}, {transform_indices = @transform_4, window_bounds = array<i64: 64, 32>}]} {
    %c0 = arith.constant 0 : index
    %c0_0 = arith.constant 0 : index
    %0 = vector.load %arg1[%c0, %c0_0] : memref<64x48xbf16, #tpu.memory_space<vmem>>, vector<64x48xbf16>
    %c0_1 = arith.constant 0 : index
    %c0_2 = arith.constant 0 : index
    %1 = vector.load %arg2[%c0_1, %c0_2] : memref<48x32xbf16, #tpu.memory_space<vmem>>, vector<48x32xbf16>
    %cst = arith.constant dense<0.000000e+00> : vector<64x32xf32>
    %2 = tpu.matmul %0, %1, %cst {dimension_numbers = #tpu.dot_dimension_numbers<[1], [0], [0], [1], [0, 0, 1, 1], [], []>} : vector<64x48xbf16>, vector<48x32xbf16>, vector<64x32xf32> -> vector<64x32xf32>
    %c0_3 = arith.constant 0 : index
    %c0_4 = arith.constant 0 : index
    %3 = vector.load %arg3[%c0_3, %c0_4] : memref<1x32xf32, #tpu.memory_space<vmem>>, vector<1x32xf32>
    %4 = vector.broadcast %3 : vector<1x32xf32> to vector<64x32xf32>
    %5 = arith.addf %2, %4 : vector<64x32xf32>
    %c0_5 = arith.constant 0 : index
    %c0_6 = arith.constant 0 : index
    %6 = vector.load %arg4[%c0_5, %c0_6] : memref<64x32xf32, #tpu.memory_space<vmem>>, vector<64x32xf32>
    %7 = arith.addf %5, %6 : vector<64x32xf32>
    %c0_7 = arith.constant 0 : index
    %c0_8 = arith.constant 0 : index
    %8 = vector.load %arg5[%c0_7, %c0_8] : memref<64x32xf32, #tpu.memory_space<vmem>>, vector<64x32xf32>
    tpu.vector_store %arg5[%c0_7, %c0_8], %7 {strides = array<i32>} : memref<64x32xf32, #tpu.memory_space<vmem>>, vector<64x32xf32>,
    return
  }
  func.func @transform_0(%arg0: i32) -> (i32, i32) {
    %c0_i32 = arith.constant 0 : i32
    %c0_i32_0 = arith.constant 0 : i32
    return %arg0, %c0_i32 : i32, i32
  }
  func.func @transform_1(%arg0: i32) -> (i32, i32) {
    %c0_i32 = arith.constant 0 : i32
    %c0_i32_0 = arith.constant 0 : i32
    %c0_i32_1 = arith.constant 0 : i32
    return %c0_i32, %c0_i32_0 : i32, i32
  }
  func.func @transform_2(%arg0: i32) -> (i32, i32) {
    %c0_i32 = arith.constant 0 : i32
    %c0_i32_0 = arith.constant 0 : i32
    %c0_i32_1 = arith.constant 0 : i32
    return %c0_i32, %c0_i32_0 : i32, i32
  }
  func.func @transform_3(%arg0: i32) -> (i32, i32) {
    %c1_i32 = arith.constant 1 : i32
    %c0_i32 = arith.constant 0 : i32
    %0 = arith.cmpi eq, %c1_i32, %c0_i32 : i32
    %c1_i32_0 = arith.constant 1 : i32
    %1 = arith.select %0, %c1_i32_0, %c1_i32 : i32
    %2 = arith.remsi %arg0, %1 : i32
    %c0_i32_1 = arith.constant 0 : i32
    %3 = arith.cmpi ne, %2, %c0_i32_1 : i32
    %c0_i32_2 = arith.constant 0 : i32
    %4 = arith.cmpi slt, %2, %c0_i32_2 : i32
    %c0_i32_3 = arith.constant 0 : i32
    %5 = arith.cmpi slt, %1, %c0_i32_3 : i32
    %6 = arith.xori %4, %5 : i1
    %7 = arith.andi %6, %3 : i1
    %8 = arith.addi %2, %1 : i32
    %9 = arith.select %7, %8, %2 : i32
    %c0_i32_4 = arith.constant 0 : i32
    %c0_i32_5 = arith.constant 0 : i32
    return %9, %c0_i32_4 : i32, i32
  }
  func.func @transform_4(%arg0: i32) -> (i32, i32) {
    %c0_i32 = arith.constant 0 : i32
    %c0_i32_0 = arith.constant 0 : i32
    return %arg0, %c0_i32 : i32, i32
  }
}

module attributes {stable_mosaic.version = 11 : i64} {
  func.func @_qkv_kernel(%arg0: i32, %arg1: memref<128x32xf32, #tpu.memory_space<vmem>>, %arg2: memref<1x32xf32, #tpu.memory_space<vmem>>, %arg3: memref<1x32xf32, #tpu.memory_space<vmem>>, %arg4: memref<32x32xbf16, #tpu.memory_space<vmem>>, %arg5: memref<1x32xf32, #tpu.memory_space<vmem>>, %arg6: memref<32x32xbf16, #tpu.memory_space<vmem>>, %arg7: memref<1x32xf32, #tpu.memory_space<vmem>>, %arg8: memref<32x32xbf16, #tpu.memory_space<vmem>>, %arg9: memref<1x32xf32, #tpu.memory_space<vmem>>, %arg10: memref<128x32xbf16, #tpu.memory_space<vmem>>, %arg11: memref<128x32xbf16, #tpu.memory_space<vmem>>, %arg12: memref<128x32xbf16, #tpu.memory_space<vmem>>) attributes {dimension_semantics = [#tpu.dimension_semantics<parallel>], iteration_bounds = array<i64: 1>, scalar_prefetch = 0 : i64, scratch_operands = 0 : i64, tpu.core_type = #tpu.core_type<tc>, window_params = [{transform_indices = @transform_0, window_bounds = array<i64: 128, 32>}, {pipeline_mode = #tpu.pipeline_mode<synchronous>, transform_indices = @transform_1, window_bounds = array<i64: 1, 32>}, {pipeline_mode = #tpu.pipeline_mode<synchronous>, transform_indices = @transform_2, window_bounds = array<i64: 1, 32>}, {pipeline_mode = #tpu.pipeline_mode<synchronous>, transform_indices = @transform_3, window_bounds = array<i64: 32, 32>}, {pipeline_mode = #tpu.pipeline_mode<synchronous>, transform_indices = @transform_4, window_bounds = array<i64: 1, 32>}, {pipeline_mode = #tpu.pipeline_mode<synchronous>, transform_indices = @transform_5, window_bounds = array<i64: 32, 32>}, {pipeline_mode = #tpu.pipeline_mode<synchronous>, transform_indices = @transform_6, window_bounds = array<i64: 1, 32>}, {pipeline_mode = #tpu.pipeline_mode<synchronous>, transform_indices = @transform_7, window_bounds = array<i64: 32, 32>}, {pipeline_mode = #tpu.pipeline_mode<synchronous>, transform_indices = @transform_8, window_bounds = array<i64: 1, 32>}, {transform_indices = @transform_9, window_bounds = array<i64: 128, 32>}, {transform_indices = @transform_10, window_bounds = array<i64: 128, 32>}, {transform_indices = @transform_11, window_bounds = array<i64: 128, 32>}]} {
    %c0 = arith.constant 0 : index
    %c0_0 = arith.constant 0 : index
    %0 = vector.load %arg1[%c0, %c0_0] : memref<128x32xf32, #tpu.memory_space<vmem>>, vector<128x32xf32>
    %cst = arith.constant dense<0.000000e+00> : vector<128xf32>
    %1 = vector.multi_reduction <add>, %0, %cst [1] : vector<128x32xf32> to vector<128xf32>
    %2 = vector.shape_cast %1 : vector<128xf32> to vector<128x1xf32>
    %cst_1 = arith.constant 3.200000e+01 : f32
    %3 = vector.broadcast %cst_1 : f32 to vector<128x1xf32>
    %4 = arith.divf %2, %3 : vector<128x1xf32>
    %5 = vector.broadcast %4 : vector<128x1xf32> to vector<128x32xf32>
    %6 = arith.subf %0, %5 : vector<128x32xf32>
    %7 = arith.mulf %6, %6 : vector<128x32xf32>
    %cst_2 = arith.constant dense<0.000000e+00> : vector<128xf32>
    %8 = vector.multi_reduction <add>, %7, %cst_2 [1] : vector<128x32xf32> to vector<128xf32>
    %9 = vector.shape_cast %8 : vector<128xf32> to vector<128x1xf32>
    %cst_3 = arith.constant 3.200000e+01 : f32
    %10 = vector.broadcast %cst_3 : f32 to vector<128x1xf32>
    %11 = arith.divf %9, %10 : vector<128x1xf32>
    %cst_4 = arith.constant 9.99999997E-7 : f32
    %12 = vector.broadcast %cst_4 : f32 to vector<128x1xf32>
    %13 = arith.addf %11, %12 : vector<128x1xf32>
    %14 = math.rsqrt %13 : vector<128x1xf32>
    %15 = vector.broadcast %14 : vector<128x1xf32> to vector<128x32xf32>
    %16 = arith.mulf %6, %15 : vector<128x32xf32>
    %c0_5 = arith.constant 0 : index
    %c0_6 = arith.constant 0 : index
    %17 = vector.load %arg2[%c0_5, %c0_6] : memref<1x32xf32, #tpu.memory_space<vmem>>, vector<1x32xf32>
    %18 = vector.broadcast %17 : vector<1x32xf32> to vector<128x32xf32>
    %19 = arith.mulf %16, %18 : vector<128x32xf32>
    %c0_7 = arith.constant 0 : index
    %c0_8 = arith.constant 0 : index
    %20 = vector.load %arg3[%c0_7, %c0_8] : memref<1x32xf32, #tpu.memory_space<vmem>>, vector<1x32xf32>
    %21 = vector.broadcast %20 : vector<1x32xf32> to vector<128x32xf32>
    %22 = arith.addf %19, %21 : vector<128x32xf32>
    %23 = arith.truncf %22 : vector<128x32xf32> to vector<128x32xbf16>
    %c0_9 = arith.constant 0 : index
    %c0_10 = arith.constant 0 : index
    %24 = vector.load %arg4[%c0_9, %c0_10] : memref<32x32xbf16, #tpu.memory_space<vmem>>, vector<32x32xbf16>
    %cst_11 = arith.constant dense<0.000000e+00> : vector<128x32xf32>
    %25 = tpu.matmul %23, %24, %cst_11 {dimension_numbers = #tpu.dot_dimension_numbers<[1], [0], [0], [1], [0, 0, 1, 1], [], []>} : vector<128x32xbf16>, vector<32x32xbf16>, vector<128x32xf32> -> vector<128x32xf32>
    %c0_12 = arith.constant 0 : index
    %c0_13 = arith.constant 0 : index
    %26 = vector.load %arg5[%c0_12, %c0_13] : memref<1x32xf32, #tpu.memory_space<vmem>>, vector<1x32xf32>
    %27 = vector.broadcast %26 : vector<1x32xf32> to vector<128x32xf32>
    %28 = arith.addf %25, %27 : vector<128x32xf32>
    %29 = arith.truncf %28 : vector<128x32xf32> to vector<128x32xbf16>
    %c0_14 = arith.constant 0 : index
    %c0_15 = arith.constant 0 : index
    %30 = vector.load %arg10[%c0_14, %c0_15] : memref<128x32xbf16, #tpu.memory_space<vmem>>, vector<128x32xbf16>
    tpu.vector_store %arg10[%c0_14, %c0_15], %29 {strides = array<i32>} : memref<128x32xbf16, #tpu.memory_space<vmem>>, vector<128x32xbf16>,
    %c0_16 = arith.constant 0 : index
    %c0_17 = arith.constant 0 : index
    %31 = vector.load %arg6[%c0_16, %c0_17] : memref<32x32xbf16, #tpu.memory_space<vmem>>, vector<32x32xbf16>
    %cst_18 = arith.constant dense<0.000000e+00> : vector<128x32xf32>
    %32 = tpu.matmul %23, %31, %cst_18 {dimension_numbers = #tpu.dot_dimension_numbers<[1], [0], [0], [1], [0, 0, 1, 1], [], []>} : vector<128x32xbf16>, vector<32x32xbf16>, vector<128x32xf32> -> vector<128x32xf32>
    %c0_19 = arith.constant 0 : index
    %c0_20 = arith.constant 0 : index
    %33 = vector.load %arg7[%c0_19, %c0_20] : memref<1x32xf32, #tpu.memory_space<vmem>>, vector<1x32xf32>
    %34 = vector.broadcast %33 : vector<1x32xf32> to vector<128x32xf32>
    %35 = arith.addf %32, %34 : vector<128x32xf32>
    %36 = arith.truncf %35 : vector<128x32xf32> to vector<128x32xbf16>
    %c0_21 = arith.constant 0 : index
    %c0_22 = arith.constant 0 : index
    %37 = vector.load %arg11[%c0_21, %c0_22] : memref<128x32xbf16, #tpu.memory_space<vmem>>, vector<128x32xbf16>
    tpu.vector_store %arg11[%c0_21, %c0_22], %36 {strides = array<i32>} : memref<128x32xbf16, #tpu.memory_space<vmem>>, vector<128x32xbf16>,
    %c0_23 = arith.constant 0 : index
    %c0_24 = arith.constant 0 : index
    %38 = vector.load %arg8[%c0_23, %c0_24] : memref<32x32xbf16, #tpu.memory_space<vmem>>, vector<32x32xbf16>
    %cst_25 = arith.constant dense<0.000000e+00> : vector<128x32xf32>
    %39 = tpu.matmul %23, %38, %cst_25 {dimension_numbers = #tpu.dot_dimension_numbers<[1], [0], [0], [1], [0, 0, 1, 1], [], []>} : vector<128x32xbf16>, vector<32x32xbf16>, vector<128x32xf32> -> vector<128x32xf32>
    %c0_26 = arith.constant 0 : index
    %c0_27 = arith.constant 0 : index
    %40 = vector.load %arg9[%c0_26, %c0_27] : memref<1x32xf32, #tpu.memory_space<vmem>>, vector<1x32xf32>
    %41 = vector.broadcast %40 : vector<1x32xf32> to vector<128x32xf32>
    %42 = arith.addf %39, %41 : vector<128x32xf32>
    %43 = arith.truncf %42 : vector<128x32xf32> to vector<128x32xbf16>
    %c0_28 = arith.constant 0 : index
    %c0_29 = arith.constant 0 : index
    %44 = vector.load %arg12[%c0_28, %c0_29] : memref<128x32xbf16, #tpu.memory_space<vmem>>, vector<128x32xbf16>
    tpu.vector_store %arg12[%c0_28, %c0_29], %43 {strides = array<i32>} : memref<128x32xbf16, #tpu.memory_space<vmem>>, vector<128x32xbf16>,
    return
  }
  func.func @transform_0(%arg0: i32) -> (i32, i32) {
    %c0_i32 = arith.constant 0 : i32
    %c0_i32_0 = arith.constant 0 : i32
    return %arg0, %c0_i32 : i32, i32
  }
  func.func @transform_1(%arg0: i32) -> (i32, i32) {
    %c0_i32 = arith.constant 0 : i32
    %c0_i32_0 = arith.constant 0 : i32
    %c0_i32_1 = arith.constant 0 : i32
    return %c0_i32, %c0_i32_0 : i32, i32
  }
  func.func @transform_2(%arg0: i32) -> (i32, i32) {
    %c0_i32 = arith.constant 0 : i32
    %c0_i32_0 = arith.constant 0 : i32
    %c0_i32_1 = arith.constant 0 : i32
    return %c0_i32, %c0_i32_0 : i32, i32
  }
  func.func @transform_3(%arg0: i32) -> (i32, i32) {
    %c0_i32 = arith.constant 0 : i32
    %c0_i32_0 = arith.constant 0 : i32
    %c0_i32_1 = arith.constant 0 : i32
    return %c0_i32, %c0_i32_0 : i32, i32
  }
  func.func @transform_4(%arg0: i32) -> (i32, i32) {
    %c0_i32 = arith.constant 0 : i32
    %c0_i32_0 = arith.constant 0 : i32
    %c0_i32_1 = arith.constant 0 : i32
    return %c0_i32, %c0_i32_0 : i32, i32
  }
  func.func @transform_5(%arg0: i32) -> (i32, i32) {
    %c0_i32 = arith.constant 0 : i32
    %c0_i32_0 = arith.constant 0 : i32
    %c0_i32_1 = arith.constant 0 : i32
    return %c0_i32, %c0_i32_0 : i32, i32
  }
  func.func @transform_6(%arg0: i32) -> (i32, i32) {
    %c0_i32 = arith.constant 0 : i32
    %c0_i32_0 = arith.constant 0 : i32
    %c0_i32_1 = arith.constant 0 : i32
    return %c0_i32, %c0_i32_0 : i32, i32
  }
  func.func @transform_7(%arg0: i32) -> (i32, i32) {
    %c0_i32 = arith.constant 0 : i32
    %c0_i32_0 = arith.constant 0 : i32
    %c0_i32_1 = arith.constant 0 : i32
    return %c0_i32, %c0_i32_0 : i32, i32
  }
  func.func @transform_8(%arg0: i32) -> (i32, i32) {
    %c0_i32 = arith.constant 0 : i32
    %c0_i32_0 = arith.constant 0 : i32
    %c0_i32_1 = arith.constant 0 : i32
    return %c0_i32, %c0_i32_0 : i32, i32
  }
  func.func @transform_9(%arg0: i32) -> (i32, i32) {
    %c0_i32 = arith.constant 0 : i32
    %c0_i32_0 = arith.constant 0 : i32
    return %arg0, %c0_i32 : i32, i32
  }
  func.func @transform_10(%arg0: i32) -> (i32, i32) {
    %c0_i32 = arith.constant 0 : i32
    %c0_i32_0 = arith.constant 0 : i32
    return %arg0, %c0_i32 : i32, i32
  }
  func.func @transform_11(%arg0: i32) -> (i32, i32) {
    %c0_i32 = arith.constant 0 : i32
    %c0_i32_0 = arith.constant 0 : i32
    return %arg0, %c0_i32 : i32, i32
  }
}

module attributes {stable_mosaic.version = 11 : i64} {
  func.func @_attn_kernel(%arg0: i32, %arg1: i32, %arg2: i32, %arg3: memref<1x16x8xbf16, #tpu.memory_space<vmem>>, %arg4: memref<1x16x8xbf16, #tpu.memory_space<vmem>>, %arg5: memref<1x16x8xbf16, #tpu.memory_space<vmem>>, %arg6: memref<1x16x8xbf16, #tpu.memory_space<vmem>>, %arg7: memref<16x1xf32, #tpu.memory_space<vmem>>, %arg8: memref<16x1xf32, #tpu.memory_space<vmem>>, %arg9: memref<16x8xf32, #tpu.memory_space<vmem>>) attributes {dimension_semantics = [#tpu.dimension_semantics<parallel>, #tpu.dimension_semantics<parallel>, #tpu.dimension_semantics<arbitrary>], iteration_bounds = array<i64: 32, 1, 1>, scalar_prefetch = 0 : i64, scratch_operands = 3 : i64, tpu.core_type = #tpu.core_type<tc>, window_params = [{transform_indices = @transform_0, window_bounds = array<i64: 1, 16, 8>}, {transform_indices = @transform_1, window_bounds = array<i64: 1, 16, 8>}, {transform_indices = @transform_2, window_bounds = array<i64: 1, 16, 8>}, {transform_indices = @transform_3, window_bounds = array<i64: 1, 16, 8>}]} {
    %c0_i32 = arith.constant 0 : i32
    %0 = arith.cmpi eq, %arg2, %c0_i32 : i32
    %1 = arith.extui %0 : i1 to i32
    %c0_i32_0 = arith.constant 0 : i32
    %2 = arith.cmpi ne, %1, %c0_i32_0 : i32
    scf.if %2 {
      %cst_26 = arith.constant -1.000000e+30 : f32
      %36 = vector.broadcast %cst_26 : f32 to vector<16x1xf32>
      %c0_27 = arith.constant 0 : index
      %c0_28 = arith.constant 0 : index
      %37 = vector.load %arg7[%c0_27, %c0_28] : memref<16x1xf32, #tpu.memory_space<vmem>>, vector<16x1xf32>
      tpu.vector_store %arg7[%c0_27, %c0_28], %36 {strides = array<i32>} : memref<16x1xf32, #tpu.memory_space<vmem>>, vector<16x1xf32>,
      %cst_29 = arith.constant 0.000000e+00 : f32
      %38 = vector.broadcast %cst_29 : f32 to vector<16x1xf32>
      %c0_30 = arith.constant 0 : index
      %c0_31 = arith.constant 0 : index
      %39 = vector.load %arg8[%c0_30, %c0_31] : memref<16x1xf32, #tpu.memory_space<vmem>>, vector<16x1xf32>
      tpu.vector_store %arg8[%c0_30, %c0_31], %38 {strides = array<i32>} : memref<16x1xf32, #tpu.memory_space<vmem>>, vector<16x1xf32>,
      %cst_32 = arith.constant 0.000000e+00 : f32
      %40 = vector.broadcast %cst_32 : f32 to vector<16x8xf32>
      %c0_33 = arith.constant 0 : index
      %c0_34 = arith.constant 0 : index
      %41 = vector.load %arg9[%c0_33, %c0_34] : memref<16x8xf32, #tpu.memory_space<vmem>>, vector<16x8xf32>
      tpu.vector_store %arg9[%c0_33, %c0_34], %40 {strides = array<i32>} : memref<16x8xf32, #tpu.memory_space<vmem>>, vector<16x8xf32>,
    } else {
    }
    %c0 = arith.constant 0 : index
    %c0_1 = arith.constant 0 : index
    %c0_2 = arith.constant 0 : index
    %3 = vector.load %arg3[%c0, %c0_1, %c0_2] : memref<1x16x8xbf16, #tpu.memory_space<vmem>>, vector<1x16x8xbf16>
    %4 = vector.shape_cast %3 : vector<1x16x8xbf16> to vector<16x8xbf16>
    %c0_3 = arith.constant 0 : index
    %c0_4 = arith.constant 0 : index
    %c0_5 = arith.constant 0 : index
    %5 = vector.load %arg4[%c0_3, %c0_4, %c0_5] : memref<1x16x8xbf16, #tpu.memory_space<vmem>>, vector<1x16x8xbf16>
    %6 = vector.shape_cast %5 : vector<1x16x8xbf16> to vector<16x8xbf16>
    %c0_6 = arith.constant 0 : index
    %c0_7 = arith.constant 0 : index
    %c0_8 = arith.constant 0 : index
    %7 = vector.load %arg5[%c0_6, %c0_7, %c0_8] : memref<1x16x8xbf16, #tpu.memory_space<vmem>>, vector<1x16x8xbf16>
    %8 = vector.shape_cast %7 : vector<1x16x8xbf16> to vector<16x8xbf16>
    %cst = arith.constant dense<0.000000e+00> : vector<16x16xf32>
    %9 = tpu.matmul %4, %6, %cst {dimension_numbers = #tpu.dot_dimension_numbers<[1], [1], [0], [0], [0, 0, 1, 0], [], []>} : vector<16x8xbf16>, vector<16x8xbf16>, vector<16x16xf32> -> vector<16x16xf32>
    %c0_9 = arith.constant 0 : index
    %c0_10 = arith.constant 0 : index
    %10 = vector.load %arg7[%c0_9, %c0_10] : memref<16x1xf32, #tpu.memory_space<vmem>>, vector<16x1xf32>
    %cst_11 = arith.constant dense<0xFF800000> : vector<16xf32>
    %11 = vector.multi_reduction <maximumf>, %9, %cst_11 [1] : vector<16x16xf32> to vector<16xf32>
    %12 = vector.shape_cast %11 : vector<16xf32> to vector<16x1xf32>
    %13 = arith.maximumf %10, %12 : vector<16x1xf32>
    %14 = arith.subf %10, %13 : vector<16x1xf32>
    %15 = math.exp %14 : vector<16x1xf32>
    %16 = vector.broadcast %13 : vector<16x1xf32> to vector<16x16xf32>
    %17 = arith.subf %9, %16 : vector<16x16xf32>
    %18 = math.exp %17 : vector<16x16xf32>
    %c0_12 = arith.constant 0 : index
    %c0_13 = arith.constant 0 : index
    %19 = vector.load %arg8[%c0_12, %c0_13] : memref<16x1xf32, #tpu.memory_space<vmem>>, vector<16x1xf32>
    %20 = arith.mulf %15, %19 : vector<16x1xf32>
    %cst_14 = arith.constant dense<0.000000e+00> : vector<16xf32>
    %21 = vector.multi_reduction <add>, %18, %cst_14 [1] : vector<16x16xf32> to vector<16xf32>
    %22 = vector.shape_cast %21 : vector<16xf32> to vector<16x1xf32>
    %23 = arith.addf %20, %22 : vector<16x1xf32>
    %c0_15 = arith.constant 0 : index
    %c0_16 = arith.constant 0 : index
    %24 = vector.load %arg8[%c0_15, %c0_16] : memref<16x1xf32, #tpu.memory_space<vmem>>, vector<16x1xf32>
    tpu.vector_store %arg8[%c0_15, %c0_16], %23 {strides = array<i32>} : memref<16x1xf32, #tpu.memory_space<vmem>>, vector<16x1xf32>,
    %c0_17 = arith.constant 0 : index
    %c0_18 = arith.constant 0 : index
    %25 = vector.load %arg9[%c0_17, %c0_18] : memref<16x8xf32, #tpu.memory_space<vmem>>, vector<16x8xf32>
    %26 = vector.broadcast %15 : vector<16x1xf32> to vector<16x8xf32>
    %27 = arith.mulf %26, %25 : vector<16x8xf32>
    %28 = arith.truncf %18 : vector<16x16xf32> to vector<16x16xbf16>
    %cst_19 = arith.constant dense<0.000000e+00> : vector<16x8xf32>
    %29 = tpu.matmul %28, %8, %cst_19 {dimension_numbers = #tpu.dot_dimension_numbers<[1], [0], [0], [1], [0, 0, 1, 1], [], []>} : vector<16x16xbf16>, vector<16x8xbf16>, vector<16x8xf32> -> vector<16x8xf32>
    %30 = arith.addf %27, %29 : vector<16x8xf32>
    %c0_20 = arith.constant 0 : index
    %c0_21 = arith.constant 0 : index
    %31 = vector.load %arg9[%c0_20, %c0_21] : memref<16x8xf32, #tpu.memory_space<vmem>>, vector<16x8xf32>
    tpu.vector_store %arg9[%c0_20, %c0_21], %30 {strides = array<i32>} : memref<16x8xf32, #tpu.memory_space<vmem>>, vector<16x8xf32>,
    %c0_22 = arith.constant 0 : index
    %c0_23 = arith.constant 0 : index
    %32 = vector.load %arg7[%c0_22, %c0_23] : memref<16x1xf32, #tpu.memory_space<vmem>>, vector<16x1xf32>
    tpu.vector_store %arg7[%c0_22, %c0_23], %13 {strides = array<i32>} : memref<16x1xf32, #tpu.memory_space<vmem>>, vector<16x1xf32>,
    %c0_i32_24 = arith.constant 0 : i32
    %33 = arith.cmpi eq, %arg2, %c0_i32_24 : i32
    %34 = arith.extui %33 : i1 to i32
    %c0_i32_25 = arith.constant 0 : i32
    %35 = arith.cmpi ne, %34, %c0_i32_25 : i32
    scf.if %35 {
      %c0_26 = arith.constant 0 : index
      %c0_27 = arith.constant 0 : index
      %36 = vector.load %arg9[%c0_26, %c0_27] : memref<16x8xf32, #tpu.memory_space<vmem>>, vector<16x8xf32>
      %c0_28 = arith.constant 0 : index
      %c0_29 = arith.constant 0 : index
      %37 = vector.load %arg8[%c0_28, %c0_29] : memref<16x1xf32, #tpu.memory_space<vmem>>, vector<16x1xf32>
      %38 = tpu.reciprocal %37 {approx = true} : vector<16x1xf32> -> vector<16x1xf32>
      %39 = vector.broadcast %38 : vector<16x1xf32> to vector<16x8xf32>
      %40 = arith.mulf %36, %39 : vector<16x8xf32>
      %41 = arith.truncf %40 : vector<16x8xf32> to vector<16x8xbf16>
      %c0_30 = arith.constant 0 : index
      %c0_31 = arith.constant 0 : index
      %c0_32 = arith.constant 0 : index
      %42 = vector.load %arg6[%c0_30, %c0_31, %c0_32] : memref<1x16x8xbf16, #tpu.memory_space<vmem>>, vector<1x16x8xbf16>
      %43 = vector.shape_cast %42 : vector<1x16x8xbf16> to vector<16x8xbf16>
      %44 = vector.shape_cast %41 : vector<16x8xbf16> to vector<1x16x8xbf16>
      tpu.vector_store %arg6[%c0_30, %c0_31, %c0_32], %44 {strides = array<i32>} : memref<1x16x8xbf16, #tpu.memory_space<vmem>>, vector<1x16x8xbf16>,
    } else {
    }
    return
  }
  func.func @transform_0(%arg0: i32, %arg1: i32, %arg2: i32) -> (i32, i32, i32) {
    %c0_i32 = arith.constant 0 : i32
    %c0_i32_0 = arith.constant 0 : i32
    return %arg0, %arg1, %c0_i32 : i32, i32, i32
  }
  func.func @transform_1(%arg0: i32, %arg1: i32, %arg2: i32) -> (i32, i32, i32) {
    %c0_i32 = arith.constant 0 : i32
    %c0_i32_0 = arith.constant 0 : i32
    return %arg0, %arg2, %c0_i32 : i32, i32, i32
  }
  func.func @transform_2(%arg0: i32, %arg1: i32, %arg2: i32) -> (i32, i32, i32) {
    %c0_i32 = arith.constant 0 : i32
    %c0_i32_0 = arith.constant 0 : i32
    return %arg0, %arg2, %c0_i32 : i32, i32, i32
  }
  func.func @transform_3(%arg0: i32, %arg1: i32, %arg2: i32) -> (i32, i32, i32) {
    %c0_i32 = arith.constant 0 : i32
    %c0_i32_0 = arith.constant 0 : i32
    return %arg0, %arg1, %c0_i32 : i32, i32, i32
  }
}

module attributes {stable_mosaic.version = 11 : i64} {
  func.func @_linear_kernel(%arg0: i32, %arg1: memref<128x32xbf16, #tpu.memory_space<vmem>>, %arg2: memref<32x32xbf16, #tpu.memory_space<vmem>>, %arg3: memref<1x32xf32, #tpu.memory_space<vmem>>, %arg4: memref<128x32xf32, #tpu.memory_space<vmem>>, %arg5: memref<128x32xf32, #tpu.memory_space<vmem>>) attributes {dimension_semantics = [#tpu.dimension_semantics<parallel>], iteration_bounds = array<i64: 1>, scalar_prefetch = 0 : i64, scratch_operands = 0 : i64, tpu.core_type = #tpu.core_type<tc>, window_params = [{transform_indices = @transform_0, window_bounds = array<i64: 128, 32>}, {pipeline_mode = #tpu.pipeline_mode<synchronous>, transform_indices = @transform_1, window_bounds = array<i64: 32, 32>}, {pipeline_mode = #tpu.pipeline_mode<synchronous>, transform_indices = @transform_2, window_bounds = array<i64: 1, 32>}, {transform_indices = @transform_3, window_bounds = array<i64: 128, 32>}, {transform_indices = @transform_4, window_bounds = array<i64: 128, 32>}]} {
    %c0 = arith.constant 0 : index
    %c0_0 = arith.constant 0 : index
    %0 = vector.load %arg1[%c0, %c0_0] : memref<128x32xbf16, #tpu.memory_space<vmem>>, vector<128x32xbf16>
    %c0_1 = arith.constant 0 : index
    %c0_2 = arith.constant 0 : index
    %1 = vector.load %arg2[%c0_1, %c0_2] : memref<32x32xbf16, #tpu.memory_space<vmem>>, vector<32x32xbf16>
    %cst = arith.constant dense<0.000000e+00> : vector<128x32xf32>
    %2 = tpu.matmul %0, %1, %cst {dimension_numbers = #tpu.dot_dimension_numbers<[1], [0], [0], [1], [0, 0, 1, 1], [], []>} : vector<128x32xbf16>, vector<32x32xbf16>, vector<128x32xf32> -> vector<128x32xf32>
    %c0_3 = arith.constant 0 : index
    %c0_4 = arith.constant 0 : index
    %3 = vector.load %arg3[%c0_3, %c0_4] : memref<1x32xf32, #tpu.memory_space<vmem>>, vector<1x32xf32>
    %4 = vector.broadcast %3 : vector<1x32xf32> to vector<128x32xf32>
    %5 = arith.addf %2, %4 : vector<128x32xf32>
    %c0_5 = arith.constant 0 : index
    %c0_6 = arith.constant 0 : index
    %6 = vector.load %arg4[%c0_5, %c0_6] : memref<128x32xf32, #tpu.memory_space<vmem>>, vector<128x32xf32>
    %7 = arith.addf %5, %6 : vector<128x32xf32>
    %c0_7 = arith.constant 0 : index
    %c0_8 = arith.constant 0 : index
    %8 = vector.load %arg5[%c0_7, %c0_8] : memref<128x32xf32, #tpu.memory_space<vmem>>, vector<128x32xf32>
    tpu.vector_store %arg5[%c0_7, %c0_8], %7 {strides = array<i32>} : memref<128x32xf32, #tpu.memory_space<vmem>>, vector<128x32xf32>,
    return
  }
  func.func @transform_0(%arg0: i32) -> (i32, i32) {
    %c0_i32 = arith.constant 0 : i32
    %c0_i32_0 = arith.constant 0 : i32
    return %arg0, %c0_i32 : i32, i32
  }
  func.func @transform_1(%arg0: i32) -> (i32, i32) {
    %c0_i32 = arith.constant 0 : i32
    %c0_i32_0 = arith.constant 0 : i32
    %c0_i32_1 = arith.constant 0 : i32
    return %c0_i32, %c0_i32_0 : i32, i32
  }
  func.func @transform_2(%arg0: i32) -> (i32, i32) {
    %c0_i32 = arith.constant 0 : i32
    %c0_i32_0 = arith.constant 0 : i32
    %c0_i32_1 = arith.constant 0 : i32
    return %c0_i32, %c0_i32_0 : i32, i32
  }
  func.func @transform_3(%arg0: i32) -> (i32, i32) {
    %c0_i32 = arith.constant 0 : i32
    %c0_i32_0 = arith.constant 0 : i32
    return %arg0, %c0_i32 : i32, i32
  }
  func.func @transform_4(%arg0: i32) -> (i32, i32) {
    %c0_i32 = arith.constant 0 : i32
    %c0_i32_0 = arith.constant 0 : i32
    return %arg0, %c0_i32 : i32, i32
  }
}

module attributes {stable_mosaic.version = 11 : i64} {
  func.func @_linear_kernel(%arg0: i32, %arg1: memref<128x32xf32, #tpu.memory_space<vmem>>, %arg2: memref<1x32xf32, #tpu.memory_space<vmem>>, %arg3: memref<1x32xf32, #tpu.memory_space<vmem>>, %arg4: memref<32x128xbf16, #tpu.memory_space<vmem>>, %arg5: memref<1x128xf32, #tpu.memory_space<vmem>>, %arg6: memref<128x128xbf16, #tpu.memory_space<vmem>>) attributes {dimension_semantics = [#tpu.dimension_semantics<parallel>], iteration_bounds = array<i64: 1>, scalar_prefetch = 0 : i64, scratch_operands = 0 : i64, tpu.core_type = #tpu.core_type<tc>, window_params = [{transform_indices = @transform_0, window_bounds = array<i64: 128, 32>}, {pipeline_mode = #tpu.pipeline_mode<synchronous>, transform_indices = @transform_1, window_bounds = array<i64: 1, 32>}, {pipeline_mode = #tpu.pipeline_mode<synchronous>, transform_indices = @transform_2, window_bounds = array<i64: 1, 32>}, {pipeline_mode = #tpu.pipeline_mode<synchronous>, transform_indices = @transform_3, window_bounds = array<i64: 32, 128>}, {pipeline_mode = #tpu.pipeline_mode<synchronous>, transform_indices = @transform_4, window_bounds = array<i64: 1, 128>}, {transform_indices = @transform_5, window_bounds = array<i64: 128, 128>}]} {
    %c0 = arith.constant 0 : index
    %c0_0 = arith.constant 0 : index
    %0 = vector.load %arg1[%c0, %c0_0] : memref<128x32xf32, #tpu.memory_space<vmem>>, vector<128x32xf32>
    %cst = arith.constant dense<0.000000e+00> : vector<128xf32>
    %1 = vector.multi_reduction <add>, %0, %cst [1] : vector<128x32xf32> to vector<128xf32>
    %2 = vector.shape_cast %1 : vector<128xf32> to vector<128x1xf32>
    %cst_1 = arith.constant 3.200000e+01 : f32
    %3 = vector.broadcast %cst_1 : f32 to vector<128x1xf32>
    %4 = arith.divf %2, %3 : vector<128x1xf32>
    %5 = vector.broadcast %4 : vector<128x1xf32> to vector<128x32xf32>
    %6 = arith.subf %0, %5 : vector<128x32xf32>
    %7 = arith.mulf %6, %6 : vector<128x32xf32>
    %cst_2 = arith.constant dense<0.000000e+00> : vector<128xf32>
    %8 = vector.multi_reduction <add>, %7, %cst_2 [1] : vector<128x32xf32> to vector<128xf32>
    %9 = vector.shape_cast %8 : vector<128xf32> to vector<128x1xf32>
    %cst_3 = arith.constant 3.200000e+01 : f32
    %10 = vector.broadcast %cst_3 : f32 to vector<128x1xf32>
    %11 = arith.divf %9, %10 : vector<128x1xf32>
    %cst_4 = arith.constant 9.99999997E-7 : f32
    %12 = vector.broadcast %cst_4 : f32 to vector<128x1xf32>
    %13 = arith.addf %11, %12 : vector<128x1xf32>
    %14 = math.rsqrt %13 : vector<128x1xf32>
    %15 = vector.broadcast %14 : vector<128x1xf32> to vector<128x32xf32>
    %16 = arith.mulf %6, %15 : vector<128x32xf32>
    %c0_5 = arith.constant 0 : index
    %c0_6 = arith.constant 0 : index
    %17 = vector.load %arg2[%c0_5, %c0_6] : memref<1x32xf32, #tpu.memory_space<vmem>>, vector<1x32xf32>
    %18 = vector.broadcast %17 : vector<1x32xf32> to vector<128x32xf32>
    %19 = arith.mulf %16, %18 : vector<128x32xf32>
    %c0_7 = arith.constant 0 : index
    %c0_8 = arith.constant 0 : index
    %20 = vector.load %arg3[%c0_7, %c0_8] : memref<1x32xf32, #tpu.memory_space<vmem>>, vector<1x32xf32>
    %21 = vector.broadcast %20 : vector<1x32xf32> to vector<128x32xf32>
    %22 = arith.addf %19, %21 : vector<128x32xf32>
    %23 = arith.truncf %22 : vector<128x32xf32> to vector<128x32xbf16>
    %c0_9 = arith.constant 0 : index
    %c0_10 = arith.constant 0 : index
    %24 = vector.load %arg4[%c0_9, %c0_10] : memref<32x128xbf16, #tpu.memory_space<vmem>>, vector<32x128xbf16>
    %cst_11 = arith.constant dense<0.000000e+00> : vector<128x128xf32>
    %25 = tpu.matmul %23, %24, %cst_11 {dimension_numbers = #tpu.dot_dimension_numbers<[1], [0], [0], [1], [0, 0, 1, 1], [], []>} : vector<128x32xbf16>, vector<32x128xbf16>, vector<128x128xf32> -> vector<128x128xf32>
    %c0_12 = arith.constant 0 : index
    %c0_13 = arith.constant 0 : index
    %26 = vector.load %arg5[%c0_12, %c0_13] : memref<1x128xf32, #tpu.memory_space<vmem>>, vector<1x128xf32>
    %27 = vector.broadcast %26 : vector<1x128xf32> to vector<128x128xf32>
    %28 = arith.addf %25, %27 : vector<128x128xf32>
    %29 = arith.mulf %28, %28 : vector<128x128xf32>
    %30 = arith.mulf %28, %29 : vector<128x128xf32>
    %cst_14 = arith.constant 4.471500e-02 : f32
    %31 = vector.broadcast %cst_14 : f32 to vector<128x128xf32>
    %32 = arith.mulf %31, %30 : vector<128x128xf32>
    %33 = arith.addf %28, %32 : vector<128x128xf32>
    %cst_15 = arith.constant 0.797884583 : f32
    %34 = vector.broadcast %cst_15 : f32 to vector<128x128xf32>
    %35 = arith.mulf %34, %33 : vector<128x128xf32>
    %36 = math.tanh %35 : vector<128x128xf32>
    %cst_16 = arith.constant 1.000000e+00 : f32
    %37 = vector.broadcast %cst_16 : f32 to vector<128x128xf32>
    %38 = arith.addf %37, %36 : vector<128x128xf32>
    %cst_17 = arith.constant 5.000000e-01 : f32
    %39 = vector.broadcast %cst_17 : f32 to vector<128x128xf32>
    %40 = arith.mulf %39, %38 : vector<128x128xf32>
    %41 = arith.mulf %28, %40 : vector<128x128xf32>
    %42 = arith.truncf %41 : vector<128x128xf32> to vector<128x128xbf16>
    %c0_18 = arith.constant 0 : index
    %c0_19 = arith.constant 0 : index
    %43 = vector.load %arg6[%c0_18, %c0_19] : memref<128x128xbf16, #tpu.memory_space<vmem>>, vector<128x128xbf16>
    tpu.vector_store %arg6[%c0_18, %c0_19], %42 {strides = array<i32>} : memref<128x128xbf16, #tpu.memory_space<vmem>>, vector<128x128xbf16>,
    return
  }
  func.func @transform_0(%arg0: i32) -> (i32, i32) {
    %c0_i32 = arith.constant 0 : i32
    %c0_i32_0 = arith.constant 0 : i32
    return %arg0, %c0_i32 : i32, i32
  }
  func.func @transform_1(%arg0: i32) -> (i32, i32) {
    %c0_i32 = arith.constant 0 : i32
    %c0_i32_0 = arith.constant 0 : i32
    %c0_i32_1 = arith.constant 0 : i32
    return %c0_i32, %c0_i32_0 : i32, i32
  }
  func.func @transform_2(%arg0: i32) -> (i32, i32) {
    %c0_i32 = arith.constant 0 : i32
    %c0_i32_0 = arith.constant 0 : i32
    %c0_i32_1 = arith.constant 0 : i32
    return %c0_i32, %c0_i32_0 : i32, i32
  }
  func.func @transform_3(%arg0: i32) -> (i32, i32) {
    %c0_i32 = arith.constant 0 : i32
    %c0_i32_0 = arith.constant 0 : i32
    %c0_i32_1 = arith.constant 0 : i32
    return %c0_i32, %c0_i32_0 : i32, i32
  }
  func.func @transform_4(%arg0: i32) -> (i32, i32) {
    %c0_i32 = arith.constant 0 : i32
    %c0_i32_0 = arith.constant 0 : i32
    %c0_i32_1 = arith.constant 0 : i32
    return %c0_i32, %c0_i32_0 : i32, i32
  }
  func.func @transform_5(%arg0: i32) -> (i32, i32) {
    %c0_i32 = arith.constant 0 : i32
    %c0_i32_0 = arith.constant 0 : i32
    return %arg0, %c0_i32 : i32, i32
  }
}

module attributes {stable_mosaic.version = 11 : i64} {
  func.func @_linear_kernel(%arg0: i32, %arg1: memref<128x128xbf16, #tpu.memory_space<vmem>>, %arg2: memref<128x32xbf16, #tpu.memory_space<vmem>>, %arg3: memref<1x32xf32, #tpu.memory_space<vmem>>, %arg4: memref<128x32xf32, #tpu.memory_space<vmem>>, %arg5: memref<128x32xf32, #tpu.memory_space<vmem>>) attributes {dimension_semantics = [#tpu.dimension_semantics<parallel>], iteration_bounds = array<i64: 1>, scalar_prefetch = 0 : i64, scratch_operands = 0 : i64, tpu.core_type = #tpu.core_type<tc>, window_params = [{transform_indices = @transform_0, window_bounds = array<i64: 128, 128>}, {pipeline_mode = #tpu.pipeline_mode<synchronous>, transform_indices = @transform_1, window_bounds = array<i64: 128, 32>}, {pipeline_mode = #tpu.pipeline_mode<synchronous>, transform_indices = @transform_2, window_bounds = array<i64: 1, 32>}, {transform_indices = @transform_3, window_bounds = array<i64: 128, 32>}, {transform_indices = @transform_4, window_bounds = array<i64: 128, 32>}]} {
    %c0 = arith.constant 0 : index
    %c0_0 = arith.constant 0 : index
    %0 = vector.load %arg1[%c0, %c0_0] : memref<128x128xbf16, #tpu.memory_space<vmem>>, vector<128x128xbf16>
    %c0_1 = arith.constant 0 : index
    %c0_2 = arith.constant 0 : index
    %1 = vector.load %arg2[%c0_1, %c0_2] : memref<128x32xbf16, #tpu.memory_space<vmem>>, vector<128x32xbf16>
    %cst = arith.constant dense<0.000000e+00> : vector<128x32xf32>
    %2 = tpu.matmul %0, %1, %cst {dimension_numbers = #tpu.dot_dimension_numbers<[1], [0], [0], [1], [0, 0, 1, 1], [], []>} : vector<128x128xbf16>, vector<128x32xbf16>, vector<128x32xf32> -> vector<128x32xf32>
    %c0_3 = arith.constant 0 : index
    %c0_4 = arith.constant 0 : index
    %3 = vector.load %arg3[%c0_3, %c0_4] : memref<1x32xf32, #tpu.memory_space<vmem>>, vector<1x32xf32>
    %4 = vector.broadcast %3 : vector<1x32xf32> to vector<128x32xf32>
    %5 = arith.addf %2, %4 : vector<128x32xf32>
    %c0_5 = arith.constant 0 : index
    %c0_6 = arith.constant 0 : index
    %6 = vector.load %arg4[%c0_5, %c0_6] : memref<128x32xf32, #tpu.memory_space<vmem>>, vector<128x32xf32>
    %7 = arith.addf %5, %6 : vector<128x32xf32>
    %c0_7 = arith.constant 0 : index
    %c0_8 = arith.constant 0 : index
    %8 = vector.load %arg5[%c0_7, %c0_8] : memref<128x32xf32, #tpu.memory_space<vmem>>, vector<128x32xf32>
    tpu.vector_store %arg5[%c0_7, %c0_8], %7 {strides = array<i32>} : memref<128x32xf32, #tpu.memory_space<vmem>>, vector<128x32xf32>,
    return
  }
  func.func @transform_0(%arg0: i32) -> (i32, i32) {
    %c0_i32 = arith.constant 0 : i32
    %c0_i32_0 = arith.constant 0 : i32
    return %arg0, %c0_i32 : i32, i32
  }
  func.func @transform_1(%arg0: i32) -> (i32, i32) {
    %c0_i32 = arith.constant 0 : i32
    %c0_i32_0 = arith.constant 0 : i32
    %c0_i32_1 = arith.constant 0 : i32
    return %c0_i32, %c0_i32_0 : i32, i32
  }
  func.func @transform_2(%arg0: i32) -> (i32, i32) {
    %c0_i32 = arith.constant 0 : i32
    %c0_i32_0 = arith.constant 0 : i32
    %c0_i32_1 = arith.constant 0 : i32
    return %c0_i32, %c0_i32_0 : i32, i32
  }
  func.func @transform_3(%arg0: i32) -> (i32, i32) {
    %c0_i32 = arith.constant 0 : i32
    %c0_i32_0 = arith.constant 0 : i32
    return %arg0, %c0_i32 : i32, i32
  }
  func.func @transform_4(%arg0: i32) -> (i32, i32) {
    %c0_i32 = arith.constant 0 : i32
    %c0_i32_0 = arith.constant 0 : i32
    return %arg0, %c0_i32 : i32, i32
  }
}

module attributes {stable_mosaic.version = 11 : i64} {
  func.func @_attn_kernel(%arg0: i32, %arg1: i32, %arg2: i32, %arg3: memref<1x64x8xbf16, #tpu.memory_space<vmem>>, %arg4: memref<1x64x8xbf16, #tpu.memory_space<vmem>>, %arg5: memref<1x64x8xbf16, #tpu.memory_space<vmem>>, %arg6: memref<1x64x8xbf16, #tpu.memory_space<vmem>>, %arg7: memref<64x1xf32, #tpu.memory_space<vmem>>, %arg8: memref<64x1xf32, #tpu.memory_space<vmem>>, %arg9: memref<64x8xf32, #tpu.memory_space<vmem>>) attributes {dimension_semantics = [#tpu.dimension_semantics<parallel>, #tpu.dimension_semantics<parallel>, #tpu.dimension_semantics<arbitrary>], iteration_bounds = array<i64: 8, 1, 1>, scalar_prefetch = 0 : i64, scratch_operands = 3 : i64, tpu.core_type = #tpu.core_type<tc>, window_params = [{transform_indices = @transform_0, window_bounds = array<i64: 1, 64, 8>}, {transform_indices = @transform_1, window_bounds = array<i64: 1, 64, 8>}, {transform_indices = @transform_2, window_bounds = array<i64: 1, 64, 8>}, {transform_indices = @transform_3, window_bounds = array<i64: 1, 64, 8>}]} {
    %c0_i32 = arith.constant 0 : i32
    %0 = arith.cmpi eq, %arg2, %c0_i32 : i32
    %1 = arith.extui %0 : i1 to i32
    %c0_i32_0 = arith.constant 0 : i32
    %2 = arith.cmpi ne, %1, %c0_i32_0 : i32
    scf.if %2 {
      %cst_26 = arith.constant -1.000000e+30 : f32
      %36 = vector.broadcast %cst_26 : f32 to vector<64x1xf32>
      %c0_27 = arith.constant 0 : index
      %c0_28 = arith.constant 0 : index
      %37 = vector.load %arg7[%c0_27, %c0_28] : memref<64x1xf32, #tpu.memory_space<vmem>>, vector<64x1xf32>
      tpu.vector_store %arg7[%c0_27, %c0_28], %36 {strides = array<i32>} : memref<64x1xf32, #tpu.memory_space<vmem>>, vector<64x1xf32>,
      %cst_29 = arith.constant 0.000000e+00 : f32
      %38 = vector.broadcast %cst_29 : f32 to vector<64x1xf32>
      %c0_30 = arith.constant 0 : index
      %c0_31 = arith.constant 0 : index
      %39 = vector.load %arg8[%c0_30, %c0_31] : memref<64x1xf32, #tpu.memory_space<vmem>>, vector<64x1xf32>
      tpu.vector_store %arg8[%c0_30, %c0_31], %38 {strides = array<i32>} : memref<64x1xf32, #tpu.memory_space<vmem>>, vector<64x1xf32>,
      %cst_32 = arith.constant 0.000000e+00 : f32
      %40 = vector.broadcast %cst_32 : f32 to vector<64x8xf32>
      %c0_33 = arith.constant 0 : index
      %c0_34 = arith.constant 0 : index
      %41 = vector.load %arg9[%c0_33, %c0_34] : memref<64x8xf32, #tpu.memory_space<vmem>>, vector<64x8xf32>
      tpu.vector_store %arg9[%c0_33, %c0_34], %40 {strides = array<i32>} : memref<64x8xf32, #tpu.memory_space<vmem>>, vector<64x8xf32>,
    } else {
    }
    %c0 = arith.constant 0 : index
    %c0_1 = arith.constant 0 : index
    %c0_2 = arith.constant 0 : index
    %3 = vector.load %arg3[%c0, %c0_1, %c0_2] : memref<1x64x8xbf16, #tpu.memory_space<vmem>>, vector<1x64x8xbf16>
    %4 = vector.shape_cast %3 : vector<1x64x8xbf16> to vector<64x8xbf16>
    %c0_3 = arith.constant 0 : index
    %c0_4 = arith.constant 0 : index
    %c0_5 = arith.constant 0 : index
    %5 = vector.load %arg4[%c0_3, %c0_4, %c0_5] : memref<1x64x8xbf16, #tpu.memory_space<vmem>>, vector<1x64x8xbf16>
    %6 = vector.shape_cast %5 : vector<1x64x8xbf16> to vector<64x8xbf16>
    %c0_6 = arith.constant 0 : index
    %c0_7 = arith.constant 0 : index
    %c0_8 = arith.constant 0 : index
    %7 = vector.load %arg5[%c0_6, %c0_7, %c0_8] : memref<1x64x8xbf16, #tpu.memory_space<vmem>>, vector<1x64x8xbf16>
    %8 = vector.shape_cast %7 : vector<1x64x8xbf16> to vector<64x8xbf16>
    %cst = arith.constant dense<0.000000e+00> : vector<64x64xf32>
    %9 = tpu.matmul %4, %6, %cst {dimension_numbers = #tpu.dot_dimension_numbers<[1], [1], [0], [0], [0, 0, 1, 0], [], []>} : vector<64x8xbf16>, vector<64x8xbf16>, vector<64x64xf32> -> vector<64x64xf32>
    %c0_9 = arith.constant 0 : index
    %c0_10 = arith.constant 0 : index
    %10 = vector.load %arg7[%c0_9, %c0_10] : memref<64x1xf32, #tpu.memory_space<vmem>>, vector<64x1xf32>
    %cst_11 = arith.constant dense<0xFF800000> : vector<64xf32>
    %11 = vector.multi_reduction <maximumf>, %9, %cst_11 [1] : vector<64x64xf32> to vector<64xf32>
    %12 = vector.shape_cast %11 : vector<64xf32> to vector<64x1xf32>
    %13 = arith.maximumf %10, %12 : vector<64x1xf32>
    %14 = arith.subf %10, %13 : vector<64x1xf32>
    %15 = math.exp %14 : vector<64x1xf32>
    %16 = vector.broadcast %13 : vector<64x1xf32> to vector<64x64xf32>
    %17 = arith.subf %9, %16 : vector<64x64xf32>
    %18 = math.exp %17 : vector<64x64xf32>
    %c0_12 = arith.constant 0 : index
    %c0_13 = arith.constant 0 : index
    %19 = vector.load %arg8[%c0_12, %c0_13] : memref<64x1xf32, #tpu.memory_space<vmem>>, vector<64x1xf32>
    %20 = arith.mulf %15, %19 : vector<64x1xf32>
    %cst_14 = arith.constant dense<0.000000e+00> : vector<64xf32>
    %21 = vector.multi_reduction <add>, %18, %cst_14 [1] : vector<64x64xf32> to vector<64xf32>
    %22 = vector.shape_cast %21 : vector<64xf32> to vector<64x1xf32>
    %23 = arith.addf %20, %22 : vector<64x1xf32>
    %c0_15 = arith.constant 0 : index
    %c0_16 = arith.constant 0 : index
    %24 = vector.load %arg8[%c0_15, %c0_16] : memref<64x1xf32, #tpu.memory_space<vmem>>, vector<64x1xf32>
    tpu.vector_store %arg8[%c0_15, %c0_16], %23 {strides = array<i32>} : memref<64x1xf32, #tpu.memory_space<vmem>>, vector<64x1xf32>,
    %c0_17 = arith.constant 0 : index
    %c0_18 = arith.constant 0 : index
    %25 = vector.load %arg9[%c0_17, %c0_18] : memref<64x8xf32, #tpu.memory_space<vmem>>, vector<64x8xf32>
    %26 = vector.broadcast %15 : vector<64x1xf32> to vector<64x8xf32>
    %27 = arith.mulf %26, %25 : vector<64x8xf32>
    %28 = arith.truncf %18 : vector<64x64xf32> to vector<64x64xbf16>
    %cst_19 = arith.constant dense<0.000000e+00> : vector<64x8xf32>
    %29 = tpu.matmul %28, %8, %cst_19 {dimension_numbers = #tpu.dot_dimension_numbers<[1], [0], [0], [1], [0, 0, 1, 1], [], []>} : vector<64x64xbf16>, vector<64x8xbf16>, vector<64x8xf32> -> vector<64x8xf32>
    %30 = arith.addf %27, %29 : vector<64x8xf32>
    %c0_20 = arith.constant 0 : index
    %c0_21 = arith.constant 0 : index
    %31 = vector.load %arg9[%c0_20, %c0_21] : memref<64x8xf32, #tpu.memory_space<vmem>>, vector<64x8xf32>
    tpu.vector_store %arg9[%c0_20, %c0_21], %30 {strides = array<i32>} : memref<64x8xf32, #tpu.memory_space<vmem>>, vector<64x8xf32>,
    %c0_22 = arith.constant 0 : index
    %c0_23 = arith.constant 0 : index
    %32 = vector.load %arg7[%c0_22, %c0_23] : memref<64x1xf32, #tpu.memory_space<vmem>>, vector<64x1xf32>
    tpu.vector_store %arg7[%c0_22, %c0_23], %13 {strides = array<i32>} : memref<64x1xf32, #tpu.memory_space<vmem>>, vector<64x1xf32>,
    %c0_i32_24 = arith.constant 0 : i32
    %33 = arith.cmpi eq, %arg2, %c0_i32_24 : i32
    %34 = arith.extui %33 : i1 to i32
    %c0_i32_25 = arith.constant 0 : i32
    %35 = arith.cmpi ne, %34, %c0_i32_25 : i32
    scf.if %35 {
      %c0_26 = arith.constant 0 : index
      %c0_27 = arith.constant 0 : index
      %36 = vector.load %arg9[%c0_26, %c0_27] : memref<64x8xf32, #tpu.memory_space<vmem>>, vector<64x8xf32>
      %c0_28 = arith.constant 0 : index
      %c0_29 = arith.constant 0 : index
      %37 = vector.load %arg8[%c0_28, %c0_29] : memref<64x1xf32, #tpu.memory_space<vmem>>, vector<64x1xf32>
      %38 = tpu.reciprocal %37 {approx = true} : vector<64x1xf32> -> vector<64x1xf32>
      %39 = vector.broadcast %38 : vector<64x1xf32> to vector<64x8xf32>
      %40 = arith.mulf %36, %39 : vector<64x8xf32>
      %41 = arith.truncf %40 : vector<64x8xf32> to vector<64x8xbf16>
      %c0_30 = arith.constant 0 : index
      %c0_31 = arith.constant 0 : index
      %c0_32 = arith.constant 0 : index
      %42 = vector.load %arg6[%c0_30, %c0_31, %c0_32] : memref<1x64x8xbf16, #tpu.memory_space<vmem>>, vector<1x64x8xbf16>
      %43 = vector.shape_cast %42 : vector<1x64x8xbf16> to vector<64x8xbf16>
      %44 = vector.shape_cast %41 : vector<64x8xbf16> to vector<1x64x8xbf16>
      tpu.vector_store %arg6[%c0_30, %c0_31, %c0_32], %44 {strides = array<i32>} : memref<1x64x8xbf16, #tpu.memory_space<vmem>>, vector<1x64x8xbf16>,
    } else {
    }
    return
  }
  func.func @transform_0(%arg0: i32, %arg1: i32, %arg2: i32) -> (i32, i32, i32) {
    %c0_i32 = arith.constant 0 : i32
    %c0_i32_0 = arith.constant 0 : i32
    return %arg0, %arg1, %c0_i32 : i32, i32, i32
  }
  func.func @transform_1(%arg0: i32, %arg1: i32, %arg2: i32) -> (i32, i32, i32) {
    %c0_i32 = arith.constant 0 : i32
    %c0_i32_0 = arith.constant 0 : i32
    return %arg0, %arg2, %c0_i32 : i32, i32, i32
  }
  func.func @transform_2(%arg0: i32, %arg1: i32, %arg2: i32) -> (i32, i32, i32) {
    %c0_i32 = arith.constant 0 : i32
    %c0_i32_0 = arith.constant 0 : i32
    return %arg0, %arg2, %c0_i32 : i32, i32, i32
  }
  func.func @transform_3(%arg0: i32, %arg1: i32, %arg2: i32) -> (i32, i32, i32) {
    %c0_i32 = arith.constant 0 : i32
    %c0_i32_0 = arith.constant 0 : i32
    return %arg0, %arg1, %c0_i32 : i32, i32, i32
  }
}

module attributes {stable_mosaic.version = 11 : i64} {
  func.func @_linear_kernel(%arg0: i32, %arg1: memref<128x32xf32, #tpu.memory_space<vmem>>, %arg2: memref<32x16xbf16, #tpu.memory_space<vmem>>, %arg3: memref<1x16xf32, #tpu.memory_space<vmem>>, %arg4: memref<1x16xf32, #tpu.memory_space<vmem>>, %arg5: memref<128x16xbf16, #tpu.memory_space<vmem>>) attributes {dimension_semantics = [#tpu.dimension_semantics<parallel>], iteration_bounds = array<i64: 1>, scalar_prefetch = 0 : i64, scratch_operands = 0 : i64, tpu.core_type = #tpu.core_type<tc>, window_params = [{transform_indices = @transform_0, window_bounds = array<i64: 128, 32>}, {pipeline_mode = #tpu.pipeline_mode<synchronous>, transform_indices = @transform_1, window_bounds = array<i64: 32, 16>}, {pipeline_mode = #tpu.pipeline_mode<synchronous>, transform_indices = @transform_2, window_bounds = array<i64: 1, 16>}, {pipeline_mode = #tpu.pipeline_mode<synchronous>, transform_indices = @transform_3, window_bounds = array<i64: 1, 16>}, {transform_indices = @transform_4, window_bounds = array<i64: 128, 16>}]} {
    %c0 = arith.constant 0 : index
    %c0_0 = arith.constant 0 : index
    %0 = vector.load %arg1[%c0, %c0_0] : memref<128x32xf32, #tpu.memory_space<vmem>>, vector<128x32xf32>
    %1 = arith.truncf %0 : vector<128x32xf32> to vector<128x32xbf16>
    %c0_1 = arith.constant 0 : index
    %c0_2 = arith.constant 0 : index
    %2 = vector.load %arg2[%c0_1, %c0_2] : memref<32x16xbf16, #tpu.memory_space<vmem>>, vector<32x16xbf16>
    %cst = arith.constant dense<0.000000e+00> : vector<128x16xf32>
    %3 = tpu.matmul %1, %2, %cst {dimension_numbers = #tpu.dot_dimension_numbers<[1], [0], [0], [1], [0, 0, 1, 1], [], []>} : vector<128x32xbf16>, vector<32x16xbf16>, vector<128x16xf32> -> vector<128x16xf32>
    %cst_3 = arith.constant dense<0.000000e+00> : vector<128xf32>
    %4 = vector.multi_reduction <add>, %3, %cst_3 [1] : vector<128x16xf32> to vector<128xf32>
    %5 = vector.shape_cast %4 : vector<128xf32> to vector<128x1xf32>
    %cst_4 = arith.constant 1.600000e+01 : f32
    %6 = vector.broadcast %cst_4 : f32 to vector<128x1xf32>
    %7 = arith.divf %5, %6 : vector<128x1xf32>
    %8 = vector.broadcast %7 : vector<128x1xf32> to vector<128x16xf32>
    %9 = arith.subf %3, %8 : vector<128x16xf32>
    %10 = arith.mulf %9, %9 : vector<128x16xf32>
    %cst_5 = arith.constant dense<0.000000e+00> : vector<128xf32>
    %11 = vector.multi_reduction <add>, %10, %cst_5 [1] : vector<128x16xf32> to vector<128xf32>
    %12 = vector.shape_cast %11 : vector<128xf32> to vector<128x1xf32>
    %cst_6 = arith.constant 1.600000e+01 : f32
    %13 = vector.broadcast %cst_6 : f32 to vector<128x1xf32>
    %14 = arith.divf %12, %13 : vector<128x1xf32>
    %cst_7 = arith.constant 9.99999997E-7 : f32
    %15 = vector.broadcast %cst_7 : f32 to vector<128x1xf32>
    %16 = arith.addf %14, %15 : vector<128x1xf32>
    %17 = math.rsqrt %16 : vector<128x1xf32>
    %18 = vector.broadcast %17 : vector<128x1xf32> to vector<128x16xf32>
    %19 = arith.mulf %9, %18 : vector<128x16xf32>
    %c0_8 = arith.constant 0 : index
    %c0_9 = arith.constant 0 : index
    %20 = vector.load %arg3[%c0_8, %c0_9] : memref<1x16xf32, #tpu.memory_space<vmem>>, vector<1x16xf32>
    %21 = vector.broadcast %20 : vector<1x16xf32> to vector<128x16xf32>
    %22 = arith.mulf %19, %21 : vector<128x16xf32>
    %c0_10 = arith.constant 0 : index
    %c0_11 = arith.constant 0 : index
    %23 = vector.load %arg4[%c0_10, %c0_11] : memref<1x16xf32, #tpu.memory_space<vmem>>, vector<1x16xf32>
    %24 = vector.broadcast %23 : vector<1x16xf32> to vector<128x16xf32>
    %25 = arith.addf %22, %24 : vector<128x16xf32>
    %26 = arith.truncf %25 : vector<128x16xf32> to vector<128x16xbf16>
    %c0_12 = arith.constant 0 : index
    %c0_13 = arith.constant 0 : index
    %27 = vector.load %arg5[%c0_12, %c0_13] : memref<128x16xbf16, #tpu.memory_space<vmem>>, vector<128x16xbf16>
    tpu.vector_store %arg5[%c0_12, %c0_13], %26 {strides = array<i32>} : memref<128x16xbf16, #tpu.memory_space<vmem>>, vector<128x16xbf16>,
    return
  }
  func.func @transform_0(%arg0: i32) -> (i32, i32) {
    %c0_i32 = arith.constant 0 : i32
    %c0_i32_0 = arith.constant 0 : i32
    return %arg0, %c0_i32 : i32, i32
  }
  func.func @transform_1(%arg0: i32) -> (i32, i32) {
    %c0_i32 = arith.constant 0 : i32
    %c0_i32_0 = arith.constant 0 : i32
    %c0_i32_1 = arith.constant 0 : i32
    return %c0_i32, %c0_i32_0 : i32, i32
  }
  func.func @transform_2(%arg0: i32) -> (i32, i32) {
    %c0_i32 = arith.constant 0 : i32
    %c0_i32_0 = arith.constant 0 : i32
    %c0_i32_1 = arith.constant 0 : i32
    return %c0_i32, %c0_i32_0 : i32, i32
  }
  func.func @transform_3(%arg0: i32) -> (i32, i32) {
    %c0_i32 = arith.constant 0 : i32
    %c0_i32_0 = arith.constant 0 : i32
    %c0_i32_1 = arith.constant 0 : i32
    return %c0_i32, %c0_i32_0 : i32, i32
  }
  func.func @transform_4(%arg0: i32) -> (i32, i32) {
    %c0_i32 = arith.constant 0 : i32
    %c0_i32_0 = arith.constant 0 : i32
    return %arg0, %c0_i32 : i32, i32
  }
}

module attributes {stable_mosaic.version = 11 : i64} {
  func.func @_conv3x3_ln_kernel(%arg0: i32, %arg1: i32, %arg2: memref<1x8x10x16xbf16, #tpu.memory_space<vmem>>, %arg3: memref<1x8x10x16xbf16, #tpu.memory_space<vmem>>, %arg4: memref<1x8x10x16xbf16, #tpu.memory_space<vmem>>, %arg5: memref<144x16xbf16, #tpu.memory_space<vmem>>, %arg6: memref<1x16xf32, #tpu.memory_space<vmem>>, %arg7: memref<1x16xf32, #tpu.memory_space<vmem>>, %arg8: memref<1x8x8x16xf32, #tpu.memory_space<vmem>>) attributes {dimension_semantics = [#tpu.dimension_semantics<parallel>, #tpu.dimension_semantics<parallel>], iteration_bounds = array<i64: 2, 1>, scalar_prefetch = 0 : i64, scratch_operands = 0 : i64, tpu.core_type = #tpu.core_type<tc>, window_params = [{transform_indices = @transform_0, window_bounds = array<i64: 1, 8, 10, 16>}, {transform_indices = @transform_1, window_bounds = array<i64: 1, 8, 10, 16>}, {transform_indices = @transform_2, window_bounds = array<i64: 1, 8, 10, 16>}, {pipeline_mode = #tpu.pipeline_mode<synchronous>, transform_indices = @transform_3, window_bounds = array<i64: 144, 16>}, {pipeline_mode = #tpu.pipeline_mode<synchronous>, transform_indices = @transform_4, window_bounds = array<i64: 1, 16>}, {pipeline_mode = #tpu.pipeline_mode<synchronous>, transform_indices = @transform_5, window_bounds = array<i64: 1, 16>}, {transform_indices = @transform_6, window_bounds = array<i64: 1, 8, 8, 16>}]} {
    %c0 = arith.constant 0 : index
    %c0_0 = arith.constant 0 : index
    %0 = vector.load %arg5[%c0, %c0_0] : memref<144x16xbf16, #tpu.memory_space<vmem>>, vector<144x16xbf16>
    %cst = arith.constant 0.000000e+00 : f32
    %1 = vector.broadcast %cst : f32 to vector<64x16xf32>
    %c0_1 = arith.constant 0 : index
    %c0_2 = arith.constant 0 : index
    %c0_3 = arith.constant 0 : index
    %c0_4 = arith.constant 0 : index
    %2 = vector.load %arg2[%c0_1, %c0_2, %c0_3, %c0_4] : memref<1x8x10x16xbf16, #tpu.memory_space<vmem>>, vector<1x8x10x16xbf16>
    %3 = vector.shape_cast %2 : vector<1x8x10x16xbf16> to vector<8x10x16xbf16>
    %4 = vector.extract_strided_slice %3 {offsets = [0, 0, 0], sizes = [8, 8, 16], strides = [1, 1, 1]} : vector<8x10x16xbf16> to vector<8x8x16xbf16>
    %5 = vector.shape_cast %4 : vector<8x8x16xbf16> to vector<64x16xbf16>
    %6 = vector.extract_strided_slice %0 {offsets = [0, 0], sizes = [16, 16], strides = [1, 1]} : vector<144x16xbf16> to vector<16x16xbf16>
    %cst_5 = arith.constant dense<0.000000e+00> : vector<64x16xf32>
    %7 = tpu.matmul %5, %6, %cst_5 {dimension_numbers = #tpu.dot_dimension_numbers<[1], [0], [0], [1], [0, 0, 1, 1], [], []>} : vector<64x16xbf16>, vector<16x16xbf16>, vector<64x16xf32> -> vector<64x16xf32>
    %8 = arith.addf %1, %7 : vector<64x16xf32>
    %9 = vector.extract_strided_slice %3 {offsets = [0, 1, 0], sizes = [8, 8, 16], strides = [1, 1, 1]} : vector<8x10x16xbf16> to vector<8x8x16xbf16>
    %10 = vector.shape_cast %9 : vector<8x8x16xbf16> to vector<64x16xbf16>
    %11 = vector.extract_strided_slice %0 {offsets = [16, 0], sizes = [16, 16], strides = [1, 1]} : vector<144x16xbf16> to vector<16x16xbf16>
    %cst_6 = arith.constant dense<0.000000e+00> : vector<64x16xf32>
    %12 = tpu.matmul %10, %11, %cst_6 {dimension_numbers = #tpu.dot_dimension_numbers<[1], [0], [0], [1], [0, 0, 1, 1], [], []>} : vector<64x16xbf16>, vector<16x16xbf16>, vector<64x16xf32> -> vector<64x16xf32>
    %13 = arith.addf %8, %12 : vector<64x16xf32>
    %14 = vector.extract_strided_slice %3 {offsets = [0, 2, 0], sizes = [8, 8, 16], strides = [1, 1, 1]} : vector<8x10x16xbf16> to vector<8x8x16xbf16>
    %15 = vector.shape_cast %14 : vector<8x8x16xbf16> to vector<64x16xbf16>
    %16 = vector.extract_strided_slice %0 {offsets = [32, 0], sizes = [16, 16], strides = [1, 1]} : vector<144x16xbf16> to vector<16x16xbf16>
    %cst_7 = arith.constant dense<0.000000e+00> : vector<64x16xf32>
    %17 = tpu.matmul %15, %16, %cst_7 {dimension_numbers = #tpu.dot_dimension_numbers<[1], [0], [0], [1], [0, 0, 1, 1], [], []>} : vector<64x16xbf16>, vector<16x16xbf16>, vector<64x16xf32> -> vector<64x16xf32>
    %18 = arith.addf %13, %17 : vector<64x16xf32>
    %c0_8 = arith.constant 0 : index
    %c0_9 = arith.constant 0 : index
    %c0_10 = arith.constant 0 : index
    %c0_11 = arith.constant 0 : index
    %19 = vector.load %arg3[%c0_8, %c0_9, %c0_10, %c0_11] : memref<1x8x10x16xbf16, #tpu.memory_space<vmem>>, vector<1x8x10x16xbf16>
    %20 = vector.shape_cast %19 : vector<1x8x10x16xbf16> to vector<8x10x16xbf16>
    %21 = vector.extract_strided_slice %20 {offsets = [0, 0, 0], sizes = [8, 8, 16], strides = [1, 1, 1]} : vector<8x10x16xbf16> to vector<8x8x16xbf16>
    %22 = vector.shape_cast %21 : vector<8x8x16xbf16> to vector<64x16xbf16>
    %23 = vector.extract_strided_slice %0 {offsets = [48, 0], sizes = [16, 16], strides = [1, 1]} : vector<144x16xbf16> to vector<16x16xbf16>
    %cst_12 = arith.constant dense<0.000000e+00> : vector<64x16xf32>
    %24 = tpu.matmul %22, %23, %cst_12 {dimension_numbers = #tpu.dot_dimension_numbers<[1], [0], [0], [1], [0, 0, 1, 1], [], []>} : vector<64x16xbf16>, vector<16x16xbf16>, vector<64x16xf32> -> vector<64x16xf32>
    %25 = arith.addf %18, %24 : vector<64x16xf32>
    %26 = vector.extract_strided_slice %20 {offsets = [0, 1, 0], sizes = [8, 8, 16], strides = [1, 1, 1]} : vector<8x10x16xbf16> to vector<8x8x16xbf16>
    %27 = vector.shape_cast %26 : vector<8x8x16xbf16> to vector<64x16xbf16>
    %28 = vector.extract_strided_slice %0 {offsets = [64, 0], sizes = [16, 16], strides = [1, 1]} : vector<144x16xbf16> to vector<16x16xbf16>
    %cst_13 = arith.constant dense<0.000000e+00> : vector<64x16xf32>
    %29 = tpu.matmul %27, %28, %cst_13 {dimension_numbers = #tpu.dot_dimension_numbers<[1], [0], [0], [1], [0, 0, 1, 1], [], []>} : vector<64x16xbf16>, vector<16x16xbf16>, vector<64x16xf32> -> vector<64x16xf32>
    %30 = arith.addf %25, %29 : vector<64x16xf32>
    %31 = vector.extract_strided_slice %20 {offsets = [0, 2, 0], sizes = [8, 8, 16], strides = [1, 1, 1]} : vector<8x10x16xbf16> to vector<8x8x16xbf16>
    %32 = vector.shape_cast %31 : vector<8x8x16xbf16> to vector<64x16xbf16>
    %33 = vector.extract_strided_slice %0 {offsets = [80, 0], sizes = [16, 16], strides = [1, 1]} : vector<144x16xbf16> to vector<16x16xbf16>
    %cst_14 = arith.constant dense<0.000000e+00> : vector<64x16xf32>
    %34 = tpu.matmul %32, %33, %cst_14 {dimension_numbers = #tpu.dot_dimension_numbers<[1], [0], [0], [1], [0, 0, 1, 1], [], []>} : vector<64x16xbf16>, vector<16x16xbf16>, vector<64x16xf32> -> vector<64x16xf32>
    %35 = arith.addf %30, %34 : vector<64x16xf32>
    %c0_15 = arith.constant 0 : index
    %c0_16 = arith.constant 0 : index
    %c0_17 = arith.constant 0 : index
    %c0_18 = arith.constant 0 : index
    %36 = vector.load %arg4[%c0_15, %c0_16, %c0_17, %c0_18] : memref<1x8x10x16xbf16, #tpu.memory_space<vmem>>, vector<1x8x10x16xbf16>
    %37 = vector.shape_cast %36 : vector<1x8x10x16xbf16> to vector<8x10x16xbf16>
    %38 = vector.extract_strided_slice %37 {offsets = [0, 0, 0], sizes = [8, 8, 16], strides = [1, 1, 1]} : vector<8x10x16xbf16> to vector<8x8x16xbf16>
    %39 = vector.shape_cast %38 : vector<8x8x16xbf16> to vector<64x16xbf16>
    %40 = vector.extract_strided_slice %0 {offsets = [96, 0], sizes = [16, 16], strides = [1, 1]} : vector<144x16xbf16> to vector<16x16xbf16>
    %cst_19 = arith.constant dense<0.000000e+00> : vector<64x16xf32>
    %41 = tpu.matmul %39, %40, %cst_19 {dimension_numbers = #tpu.dot_dimension_numbers<[1], [0], [0], [1], [0, 0, 1, 1], [], []>} : vector<64x16xbf16>, vector<16x16xbf16>, vector<64x16xf32> -> vector<64x16xf32>
    %42 = arith.addf %35, %41 : vector<64x16xf32>
    %43 = vector.extract_strided_slice %37 {offsets = [0, 1, 0], sizes = [8, 8, 16], strides = [1, 1, 1]} : vector<8x10x16xbf16> to vector<8x8x16xbf16>
    %44 = vector.shape_cast %43 : vector<8x8x16xbf16> to vector<64x16xbf16>
    %45 = vector.extract_strided_slice %0 {offsets = [112, 0], sizes = [16, 16], strides = [1, 1]} : vector<144x16xbf16> to vector<16x16xbf16>
    %cst_20 = arith.constant dense<0.000000e+00> : vector<64x16xf32>
    %46 = tpu.matmul %44, %45, %cst_20 {dimension_numbers = #tpu.dot_dimension_numbers<[1], [0], [0], [1], [0, 0, 1, 1], [], []>} : vector<64x16xbf16>, vector<16x16xbf16>, vector<64x16xf32> -> vector<64x16xf32>
    %47 = arith.addf %42, %46 : vector<64x16xf32>
    %48 = vector.extract_strided_slice %37 {offsets = [0, 2, 0], sizes = [8, 8, 16], strides = [1, 1, 1]} : vector<8x10x16xbf16> to vector<8x8x16xbf16>
    %49 = vector.shape_cast %48 : vector<8x8x16xbf16> to vector<64x16xbf16>
    %50 = vector.extract_strided_slice %0 {offsets = [128, 0], sizes = [16, 16], strides = [1, 1]} : vector<144x16xbf16> to vector<16x16xbf16>
    %cst_21 = arith.constant dense<0.000000e+00> : vector<64x16xf32>
    %51 = tpu.matmul %49, %50, %cst_21 {dimension_numbers = #tpu.dot_dimension_numbers<[1], [0], [0], [1], [0, 0, 1, 1], [], []>} : vector<64x16xbf16>, vector<16x16xbf16>, vector<64x16xf32> -> vector<64x16xf32>
    %52 = arith.addf %47, %51 : vector<64x16xf32>
    %cst_22 = arith.constant dense<0.000000e+00> : vector<64xf32>
    %53 = vector.multi_reduction <add>, %52, %cst_22 [1] : vector<64x16xf32> to vector<64xf32>
    %54 = vector.shape_cast %53 : vector<64xf32> to vector<64x1xf32>
    %cst_23 = arith.constant 1.600000e+01 : f32
    %55 = vector.broadcast %cst_23 : f32 to vector<64x1xf32>
    %56 = arith.divf %54, %55 : vector<64x1xf32>
    %57 = vector.broadcast %56 : vector<64x1xf32> to vector<64x16xf32>
    %58 = arith.subf %52, %57 : vector<64x16xf32>
    %59 = arith.mulf %58, %58 : vector<64x16xf32>
    %cst_24 = arith.constant dense<0.000000e+00> : vector<64xf32>
    %60 = vector.multi_reduction <add>, %59, %cst_24 [1] : vector<64x16xf32> to vector<64xf32>
    %61 = vector.shape_cast %60 : vector<64xf32> to vector<64x1xf32>
    %cst_25 = arith.constant 1.600000e+01 : f32
    %62 = vector.broadcast %cst_25 : f32 to vector<64x1xf32>
    %63 = arith.divf %61, %62 : vector<64x1xf32>
    %cst_26 = arith.constant 9.99999997E-7 : f32
    %64 = vector.broadcast %cst_26 : f32 to vector<64x1xf32>
    %65 = arith.addf %63, %64 : vector<64x1xf32>
    %66 = math.rsqrt %65 : vector<64x1xf32>
    %67 = vector.broadcast %66 : vector<64x1xf32> to vector<64x16xf32>
    %68 = arith.mulf %58, %67 : vector<64x16xf32>
    %c0_27 = arith.constant 0 : index
    %c0_28 = arith.constant 0 : index
    %69 = vector.load %arg6[%c0_27, %c0_28] : memref<1x16xf32, #tpu.memory_space<vmem>>, vector<1x16xf32>
    %70 = vector.broadcast %69 : vector<1x16xf32> to vector<64x16xf32>
    %71 = arith.mulf %68, %70 : vector<64x16xf32>
    %c0_29 = arith.constant 0 : index
    %c0_30 = arith.constant 0 : index
    %72 = vector.load %arg7[%c0_29, %c0_30] : memref<1x16xf32, #tpu.memory_space<vmem>>, vector<1x16xf32>
    %73 = vector.broadcast %72 : vector<1x16xf32> to vector<64x16xf32>
    %74 = arith.addf %71, %73 : vector<64x16xf32>
    %75 = vector.shape_cast %74 : vector<64x16xf32> to vector<8x8x16xf32>
    %c0_31 = arith.constant 0 : index
    %c0_32 = arith.constant 0 : index
    %c0_33 = arith.constant 0 : index
    %c0_34 = arith.constant 0 : index
    %76 = vector.load %arg8[%c0_31, %c0_32, %c0_33, %c0_34] : memref<1x8x8x16xf32, #tpu.memory_space<vmem>>, vector<1x8x8x16xf32>
    %77 = vector.shape_cast %76 : vector<1x8x8x16xf32> to vector<8x8x16xf32>
    %78 = vector.shape_cast %75 : vector<8x8x16xf32> to vector<1x8x8x16xf32>
    tpu.vector_store %arg8[%c0_31, %c0_32, %c0_33, %c0_34], %78 {strides = array<i32>} : memref<1x8x8x16xf32, #tpu.memory_space<vmem>>, vector<1x8x8x16xf32>,
    return
  }
  func.func @transform_0(%arg0: i32, %arg1: i32) -> (i32, i32, i32, i32) {
    %c0_i32 = arith.constant 0 : i32
    %c0_i32_0 = arith.constant 0 : i32
    %c0_i32_1 = arith.constant 0 : i32
    return %arg0, %arg1, %c0_i32, %c0_i32_0 : i32, i32, i32, i32
  }
  func.func @transform_1(%arg0: i32, %arg1: i32) -> (i32, i32, i32, i32) {
    %c0_i32 = arith.constant 0 : i32
    %c0_i32_0 = arith.constant 0 : i32
    %c0_i32_1 = arith.constant 0 : i32
    return %arg0, %arg1, %c0_i32, %c0_i32_0 : i32, i32, i32, i32
  }
  func.func @transform_2(%arg0: i32, %arg1: i32) -> (i32, i32, i32, i32) {
    %c0_i32 = arith.constant 0 : i32
    %c0_i32_0 = arith.constant 0 : i32
    %c0_i32_1 = arith.constant 0 : i32
    return %arg0, %arg1, %c0_i32, %c0_i32_0 : i32, i32, i32, i32
  }
  func.func @transform_3(%arg0: i32, %arg1: i32) -> (i32, i32) {
    %c0_i32 = arith.constant 0 : i32
    %c0_i32_0 = arith.constant 0 : i32
    %c0_i32_1 = arith.constant 0 : i32
    return %c0_i32, %c0_i32_0 : i32, i32
  }
  func.func @transform_4(%arg0: i32, %arg1: i32) -> (i32, i32) {
    %c0_i32 = arith.constant 0 : i32
    %c0_i32_0 = arith.constant 0 : i32
    %c0_i32_1 = arith.constant 0 : i32
    return %c0_i32, %c0_i32_0 : i32, i32
  }
  func.func @transform_5(%arg0: i32, %arg1: i32) -> (i32, i32) {
    %c0_i32 = arith.constant 0 : i32
    %c0_i32_0 = arith.constant 0 : i32
    %c0_i32_1 = arith.constant 0 : i32
    return %c0_i32, %c0_i32_0 : i32, i32
  }
  func.func @transform_6(%arg0: i32, %arg1: i32) -> (i32, i32, i32, i32) {
    %c0_i32 = arith.constant 0 : i32
    %c0_i32_0 = arith.constant 0 : i32
    %c0_i32_1 = arith.constant 0 : i32
    return %arg0, %arg1, %c0_i32, %c0_i32_0 : i32, i32, i32, i32
  }
}

</mosaic_0001>

<llo_original>
// kernel: sam_v1_image_encoder.23
$region0: #{sam_v1_image_encoder.23}
  #allocation0 [shape = 'u32[]', space=smem, size = 0x4, offset = 0x4, fixed_abs, tag = 'smem constant byte address 0x4 - core index']
  #allocation1 [shape = 'u32[144,128]{1,0:T(1,128)}', space=vmem, size = 0x12000, scoped, tag = 'internal scratch']
  %s0 = inlined_call_operand.vmem [shape: bf16[128,48], index: 0, kind: input, shape index: {}]
  %s1 = inlined_call_operand.vmem [shape: bf16[48,32], index: 1, kind: input, shape index: {}]
  %s2 = inlined_call_operand.vmem [shape: f32[1,32], index: 2, kind: input, shape index: {}]
  %s3 = inlined_call_operand.vmem [shape: f32[64,32], index: 3, kind: input, shape index: {}]
  %s4 = inlined_call_operand.vmem [shape: f32[128,32], index: 4, kind: output, shape index: {}]
  %s5 = sld [smem:[#allocation0]]
  $region49: #{sam_v1_image_encoder.23} parent=0
    _
  %s7 = ssub.s32 1, %s5
  %s8 = scalar_select 0, %s7, %s5
  loop: start=0, step=1, limit=4
  $region2: #{sam_v1_image_encoder.23} parent=0 // loop_pre_header
    _
  $region3: #{sam_v1_image_encoder.23} parent=0 // loop_header
    %s10 = sphi 0, %s14
    %p11 = scmp.ge.s32.totalorder %s10, 4
    %s20 = sphi 0, %s22
    %s23 = sphi 0, %s20
    %s24 = sphi 0, %s23
    %s40 = sphi 0, %s24
    %s44 = sphi 0, %s44
    %s46 = sphi 0, %s44
    %s47 = sphi 0, %s46
    %s61 = sphi 0, %s47
    %s65 = sphi 0, %s65
    %s67 = sphi 0, %s65
    %s68 = sphi 0, %s67
    %s82 = sphi 0, %s68
    %s86 = sphi 0, %s86
    %s88 = sphi 0, %s86
    %s89 = sphi 0, %s88
    %s103 = sphi 0, %s89
    %s109 = sphi 0, %s111
    %s112 = sphi 0, %s109
    %s113 = sphi 0, %s112
    %s129 = sphi 0, %s113
  $region4: #{sam_v1_image_encoder.23} parent=0 // loop_header_branch
    %13 = sbr.rel (%p11) target = $region8
  $region5: #{sam_v1_image_encoder.23} parent=0 // loop_body
    %s15 = ssub.s32 %s10, 1
    %s16 = ssub.s32 %s10, 2
    %s17 = sadd.s32 %s10, 1
    %s18 = ssub.s32 %s10, %s17
    %p19 = scmp.eq.s32.totalorder %s18, 0
    %s21 = sadd.s32 %s20, 1
    %s22 = scalar_select %p19, %s20, %s21
    %p25 = pneg %p19
    %p26 = scmp.eq.s32.totalorder %s10, 1
    %p27 = por %p25, %p26
    %p28 = scmp.ne.s32.totalorder %s20, %s23
    %p29 = scmp.eq.s32.totalorder %s10, 0
    %p30 = por %p28, %p29
    %p31 = scmp.ne.s32.totalorder %s20, %s23
    %p32 = scmp.eq.s32.totalorder %s15, 1
    %p33 = por %p31, %p32
    %p34 = scmp.ne.s32.totalorder %s23, %s24
    %p35 = scmp.eq.s32.totalorder %s15, 0
    %p36 = por %p34, %p35
    %p37 = scmp.ne.s32.totalorder %s23, %s24
    %p38 = scmp.eq.s32.totalorder %s16, 1
    %p39 = por %p37, %p38
    %p41 = scmp.ne.s32.totalorder %s24, %s40
    %p42 = scmp.eq.s32.totalorder %s16, 0
    %p43 = por %p41, %p42
    %s45 = sadd.s32 %s44, 1
    %p48 = scmp.eq.s32.totalorder %s10, 1
    %p49 = scmp.ne.s32.totalorder %s44, %s46
    %p50 = scmp.eq.s32.totalorder %s10, 0
    %p51 = por %p49, %p50
    %p52 = scmp.ne.s32.totalorder %s44, %s46
    %p53 = scmp.eq.s32.totalorder %s15, 1
    %p54 = por %p52, %p53
    %p55 = scmp.ne.s32.totalorder %s46, %s47
    %p56 = scmp.eq.s32.totalorder %s15, 0
    %p57 = por %p55, %p56
    %p58 = scmp.ne.s32.totalorder %s46, %s47
    %p59 = scmp.eq.s32.totalorder %s16, 1
    %p60 = por %p58, %p59
    %p62 = scmp.ne.s32.totalorder %s47, %s61
    %p63 = scmp.eq.s32.totalorder %s16, 0
    %p64 = por %p62, %p63
    %s66 = sadd.s32 %s65, 1
    %p69 = scmp.eq.s32.totalorder %s10, 1
    %p70 = scmp.ne.s32.totalorder %s65, %s67
    %p71 = scmp.eq.s32.totalorder %s10, 0
    %p72 = por %p70, %p71
    %p73 = scmp.ne.s32.totalorder %s65, %s67
    %p74 = scmp.eq.s32.totalorder %s15, 1
    %p75 = por %p73, %p74
    %p76 = scmp.ne.s32.totalorder %s67, %s68
    %p77 = scmp.eq.s32.totalorder %s15, 0
    %p78 = por %p76, %p77
    %p79 = scmp.ne.s32.totalorder %s67, %s68
    %p80 = scmp.eq.s32.totalorder %s16, 1
    %p81 = por %p79, %p80
    %p83 = scmp.ne.s32.totalorder %s68, %s82
    %p84 = scmp.eq.s32.totalorder %s16, 0
    %p85 = por %p83, %p84
    %s87 = sadd.s32 %s86, 1
    %p90 = scmp.eq.s32.totalorder %s10, 1
    %p91 = scmp.ne.s32.totalorder %s86, %s88
    %p92 = scmp.eq.s32.totalorder %s10, 0
    %p93 = por %p91, %p92
    %p94 = scmp.ne.s32.totalorder %s86, %s88
    %p95 = scmp.eq.s32.totalorder %s15, 1
    %p96 = por %p94, %p95
    %p97 = scmp.ne.s32.totalorder %s88, %s89
    %p98 = scmp.eq.s32.totalorder %s15, 0
    %p99 = por %p97, %p98
    %p100 = scmp.ne.s32.totalorder %s88, %s89
    %p101 = scmp.eq.s32.totalorder %s16, 1
    %p102 = por %p100, %p101
    %p104 = scmp.ne.s32.totalorder %s89, %s103
    %p105 = scmp.eq.s32.totalorder %s16, 0
    %p106 = por %p104, %p105
    %s107 = ssub.s32 %s10, %s17
    %p108 = scmp.eq.s32.totalorder %s107, 0
    %s110 = sadd.s32 %s109, 1
    %s111 = scalar_select %p108, %s109, %s110
    %p114 = pneg %p108
    %p115 = scmp.eq.s32.totalorder %s10, 1
    %p116 = por %p114, %p115
    %p117 = scmp.ne.s32.totalorder %s109, %s112
    %p118 = scmp.eq.s32.totalorder %s10, 0
    %p119 = por %p117, %p118
    %p120 = scmp.ne.s32.totalorder %s109, %s112
    %p121 = scmp.eq.s32.totalorder %s15, 1
    %p122 = por %p120, %p121
    %p123 = scmp.ne.s32.totalorder %s112, %s113
    %p124 = scmp.eq.s32.totalorder %s15, 0
    %p125 = por %p123, %p124
    %p126 = scmp.ne.s32.totalorder %s112, %s113
    %p127 = scmp.eq.s32.totalorder %s16, 1
    %p128 = por %p126, %p127
    %p130 = scmp.ne.s32.totalorder %s113, %s129
    %p131 = scmp.eq.s32.totalorder %s16, 0
    %p132 = por %p130, %p131
    %p133 = scmp.le.s32.totalorder 1, %s10
    %p134 = scmp.lt.s32.totalorder %s10, 3
    %p135 = pnand %p133, %p134
    %p136 = pneg %p135
    // Predicated region
    $region9: #{sam_v1_image_encoder.23} parent=5 // pred_check
      _
    $region10: #{sam_v1_image_encoder.23} parent=5 // pred_check_branch
      %138 = sbr.rel (%p135) target = $region12
    $region11: #{sam_v1_image_encoder.23} parent=5 // pred_region
      %s139 = ssub.s32 %s10, 1
      // Predicated region
      $region13: #{sam_v1_image_encoder.23} parent=11 // pred_check
        %p140 = pneg %p57
      $region14: #{sam_v1_image_encoder.23} parent=11 // pred_check_branch
        %142 = sbr.rel (%p140) target = $region16
      $region15: #{sam_v1_image_encoder.23} parent=11 // pred_region
        _
      $region16: #{sam_v1_image_encoder.23} parent=11 // pred_fallthru
        _
      // Predicated region
      $region17: #{sam_v1_image_encoder.23} parent=11 // pred_check
        %p143 = pneg %p78
      $region18: #{sam_v1_image_encoder.23} parent=11 // pred_check_branch
        %145 = sbr.rel (%p143) target = $region20
      $region19: #{sam_v1_image_encoder.23} parent=11 // pred_region
        _
      $region20: #{sam_v1_image_encoder.23} parent=11 // pred_fallthru
        _
      // Predicated region
      $region21: #{sam_v1_image_encoder.23} parent=11 // pred_check
        %p146 = pneg %p99
      $region22: #{sam_v1_image_encoder.23} parent=11 // pred_check_branch
        %148 = sbr.rel (%p146) target = $region24
      $region23: #{sam_v1_image_encoder.23} parent=11 // pred_region
        _
      $region24: #{sam_v1_image_encoder.23} parent=11 // pred_fallthru
        _
    $region12: #{sam_v1_image_encoder.23} parent=5 // pred_fallthru
      _
    %p149 = scmp.lt.s32.totalorder %s10, 2
    // Predicated region
    $region25: #{sam_v1_image_encoder.23} parent=5 // pred_check
      %p150 = pneg %p149
    $region26: #{sam_v1_image_encoder.23} parent=5 // pred_check_branch
      %152 = sbr.rel (%p150) target = $region28
    $region27: #{sam_v1_image_encoder.23} parent=5 // pred_region
      // Predicated region
      $region29: #{sam_v1_image_encoder.23} parent=27 // pred_check
        %p153 = pneg %p30
      $region30: #{sam_v1_image_encoder.23} parent=27 // pred_check_branch
        %155 = sbr.rel (%p153) target = $region32
      $region31: #{sam_v1_image_encoder.23} parent=27 // pred_region
        %s156 = smul.u32 8, %s10
        %p157 = scmp.lt.s32.totalorder %s156, 15
        %s158 = scalar_select %p157, %s156, 15
        %s159 = smul.addr %s158, 4
        %s160 = scalar_lea.vmem %s0, %s159
        %s161 = smul.u32 8, %s10
      $region32: #{sam_v1_image_encoder.23} parent=27 // pred_fallthru
        _
    $region28: #{sam_v1_image_encoder.23} parent=5 // pred_fallthru
      _
    %p162 = scmp.le.s32.totalorder 1, %s10
    %p163 = scmp.lt.s32.totalorder %s10, 3
    %p164 = pnand %p162, %p163
    %p165 = pneg %p164
    // Predicated region
    $region33: #{sam_v1_image_encoder.23} parent=5 // pred_check
      _
    $region34: #{sam_v1_image_encoder.23} parent=5 // pred_check_branch
      %167 = sbr.rel (%p164) target = $region36
    $region35: #{sam_v1_image_encoder.23} parent=5 // pred_region
      %s168 = ssub.s32 %s10, 1
      %s169 = smul.u32 8, %s15
      %p170 = scmp.lt.s32.totalorder %s169, 15
      %s171 = scalar_select %p170, %s169, 15
      %s172 = smul.addr %s171, 4
      %s173 = scalar_lea.vmem %s0, %s172
      %p174 = pneg %p36
      %p175 = pneg %p33
      %p176 = pneg %p57
      %p177 = pneg %p54
      %p178 = pneg %p78
      %p179 = pneg %p75
      %p180 = pneg %p99
      %p181 = pneg %p96
      %p182 = pneg %p125
      %p183 = pneg %p122
      %s184 = smul.u32 8, %s15
      %p185 = scmp.lt.s32.totalorder %s184, 15
      %s186 = scalar_select %p185, %s184, 15
      %s187 = smul.addr %s186, 8
      %s188 = scalar_lea.vmem %s4, %s187
      %s189 = smul.u32 8, %s15
      %p190 = scmp.lt.s32.totalorder %s189, 15
      %s191 = scalar_select %p190, %s189, 15
      %s192 = smul.addr %s191, 4
      %s193 = scalar_lea.vmem %s0, %s192
      %s194 = smul.u32 8, %s15
      %s195 = smul.u32 8, %s15
      %p196 = scmp.lt.s32.totalorder %s195, 15
      %s197 = scalar_select %p196, %s195, 15
      %s198 = smul.addr %s197, 8
      %s199 = scalar_lea.vmem %s4, %s198
      %s200 = smul.u32 8, %s15
      %v202 = vld [vmem:[%s193] sm:$0xf]
      %v203 = vld [vmem:[%s193 + $0x4] sm:$0xf]
      %v204 = vld [vmem:[%s193 + $0x8] sm:$0xf]
      %v205 = vld [vmem:[%s193 + $0xc] sm:$0xf]
      %v206 = vld [vmem:[%s193 + $0x10] sm:$0xf]
      %v207 = vld [vmem:[%s193 + $0x14] sm:$0xf]
      %v208 = vld [vmem:[%s193 + $0x18] sm:$0xf]
      %v209 = vld [vmem:[%s193 + $0x1c] sm:$0xf]
      %v210 = vld [vmem:[%s1] sm:$0xf]
      %v211 = vld [vmem:[%s1 + $0x4] sm:$0xf]
      %v212 = vld [vmem:[%s1 + $0x8] sm:$0xf]
      %v213 = vld [vmem:[%s1 + $0xc] sm:$0xf]
      %v214 = vld [vmem:[%s1 + $0x10] sm:$0xf]
      %v215 = vld [vmem:[%s1 + $0x14] sm:$0xf]
      %v216 = vld [vmem:[%s2] sm:$0x1]
      %v218 = vlaneseq
      %v219 = vshrl.u32 %v218, 7
      %v220 = vsub.s32 0, %v219
      %v221 = vrot.slane %v216, %v220
      %v231 = vunpack.c.l.b16 %v202
      %v232 = vunpack.c.l.b16 %v203
      %v233 = vunpack.c.l.b16 %v204
      %v234 = vunpack.c.l.b16 %v205
      %v235 = vunpack.c.l.b16 %v206
      %v236 = vunpack.c.l.b16 %v207
      %v237 = vunpack.c.l.b16 %v208
      %v238 = vunpack.c.l.b16 %v209
      %v239 = vpack.c.b16 %v232, %v231
      %v240 = vpack.c.b16 %v234, %v233
      %v241 = vpack.c.b16 %v236, %v235
      %v242 = vpack.c.b16 %v238, %v237
      %v249 = vunpack.c.l.b16 %v210
      %v250 = vunpack.c.l.b16 %v211
      %v251 = vunpack.c.l.b16 %v212
      %v252 = vunpack.c.l.b16 %v213
      %v253 = vunpack.c.l.b16 %v214
      %v254 = vunpack.c.l.b16 %v215
      %v255 = vpack.c.b16 %v250, %v249
      %v256 = vpack.c.b16 %v252, %v251
      %v257 = vpack.c.b16 %v254, %v253
      %vm261 = vcmask 392192
      %v263 = vsel %vm261, %v239, 0
      %v266 = vsel %vm261, %v240, 0
      %v269 = vsel %vm261, %v241, 0
      %v272 = vsel %vm261, %v242, 0
      %274 = vmatprep.subr.bf16.mxu0 0
      %275 = vmatpush1.bf16.msra.mxu0 0
      %276 = vmatprep.subr.bf16.mxu0 0
      %277 = vmatpush1.bf16.msra.mxu0 0
      %278 = vmatprep.subr.bf16.mxu0 0
      %279 = vmatpush1.bf16.msra.mxu0 0
      %280 = vmatprep.subr.bf16.mxu0 0
      %281 = vmatpush1.bf16.msra.mxu0 0
      %282 = vmatprep.subr.bf16.mxu0 0
      %283 = vmatpush1.bf16.msra.mxu0 0
      %284 = vmatprep.subr.bf16.mxu0 0
      %285 = vmatpush1.bf16.msra.mxu0 %v257
      %286 = vmatprep.subr.bf16.mxu0 0
      %287 = vmatpush1.bf16.msra.mxu0 %v256
      %288 = vmatprep.subr.bf16.mxu0 0
      %289 = vmatpush1.bf16.msra.mxu0 %v255
      %290 = vmatprep.subr.bf16.mxu0 0
      %291 = vmatpush2.bf16.msra.mxu0 0
      %292 = vmatprep.subr.bf16.mxu0 0
      %293 = vmatpush2.bf16.msra.mxu0 0
      %294 = vmatprep.subr.bf16.mxu0 0
      %295 = vmatpush2.bf16.msra.mxu0 0
      %296 = vmatprep.subr.bf16.mxu0 0
      %297 = vmatpush2.bf16.msra.mxu0 0
      %298 = vmatprep.subr.bf16.mxu0 0
      %299 = vmatpush2.bf16.msra.mxu0 0
      %300 = vmatprep.subr.bf16.mxu0 0
      %301 = vmatpush2.bf16.msra.mxu0 0
      %302 = vmatprep.subr.bf16.mxu0 0
      %303 = vmatpush2.bf16.msra.mxu0 0
      %304 = vmatprep.subr.bf16.mxu0 0
      %305 = vmatpush2.bf16.msra.mxu0 0
      %306 = vmatprep.mubr.bf16.mxu0 0
      %307 = vmatmul.mubr.bf16.gmra.mxu0 %v263
      %v308 = vpop.f32.mrf.mxu0
      %v309 = vadd.f32 %v221, %v308
      %v310 = vpop.f32.mrf.mxu0
      %v311 = vpop.f32.mrf.mxu0
      %v312 = vadd.f32 %v221, %v311
      %v313 = vpop.f32.mrf.mxu0
      %314 = vmatprep.mubr.bf16.mxu0 0
      %315 = vmatmul.mubr.bf16.gmra.mxu0 %v266
      %v316 = vpop.f32.mrf.mxu0
      %v317 = vadd.f32 %v221, %v316
      %v318 = vpop.f32.mrf.mxu0
      %v319 = vpop.f32.mrf.mxu0
      %v320 = vadd.f32 %v221, %v319
      %v321 = vpop.f32.mrf.mxu0
      %322 = vmatprep.mubr.bf16.mxu0 0
      %323 = vmatmul.mubr.bf16.gmra.mxu0 %v269
      %v324 = vpop.f32.mrf.mxu0
      %v325 = vadd.f32 %v221, %v324
      %v326 = vpop.f32.mrf.mxu0
      %v327 = vpop.f32.mrf.mxu0
      %v328 = vadd.f32 %v221, %v327
      %v329 = vpop.f32.mrf.mxu0
      %330 = vmatprep.mubr.bf16.mxu0 0
      %331 = vmatmul.mubr.bf16.gmra.mxu0 %v272
      %v332 = vpop.f32.mrf.mxu0
      %v333 = vadd.f32 %v221, %v332
      %v334 = vpop.f32.mrf.mxu0
      %v335 = vpop.f32.mrf.mxu0
      %v336 = vadd.f32 %v221, %v335
      %v337 = vpop.f32.mrf.mxu0
      %338 = vdwg.mxu0
      %v339 = vld [vmem:[%s3] sm:$0xff]
      %v340 = vld [vmem:[%s3 + $0x8] sm:$0xff]
      %v341 = vld [vmem:[%s3 + $0x10] sm:$0xff]
      %v342 = vld [vmem:[%s3 + $0x18] sm:$0xff]
      %v343 = vld [vmem:[%s3 + $0x20] sm:$0xff]
      %v344 = vld [vmem:[%s3 + $0x28] sm:$0xff]
      %v345 = vld [vmem:[%s3 + $0x30] sm:$0xff]
      %v346 = vld [vmem:[%s3 + $0x38] sm:$0xff]
      %v347 = vadd.f32 %v309, %v339
      %v348 = vadd.f32 %v312, %v340
      %v349 = vadd.f32 %v317, %v341
      %v350 = vadd.f32 %v320, %v342
      %v351 = vadd.f32 %v325, %v343
      %v352 = vadd.f32 %v328, %v344
      %v353 = vadd.f32 %v333, %v345
      %v354 = vadd.f32 %v336, %v346
      %vm355 = vcmask 261120
      %356 = vst.msk [vmem:[%s199] sm:$0xff] %vm355, %v347
      %357 = vst.msk [vmem:[%s199 + $0x8] sm:$0xff] %vm355, %v348
      %358 = vst.msk [vmem:[%s199 + $0x10] sm:$0xff] %vm355, %v349
      %359 = vst.msk [vmem:[%s199 + $0x18] sm:$0xff] %vm355, %v350
      %360 = vst.msk [vmem:[%s199 + $0x20] sm:$0xff] %vm355, %v351
      %361 = vst.msk [vmem:[%s199 + $0x28] sm:$0xff] %vm355, %v352
      %362 = vst.msk [vmem:[%s199 + $0x30] sm:$0xff] %vm355, %v353
      %363 = vst.msk [vmem:[%s199 + $0x38] sm:$0xff] %vm355, %v354
      %s364 = smul.u32 8, %s15
      %p365 = scmp.lt.s32.totalorder %s364, 15
      %s366 = scalar_select %p365, %s364, 15
      %s367 = smul.addr %s366, 8
      %s368 = scalar_lea.vmem %s4, %s367
      // Predicated region
      $region37: #{sam_v1_image_encoder.23} parent=35 // pred_check
        %p369 = pneg %p122
      $region38: #{sam_v1_image_encoder.23} parent=35 // pred_check_branch
        %371 = sbr.rel (%p369) target = $region40
      $region39: #{sam_v1_image_encoder.23} parent=35 // pred_region
        %s372 = smul.u32 8, %s15
      $region40: #{sam_v1_image_encoder.23} parent=35 // pred_fallthru
        _
    $region36: #{sam_v1_image_encoder.23} parent=5 // pred_fallthru
      _
    %p373 = scmp.le.s32.totalorder 2, %s10
    // Predicated region
    $region41: #{sam_v1_image_encoder.23} parent=5 // pred_check
      %p374 = pneg %p373
    $region42: #{sam_v1_image_encoder.23} parent=5 // pred_check_branch
      %376 = sbr.rel (%p374) target = $region44
    $region43: #{sam_v1_image_encoder.23} parent=5 // pred_region
      %s377 = ssub.s32 %s10, 2
      // Predicated region
      $region45: #{sam_v1_image_encoder.23} parent=43 // pred_check
        %p378 = pneg %p128
      $region46: #{sam_v1_image_encoder.23} parent=43 // pred_check_branch
        %380 = sbr.rel (%p378) target = $region48
      $region47: #{sam_v1_image_encoder.23} parent=43 // pred_region
        %s381 = smul.u32 8, %s16
        %p382 = scmp.lt.s32.totalorder %s381, 15
        %s383 = scalar_select %p382, %s381, 15
        %s384 = smul.addr %s383, 8
        %s385 = scalar_lea.vmem %s4, %s384
      $region48: #{sam_v1_image_encoder.23} parent=43 // pred_fallthru
        _
    $region44: #{sam_v1_image_encoder.23} parent=5 // pred_fallthru
      _
  $region6: #{sam_v1_image_encoder.23} parent=0 // loop_footer
    %s14 = sadd.s32 1, %s10
  $region7: #{sam_v1_image_encoder.23} parent=0 // loop_footer_branch
    %9 = sbr.rel target = $region3
  $region8: #{sam_v1_image_encoder.23} parent=0 // loop_exit
    _

// kernel: sam_v1_image_encoder.24
$region0: #{sam_v1_image_encoder.24}
  #allocation0 [shape = 'u32[]', space=smem, size = 0x4, offset = 0x4, fixed_abs, tag = 'smem constant byte address 0x4 - core index']
  #allocation1 [shape = 'u32[144,128]{1,0:T(1,128)}', space=vmem, size = 0x12000, scoped, tag = 'internal scratch']
  %s0 = inlined_call_operand.vmem [shape: f32[128,32], index: 0, kind: input, shape index: {}]
  %s1 = inlined_call_operand.vmem [shape: f32[1,32], index: 1, kind: input, shape index: {}]
  %s2 = inlined_call_operand.vmem [shape: f32[1,32], index: 2, kind: input, shape index: {}]
  %s3 = inlined_call_operand.vmem [shape: bf16[32,32], index: 3, kind: input, shape index: {}]
  %s4 = inlined_call_operand.vmem [shape: f32[1,32], index: 4, kind: input, shape index: {}]
  %s5 = inlined_call_operand.vmem [shape: bf16[32,32], index: 5, kind: input, shape index: {}]
  %s6 = inlined_call_operand.vmem [shape: f32[1,32], index: 6, kind: input, shape index: {}]
  %s7 = inlined_call_operand.vmem [shape: bf16[32,32], index: 7, kind: input, shape index: {}]
  %s8 = inlined_call_operand.vmem [shape: f32[1,32], index: 8, kind: input, shape index: {}]
  %s9 = inlined_call_operand.vmem [shape: bf16[128,32], index: 9, kind: output, shape index: {0}]
  %s10 = inlined_call_operand.vmem [shape: bf16[128,32], index: 10, kind: output, shape index: {1}]
  %s11 = inlined_call_operand.vmem [shape: bf16[128,32], index: 11, kind: output, shape index: {2}]
  %12 = xla_tuple %s9, %s10, %s11
  %s13 = sld [smem:[#allocation0]]
  $region62: #{sam_v1_image_encoder.24} parent=0
    _
  %s15 = ssub.s32 1, %s13
  %s16 = scalar_select 0, %s15, %s13
  // Predicated region
  $region2: #{sam_v1_image_encoder.24} parent=0 // pred_check
    _
  $region3: #{sam_v1_image_encoder.24} parent=0 // pred_check_branch
    %18 = sbr.rel (0) target = $region5
  $region4: #{sam_v1_image_encoder.24} parent=0 // pred_region
    _
  $region5: #{sam_v1_image_encoder.24} parent=0 // pred_fallthru
    _
  // Predicated region
  $region6: #{sam_v1_image_encoder.24} parent=0 // pred_check
    _
  $region7: #{sam_v1_image_encoder.24} parent=0 // pred_check_branch
    %20 = sbr.rel (0) target = $region9
  $region8: #{sam_v1_image_encoder.24} parent=0 // pred_region
    _
  $region9: #{sam_v1_image_encoder.24} parent=0 // pred_fallthru
    _
  // Predicated region
  $region10: #{sam_v1_image_encoder.24} parent=0 // pred_check
    _
  $region11: #{sam_v1_image_encoder.24} parent=0 // pred_check_branch
    %22 = sbr.rel (0) target = $region13
  $region12: #{sam_v1_image_encoder.24} parent=0 // pred_region
    _
  $region13: #{sam_v1_image_encoder.24} parent=0 // pred_fallthru
    _
  // Predicated region
  $region14: #{sam_v1_image_encoder.24} parent=0 // pred_check
    _
  $region15: #{sam_v1_image_encoder.24} parent=0 // pred_check_branch
    %24 = sbr.rel (0) target = $region17
  $region16: #{sam_v1_image_encoder.24} parent=0 // pred_region
    _
  $region17: #{sam_v1_image_encoder.24} parent=0 // pred_fallthru
    _
  // Predicated region
  $region18: #{sam_v1_image_encoder.24} parent=0 // pred_check
    _
  $region19: #{sam_v1_image_encoder.24} parent=0 // pred_check_branch
    %26 = sbr.rel (0) target = $region21
  $region20: #{sam_v1_image_encoder.24} parent=0 // pred_region
    _
  $region21: #{sam_v1_image_encoder.24} parent=0 // pred_fallthru
    _
  // Predicated region
  $region22: #{sam_v1_image_encoder.24} parent=0 // pred_check
    _
  $region23: #{sam_v1_image_encoder.24} parent=0 // pred_check_branch
    %28 = sbr.rel (0) target = $region25
  $region24: #{sam_v1_image_encoder.24} parent=0 // pred_region
    _
  $region25: #{sam_v1_image_encoder.24} parent=0 // pred_fallthru
    _
  // Predicated region
  $region26: #{sam_v1_image_encoder.24} parent=0 // pred_check
    _
  $region27: #{sam_v1_image_encoder.24} parent=0 // pred_check_branch
    %30 = sbr.rel (0) target = $region29
  $region28: #{sam_v1_image_encoder.24} parent=0 // pred_region
    _
  $region29: #{sam_v1_image_encoder.24} parent=0 // pred_fallthru
    _
  // Predicated region
  $region30: #{sam_v1_image_encoder.24} parent=0 // pred_check
    _
  $region31: #{sam_v1_image_encoder.24} parent=0 // pred_check_branch
    %32 = sbr.rel (0) target = $region33
  $region32: #{sam_v1_image_encoder.24} parent=0 // pred_region
    _
  $region33: #{sam_v1_image_encoder.24} parent=0 // pred_fallthru
    _
  // Predicated region
  $region34: #{sam_v1_image_encoder.24} parent=0 // pred_check
    _
  $region35: #{sam_v1_image_encoder.24} parent=0 // pred_check_branch
    %34 = sbr.rel (0) target = $region37
  $region36: #{sam_v1_image_encoder.24} parent=0 // pred_region
    _
  $region37: #{sam_v1_image_encoder.24} parent=0 // pred_fallthru
    _
  %v36 = vld [vmem:[%s0] sm:$0xff]
  %v37 = vld [vmem:[%s0 + $0x8] sm:$0xff]
  %v38 = vld [vmem:[%s0 + $0x10] sm:$0xff]
  %v39 = vld [vmem:[%s0 + $0x18] sm:$0xff]
  %v40 = vld [vmem:[%s0 + $0x20] sm:$0xff]
  %v41 = vld [vmem:[%s0 + $0x28] sm:$0xff]
  %v42 = vld [vmem:[%s0 + $0x30] sm:$0xff]
  %v43 = vld [vmem:[%s0 + $0x38] sm:$0xff]
  %v44 = vld [vmem:[%s0 + $0x40] sm:$0xff]
  %v45 = vld [vmem:[%s0 + $0x48] sm:$0xff]
  %v46 = vld [vmem:[%s0 + $0x50] sm:$0xff]
  %v47 = vld [vmem:[%s0 + $0x58] sm:$0xff]
  %v48 = vld [vmem:[%s0 + $0x60] sm:$0xff]
  %v49 = vld [vmem:[%s0 + $0x68] sm:$0xff]
  %v50 = vld [vmem:[%s0 + $0x70] sm:$0xff]
  %v51 = vld [vmem:[%s0 + $0x78] sm:$0xff]
  %vm52 = vcmask 261120
  %v53 = vsel %vm52, %v36, 0.0
  %54 = vadd.xlane.f32.xlu0 %v53
  %v55 = vpop.xlane.xlu0 %54
  %v56 = vsel %vm52, %v37, 0.0
  %57 = vadd.xlane.f32.xlu0 %v56
  %v58 = vpop.xlane.xlu0 %57
  %v59 = vsel %vm52, %v38, 0.0
  %60 = vadd.xlane.f32.xlu0 %v59
  %v61 = vpop.xlane.xlu0 %60
  %v62 = vsel %vm52, %v39, 0.0
  %63 = vadd.xlane.f32.xlu0 %v62
  %v64 = vpop.xlane.xlu0 %63
  %v65 = vsel %vm52, %v40, 0.0
  %66 = vadd.xlane.f32.xlu0 %v65
  %v67 = vpop.xlane.xlu0 %66
  %v68 = vsel %vm52, %v41, 0.0
  %69 = vadd.xlane.f32.xlu0 %v68
  %v70 = vpop.xlane.xlu0 %69
  %v71 = vsel %vm52, %v42, 0.0
  %72 = vadd.xlane.f32.xlu0 %v71
  %v73 = vpop.xlane.xlu0 %72
  %v74 = vsel %vm52, %v43, 0.0
  %75 = vadd.xlane.f32.xlu0 %v74
  %v76 = vpop.xlane.xlu0 %75
  %v77 = vsel %vm52, %v44, 0.0
  %78 = vadd.xlane.f32.xlu0 %v77
  %v79 = vpop.xlane.xlu0 %78
  %v80 = vsel %vm52, %v45, 0.0
  %81 = vadd.xlane.f32.xlu0 %v80
  %v82 = vpop.xlane.xlu0 %81
  %v83 = vsel %vm52, %v46, 0.0
  %84 = vadd.xlane.f32.xlu0 %v83
  %v85 = vpop.xlane.xlu0 %84
  %v86 = vsel %vm52, %v47, 0.0
  %87 = vadd.xlane.f32.xlu0 %v86
  %v88 = vpop.xlane.xlu0 %87
  %v89 = vsel %vm52, %v48, 0.0
  %90 = vadd.xlane.f32.xlu0 %v89
  %v91 = vpop.xlane.xlu0 %90
  %v92 = vsel %vm52, %v49, 0.0
  %93 = vadd.xlane.f32.xlu0 %v92
  %v94 = vpop.xlane.xlu0 %93
  %v95 = vsel %vm52, %v50, 0.0
  %96 = vadd.xlane.f32.xlu0 %v95
  %v97 = vpop.xlane.xlu0 %96
  %v98 = vsel %vm52, %v51, 0.0
  %99 = vadd.xlane.f32.xlu0 %v98
  %v100 = vpop.xlane.xlu0 %99
  %v101 = vrcp.pop 32.0
  %v102 = vmul.f32 %v55, %v101
  %v103 = vmul.f32 %v58, %v101
  %v104 = vmul.f32 %v61, %v101
  %v105 = vmul.f32 %v64, %v101
  %v106 = vmul.f32 %v67, %v101
  %v107 = vmul.f32 %v70, %v101
  %v108 = vmul.f32 %v73, %v101
  %v109 = vmul.f32 %v76, %v101
  %v110 = vmul.f32 %v79, %v101
  %v111 = vmul.f32 %v82, %v101
  %v112 = vmul.f32 %v85, %v101
  %v113 = vmul.f32 %v88, %v101
  %v114 = vmul.f32 %v91, %v101
  %v115 = vmul.f32 %v94, %v101
  %v116 = vmul.f32 %v97, %v101
  %v117 = vmul.f32 %v100, %v101
  %v118 = vsub.f32 %v36, %v102
  %v119 = vsub.f32 %v37, %v103
  %v120 = vsub.f32 %v38, %v104
  %v121 = vsub.f32 %v39, %v105
  %v122 = vsub.f32 %v40, %v106
  %v123 = vsub.f32 %v41, %v107
  %v124 = vsub.f32 %v42, %v108
  %v125 = vsub.f32 %v43, %v109
  %v126 = vsub.f32 %v44, %v110
  %v127 = vsub.f32 %v45, %v111
  %v128 = vsub.f32 %v46, %v112
  %v129 = vsub.f32 %v47, %v113
  %v130 = vsub.f32 %v48, %v114
  %v131 = vsub.f32 %v49, %v115
  %v132 = vsub.f32 %v50, %v116
  %v133 = vsub.f32 %v51, %v117
  %v134 = vmul.f32 %v118, %v118
  %v135 = vmul.f32 %v119, %v119
  %v136 = vmul.f32 %v120, %v120
  %v137 = vmul.f32 %v121, %v121
  %v138 = vmul.f32 %v122, %v122
  %v139 = vmul.f32 %v123, %v123
  %v140 = vmul.f32 %v124, %v124
  %v141 = vmul.f32 %v125, %v125
  %v142 = vmul.f32 %v126, %v126
  %v143 = vmul.f32 %v127, %v127
  %v144 = vmul.f32 %v128, %v128
  %v145 = vmul.f32 %v129, %v129
  %v146 = vmul.f32 %v130, %v130
  %v147 = vmul.f32 %v131, %v131
  %v148 = vmul.f32 %v132, %v132
  %v149 = vmul.f32 %v133, %v133
  %v150 = vsel %vm52, %v134, 0.0
  %151 = vadd.xlane.f32.xlu0 %v150
  %v152 = vpop.xlane.xlu0 %151
  %v153 = vsel %vm52, %v135, 0.0
  %154 = vadd.xlane.f32.xlu0 %v153
  %v155 = vpop.xlane.xlu0 %154
  %v156 = vsel %vm52, %v136, 0.0
  %157 = vadd.xlane.f32.xlu0 %v156
  %v158 = vpop.xlane.xlu0 %157
  %v159 = vsel %vm52, %v137, 0.0
  %160 = vadd.xlane.f32.xlu0 %v159
  %v161 = vpop.xlane.xlu0 %160
  %v162 = vsel %vm52, %v138, 0.0
  %163 = vadd.xlane.f32.xlu0 %v162
  %v164 = vpop.xlane.xlu0 %163
  %v165 = vsel %vm52, %v139, 0.0
  %166 = vadd.xlane.f32.xlu0 %v165
  %v167 = vpop.xlane.xlu0 %166
  %v168 = vsel %vm52, %v140, 0.0
  %169 = vadd.xlane.f32.xlu0 %v168
  %v170 = vpop.xlane.xlu0 %169
  %v171 = vsel %vm52, %v141, 0.0
  %172 = vadd.xlane.f32.xlu0 %v171
  %v173 = vpop.xlane.xlu0 %172
  %v174 = vsel %vm52, %v142, 0.0
  %175 = vadd.xlane.f32.xlu0 %v174
  %v176 = vpop.xlane.xlu0 %175
  %v177 = vsel %vm52, %v143, 0.0
  %178 = vadd.xlane.f32.xlu0 %v177
  %v179 = vpop.xlane.xlu0 %178
  %v180 = vsel %vm52, %v144, 0.0
  %181 = vadd.xlane.f32.xlu0 %v180
  %v182 = vpop.xlane.xlu0 %181
  %v183 = vsel %vm52, %v145, 0.0
  %184 = vadd.xlane.f32.xlu0 %v183
  %v185 = vpop.xlane.xlu0 %184
  %v186 = vsel %vm52, %v146, 0.0
  %187 = vadd.xlane.f32.xlu0 %v186
  %v188 = vpop.xlane.xlu0 %187
  %v189 = vsel %vm52, %v147, 0.0
  %190 = vadd.xlane.f32.xlu0 %v189
  %v191 = vpop.xlane.xlu0 %190
  %v192 = vsel %vm52, %v148, 0.0
  %193 = vadd.xlane.f32.xlu0 %v192
  %v194 = vpop.xlane.xlu0 %193
  %v195 = vsel %vm52, %v149, 0.0
  %196 = vadd.xlane.f32.xlu0 %v195
  %v197 = vpop.xlane.xlu0 %196
  %v198 = vmul.f32 %v152, %v101
  %v199 = vmul.f32 %v155, %v101
  %v200 = vmul.f32 %v158, %v101
  %v201 = vmul.f32 %v161, %v101
  %v202 = vmul.f32 %v164, %v101
  %v203 = vmul.f32 %v167, %v101
  %v204 = vmul.f32 %v170, %v101
  %v205 = vmul.f32 %v173, %v101
  %v206 = vmul.f32 %v176, %v101
  %v207 = vmul.f32 %v179, %v101
  %v208 = vmul.f32 %v182, %v101
  %v209 = vmul.f32 %v185, %v101
  %v210 = vmul.f32 %v188, %v101
  %v211 = vmul.f32 %v191, %v101
  %v212 = vmul.f32 %v194, %v101
  %v213 = vmul.f32 %v197, %v101
  %v214 = vadd.f32 %v198, 1e-06
  %v215 = vadd.f32 %v199, 1e-06
  %v216 = vadd.f32 %v200, 1e-06
  %v217 = vadd.f32 %v201, 1e-06
  %v218 = vadd.f32 %v202, 1e-06
  %v219 = vadd.f32 %v203, 1e-06
  %v220 = vadd.f32 %v204, 1e-06
  %v221 = vadd.f32 %v205, 1e-06
  %v222 = vadd.f32 %v206, 1e-06
  %v223 = vadd.f32 %v207, 1e-06
  %v224 = vadd.f32 %v208, 1e-06
  %v225 = vadd.f32 %v209, 1e-06
  %v226 = vadd.f32 %v210, 1e-06
  %v227 = vadd.f32 %v211, 1e-06
  %v228 = vadd.f32 %v212, 1e-06
  %v229 = vadd.f32 %v213, 1e-06
  %v230 = vrsqrt.pop %v214
  %v231 = vrsqrt.pop %v215
  %v232 = vrsqrt.pop %v216
  %v233 = vrsqrt.pop %v217
  %v234 = vrsqrt.pop %v218
  %v235 = vrsqrt.pop %v219
  %v236 = vrsqrt.pop %v220
  %v237 = vrsqrt.pop %v221
  %v238 = vrsqrt.pop %v222
  %v239 = vrsqrt.pop %v223
  %v240 = vrsqrt.pop %v224
  %v241 = vrsqrt.pop %v225
  %v242 = vrsqrt.pop %v226
  %v243 = vrsqrt.pop %v227
  %v244 = vrsqrt.pop %v228
  %v245 = vrsqrt.pop %v229
  %v246 = vmul.f32 %v118, %v230
  %v247 = vmul.f32 %v119, %v231
  %v248 = vmul.f32 %v120, %v232
  %v249 = vmul.f32 %v121, %v233
  %v250 = vmul.f32 %v122, %v234
  %v251 = vmul.f32 %v123, %v235
  %v252 = vmul.f32 %v124, %v236
  %v253 = vmul.f32 %v125, %v237
  %v254 = vmul.f32 %v126, %v238
  %v255 = vmul.f32 %v127, %v239
  %v256 = vmul.f32 %v128, %v240
  %v257 = vmul.f32 %v129, %v241
  %v258 = vmul.f32 %v130, %v242
  %v259 = vmul.f32 %v131, %v243
  %v260 = vmul.f32 %v132, %v244
  %v261 = vmul.f32 %v133, %v245
  %v262 = vld [vmem:[%s1] sm:$0x1]
  %v264 = vlaneseq
  %v265 = vshrl.u32 %v264, 7
  %v266 = vsub.s32 0, %v265
  %v267 = vrot.slane %v262, %v266
  %v269 = vmul.f32 %v246, %v267
  %v270 = vmul.f32 %v247, %v267
  %v271 = vmul.f32 %v248, %v267
  %v272 = vmul.f32 %v249, %v267
  %v273 = vmul.f32 %v250, %v267
  %v274 = vmul.f32 %v251, %v267
  %v275 = vmul.f32 %v252, %v267
  %v276 = vmul.f32 %v253, %v267
  %v277 = vmul.f32 %v254, %v267
  %v278 = vmul.f32 %v255, %v267
  %v279 = vmul.f32 %v256, %v267
  %v280 = vmul.f32 %v257, %v267
  %v281 = vmul.f32 %v258, %v267
  %v282 = vmul.f32 %v259, %v267
  %v283 = vmul.f32 %v260, %v267
  %v284 = vmul.f32 %v261, %v267
  %v285 = vld [vmem:[%s2] sm:$0x1]
  %v287 = vlaneseq
  %v288 = vshrl.u32 %v287, 7
  %v289 = vsub.s32 0, %v288
  %v290 = vrot.slane %v285, %v289
  %v292 = vadd.f32 %v269, %v290
  %v293 = vadd.f32 %v270, %v290
  %v294 = vadd.f32 %v271, %v290
  %v295 = vadd.f32 %v272, %v290
  %v296 = vadd.f32 %v273, %v290
  %v297 = vadd.f32 %v274, %v290
  %v298 = vadd.f32 %v275, %v290
  %v299 = vadd.f32 %v276, %v290
  %v300 = vadd.f32 %v277, %v290
  %v301 = vadd.f32 %v278, %v290
  %v302 = vadd.f32 %v279, %v290
  %v303 = vadd.f32 %v280, %v290
  %v304 = vadd.f32 %v281, %v290
  %v305 = vadd.f32 %v282, %v290
  %v306 = vadd.f32 %v283, %v290
  %v307 = vadd.f32 %v284, %v290
  %v308 = vpack.c.bf16 %v293, %v292
  %v309 = vpack.c.bf16 %v295, %v294
  %v310 = vpack.c.bf16 %v297, %v296
  %v311 = vpack.c.bf16 %v299, %v298
  %v312 = vpack.c.bf16 %v301, %v300
  %v313 = vpack.c.bf16 %v303, %v302
  %v314 = vpack.c.bf16 %v305, %v304
  %v315 = vpack.c.bf16 %v307, %v306
  %v316 = vld [vmem:[%s3] sm:$0xf]
  %v317 = vld [vmem:[%s3 + $0x4] sm:$0xf]
  %v318 = vld [vmem:[%s3 + $0x8] sm:$0xf]
  %v319 = vld [vmem:[%s3 + $0xc] sm:$0xf]
  %v320 = vld [vmem:[%s4] sm:$0x1]
  %v322 = vlaneseq
  %v323 = vshrl.u32 %v322, 7
  %v324 = vsub.s32 0, %v323
  %v325 = vrot.slane %v320, %v324
  %v331 = vunpack.c.l.b16 %v316
  %v332 = vunpack.c.l.b16 %v317
  %v333 = vunpack.c.l.b16 %v318
  %v334 = vunpack.c.l.b16 %v319
  %v335 = vpack.c.b16 %v332, %v331
  %v336 = vpack.c.b16 %v334, %v333
  %v340 = vsel %vm52, %v308, 0
  %v343 = vsel %vm52, %v309, 0
  %v346 = vsel %vm52, %v310, 0
  %v349 = vsel %vm52, %v311, 0
  %v352 = vsel %vm52, %v312, 0
  %v355 = vsel %vm52, %v313, 0
  %v358 = vsel %vm52, %v314, 0
  %v361 = vsel %vm52, %v315, 0
  %363 = vmatprep.subr.bf16.mxu0 0
  %364 = vmatpush1.bf16.msra.mxu0 0
  %365 = vmatprep.subr.bf16.mxu0 0
  %366 = vmatpush1.bf16.msra.mxu0 0
  %367 = vmatprep.subr.bf16.mxu0 0
  %368 = vmatpush1.bf16.msra.mxu0 0
  %369 = vmatprep.subr.bf16.mxu0 0
  %370 = vmatpush1.bf16.msra.mxu0 0
  %371 = vmatprep.subr.bf16.mxu0 0
  %372 = vmatpush1.bf16.msra.mxu0 0
  %373 = vmatprep.subr.bf16.mxu0 0
  %374 = vmatpush1.bf16.msra.mxu0 0
  %375 = vmatprep.subr.bf16.mxu0 0
  %376 = vmatpush1.bf16.msra.mxu0 %v336
  %377 = vmatprep.subr.bf16.mxu0 0
  %378 = vmatpush1.bf16.msra.mxu0 %v335
  %379 = vmatprep.subr.bf16.mxu0 0
  %380 = vmatpush2.bf16.msra.mxu0 0
  %381 = vmatprep.subr.bf16.mxu0 0
  %382 = vmatpush2.bf16.msra.mxu0 0
  %383 = vmatprep.subr.bf16.mxu0 0
  %384 = vmatpush2.bf16.msra.mxu0 0
  %385 = vmatprep.subr.bf16.mxu0 0
  %386 = vmatpush2.bf16.msra.mxu0 0
  %387 = vmatprep.subr.bf16.mxu0 0
  %388 = vmatpush2.bf16.msra.mxu0 0
  %389 = vmatprep.subr.bf16.mxu0 0
  %390 = vmatpush2.bf16.msra.mxu0 0
  %391 = vmatprep.subr.bf16.mxu0 0
  %392 = vmatpush2.bf16.msra.mxu0 0
  %393 = vmatprep.subr.bf16.mxu0 0
  %394 = vmatpush2.bf16.msra.mxu0 0
  %395 = vmatprep.mubr.bf16.mxu0 0
  %396 = vmatmul.mubr.bf16.gmra.mxu0 %v340
  %v397 = vpop.f32.mrf.mxu0
  %v398 = vadd.f32 %v325, %v397
  %v399 = vpop.f32.mrf.mxu0
  %v400 = vpop.f32.mrf.mxu0
  %v401 = vadd.f32 %v325, %v400
  %v402 = vpop.f32.mrf.mxu0
  %403 = vmatprep.mubr.bf16.mxu0 0
  %404 = vmatmul.mubr.bf16.gmra.mxu0 %v343
  %v405 = vpop.f32.mrf.mxu0
  %v406 = vadd.f32 %v325, %v405
  %v407 = vpop.f32.mrf.mxu0
  %v408 = vpop.f32.mrf.mxu0
  %v409 = vadd.f32 %v325, %v408
  %v410 = vpop.f32.mrf.mxu0
  %411 = vmatprep.mubr.bf16.mxu0 0
  %412 = vmatmul.mubr.bf16.gmra.mxu0 %v346
  %v413 = vpop.f32.mrf.mxu0
  %v414 = vadd.f32 %v325, %v413
  %v415 = vpop.f32.mrf.mxu0
  %v416 = vpop.f32.mrf.mxu0
  %v417 = vadd.f32 %v325, %v416
  %v418 = vpop.f32.mrf.mxu0
  %419 = vmatprep.mubr.bf16.mxu0 0
  %420 = vmatmul.mubr.bf16.gmra.mxu0 %v349
  %v421 = vpop.f32.mrf.mxu0
  %v422 = vadd.f32 %v325, %v421
  %v423 = vpop.f32.mrf.mxu0
  %v424 = vpop.f32.mrf.mxu0
  %v425 = vadd.f32 %v325, %v424
  %v426 = vpop.f32.mrf.mxu0
  %427 = vmatprep.mubr.bf16.mxu0 0
  %428 = vmatmul.mubr.bf16.gmra.mxu0 %v352
  %v429 = vpop.f32.mrf.mxu0
  %v430 = vadd.f32 %v325, %v429
  %v431 = vpop.f32.mrf.mxu0
  %v432 = vpop.f32.mrf.mxu0
  %v433 = vadd.f32 %v325, %v432
  %v434 = vpop.f32.mrf.mxu0
  %435 = vmatprep.mubr.bf16.mxu0 0
  %436 = vmatmul.mubr.bf16.gmra.mxu0 %v355
  %v437 = vpop.f32.mrf.mxu0
  %v438 = vadd.f32 %v325, %v437
  %v439 = vpop.f32.mrf.mxu0
  %v440 = vpop.f32.mrf.mxu0
  %v441 = vadd.f32 %v325, %v440
  %v442 = vpop.f32.mrf.mxu0
  %443 = vmatprep.mubr.bf16.mxu0 0
  %444 = vmatmul.mubr.bf16.gmra.mxu0 %v358
  %v445 = vpop.f32.mrf.mxu0
  %v446 = vadd.f32 %v325, %v445
  %v447 = vpop.f32.mrf.mxu0
  %v448 = vpop.f32.mrf.mxu0
  %v449 = vadd.f32 %v325, %v448
  %v450 = vpop.f32.mrf.mxu0
  %451 = vmatprep.mubr.bf16.mxu0 0
  %452 = vmatmul.mubr.bf16.gmra.mxu0 %v361
  %v453 = vpop.f32.mrf.mxu0
  %v454 = vadd.f32 %v325, %v453
  %v455 = vpop.f32.mrf.mxu0
  %v456 = vpop.f32.mrf.mxu0
  %v457 = vadd.f32 %v325, %v456
  %v458 = vpop.f32.mrf.mxu0
  %459 = vdwg.mxu0
  %v460 = vpack.c.bf16 %v401, %v398
  %v461 = vpack.c.bf16 %v409, %v406
  %v462 = vpack.c.bf16 %v417, %v414
  %v463 = vpack.c.bf16 %v425, %v422
  %v464 = vpack.c.bf16 %v433, %v430
  %v465 = vpack.c.bf16 %v441, %v438
  %v466 = vpack.c.bf16 %v449, %v446
  %v467 = vpack.c.bf16 %v457, %v454
  %v476 = vunpack.c.l.b16 %v460
  %v477 = vunpack.c.h.b16 %v460
  %v478 = vunpack.c.l.b16 %v461
  %v479 = vunpack.c.h.b16 %v461
  %v480 = vunpack.c.l.b16 %v462
  %v481 = vunpack.c.h.b16 %v462
  %v482 = vunpack.c.l.b16 %v463
  %v483 = vunpack.c.h.b16 %v463
  %v484 = vunpack.c.l.b16 %v464
  %v485 = vunpack.c.h.b16 %v464
  %v486 = vunpack.c.l.b16 %v465
  %v487 = vunpack.c.h.b16 %v465
  %v488 = vunpack.c.l.b16 %v466
  %v489 = vunpack.c.h.b16 %v466
  %v490 = vunpack.c.l.b16 %v467
  %v491 = vunpack.c.h.b16 %v467
  %v492 = vpack.c.b16 %v476, %v476
  %v493 = vpack.c.b16 %v477, %v477
  %v494 = vpack.c.b16 %v478, %v478
  %v495 = vpack.c.b16 %v479, %v479
  %v496 = vpack.c.b16 %v480, %v480
  %v497 = vpack.c.b16 %v481, %v481
  %v498 = vpack.c.b16 %v482, %v482
  %v499 = vpack.c.b16 %v483, %v483
  %v500 = vpack.c.b16 %v484, %v484
  %v501 = vpack.c.b16 %v485, %v485
  %v502 = vpack.c.b16 %v486, %v486
  %v503 = vpack.c.b16 %v487, %v487
  %v504 = vpack.c.b16 %v488, %v488
  %v505 = vpack.c.b16 %v489, %v489
  %v506 = vpack.c.b16 %v490, %v490
  %v507 = vpack.c.b16 %v491, %v491
  %vm524 = vcmask 257024
  %525 = vst.msk [vmem:[%s9] sm:$0xf] %vm524, %v492
  %526 = vst.msk [vmem:[%s9 + $0x4] sm:$0xf] %vm524, %v493
  %527 = vst.msk [vmem:[%s9 + $0x8] sm:$0xf] %vm524, %v494
  %528 = vst.msk [vmem:[%s9 + $0xc] sm:$0xf] %vm524, %v495
  %529 = vst.msk [vmem:[%s9 + $0x10] sm:$0xf] %vm524, %v496
  %530 = vst.msk [vmem:[%s9 + $0x14] sm:$0xf] %vm524, %v497
  %531 = vst.msk [vmem:[%s9 + $0x18] sm:$0xf] %vm524, %v498
  %532 = vst.msk [vmem:[%s9 + $0x1c] sm:$0xf] %vm524, %v499
  %533 = vst.msk [vmem:[%s9 + $0x20] sm:$0xf] %vm524, %v500
  %534 = vst.msk [vmem:[%s9 + $0x24] sm:$0xf] %vm524, %v501
  %535 = vst.msk [vmem:[%s9 + $0x28] sm:$0xf] %vm524, %v502
  %536 = vst.msk [vmem:[%s9 + $0x2c] sm:$0xf] %vm524, %v503
  %537 = vst.msk [vmem:[%s9 + $0x30] sm:$0xf] %vm524, %v504
  %538 = vst.msk [vmem:[%s9 + $0x34] sm:$0xf] %vm524, %v505
  %539 = vst.msk [vmem:[%s9 + $0x38] sm:$0xf] %vm524, %v506
  %540 = vst.msk [vmem:[%s9 + $0x3c] sm:$0xf] %vm524, %v507
  %v541 = vld [vmem:[%s5] sm:$0xf]
  %v542 = vld [vmem:[%s5 + $0x4] sm:$0xf]
  %v543 = vld [vmem:[%s5 + $0x8] sm:$0xf]
  %v544 = vld [vmem:[%s5 + $0xc] sm:$0xf]
  %v545 = vld [vmem:[%s6] sm:$0x1]
  %v547 = vlaneseq
  %v548 = vshrl.u32 %v547, 7
  %v549 = vsub.s32 0, %v548
  %v550 = vrot.slane %v545, %v549
  %v556 = vunpack.c.l.b16 %v541
  %v557 = vunpack.c.l.b16 %v542
  %v558 = vunpack.c.l.b16 %v543
  %v559 = vunpack.c.l.b16 %v544
  %v560 = vpack.c.b16 %v557, %v556
  %v561 = vpack.c.b16 %v559, %v558
  %564 = vmatprep.subr.bf16.mxu0 0
  %565 = vmatpush1.bf16.msra.mxu0 0
  %566 = vmatprep.subr.bf16.mxu0 0
  %567 = vmatpush1.bf16.msra.mxu0 0
  %568 = vmatprep.subr.bf16.mxu0 0
  %569 = vmatpush1.bf16.msra.mxu0 0
  %570 = vmatprep.subr.bf16.mxu0 0
  %571 = vmatpush1.bf16.msra.mxu0 0
  %572 = vmatprep.subr.bf16.mxu0 0
  %573 = vmatpush1.bf16.msra.mxu0 0
  %574 = vmatprep.subr.bf16.mxu0 0
  %575 = vmatpush1.bf16.msra.mxu0 0
  %576 = vmatprep.subr.bf16.mxu0 0
  %577 = vmatpush1.bf16.msra.mxu0 %v561
  %578 = vmatprep.subr.bf16.mxu0 0
  %579 = vmatpush1.bf16.msra.mxu0 %v560
  %580 = vmatprep.subr.bf16.mxu0 0
  %581 = vmatpush2.bf16.msra.mxu0 0
  %582 = vmatprep.subr.bf16.mxu0 0
  %583 = vmatpush2.bf16.msra.mxu0 0
  %584 = vmatprep.subr.bf16.mxu0 0
  %585 = vmatpush2.bf16.msra.mxu0 0
  %586 = vmatprep.subr.bf16.mxu0 0
  %587 = vmatpush2.bf16.msra.mxu0 0
  %588 = vmatprep.subr.bf16.mxu0 0
  %589 = vmatpush2.bf16.msra.mxu0 0
  %590 = vmatprep.subr.bf16.mxu0 0
  %591 = vmatpush2.bf16.msra.mxu0 0
  %592 = vmatprep.subr.bf16.mxu0 0
  %593 = vmatpush2.bf16.msra.mxu0 0
  %594 = vmatprep.subr.bf16.mxu0 0
  %595 = vmatpush2.bf16.msra.mxu0 0
  %596 = vmatprep.mubr.bf16.mxu0 0
  %597 = vmatmul.mubr.bf16.gmra.mxu0 %v340
  %v598 = vpop.f32.mrf.mxu0
  %v599 = vadd.f32 %v550, %v598
  %v600 = vpop.f32.mrf.mxu0
  %v601 = vpop.f32.mrf.mxu0
  %v602 = vadd.f32 %v550, %v601
  %v603 = vpop.f32.mrf.mxu0
  %604 = vmatprep.mubr.bf16.mxu0 0
  %605 = vmatmul.mubr.bf16.gmra.mxu0 %v343
  %v606 = vpop.f32.mrf.mxu0
  %v607 = vadd.f32 %v550, %v606
  %v608 = vpop.f32.mrf.mxu0
  %v609 = vpop.f32.mrf.mxu0
  %v610 = vadd.f32 %v550, %v609
  %v611 = vpop.f32.mrf.mxu0
  %612 = vmatprep.mubr.bf16.mxu0 0
  %613 = vmatmul.mubr.bf16.gmra.mxu0 %v346
  %v614 = vpop.f32.mrf.mxu0
  %v615 = vadd.f32 %v550, %v614
  %v616 = vpop.f32.mrf.mxu0
  %v617 = vpop.f32.mrf.mxu0
  %v618 = vadd.f32 %v550, %v617
  %v619 = vpop.f32.mrf.mxu0
  %620 = vmatprep.mubr.bf16.mxu0 0
  %621 = vmatmul.mubr.bf16.gmra.mxu0 %v349
  %v622 = vpop.f32.mrf.mxu0
  %v623 = vadd.f32 %v550, %v622
  %v624 = vpop.f32.mrf.mxu0
  %v625 = vpop.f32.mrf.mxu0
  %v626 = vadd.f32 %v550, %v625
  %v627 = vpop.f32.mrf.mxu0
  %628 = vmatprep.mubr.bf16.mxu0 0
  %629 = vmatmul.mubr.bf16.gmra.mxu0 %v352
  %v630 = vpop.f32.mrf.mxu0
  %v631 = vadd.f32 %v550, %v630
  %v632 = vpop.f32.mrf.mxu0
  %v633 = vpop.f32.mrf.mxu0
  %v634 = vadd.f32 %v550, %v633
  %v635 = vpop.f32.mrf.mxu0
  %636 = vmatprep.mubr.bf16.mxu0 0
  %637 = vmatmul.mubr.bf16.gmra.mxu0 %v355
  %v638 = vpop.f32.mrf.mxu0
  %v639 = vadd.f32 %v550, %v638
  %v640 = vpop.f32.mrf.mxu0
  %v641 = vpop.f32.mrf.mxu0
  %v642 = vadd.f32 %v550, %v641
  %v643 = vpop.f32.mrf.mxu0
  %644 = vmatprep.mubr.bf16.mxu0 0
  %645 = vmatmul.mubr.bf16.gmra.mxu0 %v358
  %v646 = vpop.f32.mrf.mxu0
  %v647 = vadd.f32 %v550, %v646
  %v648 = vpop.f32.mrf.mxu0
  %v649 = vpop.f32.mrf.mxu0
  %v650 = vadd.f32 %v550, %v649
  %v651 = vpop.f32.mrf.mxu0
  %652 = vmatprep.mubr.bf16.mxu0 0
  %653 = vmatmul.mubr.bf16.gmra.mxu0 %v361
  %v654 = vpop.f32.mrf.mxu0
  %v655 = vadd.f32 %v550, %v654
  %v656 = vpop.f32.mrf.mxu0
  %v657 = vpop.f32.mrf.mxu0
  %v658 = vadd.f32 %v550, %v657
  %v659 = vpop.f32.mrf.mxu0
  %660 = vdwg.mxu0
  %v661 = vpack.c.bf16 %v602, %v599
  %v662 = vpack.c.bf16 %v610, %v607
  %v663 = vpack.c.bf16 %v618, %v615
  %v664 = vpack.c.bf16 %v626, %v623
  %v665 = vpack.c.bf16 %v634, %v631
  %v666 = vpack.c.bf16 %v642, %v639
  %v667 = vpack.c.bf16 %v650, %v647
  %v668 = vpack.c.bf16 %v658, %v655
  %v677 = vunpack.c.l.b16 %v661
  %v678 = vunpack.c.h.b16 %v661
  %v679 = vunpack.c.l.b16 %v662
  %v680 = vunpack.c.h.b16 %v662
  %v681 = vunpack.c.l.b16 %v663
  %v682 = vunpack.c.h.b16 %v663
  %v683 = vunpack.c.l.b16 %v664
  %v684 = vunpack.c.h.b16 %v664
  %v685 = vunpack.c.l.b16 %v665
  %v686 = vunpack.c.h.b16 %v665
  %v687 = vunpack.c.l.b16 %v666
  %v688 = vunpack.c.h.b16 %v666
  %v689 = vunpack.c.l.b16 %v667
  %v690 = vunpack.c.h.b16 %v667
  %v691 = vunpack.c.l.b16 %v668
  %v692 = vunpack.c.h.b16 %v668
  %v693 = vpack.c.b16 %v677, %v677
  %v694 = vpack.c.b16 %v678, %v678
  %v695 = vpack.c.b16 %v679, %v679
  %v696 = vpack.c.b16 %v680, %v680
  %v697 = vpack.c.b16 %v681, %v681
  %v698 = vpack.c.b16 %v682, %v682
  %v699 = vpack.c.b16 %v683, %v683
  %v700 = vpack.c.b16 %v684, %v684
  %v701 = vpack.c.b16 %v685, %v685
  %v702 = vpack.c.b16 %v686, %v686
  %v703 = vpack.c.b16 %v687, %v687
  %v704 = vpack.c.b16 %v688, %v688
  %v705 = vpack.c.b16 %v689, %v689
  %v706 = vpack.c.b16 %v690, %v690
  %v707 = vpack.c.b16 %v691, %v691
  %v708 = vpack.c.b16 %v692, %v692
  %725 = vst.msk [vmem:[%s10] sm:$0xf] %vm524, %v693
  %726 = vst.msk [vmem:[%s10 + $0x4] sm:$0xf] %vm524, %v694
  %727 = vst.msk [vmem:[%s10 + $0x8] sm:$0xf] %vm524, %v695
  %728 = vst.msk [vmem:[%s10 + $0xc] sm:$0xf] %vm524, %v696
  %729 = vst.msk [vmem:[%s10 + $0x10] sm:$0xf] %vm524, %v697
  %730 = vst.msk [vmem:[%s10 + $0x14] sm:$0xf] %vm524, %v698
  %731 = vst.msk [vmem:[%s10 + $0x18] sm:$0xf] %vm524, %v699
  %732 = vst.msk [vmem:[%s10 + $0x1c] sm:$0xf] %vm524, %v700
  %733 = vst.msk [vmem:[%s10 + $0x20] sm:$0xf] %vm524, %v701
  %734 = vst.msk [vmem:[%s10 + $0x24] sm:$0xf] %vm524, %v702
  %735 = vst.msk [vmem:[%s10 + $0x28] sm:$0xf] %vm524, %v703
  %736 = vst.msk [vmem:[%s10 + $0x2c] sm:$0xf] %vm524, %v704
  %737 = vst.msk [vmem:[%s10 + $0x30] sm:$0xf] %vm524, %v705
  %738 = vst.msk [vmem:[%s10 + $0x34] sm:$0xf] %vm524, %v706
  %739 = vst.msk [vmem:[%s10 + $0x38] sm:$0xf] %vm524, %v707
  %740 = vst.msk [vmem:[%s10 + $0x3c] sm:$0xf] %vm524, %v708
  %v741 = vld [vmem:[%s7] sm:$0xf]
  %v742 = vld [vmem:[%s7 + $0x4] sm:$0xf]
  %v743 = vld [vmem:[%s7 + $0x8] sm:$0xf]
  %v744 = vld [vmem:[%s7 + $0xc] sm:$0xf]
  %v745 = vld [vmem:[%s8] sm:$0x1]
  %v747 = vlaneseq
  %v748 = vshrl.u32 %v747, 7
  %v749 = vsub.s32 0, %v748
  %v750 = vrot.slane %v745, %v749
  %v756 = vunpack.c.l.b16 %v741
  %v757 = vunpack.c.l.b16 %v742
  %v758 = vunpack.c.l.b16 %v743
  %v759 = vunpack.c.l.b16 %v744
  %v760 = vpack.c.b16 %v757, %v756
  %v761 = vpack.c.b16 %v759, %v758
  %764 = vmatprep.subr.bf16.mxu0 0
  %765 = vmatpush1.bf16.msra.mxu0 0
  %766 = vmatprep.subr.bf16.mxu0 0
  %767 = vmatpush1.bf16.msra.mxu0 0
  %768 = vmatprep.subr.bf16.mxu0 0
  %769 = vmatpush1.bf16.msra.mxu0 0
  %770 = vmatprep.subr.bf16.mxu0 0
  %771 = vmatpush1.bf16.msra.mxu0 0
  %772 = vmatprep.subr.bf16.mxu0 0
  %773 = vmatpush1.bf16.msra.mxu0 0
  %774 = vmatprep.subr.bf16.mxu0 0
  %775 = vmatpush1.bf16.msra.mxu0 0
  %776 = vmatprep.subr.bf16.mxu0 0
  %777 = vmatpush1.bf16.msra.mxu0 %v761
  %778 = vmatprep.subr.bf16.mxu0 0
  %779 = vmatpush1.bf16.msra.mxu0 %v760
  %780 = vmatprep.subr.bf16.mxu0 0
  %781 = vmatpush2.bf16.msra.mxu0 0
  %782 = vmatprep.subr.bf16.mxu0 0
  %783 = vmatpush2.bf16.msra.mxu0 0
  %784 = vmatprep.subr.bf16.mxu0 0
  %785 = vmatpush2.bf16.msra.mxu0 0
  %786 = vmatprep.subr.bf16.mxu0 0
  %787 = vmatpush2.bf16.msra.mxu0 0
  %788 = vmatprep.subr.bf16.mxu0 0
  %789 = vmatpush2.bf16.msra.mxu0 0
  %790 = vmatprep.subr.bf16.mxu0 0
  %791 = vmatpush2.bf16.msra.mxu0 0
  %792 = vmatprep.subr.bf16.mxu0 0
  %793 = vmatpush2.bf16.msra.mxu0 0
  %794 = vmatprep.subr.bf16.mxu0 0
  %795 = vmatpush2.bf16.msra.mxu0 0
  %796 = vmatprep.mubr.bf16.mxu0 0
  %797 = vmatmul.mubr.bf16.gmra.mxu0 %v340
  %v798 = vpop.f32.mrf.mxu0
  %v799 = vadd.f32 %v750, %v798
  %v800 = vpop.f32.mrf.mxu0
  %v801 = vpop.f32.mrf.mxu0
  %v802 = vadd.f32 %v750, %v801
  %v803 = vpop.f32.mrf.mxu0
  %804 = vmatprep.mubr.bf16.mxu0 0
  %805 = vmatmul.mubr.bf16.gmra.mxu0 %v343
  %v806 = vpop.f32.mrf.mxu0
  %v807 = vadd.f32 %v750, %v806
  %v808 = vpop.f32.mrf.mxu0
  %v809 = vpop.f32.mrf.mxu0
  %v810 = vadd.f32 %v750, %v809
  %v811 = vpop.f32.mrf.mxu0
  %812 = vmatprep.mubr.bf16.mxu0 0
  %813 = vmatmul.mubr.bf16.gmra.mxu0 %v346
  %v814 = vpop.f32.mrf.mxu0
  %v815 = vadd.f32 %v750, %v814
  %v816 = vpop.f32.mrf.mxu0
  %v817 = vpop.f32.mrf.mxu0
  %v818 = vadd.f32 %v750, %v817
  %v819 = vpop.f32.mrf.mxu0
  %820 = vmatprep.mubr.bf16.mxu0 0
  %821 = vmatmul.mubr.bf16.gmra.mxu0 %v349
  %v822 = vpop.f32.mrf.mxu0
  %v823 = vadd.f32 %v750, %v822
  %v824 = vpop.f32.mrf.mxu0
  %v825 = vpop.f32.mrf.mxu0
  %v826 = vadd.f32 %v750, %v825
  %v827 = vpop.f32.mrf.mxu0
  %828 = vmatprep.mubr.bf16.mxu0 0
  %829 = vmatmul.mubr.bf16.gmra.mxu0 %v352
  %v830 = vpop.f32.mrf.mxu0
  %v831 = vadd.f32 %v750, %v830
  %v832 = vpop.f32.mrf.mxu0
  %v833 = vpop.f32.mrf.mxu0
  %v834 = vadd.f32 %v750, %v833
  %v835 = vpop.f32.mrf.mxu0
  %836 = vmatprep.mubr.bf16.mxu0 0
  %837 = vmatmul.mubr.bf16.gmra.mxu0 %v355
  %v838 = vpop.f32.mrf.mxu0
  %v839 = vadd.f32 %v750, %v838
  %v840 = vpop.f32.mrf.mxu0
  %v841 = vpop.f32.mrf.mxu0
  %v842 = vadd.f32 %v750, %v841
  %v843 = vpop.f32.mrf.mxu0
  %844 = vmatprep.mubr.bf16.mxu0 0
  %845 = vmatmul.mubr.bf16.gmra.mxu0 %v358
  %v846 = vpop.f32.mrf.mxu0
  %v847 = vadd.f32 %v750, %v846
  %v848 = vpop.f32.mrf.mxu0
  %v849 = vpop.f32.mrf.mxu0
  %v850 = vadd.f32 %v750, %v849
  %v851 = vpop.f32.mrf.mxu0
  %852 = vmatprep.mubr.bf16.mxu0 0
  %853 = vmatmul.mubr.bf16.gmra.mxu0 %v361
  %v854 = vpop.f32.mrf.mxu0
  %v855 = vadd.f32 %v750, %v854
  %v856 = vpop.f32.mrf.mxu0
  %v857 = vpop.f32.mrf.mxu0
  %v858 = vadd.f32 %v750, %v857
  %v859 = vpop.f32.mrf.mxu0
  %860 = vdwg.mxu0
  %v861 = vpack.c.bf16 %v802, %v799
  %v862 = vpack.c.bf16 %v810, %v807
  %v863 = vpack.c.bf16 %v818, %v815
  %v864 = vpack.c.bf16 %v826, %v823
  %v865 = vpack.c.bf16 %v834, %v831
  %v866 = vpack.c.bf16 %v842, %v839
  %v867 = vpack.c.bf16 %v850, %v847
  %v868 = vpack.c.bf16 %v858, %v855
  %v877 = vunpack.c.l.b16 %v861
  %v878 = vunpack.c.h.b16 %v861
  %v879 = vunpack.c.l.b16 %v862
  %v880 = vunpack.c.h.b16 %v862
  %v881 = vunpack.c.l.b16 %v863
  %v882 = vunpack.c.h.b16 %v863
  %v883 = vunpack.c.l.b16 %v864
  %v884 = vunpack.c.h.b16 %v864
  %v885 = vunpack.c.l.b16 %v865
  %v886 = vunpack.c.h.b16 %v865
  %v887 = vunpack.c.l.b16 %v866
  %v888 = vunpack.c.h.b16 %v866
  %v889 = vunpack.c.l.b16 %v867
  %v890 = vunpack.c.h.b16 %v867
  %v891 = vunpack.c.l.b16 %v868
  %v892 = vunpack.c.h.b16 %v868
  %v893 = vpack.c.b16 %v877, %v877
  %v894 = vpack.c.b16 %v878, %v878
  %v895 = vpack.c.b16 %v879, %v879
  %v896 = vpack.c.b16 %v880, %v880
  %v897 = vpack.c.b16 %v881, %v881
  %v898 = vpack.c.b16 %v882, %v882
  %v899 = vpack.c.b16 %v883, %v883
  %v900 = vpack.c.b16 %v884, %v884
  %v901 = vpack.c.b16 %v885, %v885
  %v902 = vpack.c.b16 %v886, %v886
  %v903 = vpack.c.b16 %v887, %v887
  %v904 = vpack.c.b16 %v888, %v888
  %v905 = vpack.c.b16 %v889, %v889
  %v906 = vpack.c.b16 %v890, %v890
  %v907 = vpack.c.b16 %v891, %v891
  %v908 = vpack.c.b16 %v892, %v892
  %925 = vst.msk [vmem:[%s11] sm:$0xf] %vm524, %v893
  %926 = vst.msk [vmem:[%s11 + $0x4] sm:$0xf] %vm524, %v894
  %927 = vst.msk [vmem:[%s11 + $0x8] sm:$0xf] %vm524, %v895
  %928 = vst.msk [vmem:[%s11 + $0xc] sm:$0xf] %vm524, %v896
  %929 = vst.msk [vmem:[%s11 + $0x10] sm:$0xf] %vm524, %v897
  %930 = vst.msk [vmem:[%s11 + $0x14] sm:$0xf] %vm524, %v898
  %931 = vst.msk [vmem:[%s11 + $0x18] sm:$0xf] %vm524, %v899
  %932 = vst.msk [vmem:[%s11 + $0x1c] sm:$0xf] %vm524, %v900
  %933 = vst.msk [vmem:[%s11 + $0x20] sm:$0xf] %vm524, %v901
  %934 = vst.msk [vmem:[%s11 + $0x24] sm:$0xf] %vm524, %v902
  %935 = vst.msk [vmem:[%s11 + $0x28] sm:$0xf] %vm524, %v903
  %936 = vst.msk [vmem:[%s11 + $0x2c] sm:$0xf] %vm524, %v904
  %937 = vst.msk [vmem:[%s11 + $0x30] sm:$0xf] %vm524, %v905
  %938 = vst.msk [vmem:[%s11 + $0x34] sm:$0xf] %vm524, %v906
  %939 = vst.msk [vmem:[%s11 + $0x38] sm:$0xf] %vm524, %v907
  %940 = vst.msk [vmem:[%s11 + $0x3c] sm:$0xf] %vm524, %v908
  // Predicated region
  $region38: #{sam_v1_image_encoder.24} parent=0 // pred_check
    _
  $region39: #{sam_v1_image_encoder.24} parent=0 // pred_check_branch
    %942 = sbr.rel (0) target = $region41
  $region40: #{sam_v1_image_encoder.24} parent=0 // pred_region
    _
  $region41: #{sam_v1_image_encoder.24} parent=0 // pred_fallthru
    _
  // Predicated region
  $region42: #{sam_v1_image_encoder.24} parent=0 // pred_check
    _
  $region43: #{sam_v1_image_encoder.24} parent=0 // pred_check_branch
    %944 = sbr.rel (0) target = $region45
  $region44: #{sam_v1_image_encoder.24} parent=0 // pred_region
    _
  $region45: #{sam_v1_image_encoder.24} parent=0 // pred_fallthru
    _
  // Predicated region
  $region46: #{sam_v1_image_encoder.24} parent=0 // pred_check
    _
  $region47: #{sam_v1_image_encoder.24} parent=0 // pred_check_branch
    %946 = sbr.rel (0) target = $region49
  $region48: #{sam_v1_image_encoder.24} parent=0 // pred_region
    _
  $region49: #{sam_v1_image_encoder.24} parent=0 // pred_fallthru
    _
  // Predicated region
  $region50: #{sam_v1_image_encoder.24} parent=0 // pred_check
    _
  $region51: #{sam_v1_image_encoder.24} parent=0 // pred_check_branch
    %948 = sbr.rel (0) target = $region53
  $region52: #{sam_v1_image_encoder.24} parent=0 // pred_region
    _
  $region53: #{sam_v1_image_encoder.24} parent=0 // pred_fallthru
    _
  // Predicated region
  $region54: #{sam_v1_image_encoder.24} parent=0 // pred_check
    _
  $region55: #{sam_v1_image_encoder.24} parent=0 // pred_check_branch
    %950 = sbr.rel (0) target = $region57
  $region56: #{sam_v1_image_encoder.24} parent=0 // pred_region
    _
  $region57: #{sam_v1_image_encoder.24} parent=0 // pred_fallthru
    _
  // Predicated region
  $region58: #{sam_v1_image_encoder.24} parent=0 // pred_check
    _
  $region59: #{sam_v1_image_encoder.24} parent=0 // pred_check_branch
    %952 = sbr.rel (0) target = $region61
  $region60: #{sam_v1_image_encoder.24} parent=0 // pred_region
    _
  $region61: #{sam_v1_image_encoder.24} parent=0 // pred_fallthru
    _

// kernel: sam_v1_image_encoder.25
$region0: #{sam_v1_image_encoder.25}
  #allocation0 [shape = 'u32[]', space=smem, size = 0x4, offset = 0x4, fixed_abs, tag = 'smem constant byte address 0x4 - core index']
  #allocation1 [shape = 'u32[144,128]{1,0:T(1,128)}', space=vmem, size = 0x12000, scoped, tag = 'internal scratch']
  #allocation2 [shape = 'f32[16,1]{1,0:T(8,128)}', space=vmem, size = 0x2000, scoped, tag = 'scratch operand']
  #allocation3 [shape = 'f32[16,1]{1,0:T(8,128)}', space=vmem, size = 0x2000, scoped, tag = 'scratch operand']
  #allocation4 [shape = 'f32[16,8]{1,0:T(8,128)}', space=vmem, size = 0x2000, scoped, tag = 'scratch operand']
  %s0 = inlined_call_operand.vmem [shape: bf16[32,16,8], index: 0, kind: input, shape index: {}]
  %s1 = inlined_call_operand.vmem [shape: bf16[32,16,8], index: 1, kind: input, shape index: {}]
  %s2 = inlined_call_operand.vmem [shape: bf16[32,16,8], index: 2, kind: input, shape index: {}]
  %s3 = inlined_call_operand.vmem [shape: bf16[32,16,8], index: 3, kind: output, shape index: {}]
  %s4 = sld [smem:[#allocation0]]
  $region53: #{sam_v1_image_encoder.25} parent=0
    _
  %s6 = ssub.s32 1, %s4
  %s7 = scalar_select 0, %s6, %s4
  loop: start=0, step=1, limit=34
  $region2: #{sam_v1_image_encoder.25} parent=0 // loop_pre_header
    _
  $region3: #{sam_v1_image_encoder.25} parent=0 // loop_header
    %s9 = sphi 0, %s13
    %p10 = scmp.ge.s32.totalorder %s9, 34
    %s16 = sphi 0, %s35
    %s17 = sphi 0, %s31
    %s18 = sphi 0, %s27
    %s19 = sphi 0, %s16
    %s20 = sphi 0, %s17
    %s21 = sphi 0, %s18
    %s22 = sphi 0, %s19
    %s23 = sphi 0, %s20
    %s24 = sphi 0, %s21
    %s40 = sphi 0, %s42
    %s43 = sphi 0, %s40
    %s44 = sphi 0, %s43
    %s60 = sphi 0, %s44
    %s68 = sphi 0, %s70
    %s71 = sphi 0, %s68
    %s72 = sphi 0, %s71
    %s88 = sphi 0, %s72
    %s96 = sphi 0, %s98
    %s99 = sphi 0, %s96
    %s100 = sphi 0, %s99
    %s116 = sphi 0, %s100
    %s124 = sphi 0, %s126
    %s127 = sphi 0, %s124
    %s128 = sphi 0, %s127
    %s144 = sphi 0, %s128
  $region4: #{sam_v1_image_encoder.25} parent=0 // loop_header_branch
    %12 = sbr.rel (%p10) target = $region8
  $region5: #{sam_v1_image_encoder.25} parent=0 // loop_body
    %s14 = ssub.s32 %s9, 1
    %s15 = ssub.s32 %s9, 2
    %s25 = sadd.s32 1, %s18
    %p26 = scmp.ge.s32.totalorder %s25, 1
    %s27 = scalar_select %p26, 0, %s25
    %s28 = sadd.s32 1, %s17
    %s29 = scalar_select %p26, %s28, %s17
    %p30 = scmp.ge.s32.totalorder %s29, 1
    %s31 = scalar_select %p30, 0, %s29
    %s32 = sadd.s32 1, %s16
    %s33 = scalar_select %p30, %s32, %s16
    %p34 = scmp.ge.s32.totalorder %s33, 32
    %s35 = scalar_select %p34, 0, %s33
    %s36 = ssub.s32 %s16, %s35
    %s37 = ssub.s32 %s17, %s31
    %s38 = sor.u32 %s36, %s37
    %p39 = scmp.eq.s32.totalorder %s38, 0
    %s41 = sadd.s32 %s40, 1
    %s42 = scalar_select %p39, %s40, %s41
    %p45 = pneg %p39
    %p46 = scmp.eq.s32.totalorder %s9, 31
    %p47 = por %p45, %p46
    %p48 = scmp.ne.s32.totalorder %s40, %s43
    %p49 = scmp.eq.s32.totalorder %s9, 0
    %p50 = por %p48, %p49
    %p51 = scmp.ne.s32.totalorder %s40, %s43
    %p52 = scmp.eq.s32.totalorder %s14, 31
    %p53 = por %p51, %p52
    %p54 = scmp.ne.s32.totalorder %s43, %s44
    %p55 = scmp.eq.s32.totalorder %s14, 0
    %p56 = por %p54, %p55
    %p57 = scmp.ne.s32.totalorder %s43, %s44
    %p58 = scmp.eq.s32.totalorder %s15, 31
    %p59 = por %p57, %p58
    %p61 = scmp.ne.s32.totalorder %s44, %s60
    %p62 = scmp.eq.s32.totalorder %s15, 0
    %p63 = por %p61, %p62
    %s64 = ssub.s32 %s16, %s35
    %s65 = ssub.s32 %s18, %s27
    %s66 = sor.u32 %s64, %s65
    %p67 = scmp.eq.s32.totalorder %s66, 0
    %s69 = sadd.s32 %s68, 1
    %s70 = scalar_select %p67, %s68, %s69
    %p73 = pneg %p67
    %p74 = scmp.eq.s32.totalorder %s9, 31
    %p75 = por %p73, %p74
    %p76 = scmp.ne.s32.totalorder %s68, %s71
    %p77 = scmp.eq.s32.totalorder %s9, 0
    %p78 = por %p76, %p77
    %p79 = scmp.ne.s32.totalorder %s68, %s71
    %p80 = scmp.eq.s32.totalorder %s14, 31
    %p81 = por %p79, %p80
    %p82 = scmp.ne.s32.totalorder %s71, %s72
    %p83 = scmp.eq.s32.totalorder %s14, 0
    %p84 = por %p82, %p83
    %p85 = scmp.ne.s32.totalorder %s71, %s72
    %p86 = scmp.eq.s32.totalorder %s15, 31
    %p87 = por %p85, %p86
    %p89 = scmp.ne.s32.totalorder %s72, %s88
    %p90 = scmp.eq.s32.totalorder %s15, 0
    %p91 = por %p89, %p90
    %s92 = ssub.s32 %s16, %s35
    %s93 = ssub.s32 %s18, %s27
    %s94 = sor.u32 %s92, %s93
    %p95 = scmp.eq.s32.totalorder %s94, 0
    %s97 = sadd.s32 %s96, 1
    %s98 = scalar_select %p95, %s96, %s97
    %p101 = pneg %p95
    %p102 = scmp.eq.s32.totalorder %s9, 31
    %p103 = por %p101, %p102
    %p104 = scmp.ne.s32.totalorder %s96, %s99
    %p105 = scmp.eq.s32.totalorder %s9, 0
    %p106 = por %p104, %p105
    %p107 = scmp.ne.s32.totalorder %s96, %s99
    %p108 = scmp.eq.s32.totalorder %s14, 31
    %p109 = por %p107, %p108
    %p110 = scmp.ne.s32.totalorder %s99, %s100
    %p111 = scmp.eq.s32.totalorder %s14, 0
    %p112 = por %p110, %p111
    %p113 = scmp.ne.s32.totalorder %s99, %s100
    %p114 = scmp.eq.s32.totalorder %s15, 31
    %p115 = por %p113, %p114
    %p117 = scmp.ne.s32.totalorder %s100, %s116
    %p118 = scmp.eq.s32.totalorder %s15, 0
    %p119 = por %p117, %p118
    %s120 = ssub.s32 %s16, %s35
    %s121 = ssub.s32 %s17, %s31
    %s122 = sor.u32 %s120, %s121
    %p123 = scmp.eq.s32.totalorder %s122, 0
    %s125 = sadd.s32 %s124, 1
    %s126 = scalar_select %p123, %s124, %s125
    %p129 = pneg %p123
    %p130 = scmp.eq.s32.totalorder %s9, 31
    %p131 = por %p129, %p130
    %p132 = scmp.ne.s32.totalorder %s124, %s127
    %p133 = scmp.eq.s32.totalorder %s9, 0
    %p134 = por %p132, %p133
    %p135 = scmp.ne.s32.totalorder %s124, %s127
    %p136 = scmp.eq.s32.totalorder %s14, 31
    %p137 = por %p135, %p136
    %p138 = scmp.ne.s32.totalorder %s127, %s128
    %p139 = scmp.eq.s32.totalorder %s14, 0
    %p140 = por %p138, %p139
    %p141 = scmp.ne.s32.totalorder %s127, %s128
    %p142 = scmp.eq.s32.totalorder %s15, 31
    %p143 = por %p141, %p142
    %p145 = scmp.ne.s32.totalorder %s128, %s144
    %p146 = scmp.eq.s32.totalorder %s15, 0
    %p147 = por %p145, %p146
    %p148 = scmp.le.s32.totalorder 1, %s9
    %p149 = scmp.lt.s32.totalorder %s9, 33
    %p150 = pnand %p148, %p149
    %p151 = pneg %p150
    // Predicated region
    $region9: #{sam_v1_image_encoder.25} parent=5 // pred_check
      _
    $region10: #{sam_v1_image_encoder.25} parent=5 // pred_check_branch
      %153 = sbr.rel (%p150) target = $region12
    $region11: #{sam_v1_image_encoder.25} parent=5 // pred_region
      %s154 = ssub.s32 %s9, 1
    $region12: #{sam_v1_image_encoder.25} parent=5 // pred_fallthru
      _
    %p155 = scmp.lt.s32.totalorder %s9, 32
    // Predicated region
    $region13: #{sam_v1_image_encoder.25} parent=5 // pred_check
      %p156 = pneg %p155
    $region14: #{sam_v1_image_encoder.25} parent=5 // pred_check_branch
      %158 = sbr.rel (%p156) target = $region16
    $region15: #{sam_v1_image_encoder.25} parent=5 // pred_region
      // Predicated region
      $region17: #{sam_v1_image_encoder.25} parent=15 // pred_check
        %p159 = pneg %p50
      $region18: #{sam_v1_image_encoder.25} parent=15 // pred_check_branch
        %161 = sbr.rel (%p159) target = $region20
      $region19: #{sam_v1_image_encoder.25} parent=15 // pred_region
        %s162 = smul.u32 2, %s17
        %p163 = scmp.lt.s32.totalorder %s16, 31
        %s164 = scalar_select %p163, %s16, 31
        %p165 = scmp.lt.s32.totalorder %s162, 1
        %s166 = scalar_select %p165, %s162, 1
        %s167 = smul.addr %s164, 2
        %s168 = sadd.s32 %s166, %s167
        %s169 = smul.addr %s168, 4
        %s170 = scalar_lea.vmem %s0, %s169
        %s171 = smul.u32 2, %s17
      $region20: #{sam_v1_image_encoder.25} parent=15 // pred_fallthru
        _
      // Predicated region
      $region21: #{sam_v1_image_encoder.25} parent=15 // pred_check
        %p172 = pneg %p78
      $region22: #{sam_v1_image_encoder.25} parent=15 // pred_check_branch
        %174 = sbr.rel (%p172) target = $region24
      $region23: #{sam_v1_image_encoder.25} parent=15 // pred_region
        %s175 = smul.u32 2, %s18
        %p176 = scmp.lt.s32.totalorder %s16, 31
        %s177 = scalar_select %p176, %s16, 31
        %p178 = scmp.lt.s32.totalorder %s175, 1
        %s179 = scalar_select %p178, %s175, 1
        %s180 = smul.addr %s177, 2
        %s181 = sadd.s32 %s179, %s180
        %s182 = smul.addr %s181, 4
        %s183 = scalar_lea.vmem %s1, %s182
        %s184 = smul.u32 2, %s18
      $region24: #{sam_v1_image_encoder.25} parent=15 // pred_fallthru
        _
      // Predicated region
      $region25: #{sam_v1_image_encoder.25} parent=15 // pred_check
        %p185 = pneg %p106
      $region26: #{sam_v1_image_encoder.25} parent=15 // pred_check_branch
        %187 = sbr.rel (%p185) target = $region28
      $region27: #{sam_v1_image_encoder.25} parent=15 // pred_region
        %s188 = smul.u32 2, %s18
        %p189 = scmp.lt.s32.totalorder %s16, 31
        %s190 = scalar_select %p189, %s16, 31
        %p191 = scmp.lt.s32.totalorder %s188, 1
        %s192 = scalar_select %p191, %s188, 1
        %s193 = smul.addr %s190, 2
        %s194 = sadd.s32 %s192, %s193
        %s195 = smul.addr %s194, 4
        %s196 = scalar_lea.vmem %s2, %s195
        %s197 = smul.u32 2, %s18
      $region28: #{sam_v1_image_encoder.25} parent=15 // pred_fallthru
        _
    $region16: #{sam_v1_image_encoder.25} parent=5 // pred_fallthru
      _
    %p198 = scmp.le.s32.totalorder 1, %s9
    %p199 = scmp.lt.s32.totalorder %s9, 33
    %p200 = pnand %p198, %p199
    %p201 = pneg %p200
    // Predicated region
    $region29: #{sam_v1_image_encoder.25} parent=5 // pred_check
      _
    $region30: #{sam_v1_image_encoder.25} parent=5 // pred_check_branch
      %203 = sbr.rel (%p200) target = $region32
    $region31: #{sam_v1_image_encoder.25} parent=5 // pred_region
      %s204 = ssub.s32 %s9, 1
      %s205 = smul.u32 2, %s20
      %p206 = scmp.lt.s32.totalorder %s19, 31
      %s207 = scalar_select %p206, %s19, 31
      %p208 = scmp.lt.s32.totalorder %s205, 1
      %s209 = scalar_select %p208, %s205, 1
      %s210 = smul.addr %s207, 2
      %s211 = sadd.s32 %s209, %s210
      %s212 = smul.addr %s211, 4
      %s213 = scalar_lea.vmem %s0, %s212
      %p214 = pneg %p56
      %p215 = pneg %p53
      %s216 = smul.u32 2, %s21
      %p217 = scmp.lt.s32.totalorder %s19, 31
      %s218 = scalar_select %p217, %s19, 31
      %p219 = scmp.lt.s32.totalorder %s216, 1
      %s220 = scalar_select %p219, %s216, 1
      %s221 = smul.addr %s218, 2
      %s222 = sadd.s32 %s220, %s221
      %s223 = smul.addr %s222, 4
      %s224 = scalar_lea.vmem %s1, %s223
      %p225 = pneg %p84
      %p226 = pneg %p81
      %s227 = smul.u32 2, %s21
      %p228 = scmp.lt.s32.totalorder %s19, 31
      %s229 = scalar_select %p228, %s19, 31
      %p230 = scmp.lt.s32.totalorder %s227, 1
      %s231 = scalar_select %p230, %s227, 1
      %s232 = smul.addr %s229, 2
      %s233 = sadd.s32 %s231, %s232
      %s234 = smul.addr %s233, 4
      %s235 = scalar_lea.vmem %s2, %s234
      %p236 = pneg %p112
      %p237 = pneg %p109
      %p238 = pneg %p140
      %p239 = pneg %p137
      %s240 = smul.u32 2, %s20
      %p241 = scmp.lt.s32.totalorder %s19, 31
      %s242 = scalar_select %p241, %s19, 31
      %p243 = scmp.lt.s32.totalorder %s240, 1
      %s244 = scalar_select %p243, %s240, 1
      %s245 = smul.addr %s242, 2
      %s246 = sadd.s32 %s244, %s245
      %s247 = smul.addr %s246, 4
      %s248 = scalar_lea.vmem %s3, %s247
      %s249 = smul.u32 2, %s20
      %p250 = scmp.lt.s32.totalorder %s19, 31
      %s251 = scalar_select %p250, %s19, 31
      %p252 = scmp.lt.s32.totalorder %s249, 1
      %s253 = scalar_select %p252, %s249, 1
      %s254 = smul.addr %s251, 2
      %s255 = sadd.s32 %s253, %s254
      %s256 = smul.addr %s255, 4
      %s257 = scalar_lea.vmem %s0, %s256
      %s258 = smul.u32 2, %s20
      %s259 = smul.u32 2, %s21
      %p260 = scmp.lt.s32.totalorder %s19, 31
      %s261 = scalar_select %p260, %s19, 31
      %p262 = scmp.lt.s32.totalorder %s259, 1
      %s263 = scalar_select %p262, %s259, 1
      %s264 = smul.addr %s261, 2
      %s265 = sadd.s32 %s263, %s264
      %s266 = smul.addr %s265, 4
      %s267 = scalar_lea.vmem %s1, %s266
      %s268 = smul.u32 2, %s21
      %s269 = smul.u32 2, %s21
      %p270 = scmp.lt.s32.totalorder %s19, 31
      %s271 = scalar_select %p270, %s19, 31
      %p272 = scmp.lt.s32.totalorder %s269, 1
      %s273 = scalar_select %p272, %s269, 1
      %s274 = smul.addr %s271, 2
      %s275 = sadd.s32 %s273, %s274
      %s276 = smul.addr %s275, 4
      %s277 = scalar_lea.vmem %s2, %s276
      %s278 = smul.u32 2, %s21
      %s279 = smul.u32 2, %s20
      %p280 = scmp.lt.s32.totalorder %s19, 31
      %s281 = scalar_select %p280, %s19, 31
      %p282 = scmp.lt.s32.totalorder %s279, 1
      %s283 = scalar_select %p282, %s279, 1
      %s284 = smul.addr %s281, 2
      %s285 = sadd.s32 %s283, %s284
      %s286 = smul.addr %s285, 4
      %s287 = scalar_lea.vmem %s3, %s286
      %s288 = smul.u32 2, %s20
      %p290 = scmp.eq.s32.totalorder %s21, 0
      // Predicated region
      $region33: #{sam_v1_image_encoder.25} parent=31 // pred_check
        %p291 = pneg %p290
      $region34: #{sam_v1_image_encoder.25} parent=31 // pred_check_branch
        %293 = sbr.rel (%p291) target = $region36
      $region35: #{sam_v1_image_encoder.25} parent=31 // pred_region
        %vm294 = vcmask 7168
        %295 = vst.msk [vmem:[#allocation2] sm:$0xff] %vm294, -1e+30
        %296 = vst.msk [vmem:[#allocation2 + $0x8] sm:$0xff] %vm294, -1e+30
        %297 = vst.msk [vmem:[#allocation3] sm:$0xff] %vm294, 0.0
        %298 = vst.msk [vmem:[#allocation3 + $0x8] sm:$0xff] %vm294, 0.0
        %vm299 = vcmask 64512
        %300 = vst.msk [vmem:[#allocation4] sm:$0xff] %vm299, 0.0
        %301 = vst.msk [vmem:[#allocation4 + $0x8] sm:$0xff] %vm299, 0.0
      $region36: #{sam_v1_image_encoder.25} parent=31 // pred_fallthru
        _
      %v302 = vld [vmem:[%s257] sm:$0xf]
      %v303 = vld [vmem:[%s257 + $0x4] sm:$0xf]
      %v304 = vld [vmem:[%s267] sm:$0xf]
      %v305 = vld [vmem:[%s267 + $0x4] sm:$0xf]
      %v306 = vld [vmem:[%s277] sm:$0xf]
      %v307 = vld [vmem:[%s277 + $0x4] sm:$0xf]
      %v310 = vunpack.c.l.b16 %v302
      %v311 = vunpack.c.l.b16 %v303
      %v312 = vpack.c.b16 %v311, %v310
      %v315 = vunpack.c.l.b16 %v304
      %v316 = vunpack.c.l.b16 %v305
      %v317 = vpack.c.b16 %v316, %v315
      %vm318 = vcmask 64512
      %v320 = vsel %vm318, %v312, 0
      %v323 = vsel %vm318, %v317, 0
      %325 = vmatprep.subr.bf16.mxu0 0
      %326 = vmatpush1.bf16.xpose.msra.mxu0 0
      %327 = vmatprep.subr.bf16.mxu0 0
      %328 = vmatpush1.bf16.xpose.msra.mxu0 0
      %329 = vmatprep.subr.bf16.mxu0 0
      %330 = vmatpush1.bf16.xpose.msra.mxu0 0
      %331 = vmatprep.subr.bf16.mxu0 0
      %332 = vmatpush1.bf16.xpose.msra.mxu0 0
      %333 = vmatprep.subr.bf16.mxu0 0
      %334 = vmatpush1.bf16.xpose.msra.mxu0 0
      %335 = vmatprep.subr.bf16.mxu0 0
      %336 = vmatpush1.bf16.xpose.msra.mxu0 0
      %337 = vmatprep.subr.bf16.mxu0 0
      %338 = vmatpush1.bf16.xpose.msra.mxu0 0
      %339 = vmatprep.subr.bf16.mxu0 0
      %340 = vmatpush1.bf16.xpose.msra.mxu0 %v323
      %341 = vmatprep.subr.bf16.mxu0 0
      %342 = vmatpush2.bf16.xpose.msra.mxu0 0
      %343 = vmatprep.subr.bf16.mxu0 0
      %344 = vmatpush2.bf16.xpose.msra.mxu0 0
      %345 = vmatprep.subr.bf16.mxu0 0
      %346 = vmatpush2.bf16.xpose.msra.mxu0 0
      %347 = vmatprep.subr.bf16.mxu0 0
      %348 = vmatpush2.bf16.xpose.msra.mxu0 0
      %349 = vmatprep.subr.bf16.mxu0 0
      %350 = vmatpush2.bf16.xpose.msra.mxu0 0
      %351 = vmatprep.subr.bf16.mxu0 0
      %352 = vmatpush2.bf16.xpose.msra.mxu0 0
      %353 = vmatprep.subr.bf16.mxu0 0
      %354 = vmatpush2.bf16.xpose.msra.mxu0 0
      %355 = vmatprep.subr.bf16.mxu0 0
      %356 = vmatpush2.bf16.xpose.msra.mxu0 0
      %357 = vmatprep.mubr.bf16.mxu0 0
      %358 = vmatmul.mubr.bf16.gmra.mxu0 %v320
      %v359 = vpop.f32.mrf.mxu0
      %v360 = vadd.f32 0.0, %v359
      %v361 = vpop.f32.mrf.mxu0
      %v362 = vpop.f32.mrf.mxu0
      %v363 = vadd.f32 0.0, %v362
      %v364 = vpop.f32.mrf.mxu0
      %365 = vdwg.mxu0
      %v366 = vld [vmem:[#allocation2] sm:$0xff]
      %v367 = vld [vmem:[#allocation2 + $0x8] sm:$0xff]
      %vm368 = vcmask 130048
      %v369 = vsel %vm368, %v360, -inf
      %370 = vmax.xlane.f32.xlu0 %v369
      %v371 = vpop.xlane.xlu0 %370
      %v372 = vsel %vm368, %v363, -inf
      %373 = vmax.xlane.f32.xlu0 %v372
      %v374 = vpop.xlane.xlu0 %373
      %v375 = vmax.f32 %v366, %v371
      %v376 = vmax.f32 %v367, %v374
      %v377 = vsub.f32 %v366, %v375
      %v378 = vsub.f32 %v367, %v376
      %v379 = vmul.f32 %v377, 1.442695
      %v380 = vpow.pop %v379
      %v381 = vmul.f32 %v378, 1.442695
      %v382 = vpow.pop %v381
      %384 = vset.pattern.permute.xlu0 0
      %385 = vperm.xlu0 %384, %v375
      %v386 = vpop.permute.xlu0 %385
      %389 = vset.pattern.permute.xlu0 0
      %390 = vperm.xlu0 %389, %v376
      %v391 = vpop.permute.xlu0 %390
      %v393 = vsub.f32 %v360, %v386
      %v394 = vsub.f32 %v363, %v391
      %v395 = vmul.f32 %v393, 1.442695
      %v396 = vpow.pop %v395
      %v397 = vmul.f32 %v394, 1.442695
      %v398 = vpow.pop %v397
      %v399 = vld [vmem:[#allocation3] sm:$0xff]
      %v400 = vld [vmem:[#allocation3 + $0x8] sm:$0xff]
      %v401 = vmul.f32 %v380, %v399
      %v402 = vmul.f32 %v382, %v400
      %v403 = vsel %vm368, %v396, 0.0
      %404 = vadd.xlane.f32.xlu0 %v403
      %v405 = vpop.xlane.xlu0 %404
      %v406 = vsel %vm368, %v398, 0.0
      %407 = vadd.xlane.f32.xlu0 %v406
      %v408 = vpop.xlane.xlu0 %407
      %v409 = vadd.f32 %v401, %v405
      %v410 = vadd.f32 %v402, %v408
      %vm411 = vcmask 7168
      %412 = vst.msk [vmem:[#allocation3] sm:$0xff] %vm411, %v409
      %413 = vst.msk [vmem:[#allocation3 + $0x8] sm:$0xff] %vm411, %v410
      %v414 = vld [vmem:[#allocation4] sm:$0xff]
      %v415 = vld [vmem:[#allocation4 + $0x8] sm:$0xff]
      %417 = vset.pattern.permute.xlu0 0
      %418 = vperm.xlu0 %417, %v380
      %v419 = vpop.permute.xlu0 %418
      %422 = vset.pattern.permute.xlu0 0
      %423 = vperm.xlu0 %422, %v382
      %v424 = vpop.permute.xlu0 %423
      %v426 = vmul.f32 %v419, %v414
      %v427 = vmul.f32 %v424, %v415
      %v428 = vpack.c.bf16 %v398, %v396
      %v431 = vunpack.c.l.b16 %v306
      %v432 = vunpack.c.l.b16 %v307
      %v433 = vpack.c.b16 %v432, %v431
      %v436 = vsel %vm368, %v428, 0
      %438 = vmatprep.subr.bf16.mxu0 0
      %439 = vmatpush1.bf16.msra.mxu0 0
      %440 = vmatprep.subr.bf16.mxu0 0
      %441 = vmatpush1.bf16.msra.mxu0 0
      %442 = vmatprep.subr.bf16.mxu0 0
      %443 = vmatpush1.bf16.msra.mxu0 0
      %444 = vmatprep.subr.bf16.mxu0 0
      %445 = vmatpush1.bf16.msra.mxu0 0
      %446 = vmatprep.subr.bf16.mxu0 0
      %447 = vmatpush1.bf16.msra.mxu0 0
      %448 = vmatprep.subr.bf16.mxu0 0
      %449 = vmatpush1.bf16.msra.mxu0 0
      %450 = vmatprep.subr.bf16.mxu0 0
      %451 = vmatpush1.bf16.msra.mxu0 0
      %452 = vmatprep.subr.bf16.mxu0 0
      %453 = vmatpush1.bf16.msra.mxu0 %v433
      %454 = vmatprep.subr.bf16.mxu0 0
      %455 = vmatpush2.bf16.msra.mxu0 0
      %456 = vmatprep.subr.bf16.mxu0 0
      %457 = vmatpush2.bf16.msra.mxu0 0
      %458 = vmatprep.subr.bf16.mxu0 0
      %459 = vmatpush2.bf16.msra.mxu0 0
      %460 = vmatprep.subr.bf16.mxu0 0
      %461 = vmatpush2.bf16.msra.mxu0 0
      %462 = vmatprep.subr.bf16.mxu0 0
      %463 = vmatpush2.bf16.msra.mxu0 0
      %464 = vmatprep.subr.bf16.mxu0 0
      %465 = vmatpush2.bf16.msra.mxu0 0
      %466 = vmatprep.subr.bf16.mxu0 0
      %467 = vmatpush2.bf16.msra.mxu0 0
      %468 = vmatprep.subr.bf16.mxu0 0
      %469 = vmatpush2.bf16.msra.mxu0 0
      %470 = vmatprep.mubr.bf16.mxu0 0
      %471 = vmatmul.mubr.bf16.gmra.mxu0 %v436
      %v472 = vpop.f32.mrf.mxu0
      %v473 = vadd.f32 0.0, %v472
      %v474 = vpop.f32.mrf.mxu0
      %v475 = vpop.f32.mrf.mxu0
      %v476 = vadd.f32 0.0, %v475
      %v477 = vpop.f32.mrf.mxu0
      %478 = vdwg.mxu0
      %v479 = vadd.f32 %v426, %v473
      %v480 = vadd.f32 %v427, %v476
      %481 = vst.msk [vmem:[#allocation4] sm:$0xff] %vm318, %v479
      %482 = vst.msk [vmem:[#allocation4 + $0x8] sm:$0xff] %vm318, %v480
      %483 = vst.msk [vmem:[#allocation2] sm:$0xff] %vm411, %v375
      %484 = vst.msk [vmem:[#allocation2 + $0x8] sm:$0xff] %vm411, %v376
      // Predicated region
      $region37: #{sam_v1_image_encoder.25} parent=31 // pred_check
        %p485 = pneg %p290
      $region38: #{sam_v1_image_encoder.25} parent=31 // pred_check_branch
        %487 = sbr.rel (%p485) target = $region40
      $region39: #{sam_v1_image_encoder.25} parent=31 // pred_region
        %v488 = vld [vmem:[#allocation4] sm:$0xff]
        %v489 = vld [vmem:[#allocation4 + $0x8] sm:$0xff]
        %v490 = vld [vmem:[#allocation3] sm:$0xff]
        %v491 = vld [vmem:[#allocation3 + $0x8] sm:$0xff]
        %v492 = vrcp.pop %v490
        %v493 = vrcp.pop %v491
        %495 = vset.pattern.permute.xlu0 0
        %496 = vperm.xlu0 %495, %v492
        %v497 = vpop.permute.xlu0 %496
        %500 = vset.pattern.permute.xlu0 0
        %501 = vperm.xlu0 %500, %v493
        %v502 = vpop.permute.xlu0 %501
        %v504 = vmul.f32 %v488, %v497
        %v505 = vmul.f32 %v489, %v502
        %v506 = vpack.c.bf16 %v505, %v504
        %v508 = vunpack.c.l.b16 %v506
        %v509 = vunpack.c.h.b16 %v506
        %v510 = vpack.c.b16 %v508, %v508
        %v511 = vpack.c.b16 %v509, %v509
        %vm514 = vcmask 60416
        %515 = vst.msk [vmem:[%s287] sm:$0xf] %vm514, %v510
        %516 = vst.msk [vmem:[%s287 + $0x4] sm:$0xf] %vm514, %v511
      $region40: #{sam_v1_image_encoder.25} parent=31 // pred_fallthru
        _
      %s517 = smul.u32 2, %s20
      %p518 = scmp.lt.s32.totalorder %s19, 31
      %s519 = scalar_select %p518, %s19, 31
      %p520 = scmp.lt.s32.totalorder %s517, 1
      %s521 = scalar_select %p520, %s517, 1
      %s522 = smul.addr %s519, 2
      %s523 = sadd.s32 %s521, %s522
      %s524 = smul.addr %s523, 4
      %s525 = scalar_lea.vmem %s3, %s524
      // Predicated region
      $region41: #{sam_v1_image_encoder.25} parent=31 // pred_check
        %p526 = pneg %p137
      $region42: #{sam_v1_image_encoder.25} parent=31 // pred_check_branch
        %528 = sbr.rel (%p526) target = $region44
      $region43: #{sam_v1_image_encoder.25} parent=31 // pred_region
        %s529 = smul.u32 2, %s20
      $region44: #{sam_v1_image_encoder.25} parent=31 // pred_fallthru
        _
    $region32: #{sam_v1_image_encoder.25} parent=5 // pred_fallthru
      _
    %p530 = scmp.le.s32.totalorder 2, %s9
    // Predicated region
    $region45: #{sam_v1_image_encoder.25} parent=5 // pred_check
      %p531 = pneg %p530
    $region46: #{sam_v1_image_encoder.25} parent=5 // pred_check_branch
      %533 = sbr.rel (%p531) target = $region48
    $region47: #{sam_v1_image_encoder.25} parent=5 // pred_region
      %s534 = ssub.s32 %s9, 2
      // Predicated region
      $region49: #{sam_v1_image_encoder.25} parent=47 // pred_check
        %p535 = pneg %p143
      $region50: #{sam_v1_image_encoder.25} parent=47 // pred_check_branch
        %537 = sbr.rel (%p535) target = $region52
      $region51: #{sam_v1_image_encoder.25} parent=47 // pred_region
        %s538 = smul.u32 2, %s23
        %p539 = scmp.lt.s32.totalorder %s22, 31
        %s540 = scalar_select %p539, %s22, 31
        %p541 = scmp.lt.s32.totalorder %s538, 1
        %s542 = scalar_select %p541, %s538, 1
        %s543 = smul.addr %s540, 2
        %s544 = sadd.s32 %s542, %s543
        %s545 = smul.addr %s544, 4
        %s546 = scalar_lea.vmem %s3, %s545
      $region52: #{sam_v1_image_encoder.25} parent=47 // pred_fallthru
        _
    $region48: #{sam_v1_image_encoder.25} parent=5 // pred_fallthru
      _
  $region6: #{sam_v1_image_encoder.25} parent=0 // loop_footer
    %s13 = sadd.s32 1, %s9
  $region7: #{sam_v1_image_encoder.25} parent=0 // loop_footer_branch
    %8 = sbr.rel target = $region3
  $region8: #{sam_v1_image_encoder.25} parent=0 // loop_exit
    _

// kernel: sam_v1_image_encoder.26
$region0: #{sam_v1_image_encoder.26}
  #allocation0 [shape = 'u32[]', space=smem, size = 0x4, offset = 0x4, fixed_abs, tag = 'smem constant byte address 0x4 - core index']
  #allocation1 [shape = 'u32[144,128]{1,0:T(1,128)}', space=vmem, size = 0x12000, scoped, tag = 'internal scratch']
  %s0 = inlined_call_operand.vmem [shape: bf16[128,32], index: 0, kind: input, shape index: {}]
  %s1 = inlined_call_operand.vmem [shape: bf16[32,32], index: 1, kind: input, shape index: {}]
  %s2 = inlined_call_operand.vmem [shape: f32[1,32], index: 2, kind: input, shape index: {}]
  %s3 = inlined_call_operand.vmem [shape: f32[128,32], index: 3, kind: input, shape index: {}]
  %s4 = inlined_call_operand.vmem [shape: f32[128,32], index: 4, kind: output, shape index: {}]
  %s5 = sld [smem:[#allocation0]]
  $region26: #{sam_v1_image_encoder.26} parent=0
    _
  %s7 = ssub.s32 1, %s5
  %s8 = scalar_select 0, %s7, %s5
  // Predicated region
  $region2: #{sam_v1_image_encoder.26} parent=0 // pred_check
    _
  $region3: #{sam_v1_image_encoder.26} parent=0 // pred_check_branch
    %10 = sbr.rel (0) target = $region5
  $region4: #{sam_v1_image_encoder.26} parent=0 // pred_region
    _
  $region5: #{sam_v1_image_encoder.26} parent=0 // pred_fallthru
    _
  // Predicated region
  $region6: #{sam_v1_image_encoder.26} parent=0 // pred_check
    _
  $region7: #{sam_v1_image_encoder.26} parent=0 // pred_check_branch
    %12 = sbr.rel (0) target = $region9
  $region8: #{sam_v1_image_encoder.26} parent=0 // pred_region
    _
  $region9: #{sam_v1_image_encoder.26} parent=0 // pred_fallthru
    _
  // Predicated region
  $region10: #{sam_v1_image_encoder.26} parent=0 // pred_check
    _
  $region11: #{sam_v1_image_encoder.26} parent=0 // pred_check_branch
    %14 = sbr.rel (0) target = $region13
  $region12: #{sam_v1_image_encoder.26} parent=0 // pred_region
    _
  $region13: #{sam_v1_image_encoder.26} parent=0 // pred_fallthru
    _
  // Predicated region
  $region14: #{sam_v1_image_encoder.26} parent=0 // pred_check
    _
  $region15: #{sam_v1_image_encoder.26} parent=0 // pred_check_branch
    %16 = sbr.rel (0) target = $region17
  $region16: #{sam_v1_image_encoder.26} parent=0 // pred_region
    _
  $region17: #{sam_v1_image_encoder.26} parent=0 // pred_fallthru
    _
  %v18 = vld [vmem:[%s0] sm:$0xf]
  %v19 = vld [vmem:[%s0 + $0x4] sm:$0xf]
  %v20 = vld [vmem:[%s0 + $0x8] sm:$0xf]
  %v21 = vld [vmem:[%s0 + $0xc] sm:$0xf]
  %v22 = vld [vmem:[%s0 + $0x10] sm:$0xf]
  %v23 = vld [vmem:[%s0 + $0x14] sm:$0xf]
  %v24 = vld [vmem:[%s0 + $0x18] sm:$0xf]
  %v25 = vld [vmem:[%s0 + $0x1c] sm:$0xf]
  %v26 = vld [vmem:[%s0 + $0x20] sm:$0xf]
  %v27 = vld [vmem:[%s0 + $0x24] sm:$0xf]
  %v28 = vld [vmem:[%s0 + $0x28] sm:$0xf]
  %v29 = vld [vmem:[%s0 + $0x2c] sm:$0xf]
  %v30 = vld [vmem:[%s0 + $0x30] sm:$0xf]
  %v31 = vld [vmem:[%s0 + $0x34] sm:$0xf]
  %v32 = vld [vmem:[%s0 + $0x38] sm:$0xf]
  %v33 = vld [vmem:[%s0 + $0x3c] sm:$0xf]
  %v34 = vld [vmem:[%s1] sm:$0xf]
  %v35 = vld [vmem:[%s1 + $0x4] sm:$0xf]
  %v36 = vld [vmem:[%s1 + $0x8] sm:$0xf]
  %v37 = vld [vmem:[%s1 + $0xc] sm:$0xf]
  %v38 = vld [vmem:[%s2] sm:$0x1]
  %v40 = vlaneseq
  %v41 = vshrl.u32 %v40, 7
  %v42 = vsub.s32 0, %v41
  %v43 = vrot.slane %v38, %v42
  %v61 = vunpack.c.l.b16 %v18
  %v62 = vunpack.c.l.b16 %v19
  %v63 = vunpack.c.l.b16 %v20
  %v64 = vunpack.c.l.b16 %v21
  %v65 = vunpack.c.l.b16 %v22
  %v66 = vunpack.c.l.b16 %v23
  %v67 = vunpack.c.l.b16 %v24
  %v68 = vunpack.c.l.b16 %v25
  %v69 = vunpack.c.l.b16 %v26
  %v70 = vunpack.c.l.b16 %v27
  %v71 = vunpack.c.l.b16 %v28
  %v72 = vunpack.c.l.b16 %v29
  %v73 = vunpack.c.l.b16 %v30
  %v74 = vunpack.c.l.b16 %v31
  %v75 = vunpack.c.l.b16 %v32
  %v76 = vunpack.c.l.b16 %v33
  %v77 = vpack.c.b16 %v62, %v61
  %v78 = vpack.c.b16 %v64, %v63
  %v79 = vpack.c.b16 %v66, %v65
  %v80 = vpack.c.b16 %v68, %v67
  %v81 = vpack.c.b16 %v70, %v69
  %v82 = vpack.c.b16 %v72, %v71
  %v83 = vpack.c.b16 %v74, %v73
  %v84 = vpack.c.b16 %v76, %v75
  %v89 = vunpack.c.l.b16 %v34
  %v90 = vunpack.c.l.b16 %v35
  %v91 = vunpack.c.l.b16 %v36
  %v92 = vunpack.c.l.b16 %v37
  %v93 = vpack.c.b16 %v90, %v89
  %v94 = vpack.c.b16 %v92, %v91
  %vm97 = vcmask 261120
  %v99 = vsel %vm97, %v77, 0
  %v102 = vsel %vm97, %v78, 0
  %v105 = vsel %vm97, %v79, 0
  %v108 = vsel %vm97, %v80, 0
  %v111 = vsel %vm97, %v81, 0
  %v114 = vsel %vm97, %v82, 0
  %v117 = vsel %vm97, %v83, 0
  %v120 = vsel %vm97, %v84, 0
  %122 = vmatprep.subr.bf16.mxu0 0
  %123 = vmatpush1.bf16.msra.mxu0 0
  %124 = vmatprep.subr.bf16.mxu0 0
  %125 = vmatpush1.bf16.msra.mxu0 0
  %126 = vmatprep.subr.bf16.mxu0 0
  %127 = vmatpush1.bf16.msra.mxu0 0
  %128 = vmatprep.subr.bf16.mxu0 0
  %129 = vmatpush1.bf16.msra.mxu0 0
  %130 = vmatprep.subr.bf16.mxu0 0
  %131 = vmatpush1.bf16.msra.mxu0 0
  %132 = vmatprep.subr.bf16.mxu0 0
  %133 = vmatpush1.bf16.msra.mxu0 0
  %134 = vmatprep.subr.bf16.mxu0 0
  %135 = vmatpush1.bf16.msra.mxu0 %v94
  %136 = vmatprep.subr.bf16.mxu0 0
  %137 = vmatpush1.bf16.msra.mxu0 %v93
  %138 = vmatprep.subr.bf16.mxu0 0
  %139 = vmatpush2.bf16.msra.mxu0 0
  %140 = vmatprep.subr.bf16.mxu0 0
  %141 = vmatpush2.bf16.msra.mxu0 0
  %142 = vmatprep.subr.bf16.mxu0 0
  %143 = vmatpush2.bf16.msra.mxu0 0
  %144 = vmatprep.subr.bf16.mxu0 0
  %145 = vmatpush2.bf16.msra.mxu0 0
  %146 = vmatprep.subr.bf16.mxu0 0
  %147 = vmatpush2.bf16.msra.mxu0 0
  %148 = vmatprep.subr.bf16.mxu0 0
  %149 = vmatpush2.bf16.msra.mxu0 0
  %150 = vmatprep.subr.bf16.mxu0 0
  %151 = vmatpush2.bf16.msra.mxu0 0
  %152 = vmatprep.subr.bf16.mxu0 0
  %153 = vmatpush2.bf16.msra.mxu0 0
  %154 = vmatprep.mubr.bf16.mxu0 0
  %155 = vmatmul.mubr.bf16.gmra.mxu0 %v99
  %v156 = vpop.f32.mrf.mxu0
  %v157 = vadd.f32 %v43, %v156
  %v158 = vpop.f32.mrf.mxu0
  %v159 = vpop.f32.mrf.mxu0
  %v160 = vadd.f32 %v43, %v159
  %v161 = vpop.f32.mrf.mxu0
  %162 = vmatprep.mubr.bf16.mxu0 0
  %163 = vmatmul.mubr.bf16.gmra.mxu0 %v102
  %v164 = vpop.f32.mrf.mxu0
  %v165 = vadd.f32 %v43, %v164
  %v166 = vpop.f32.mrf.mxu0
  %v167 = vpop.f32.mrf.mxu0
  %v168 = vadd.f32 %v43, %v167
  %v169 = vpop.f32.mrf.mxu0
  %170 = vmatprep.mubr.bf16.mxu0 0
  %171 = vmatmul.mubr.bf16.gmra.mxu0 %v105
  %v172 = vpop.f32.mrf.mxu0
  %v173 = vadd.f32 %v43, %v172
  %v174 = vpop.f32.mrf.mxu0
  %v175 = vpop.f32.mrf.mxu0
  %v176 = vadd.f32 %v43, %v175
  %v177 = vpop.f32.mrf.mxu0
  %178 = vmatprep.mubr.bf16.mxu0 0
  %179 = vmatmul.mubr.bf16.gmra.mxu0 %v108
  %v180 = vpop.f32.mrf.mxu0
  %v181 = vadd.f32 %v43, %v180
  %v182 = vpop.f32.mrf.mxu0
  %v183 = vpop.f32.mrf.mxu0
  %v184 = vadd.f32 %v43, %v183
  %v185 = vpop.f32.mrf.mxu0
  %186 = vmatprep.mubr.bf16.mxu0 0
  %187 = vmatmul.mubr.bf16.gmra.mxu0 %v111
  %v188 = vpop.f32.mrf.mxu0
  %v189 = vadd.f32 %v43, %v188
  %v190 = vpop.f32.mrf.mxu0
  %v191 = vpop.f32.mrf.mxu0
  %v192 = vadd.f32 %v43, %v191
  %v193 = vpop.f32.mrf.mxu0
  %194 = vmatprep.mubr.bf16.mxu0 0
  %195 = vmatmul.mubr.bf16.gmra.mxu0 %v114
  %v196 = vpop.f32.mrf.mxu0
  %v197 = vadd.f32 %v43, %v196
  %v198 = vpop.f32.mrf.mxu0
  %v199 = vpop.f32.mrf.mxu0
  %v200 = vadd.f32 %v43, %v199
  %v201 = vpop.f32.mrf.mxu0
  %202 = vmatprep.mubr.bf16.mxu0 0
  %203 = vmatmul.mubr.bf16.gmra.mxu0 %v117
  %v204 = vpop.f32.mrf.mxu0
  %v205 = vadd.f32 %v43, %v204
  %v206 = vpop.f32.mrf.mxu0
  %v207 = vpop.f32.mrf.mxu0
  %v208 = vadd.f32 %v43, %v207
  %v209 = vpop.f32.mrf.mxu0
  %210 = vmatprep.mubr.bf16.mxu0 0
  %211 = vmatmul.mubr.bf16.gmra.mxu0 %v120
  %v212 = vpop.f32.mrf.mxu0
  %v213 = vadd.f32 %v43, %v212
  %v214 = vpop.f32.mrf.mxu0
  %v215 = vpop.f32.mrf.mxu0
  %v216 = vadd.f32 %v43, %v215
  %v217 = vpop.f32.mrf.mxu0
  %218 = vdwg.mxu0
  %v219 = vld [vmem:[%s3] sm:$0xff]
  %v220 = vld [vmem:[%s3 + $0x8] sm:$0xff]
  %v221 = vld [vmem:[%s3 + $0x10] sm:$0xff]
  %v222 = vld [vmem:[%s3 + $0x18] sm:$0xff]
  %v223 = vld [vmem:[%s3 + $0x20] sm:$0xff]
  %v224 = vld [vmem:[%s3 + $0x28] sm:$0xff]
  %v225 = vld [vmem:[%s3 + $0x30] sm:$0xff]
  %v226 = vld [vmem:[%s3 + $0x38] sm:$0xff]
  %v227 = vld [vmem:[%s3 + $0x40] sm:$0xff]
  %v228 = vld [vmem:[%s3 + $0x48] sm:$0xff]
  %v229 = vld [vmem:[%s3 + $0x50] sm:$0xff]
  %v230 = vld [vmem:[%s3 + $0x58] sm:$0xff]
  %v231 = vld [vmem:[%s3 + $0x60] sm:$0xff]
  %v232 = vld [vmem:[%s3 + $0x68] sm:$0xff]
  %v233 = vld [vmem:[%s3 + $0x70] sm:$0xff]
  %v234 = vld [vmem:[%s3 + $0x78] sm:$0xff]
  %v235 = vadd.f32 %v157, %v219
  %v236 = vadd.f32 %v160, %v220
  %v237 = vadd.f32 %v165, %v221
  %v238 = vadd.f32 %v168, %v222
  %v239 = vadd.f32 %v173, %v223
  %v240 = vadd.f32 %v176, %v224
  %v241 = vadd.f32 %v181, %v225
  %v242 = vadd.f32 %v184, %v226
  %v243 = vadd.f32 %v189, %v227
  %v244 = vadd.f32 %v192, %v228
  %v245 = vadd.f32 %v197, %v229
  %v246 = vadd.f32 %v200, %v230
  %v247 = vadd.f32 %v205, %v231
  %v248 = vadd.f32 %v208, %v232
  %v249 = vadd.f32 %v213, %v233
  %v250 = vadd.f32 %v216, %v234
  %251 = vst.msk [vmem:[%s4] sm:$0xff] %vm97, %v235
  %252 = vst.msk [vmem:[%s4 + $0x8] sm:$0xff] %vm97, %v236
  %253 = vst.msk [vmem:[%s4 + $0x10] sm:$0xff] %vm97, %v237
  %254 = vst.msk [vmem:[%s4 + $0x18] sm:$0xff] %vm97, %v238
  %255 = vst.msk [vmem:[%s4 + $0x20] sm:$0xff] %vm97, %v239
  %256 = vst.msk [vmem:[%s4 + $0x28] sm:$0xff] %vm97, %v240
  %257 = vst.msk [vmem:[%s4 + $0x30] sm:$0xff] %vm97, %v241
  %258 = vst.msk [vmem:[%s4 + $0x38] sm:$0xff] %vm97, %v242
  %259 = vst.msk [vmem:[%s4 + $0x40] sm:$0xff] %vm97, %v243
  %260 = vst.msk [vmem:[%s4 + $0x48] sm:$0xff] %vm97, %v244
  %261 = vst.msk [vmem:[%s4 + $0x50] sm:$0xff] %vm97, %v245
  %262 = vst.msk [vmem:[%s4 + $0x58] sm:$0xff] %vm97, %v246
  %263 = vst.msk [vmem:[%s4 + $0x60] sm:$0xff] %vm97, %v247
  %264 = vst.msk [vmem:[%s4 + $0x68] sm:$0xff] %vm97, %v248
  %265 = vst.msk [vmem:[%s4 + $0x70] sm:$0xff] %vm97, %v249
  %266 = vst.msk [vmem:[%s4 + $0x78] sm:$0xff] %vm97, %v250
  // Predicated region
  $region18: #{sam_v1_image_encoder.26} parent=0 // pred_check
    _
  $region19: #{sam_v1_image_encoder.26} parent=0 // pred_check_branch
    %268 = sbr.rel (0) target = $region21
  $region20: #{sam_v1_image_encoder.26} parent=0 // pred_region
    _
  $region21: #{sam_v1_image_encoder.26} parent=0 // pred_fallthru
    _
  // Predicated region
  $region22: #{sam_v1_image_encoder.26} parent=0 // pred_check
    _
  $region23: #{sam_v1_image_encoder.26} parent=0 // pred_check_branch
    %270 = sbr.rel (0) target = $region25
  $region24: #{sam_v1_image_encoder.26} parent=0 // pred_region
    _
  $region25: #{sam_v1_image_encoder.26} parent=0 // pred_fallthru
    _

// kernel: sam_v1_image_encoder.27
$region0: #{sam_v1_image_encoder.27}
  #allocation0 [shape = 'u32[]', space=smem, size = 0x4, offset = 0x4, fixed_abs, tag = 'smem constant byte address 0x4 - core index']
  #allocation1 [shape = 'u32[144,128]{1,0:T(1,128)}', space=vmem, size = 0x12000, scoped, tag = 'internal scratch']
  %s0 = inlined_call_operand.vmem [shape: f32[128,32], index: 0, kind: input, shape index: {}]
  %s1 = inlined_call_operand.vmem [shape: f32[1,32], index: 1, kind: input, shape index: {}]
  %s2 = inlined_call_operand.vmem [shape: f32[1,32], index: 2, kind: input, shape index: {}]
  %s3 = inlined_call_operand.vmem [shape: bf16[32,128], index: 3, kind: input, shape index: {}]
  %s4 = inlined_call_operand.vmem [shape: f32[1,128], index: 4, kind: input, shape index: {}]
  %s5 = inlined_call_operand.vmem [shape: bf16[128,128], index: 5, kind: output, shape index: {}]
  %s6 = sld [smem:[#allocation0]]
  $region30: #{sam_v1_image_encoder.27} parent=0
    _
  %s8 = ssub.s32 1, %s6
  %s9 = scalar_select 0, %s8, %s6
  // Predicated region
  $region2: #{sam_v1_image_encoder.27} parent=0 // pred_check
    _
  $region3: #{sam_v1_image_encoder.27} parent=0 // pred_check_branch
    %11 = sbr.rel (0) target = $region5
  $region4: #{sam_v1_image_encoder.27} parent=0 // pred_region
    _
  $region5: #{sam_v1_image_encoder.27} parent=0 // pred_fallthru
    _
  // Predicated region
  $region6: #{sam_v1_image_encoder.27} parent=0 // pred_check
    _
  $region7: #{sam_v1_image_encoder.27} parent=0 // pred_check_branch
    %13 = sbr.rel (0) target = $region9
  $region8: #{sam_v1_image_encoder.27} parent=0 // pred_region
    _
  $region9: #{sam_v1_image_encoder.27} parent=0 // pred_fallthru
    _
  // Predicated region
  $region10: #{sam_v1_image_encoder.27} parent=0 // pred_check
    _
  $region11: #{sam_v1_image_encoder.27} parent=0 // pred_check_branch
    %15 = sbr.rel (0) target = $region13
  $region12: #{sam_v1_image_encoder.27} parent=0 // pred_region
    _
  $region13: #{sam_v1_image_encoder.27} parent=0 // pred_fallthru
    _
  // Predicated region
  $region14: #{sam_v1_image_encoder.27} parent=0 // pred_check
    _
  $region15: #{sam_v1_image_encoder.27} parent=0 // pred_check_branch
    %17 = sbr.rel (0) target = $region17
  $region16: #{sam_v1_image_encoder.27} parent=0 // pred_region
    _
  $region17: #{sam_v1_image_encoder.27} parent=0 // pred_fallthru
    _
  // Predicated region
  $region18: #{sam_v1_image_encoder.27} parent=0 // pred_check
    _
  $region19: #{sam_v1_image_encoder.27} parent=0 // pred_check_branch
    %19 = sbr.rel (0) target = $region21
  $region20: #{sam_v1_image_encoder.27} parent=0 // pred_region
    _
  $region21: #{sam_v1_image_encoder.27} parent=0 // pred_fallthru
    _
  %v21 = vld [vmem:[%s0] sm:$0xff]
  %v22 = vld [vmem:[%s0 + $0x8] sm:$0xff]
  %v23 = vld [vmem:[%s0 + $0x10] sm:$0xff]
  %v24 = vld [vmem:[%s0 + $0x18] sm:$0xff]
  %v25 = vld [vmem:[%s0 + $0x20] sm:$0xff]
  %v26 = vld [vmem:[%s0 + $0x28] sm:$0xff]
  %v27 = vld [vmem:[%s0 + $0x30] sm:$0xff]
  %v28 = vld [vmem:[%s0 + $0x38] sm:$0xff]
  %v29 = vld [vmem:[%s0 + $0x40] sm:$0xff]
  %v30 = vld [vmem:[%s0 + $0x48] sm:$0xff]
  %v31 = vld [vmem:[%s0 + $0x50] sm:$0xff]
  %v32 = vld [vmem:[%s0 + $0x58] sm:$0xff]
  %v33 = vld [vmem:[%s0 + $0x60] sm:$0xff]
  %v34 = vld [vmem:[%s0 + $0x68] sm:$0xff]
  %v35 = vld [vmem:[%s0 + $0x70] sm:$0xff]
  %v36 = vld [vmem:[%s0 + $0x78] sm:$0xff]
  %vm37 = vcmask 261120
  %v38 = vsel %vm37, %v21, 0.0
  %39 = vadd.xlane.f32.xlu0 %v38
  %v40 = vpop.xlane.xlu0 %39
  %v41 = vsel %vm37, %v22, 0.0
  %42 = vadd.xlane.f32.xlu0 %v41
  %v43 = vpop.xlane.xlu0 %42
  %v44 = vsel %vm37, %v23, 0.0
  %45 = vadd.xlane.f32.xlu0 %v44
  %v46 = vpop.xlane.xlu0 %45
  %v47 = vsel %vm37, %v24, 0.0
  %48 = vadd.xlane.f32.xlu0 %v47
  %v49 = vpop.xlane.xlu0 %48
  %v50 = vsel %vm37, %v25, 0.0
  %51 = vadd.xlane.f32.xlu0 %v50
  %v52 = vpop.xlane.xlu0 %51
  %v53 = vsel %vm37, %v26, 0.0
  %54 = vadd.xlane.f32.xlu0 %v53
  %v55 = vpop.xlane.xlu0 %54
  %v56 = vsel %vm37, %v27, 0.0
  %57 = vadd.xlane.f32.xlu0 %v56
  %v58 = vpop.xlane.xlu0 %57
  %v59 = vsel %vm37, %v28, 0.0
  %60 = vadd.xlane.f32.xlu0 %v59
  %v61 = vpop.xlane.xlu0 %60
  %v62 = vsel %vm37, %v29, 0.0
  %63 = vadd.xlane.f32.xlu0 %v62
  %v64 = vpop.xlane.xlu0 %63
  %v65 = vsel %vm37, %v30, 0.0
  %66 = vadd.xlane.f32.xlu0 %v65
  %v67 = vpop.xlane.xlu0 %66
  %v68 = vsel %vm37, %v31, 0.0
  %69 = vadd.xlane.f32.xlu0 %v68
  %v70 = vpop.xlane.xlu0 %69
  %v71 = vsel %vm37, %v32, 0.0
  %72 = vadd.xlane.f32.xlu0 %v71
  %v73 = vpop.xlane.xlu0 %72
  %v74 = vsel %vm37, %v33, 0.0
  %75 = vadd.xlane.f32.xlu0 %v74
  %v76 = vpop.xlane.xlu0 %75
  %v77 = vsel %vm37, %v34, 0.0
  %78 = vadd.xlane.f32.xlu0 %v77
  %v79 = vpop.xlane.xlu0 %78
  %v80 = vsel %vm37, %v35, 0.0
  %81 = vadd.xlane.f32.xlu0 %v80
  %v82 = vpop.xlane.xlu0 %81
  %v83 = vsel %vm37, %v36, 0.0
  %84 = vadd.xlane.f32.xlu0 %v83
  %v85 = vpop.xlane.xlu0 %84
  %v86 = vrcp.pop 32.0
  %v87 = vmul.f32 %v40, %v86
  %v88 = vmul.f32 %v43, %v86
  %v89 = vmul.f32 %v46, %v86
  %v90 = vmul.f32 %v49, %v86
  %v91 = vmul.f32 %v52, %v86
  %v92 = vmul.f32 %v55, %v86
  %v93 = vmul.f32 %v58, %v86
  %v94 = vmul.f32 %v61, %v86
  %v95 = vmul.f32 %v64, %v86
  %v96 = vmul.f32 %v67, %v86
  %v97 = vmul.f32 %v70, %v86
  %v98 = vmul.f32 %v73, %v86
  %v99 = vmul.f32 %v76, %v86
  %v100 = vmul.f32 %v79, %v86
  %v101 = vmul.f32 %v82, %v86
  %v102 = vmul.f32 %v85, %v86
  %v103 = vsub.f32 %v21, %v87
  %v104 = vsub.f32 %v22, %v88
  %v105 = vsub.f32 %v23, %v89
  %v106 = vsub.f32 %v24, %v90
  %v107 = vsub.f32 %v25, %v91
  %v108 = vsub.f32 %v26, %v92
  %v109 = vsub.f32 %v27, %v93
  %v110 = vsub.f32 %v28, %v94
  %v111 = vsub.f32 %v29, %v95
  %v112 = vsub.f32 %v30, %v96
  %v113 = vsub.f32 %v31, %v97
  %v114 = vsub.f32 %v32, %v98
  %v115 = vsub.f32 %v33, %v99
  %v116 = vsub.f32 %v34, %v100
  %v117 = vsub.f32 %v35, %v101
  %v118 = vsub.f32 %v36, %v102
  %v119 = vmul.f32 %v103, %v103
  %v120 = vmul.f32 %v104, %v104
  %v121 = vmul.f32 %v105, %v105
  %v122 = vmul.f32 %v106, %v106
  %v123 = vmul.f32 %v107, %v107
  %v124 = vmul.f32 %v108, %v108
  %v125 = vmul.f32 %v109, %v109
  %v126 = vmul.f32 %v110, %v110
  %v127 = vmul.f32 %v111, %v111
  %v128 = vmul.f32 %v112, %v112
  %v129 = vmul.f32 %v113, %v113
  %v130 = vmul.f32 %v114, %v114
  %v131 = vmul.f32 %v115, %v115
  %v132 = vmul.f32 %v116, %v116
  %v133 = vmul.f32 %v117, %v117
  %v134 = vmul.f32 %v118, %v118
  %v135 = vsel %vm37, %v119, 0.0
  %136 = vadd.xlane.f32.xlu0 %v135
  %v137 = vpop.xlane.xlu0 %136
  %v138 = vsel %vm37, %v120, 0.0
  %139 = vadd.xlane.f32.xlu0 %v138
  %v140 = vpop.xlane.xlu0 %139
  %v141 = vsel %vm37, %v121, 0.0
  %142 = vadd.xlane.f32.xlu0 %v141
  %v143 = vpop.xlane.xlu0 %142
  %v144 = vsel %vm37, %v122, 0.0
  %145 = vadd.xlane.f32.xlu0 %v144
  %v146 = vpop.xlane.xlu0 %145
  %v147 = vsel %vm37, %v123, 0.0
  %148 = vadd.xlane.f32.xlu0 %v147
  %v149 = vpop.xlane.xlu0 %148
  %v150 = vsel %vm37, %v124, 0.0
  %151 = vadd.xlane.f32.xlu0 %v150
  %v152 = vpop.xlane.xlu0 %151
  %v153 = vsel %vm37, %v125, 0.0
  %154 = vadd.xlane.f32.xlu0 %v153
  %v155 = vpop.xlane.xlu0 %154
  %v156 = vsel %vm37, %v126, 0.0
  %157 = vadd.xlane.f32.xlu0 %v156
  %v158 = vpop.xlane.xlu0 %157
  %v159 = vsel %vm37, %v127, 0.0
  %160 = vadd.xlane.f32.xlu0 %v159
  %v161 = vpop.xlane.xlu0 %160
  %v162 = vsel %vm37, %v128, 0.0
  %163 = vadd.xlane.f32.xlu0 %v162
  %v164 = vpop.xlane.xlu0 %163
  %v165 = vsel %vm37, %v129, 0.0
  %166 = vadd.xlane.f32.xlu0 %v165
  %v167 = vpop.xlane.xlu0 %166
  %v168 = vsel %vm37, %v130, 0.0
  %169 = vadd.xlane.f32.xlu0 %v168
  %v170 = vpop.xlane.xlu0 %169
  %v171 = vsel %vm37, %v131, 0.0
  %172 = vadd.xlane.f32.xlu0 %v171
  %v173 = vpop.xlane.xlu0 %172
  %v174 = vsel %vm37, %v132, 0.0
  %175 = vadd.xlane.f32.xlu0 %v174
  %v176 = vpop.xlane.xlu0 %175
  %v177 = vsel %vm37, %v133, 0.0
  %178 = vadd.xlane.f32.xlu0 %v177
  %v179 = vpop.xlane.xlu0 %178
  %v180 = vsel %vm37, %v134, 0.0
  %181 = vadd.xlane.f32.xlu0 %v180
  %v182 = vpop.xlane.xlu0 %181
  %v183 = vmul.f32 %v137, %v86
  %v184 = vmul.f32 %v140, %v86
  %v185 = vmul.f32 %v143, %v86
  %v186 = vmul.f32 %v146, %v86
  %v187 = vmul.f32 %v149, %v86
  %v188 = vmul.f32 %v152, %v86
  %v189 = vmul.f32 %v155, %v86
  %v190 = vmul.f32 %v158, %v86
  %v191 = vmul.f32 %v161, %v86
  %v192 = vmul.f32 %v164, %v86
  %v193 = vmul.f32 %v167, %v86
  %v194 = vmul.f32 %v170, %v86
  %v195 = vmul.f32 %v173, %v86
  %v196 = vmul.f32 %v176, %v86
  %v197 = vmul.f32 %v179, %v86
  %v198 = vmul.f32 %v182, %v86
  %v199 = vadd.f32 %v183, 1e-06
  %v200 = vadd.f32 %v184, 1e-06
  %v201 = vadd.f32 %v185, 1e-06
  %v202 = vadd.f32 %v186, 1e-06
  %v203 = vadd.f32 %v187, 1e-06
  %v204 = vadd.f32 %v188, 1e-06
  %v205 = vadd.f32 %v189, 1e-06
  %v206 = vadd.f32 %v190, 1e-06
  %v207 = vadd.f32 %v191, 1e-06
  %v208 = vadd.f32 %v192, 1e-06
  %v209 = vadd.f32 %v193, 1e-06
  %v210 = vadd.f32 %v194, 1e-06
  %v211 = vadd.f32 %v195, 1e-06
  %v212 = vadd.f32 %v196, 1e-06
  %v213 = vadd.f32 %v197, 1e-06
  %v214 = vadd.f32 %v198, 1e-06
  %v215 = vrsqrt.pop %v199
  %v216 = vrsqrt.pop %v200
  %v217 = vrsqrt.pop %v201
  %v218 = vrsqrt.pop %v202
  %v219 = vrsqrt.pop %v203
  %v220 = vrsqrt.pop %v204
  %v221 = vrsqrt.pop %v205
  %v222 = vrsqrt.pop %v206
  %v223 = vrsqrt.pop %v207
  %v224 = vrsqrt.pop %v208
  %v225 = vrsqrt.pop %v209
  %v226 = vrsqrt.pop %v210
  %v227 = vrsqrt.pop %v211
  %v228 = vrsqrt.pop %v212
  %v229 = vrsqrt.pop %v213
  %v230 = vrsqrt.pop %v214
  %v231 = vmul.f32 %v103, %v215
  %v232 = vmul.f32 %v104, %v216
  %v233 = vmul.f32 %v105, %v217
  %v234 = vmul.f32 %v106, %v218
  %v235 = vmul.f32 %v107, %v219
  %v236 = vmul.f32 %v108, %v220
  %v237 = vmul.f32 %v109, %v221
  %v238 = vmul.f32 %v110, %v222
  %v239 = vmul.f32 %v111, %v223
  %v240 = vmul.f32 %v112, %v224
  %v241 = vmul.f32 %v113, %v225
  %v242 = vmul.f32 %v114, %v226
  %v243 = vmul.f32 %v115, %v227
  %v244 = vmul.f32 %v116, %v228
  %v245 = vmul.f32 %v117, %v229
  %v246 = vmul.f32 %v118, %v230
  %v247 = vld [vmem:[%s1] sm:$0x1]
  %v249 = vlaneseq
  %v250 = vshrl.u32 %v249, 7
  %v251 = vsub.s32 0, %v250
  %v252 = vrot.slane %v247, %v251
  %v254 = vmul.f32 %v231, %v252
  %v255 = vmul.f32 %v232, %v252
  %v256 = vmul.f32 %v233, %v252
  %v257 = vmul.f32 %v234, %v252
  %v258 = vmul.f32 %v235, %v252
  %v259 = vmul.f32 %v236, %v252
  %v260 = vmul.f32 %v237, %v252
  %v261 = vmul.f32 %v238, %v252
  %v262 = vmul.f32 %v239, %v252
  %v263 = vmul.f32 %v240, %v252
  %v264 = vmul.f32 %v241, %v252
  %v265 = vmul.f32 %v242, %v252
  %v266 = vmul.f32 %v243, %v252
  %v267 = vmul.f32 %v244, %v252
  %v268 = vmul.f32 %v245, %v252
  %v269 = vmul.f32 %v246, %v252
  %v270 = vld [vmem:[%s2] sm:$0x1]
  %v272 = vlaneseq
  %v273 = vshrl.u32 %v272, 7
  %v274 = vsub.s32 0, %v273
  %v275 = vrot.slane %v270, %v274
  %v277 = vadd.f32 %v254, %v275
  %v278 = vadd.f32 %v255, %v275
  %v279 = vadd.f32 %v256, %v275
  %v280 = vadd.f32 %v257, %v275
  %v281 = vadd.f32 %v258, %v275
  %v282 = vadd.f32 %v259, %v275
  %v283 = vadd.f32 %v260, %v275
  %v284 = vadd.f32 %v261, %v275
  %v285 = vadd.f32 %v262, %v275
  %v286 = vadd.f32 %v263, %v275
  %v287 = vadd.f32 %v264, %v275
  %v288 = vadd.f32 %v265, %v275
  %v289 = vadd.f32 %v266, %v275
  %v290 = vadd.f32 %v267, %v275
  %v291 = vadd.f32 %v268, %v275
  %v292 = vadd.f32 %v269, %v275
  %v293 = vpack.c.bf16 %v278, %v277
  %v294 = vpack.c.bf16 %v280, %v279
  %v295 = vpack.c.bf16 %v282, %v281
  %v296 = vpack.c.bf16 %v284, %v283
  %v297 = vpack.c.bf16 %v286, %v285
  %v298 = vpack.c.bf16 %v288, %v287
  %v299 = vpack.c.bf16 %v290, %v289
  %v300 = vpack.c.bf16 %v292, %v291
  %v301 = vld [vmem:[%s3] sm:$0xf]
  %v302 = vld [vmem:[%s3 + $0x4] sm:$0xf]
  %v303 = vld [vmem:[%s3 + $0x8] sm:$0xf]
  %v304 = vld [vmem:[%s3 + $0xc] sm:$0xf]
  %v305 = vld [vmem:[%s4] sm:$0x1]
  %v307 = vlaneseq
  %v308 = vshrl.u32 %v307, 7
  %v309 = vsub.s32 0, %v308
  %v310 = vrot.slane %v305, %v309
  %v316 = vunpack.c.l.b16 %v301
  %v317 = vunpack.c.l.b16 %v302
  %v318 = vunpack.c.l.b16 %v303
  %v319 = vunpack.c.l.b16 %v304
  %v320 = vpack.c.b16 %v317, %v316
  %v321 = vpack.c.b16 %v319, %v318
  %v325 = vsel %vm37, %v293, 0
  %v328 = vsel %vm37, %v294, 0
  %v331 = vsel %vm37, %v295, 0
  %v334 = vsel %vm37, %v296, 0
  %v337 = vsel %vm37, %v297, 0
  %v340 = vsel %vm37, %v298, 0
  %v343 = vsel %vm37, %v299, 0
  %v346 = vsel %vm37, %v300, 0
  %348 = vmatprep.subr.bf16.mxu0 0
  %349 = vmatpush1.bf16.msra.mxu0 0
  %350 = vmatprep.subr.bf16.mxu0 0
  %351 = vmatpush1.bf16.msra.mxu0 0
  %352 = vmatprep.subr.bf16.mxu0 0
  %353 = vmatpush1.bf16.msra.mxu0 0
  %354 = vmatprep.subr.bf16.mxu0 0
  %355 = vmatpush1.bf16.msra.mxu0 0
  %356 = vmatprep.subr.bf16.mxu0 0
  %357 = vmatpush1.bf16.msra.mxu0 0
  %358 = vmatprep.subr.bf16.mxu0 0
  %359 = vmatpush1.bf16.msra.mxu0 0
  %360 = vmatprep.subr.bf16.mxu0 0
  %361 = vmatpush1.bf16.msra.mxu0 %v321
  %362 = vmatprep.subr.bf16.mxu0 0
  %363 = vmatpush1.bf16.msra.mxu0 %v320
  %364 = vmatprep.subr.bf16.mxu0 0
  %365 = vmatpush2.bf16.msra.mxu0 0
  %366 = vmatprep.subr.bf16.mxu0 0
  %367 = vmatpush2.bf16.msra.mxu0 0
  %368 = vmatprep.subr.bf16.mxu0 0
  %369 = vmatpush2.bf16.msra.mxu0 0
  %370 = vmatprep.subr.bf16.mxu0 0
  %371 = vmatpush2.bf16.msra.mxu0 0
  %372 = vmatprep.subr.bf16.mxu0 0
  %373 = vmatpush2.bf16.msra.mxu0 0
  %374 = vmatprep.subr.bf16.mxu0 0
  %375 = vmatpush2.bf16.msra.mxu0 0
  %376 = vmatprep.subr.bf16.mxu0 0
  %377 = vmatpush2.bf16.msra.mxu0 0
  %378 = vmatprep.subr.bf16.mxu0 0
  %379 = vmatpush2.bf16.msra.mxu0 0
  %380 = vmatprep.mubr.bf16.mxu0 0
  %381 = vmatmul.mubr.bf16.gmra.mxu0 %v325
  %v382 = vpop.f32.mrf.mxu0
  %v383 = vadd.f32 %v310, %v382
  %v384 = vpop.f32.mrf.mxu0
  %v385 = vpop.f32.mrf.mxu0
  %v386 = vadd.f32 %v310, %v385
  %v387 = vpop.f32.mrf.mxu0
  %388 = vmatprep.mubr.bf16.mxu0 0
  %389 = vmatmul.mubr.bf16.gmra.mxu0 %v328
  %v390 = vpop.f32.mrf.mxu0
  %v391 = vadd.f32 %v310, %v390
  %v392 = vpop.f32.mrf.mxu0
  %v393 = vpop.f32.mrf.mxu0
  %v394 = vadd.f32 %v310, %v393
  %v395 = vpop.f32.mrf.mxu0
  %396 = vmatprep.mubr.bf16.mxu0 0
  %397 = vmatmul.mubr.bf16.gmra.mxu0 %v331
  %v398 = vpop.f32.mrf.mxu0
  %v399 = vadd.f32 %v310, %v398
  %v400 = vpop.f32.mrf.mxu0
  %v401 = vpop.f32.mrf.mxu0
  %v402 = vadd.f32 %v310, %v401
  %v403 = vpop.f32.mrf.mxu0
  %404 = vmatprep.mubr.bf16.mxu0 0
  %405 = vmatmul.mubr.bf16.gmra.mxu0 %v334
  %v406 = vpop.f32.mrf.mxu0
  %v407 = vadd.f32 %v310, %v406
  %v408 = vpop.f32.mrf.mxu0
  %v409 = vpop.f32.mrf.mxu0
  %v410 = vadd.f32 %v310, %v409
  %v411 = vpop.f32.mrf.mxu0
  %412 = vmatprep.mubr.bf16.mxu0 0
  %413 = vmatmul.mubr.bf16.gmra.mxu0 %v337
  %v414 = vpop.f32.mrf.mxu0
  %v415 = vadd.f32 %v310, %v414
  %v416 = vpop.f32.mrf.mxu0
  %v417 = vpop.f32.mrf.mxu0
  %v418 = vadd.f32 %v310, %v417
  %v419 = vpop.f32.mrf.mxu0
  %420 = vmatprep.mubr.bf16.mxu0 0
  %421 = vmatmul.mubr.bf16.gmra.mxu0 %v340
  %v422 = vpop.f32.mrf.mxu0
  %v423 = vadd.f32 %v310, %v422
  %v424 = vpop.f32.mrf.mxu0
  %v425 = vpop.f32.mrf.mxu0
  %v426 = vadd.f32 %v310, %v425
  %v427 = vpop.f32.mrf.mxu0
  %428 = vmatprep.mubr.bf16.mxu0 0
  %429 = vmatmul.mubr.bf16.gmra.mxu0 %v343
  %v430 = vpop.f32.mrf.mxu0
  %v431 = vadd.f32 %v310, %v430
  %v432 = vpop.f32.mrf.mxu0
  %v433 = vpop.f32.mrf.mxu0
  %v434 = vadd.f32 %v310, %v433
  %v435 = vpop.f32.mrf.mxu0
  %436 = vmatprep.mubr.bf16.mxu0 0
  %437 = vmatmul.mubr.bf16.gmra.mxu0 %v346
  %v438 = vpop.f32.mrf.mxu0
  %v439 = vadd.f32 %v310, %v438
  %v440 = vpop.f32.mrf.mxu0
  %v441 = vpop.f32.mrf.mxu0
  %v442 = vadd.f32 %v310, %v441
  %v443 = vpop.f32.mrf.mxu0
  %444 = vdwg.mxu0
  %v445 = vmul.f32 %v383, %v383
  %v446 = vmul.f32 %v386, %v386
  %v447 = vmul.f32 %v391, %v391
  %v448 = vmul.f32 %v394, %v394
  %v449 = vmul.f32 %v399, %v399
  %v450 = vmul.f32 %v402, %v402
  %v451 = vmul.f32 %v407, %v407
  %v452 = vmul.f32 %v410, %v410
  %v453 = vmul.f32 %v415, %v415
  %v454 = vmul.f32 %v418, %v418
  %v455 = vmul.f32 %v423, %v423
  %v456 = vmul.f32 %v426, %v426
  %v457 = vmul.f32 %v431, %v431
  %v458 = vmul.f32 %v434, %v434
  %v459 = vmul.f32 %v439, %v439
  %v460 = vmul.f32 %v442, %v442
  %v461 = vmul.f32 %v383, %v445
  %v462 = vmul.f32 %v386, %v446
  %v463 = vmul.f32 %v391, %v447
  %v464 = vmul.f32 %v394, %v448
  %v465 = vmul.f32 %v399, %v449
  %v466 = vmul.f32 %v402, %v450
  %v467 = vmul.f32 %v407, %v451
  %v468 = vmul.f32 %v410, %v452
  %v469 = vmul.f32 %v415, %v453
  %v470 = vmul.f32 %v418, %v454
  %v471 = vmul.f32 %v423, %v455
  %v472 = vmul.f32 %v426, %v456
  %v473 = vmul.f32 %v431, %v457
  %v474 = vmul.f32 %v434, %v458
  %v475 = vmul.f32 %v439, %v459
  %v476 = vmul.f32 %v442, %v460
  %v477 = vmul.f32 %v461, 0.044715
  %v478 = vmul.f32 %v462, 0.044715
  %v479 = vmul.f32 %v463, 0.044715
  %v480 = vmul.f32 %v464, 0.044715
  %v481 = vmul.f32 %v465, 0.044715
  %v482 = vmul.f32 %v466, 0.044715
  %v483 = vmul.f32 %v467, 0.044715
  %v484 = vmul.f32 %v468, 0.044715
  %v485 = vmul.f32 %v469, 0.044715
  %v486 = vmul.f32 %v470, 0.044715
  %v487 = vmul.f32 %v471, 0.044715
  %v488 = vmul.f32 %v472, 0.044715
  %v489 = vmul.f32 %v473, 0.044715
  %v490 = vmul.f32 %v474, 0.044715
  %v491 = vmul.f32 %v475, 0.044715
  %v492 = vmul.f32 %v476, 0.044715
  %v493 = vadd.f32 %v383, %v477
  %v494 = vadd.f32 %v386, %v478
  %v495 = vadd.f32 %v391, %v479
  %v496 = vadd.f32 %v394, %v480
  %v497 = vadd.f32 %v399, %v481
  %v498 = vadd.f32 %v402, %v482
  %v499 = vadd.f32 %v407, %v483
  %v500 = vadd.f32 %v410, %v484
  %v501 = vadd.f32 %v415, %v485
  %v502 = vadd.f32 %v418, %v486
  %v503 = vadd.f32 %v423, %v487
  %v504 = vadd.f32 %v426, %v488
  %v505 = vadd.f32 %v431, %v489
  %v506 = vadd.f32 %v434, %v490
  %v507 = vadd.f32 %v439, %v491
  %v508 = vadd.f32 %v442, %v492
  %v509 = vmul.f32 %v493, 0.7978846
  %v510 = vmul.f32 %v494, 0.7978846
  %v511 = vmul.f32 %v495, 0.7978846
  %v512 = vmul.f32 %v496, 0.7978846
  %v513 = vmul.f32 %v497, 0.7978846
  %v514 = vmul.f32 %v498, 0.7978846
  %v515 = vmul.f32 %v499, 0.7978846
  %v516 = vmul.f32 %v500, 0.7978846
  %v517 = vmul.f32 %v501, 0.7978846
  %v518 = vmul.f32 %v502, 0.7978846
  %v519 = vmul.f32 %v503, 0.7978846
  %v520 = vmul.f32 %v504, 0.7978846
  %v521 = vmul.f32 %v505, 0.7978846
  %v522 = vmul.f32 %v506, 0.7978846
  %v523 = vmul.f32 %v507, 0.7978846
  %v524 = vmul.f32 %v508, 0.7978846
  %v525 = vtanh.pop %v509
  %v526 = vtanh.pop %v510
  %v527 = vtanh.pop %v511
  %v528 = vtanh.pop %v512
  %v529 = vtanh.pop %v513
  %v530 = vtanh.pop %v514
  %v531 = vtanh.pop %v515
  %v532 = vtanh.pop %v516
  %v533 = vtanh.pop %v517
  %v534 = vtanh.pop %v518
  %v535 = vtanh.pop %v519
  %v536 = vtanh.pop %v520
  %v537 = vtanh.pop %v521
  %v538 = vtanh.pop %v522
  %v539 = vtanh.pop %v523
  %v540 = vtanh.pop %v524
  %v541 = vadd.f32 %v525, 1.0
  %v542 = vadd.f32 %v526, 1.0
  %v543 = vadd.f32 %v527, 1.0
  %v544 = vadd.f32 %v528, 1.0
  %v545 = vadd.f32 %v529, 1.0
  %v546 = vadd.f32 %v530, 1.0
  %v547 = vadd.f32 %v531, 1.0
  %v548 = vadd.f32 %v532, 1.0
  %v549 = vadd.f32 %v533, 1.0
  %v550 = vadd.f32 %v534, 1.0
  %v551 = vadd.f32 %v535, 1.0
  %v552 = vadd.f32 %v536, 1.0
  %v553 = vadd.f32 %v537, 1.0
  %v554 = vadd.f32 %v538, 1.0
  %v555 = vadd.f32 %v539, 1.0
  %v556 = vadd.f32 %v540, 1.0
  %v557 = vmul.f32 %v541, 0.5
  %v558 = vmul.f32 %v542, 0.5
  %v559 = vmul.f32 %v543, 0.5
  %v560 = vmul.f32 %v544, 0.5
  %v561 = vmul.f32 %v545, 0.5
  %v562 = vmul.f32 %v546, 0.5
  %v563 = vmul.f32 %v547, 0.5
  %v564 = vmul.f32 %v548, 0.5
  %v565 = vmul.f32 %v549, 0.5
  %v566 = vmul.f32 %v550, 0.5
  %v567 = vmul.f32 %v551, 0.5
  %v568 = vmul.f32 %v552, 0.5
  %v569 = vmul.f32 %v553, 0.5
  %v570 = vmul.f32 %v554, 0.5
  %v571 = vmul.f32 %v555, 0.5
  %v572 = vmul.f32 %v556, 0.5
  %v573 = vmul.f32 %v383, %v557
  %v574 = vmul.f32 %v386, %v558
  %v575 = vmul.f32 %v391, %v559
  %v576 = vmul.f32 %v394, %v560
  %v577 = vmul.f32 %v399, %v561
  %v578 = vmul.f32 %v402, %v562
  %v579 = vmul.f32 %v407, %v563
  %v580 = vmul.f32 %v410, %v564
  %v581 = vmul.f32 %v415, %v565
  %v582 = vmul.f32 %v418, %v566
  %v583 = vmul.f32 %v423, %v567
  %v584 = vmul.f32 %v426, %v568
  %v585 = vmul.f32 %v431, %v569
  %v586 = vmul.f32 %v434, %v570
  %v587 = vmul.f32 %v439, %v571
  %v588 = vmul.f32 %v442, %v572
  %v589 = vpack.c.bf16 %v574, %v573
  %v590 = vpack.c.bf16 %v576, %v575
  %v591 = vpack.c.bf16 %v578, %v577
  %v592 = vpack.c.bf16 %v580, %v579
  %v593 = vpack.c.bf16 %v582, %v581
  %v594 = vpack.c.bf16 %v584, %v583
  %v595 = vpack.c.bf16 %v586, %v585
  %v596 = vpack.c.bf16 %v588, %v587
  %v605 = vunpack.c.l.b16 %v589
  %v606 = vunpack.c.h.b16 %v589
  %v607 = vunpack.c.l.b16 %v590
  %v608 = vunpack.c.h.b16 %v590
  %v609 = vunpack.c.l.b16 %v591
  %v610 = vunpack.c.h.b16 %v591
  %v611 = vunpack.c.l.b16 %v592
  %v612 = vunpack.c.h.b16 %v592
  %v613 = vunpack.c.l.b16 %v593
  %v614 = vunpack.c.h.b16 %v593
  %v615 = vunpack.c.l.b16 %v594
  %v616 = vunpack.c.h.b16 %v594
  %v617 = vunpack.c.l.b16 %v595
  %v618 = vunpack.c.h.b16 %v595
  %v619 = vunpack.c.l.b16 %v596
  %v620 = vunpack.c.h.b16 %v596
  %v621 = vpack.c.b16 %v605, %v605
  %v622 = vpack.c.b16 %v606, %v606
  %v623 = vpack.c.b16 %v607, %v607
  %v624 = vpack.c.b16 %v608, %v608
  %v625 = vpack.c.b16 %v609, %v609
  %v626 = vpack.c.b16 %v610, %v610
  %v627 = vpack.c.b16 %v611, %v611
  %v628 = vpack.c.b16 %v612, %v612
  %v629 = vpack.c.b16 %v613, %v613
  %v630 = vpack.c.b16 %v614, %v614
  %v631 = vpack.c.b16 %v615, %v615
  %v632 = vpack.c.b16 %v616, %v616
  %v633 = vpack.c.b16 %v617, %v617
  %v634 = vpack.c.b16 %v618, %v618
  %v635 = vpack.c.b16 %v619, %v619
  %v636 = vpack.c.b16 %v620, %v620
  %653 = vst [vmem:[%s5] sm:$0xf] %v621
  %654 = vst [vmem:[%s5 + $0x4] sm:$0xf] %v622
  %655 = vst [vmem:[%s5 + $0x8] sm:$0xf] %v623
  %656 = vst [vmem:[%s5 + $0xc] sm:$0xf] %v624
  %657 = vst [vmem:[%s5 + $0x10] sm:$0xf] %v625
  %658 = vst [vmem:[%s5 + $0x14] sm:$0xf] %v626
  %659 = vst [vmem:[%s5 + $0x18] sm:$0xf] %v627
  %660 = vst [vmem:[%s5 + $0x1c] sm:$0xf] %v628
  %661 = vst [vmem:[%s5 + $0x20] sm:$0xf] %v629
  %662 = vst [vmem:[%s5 + $0x24] sm:$0xf] %v630
  %663 = vst [vmem:[%s5 + $0x28] sm:$0xf] %v631
  %664 = vst [vmem:[%s5 + $0x2c] sm:$0xf] %v632
  %665 = vst [vmem:[%s5 + $0x30] sm:$0xf] %v633
  %666 = vst [vmem:[%s5 + $0x34] sm:$0xf] %v634
  %667 = vst [vmem:[%s5 + $0x38] sm:$0xf] %v635
  %668 = vst [vmem:[%s5 + $0x3c] sm:$0xf] %v636
  // Predicated region
  $region22: #{sam_v1_image_encoder.27} parent=0 // pred_check
    _
  $region23: #{sam_v1_image_encoder.27} parent=0 // pred_check_branch
    %670 = sbr.rel (0) target = $region25
  $region24: #{sam_v1_image_encoder.27} parent=0 // pred_region
    _
  $region25: #{sam_v1_image_encoder.27} parent=0 // pred_fallthru
    _
  // Predicated region
  $region26: #{sam_v1_image_encoder.27} parent=0 // pred_check
    _
  $region27: #{sam_v1_image_encoder.27} parent=0 // pred_check_branch
    %672 = sbr.rel (0) target = $region29
  $region28: #{sam_v1_image_encoder.27} parent=0 // pred_region
    _
  $region29: #{sam_v1_image_encoder.27} parent=0 // pred_fallthru
    _

// kernel: sam_v1_image_encoder.28
$region0: #{sam_v1_image_encoder.28}
  #allocation0 [shape = 'u32[]', space=smem, size = 0x4, offset = 0x4, fixed_abs, tag = 'smem constant byte address 0x4 - core index']
  #allocation1 [shape = 'u32[144,128]{1,0:T(1,128)}', space=vmem, size = 0x12000, scoped, tag = 'internal scratch']
  %s0 = inlined_call_operand.vmem [shape: bf16[128,128], index: 0, kind: input, shape index: {}]
  %s1 = inlined_call_operand.vmem [shape: bf16[128,32], index: 1, kind: input, shape index: {}]
  %s2 = inlined_call_operand.vmem [shape: f32[1,32], index: 2, kind: input, shape index: {}]
  %s3 = inlined_call_operand.vmem [shape: f32[128,32], index: 3, kind: input, shape index: {}]
  %s4 = inlined_call_operand.vmem [shape: f32[128,32], index: 4, kind: output, shape index: {}]
  %s5 = sld [smem:[#allocation0]]
  $region26: #{sam_v1_image_encoder.28} parent=0
    _
  %s7 = ssub.s32 1, %s5
  %s8 = scalar_select 0, %s7, %s5
  // Predicated region
  $region2: #{sam_v1_image_encoder.28} parent=0 // pred_check
    _
  $region3: #{sam_v1_image_encoder.28} parent=0 // pred_check_branch
    %10 = sbr.rel (0) target = $region5
  $region4: #{sam_v1_image_encoder.28} parent=0 // pred_region
    _
  $region5: #{sam_v1_image_encoder.28} parent=0 // pred_fallthru
    _
  // Predicated region
  $region6: #{sam_v1_image_encoder.28} parent=0 // pred_check
    _
  $region7: #{sam_v1_image_encoder.28} parent=0 // pred_check_branch
    %12 = sbr.rel (0) target = $region9
  $region8: #{sam_v1_image_encoder.28} parent=0 // pred_region
    _
  $region9: #{sam_v1_image_encoder.28} parent=0 // pred_fallthru
    _
  // Predicated region
  $region10: #{sam_v1_image_encoder.28} parent=0 // pred_check
    _
  $region11: #{sam_v1_image_encoder.28} parent=0 // pred_check_branch
    %14 = sbr.rel (0) target = $region13
  $region12: #{sam_v1_image_encoder.28} parent=0 // pred_region
    _
  $region13: #{sam_v1_image_encoder.28} parent=0 // pred_fallthru
    _
  // Predicated region
  $region14: #{sam_v1_image_encoder.28} parent=0 // pred_check
    _
  $region15: #{sam_v1_image_encoder.28} parent=0 // pred_check_branch
    %16 = sbr.rel (0) target = $region17
  $region16: #{sam_v1_image_encoder.28} parent=0 // pred_region
    _
  $region17: #{sam_v1_image_encoder.28} parent=0 // pred_fallthru
    _
  %v18 = vld [vmem:[%s0] sm:$0xf]
  %v19 = vld [vmem:[%s0 + $0x4] sm:$0xf]
  %v20 = vld [vmem:[%s0 + $0x8] sm:$0xf]
  %v21 = vld [vmem:[%s0 + $0xc] sm:$0xf]
  %v22 = vld [vmem:[%s0 + $0x10] sm:$0xf]
  %v23 = vld [vmem:[%s0 + $0x14] sm:$0xf]
  %v24 = vld [vmem:[%s0 + $0x18] sm:$0xf]
  %v25 = vld [vmem:[%s0 + $0x1c] sm:$0xf]
  %v26 = vld [vmem:[%s0 + $0x20] sm:$0xf]
  %v27 = vld [vmem:[%s0 + $0x24] sm:$0xf]
  %v28 = vld [vmem:[%s0 + $0x28] sm:$0xf]
  %v29 = vld [vmem:[%s0 + $0x2c] sm:$0xf]
  %v30 = vld [vmem:[%s0 + $0x30] sm:$0xf]
  %v31 = vld [vmem:[%s0 + $0x34] sm:$0xf]
  %v32 = vld [vmem:[%s0 + $0x38] sm:$0xf]
  %v33 = vld [vmem:[%s0 + $0x3c] sm:$0xf]
  %v34 = vld [vmem:[%s1] sm:$0xf]
  %v35 = vld [vmem:[%s1 + $0x4] sm:$0xf]
  %v36 = vld [vmem:[%s1 + $0x8] sm:$0xf]
  %v37 = vld [vmem:[%s1 + $0xc] sm:$0xf]
  %v38 = vld [vmem:[%s1 + $0x10] sm:$0xf]
  %v39 = vld [vmem:[%s1 + $0x14] sm:$0xf]
  %v40 = vld [vmem:[%s1 + $0x18] sm:$0xf]
  %v41 = vld [vmem:[%s1 + $0x1c] sm:$0xf]
  %v42 = vld [vmem:[%s1 + $0x20] sm:$0xf]
  %v43 = vld [vmem:[%s1 + $0x24] sm:$0xf]
  %v44 = vld [vmem:[%s1 + $0x28] sm:$0xf]
  %v45 = vld [vmem:[%s1 + $0x2c] sm:$0xf]
  %v46 = vld [vmem:[%s1 + $0x30] sm:$0xf]
  %v47 = vld [vmem:[%s1 + $0x34] sm:$0xf]
  %v48 = vld [vmem:[%s1 + $0x38] sm:$0xf]
  %v49 = vld [vmem:[%s1 + $0x3c] sm:$0xf]
  %v50 = vld [vmem:[%s2] sm:$0x1]
  %v52 = vlaneseq
  %v53 = vshrl.u32 %v52, 7
  %v54 = vsub.s32 0, %v53
  %v55 = vrot.slane %v50, %v54
  %v73 = vunpack.c.l.b16 %v18
  %v74 = vunpack.c.l.b16 %v19
  %v75 = vunpack.c.l.b16 %v20
  %v76 = vunpack.c.l.b16 %v21
  %v77 = vunpack.c.l.b16 %v22
  %v78 = vunpack.c.l.b16 %v23
  %v79 = vunpack.c.l.b16 %v24
  %v80 = vunpack.c.l.b16 %v25
  %v81 = vunpack.c.l.b16 %v26
  %v82 = vunpack.c.l.b16 %v27
  %v83 = vunpack.c.l.b16 %v28
  %v84 = vunpack.c.l.b16 %v29
  %v85 = vunpack.c.l.b16 %v30
  %v86 = vunpack.c.l.b16 %v31
  %v87 = vunpack.c.l.b16 %v32
  %v88 = vunpack.c.l.b16 %v33
  %v89 = vpack.c.b16 %v74, %v73
  %v90 = vpack.c.b16 %v76, %v75
  %v91 = vpack.c.b16 %v78, %v77
  %v92 = vpack.c.b16 %v80, %v79
  %v93 = vpack.c.b16 %v82, %v81
  %v94 = vpack.c.b16 %v84, %v83
  %v95 = vpack.c.b16 %v86, %v85
  %v96 = vpack.c.b16 %v88, %v87
  %v121 = vunpack.c.l.b16 %v34
  %v122 = vunpack.c.l.b16 %v35
  %v123 = vunpack.c.l.b16 %v36
  %v124 = vunpack.c.l.b16 %v37
  %v125 = vunpack.c.l.b16 %v38
  %v126 = vunpack.c.l.b16 %v39
  %v127 = vunpack.c.l.b16 %v40
  %v128 = vunpack.c.l.b16 %v41
  %v129 = vunpack.c.l.b16 %v42
  %v130 = vunpack.c.l.b16 %v43
  %v131 = vunpack.c.l.b16 %v44
  %v132 = vunpack.c.l.b16 %v45
  %v133 = vunpack.c.l.b16 %v46
  %v134 = vunpack.c.l.b16 %v47
  %v135 = vunpack.c.l.b16 %v48
  %v136 = vunpack.c.l.b16 %v49
  %v137 = vpack.c.b16 %v122, %v121
  %v138 = vpack.c.b16 %v124, %v123
  %v139 = vpack.c.b16 %v126, %v125
  %v140 = vpack.c.b16 %v128, %v127
  %v141 = vpack.c.b16 %v130, %v129
  %v142 = vpack.c.b16 %v132, %v131
  %v143 = vpack.c.b16 %v134, %v133
  %v144 = vpack.c.b16 %v136, %v135
  %153 = vmatprep.subr.bf16.mxu0 0
  %154 = vmatpush1.bf16.msra.mxu0 %v144
  %155 = vmatprep.subr.bf16.mxu0 0
  %156 = vmatpush1.bf16.msra.mxu0 %v143
  %157 = vmatprep.subr.bf16.mxu0 0
  %158 = vmatpush1.bf16.msra.mxu0 %v142
  %159 = vmatprep.subr.bf16.mxu0 0
  %160 = vmatpush1.bf16.msra.mxu0 %v141
  %161 = vmatprep.subr.bf16.mxu0 0
  %162 = vmatpush1.bf16.msra.mxu0 %v140
  %163 = vmatprep.subr.bf16.mxu0 0
  %164 = vmatpush1.bf16.msra.mxu0 %v139
  %165 = vmatprep.subr.bf16.mxu0 0
  %166 = vmatpush1.bf16.msra.mxu0 %v138
  %167 = vmatprep.subr.bf16.mxu0 0
  %168 = vmatpush1.bf16.msra.mxu0 %v137
  %169 = vmatprep.subr.bf16.mxu0 0
  %170 = vmatpush2.bf16.msra.mxu0 0
  %171 = vmatprep.subr.bf16.mxu0 0
  %172 = vmatpush2.bf16.msra.mxu0 0
  %173 = vmatprep.subr.bf16.mxu0 0
  %174 = vmatpush2.bf16.msra.mxu0 0
  %175 = vmatprep.subr.bf16.mxu0 0
  %176 = vmatpush2.bf16.msra.mxu0 0
  %177 = vmatprep.subr.bf16.mxu0 0
  %178 = vmatpush2.bf16.msra.mxu0 0
  %179 = vmatprep.subr.bf16.mxu0 0
  %180 = vmatpush2.bf16.msra.mxu0 0
  %181 = vmatprep.subr.bf16.mxu0 0
  %182 = vmatpush2.bf16.msra.mxu0 0
  %183 = vmatprep.subr.bf16.mxu0 0
  %184 = vmatpush2.bf16.msra.mxu0 0
  %185 = vmatprep.mubr.bf16.mxu0 0
  %186 = vmatmul.mubr.bf16.gmra.mxu0 %v89
  %v187 = vpop.f32.mrf.mxu0
  %v188 = vadd.f32 %v55, %v187
  %v189 = vpop.f32.mrf.mxu0
  %v190 = vpop.f32.mrf.mxu0
  %v191 = vadd.f32 %v55, %v190
  %v192 = vpop.f32.mrf.mxu0
  %193 = vmatprep.mubr.bf16.mxu0 0
  %194 = vmatmul.mubr.bf16.gmra.mxu0 %v90
  %v195 = vpop.f32.mrf.mxu0
  %v196 = vadd.f32 %v55, %v195
  %v197 = vpop.f32.mrf.mxu0
  %v198 = vpop.f32.mrf.mxu0
  %v199 = vadd.f32 %v55, %v198
  %v200 = vpop.f32.mrf.mxu0
  %201 = vmatprep.mubr.bf16.mxu0 0
  %202 = vmatmul.mubr.bf16.gmra.mxu0 %v91
  %v203 = vpop.f32.mrf.mxu0
  %v204 = vadd.f32 %v55, %v203
  %v205 = vpop.f32.mrf.mxu0
  %v206 = vpop.f32.mrf.mxu0
  %v207 = vadd.f32 %v55, %v206
  %v208 = vpop.f32.mrf.mxu0
  %209 = vmatprep.mubr.bf16.mxu0 0
  %210 = vmatmul.mubr.bf16.gmra.mxu0 %v92
  %v211 = vpop.f32.mrf.mxu0
  %v212 = vadd.f32 %v55, %v211
  %v213 = vpop.f32.mrf.mxu0
  %v214 = vpop.f32.mrf.mxu0
  %v215 = vadd.f32 %v55, %v214
  %v216 = vpop.f32.mrf.mxu0
  %217 = vmatprep.mubr.bf16.mxu0 0
  %218 = vmatmul.mubr.bf16.gmra.mxu0 %v93
  %v219 = vpop.f32.mrf.mxu0
  %v220 = vadd.f32 %v55, %v219
  %v221 = vpop.f32.mrf.mxu0
  %v222 = vpop.f32.mrf.mxu0
  %v223 = vadd.f32 %v55, %v222
  %v224 = vpop.f32.mrf.mxu0
  %225 = vmatprep.mubr.bf16.mxu0 0
  %226 = vmatmul.mubr.bf16.gmra.mxu0 %v94
  %v227 = vpop.f32.mrf.mxu0
  %v228 = vadd.f32 %v55, %v227
  %v229 = vpop.f32.mrf.mxu0
  %v230 = vpop.f32.mrf.mxu0
  %v231 = vadd.f32 %v55, %v230
  %v232 = vpop.f32.mrf.mxu0
  %233 = vmatprep.mubr.bf16.mxu0 0
  %234 = vmatmul.mubr.bf16.gmra.mxu0 %v95
  %v235 = vpop.f32.mrf.mxu0
  %v236 = vadd.f32 %v55, %v235
  %v237 = vpop.f32.mrf.mxu0
  %v238 = vpop.f32.mrf.mxu0
  %v239 = vadd.f32 %v55, %v238
  %v240 = vpop.f32.mrf.mxu0
  %241 = vmatprep.mubr.bf16.mxu0 0
  %242 = vmatmul.mubr.bf16.gmra.mxu0 %v96
  %v243 = vpop.f32.mrf.mxu0
  %v244 = vadd.f32 %v55, %v243
  %v245 = vpop.f32.mrf.mxu0
  %v246 = vpop.f32.mrf.mxu0
  %v247 = vadd.f32 %v55, %v246
  %v248 = vpop.f32.mrf.mxu0
  %249 = vdwg.mxu0
  %v250 = vld [vmem:[%s3] sm:$0xff]
  %v251 = vld [vmem:[%s3 + $0x8] sm:$0xff]
  %v252 = vld [vmem:[%s3 + $0x10] sm:$0xff]
  %v253 = vld [vmem:[%s3 + $0x18] sm:$0xff]
  %v254 = vld [vmem:[%s3 + $0x20] sm:$0xff]
  %v255 = vld [vmem:[%s3 + $0x28] sm:$0xff]
  %v256 = vld [vmem:[%s3 + $0x30] sm:$0xff]
  %v257 = vld [vmem:[%s3 + $0x38] sm:$0xff]
  %v258 = vld [vmem:[%s3 + $0x40] sm:$0xff]
  %v259 = vld [vmem:[%s3 + $0x48] sm:$0xff]
  %v260 = vld [vmem:[%s3 + $0x50] sm:$0xff]
  %v261 = vld [vmem:[%s3 + $0x58] sm:$0xff]
  %v262 = vld [vmem:[%s3 + $0x60] sm:$0xff]
  %v263 = vld [vmem:[%s3 + $0x68] sm:$0xff]
  %v264 = vld [vmem:[%s3 + $0x70] sm:$0xff]
  %v265 = vld [vmem:[%s3 + $0x78] sm:$0xff]
  %v266 = vadd.f32 %v188, %v250
  %v267 = vadd.f32 %v191, %v251
  %v268 = vadd.f32 %v196, %v252
  %v269 = vadd.f32 %v199, %v253
  %v270 = vadd.f32 %v204, %v254
  %v271 = vadd.f32 %v207, %v255
  %v272 = vadd.f32 %v212, %v256
  %v273 = vadd.f32 %v215, %v257
  %v274 = vadd.f32 %v220, %v258
  %v275 = vadd.f32 %v223, %v259
  %v276 = vadd.f32 %v228, %v260
  %v277 = vadd.f32 %v231, %v261
  %v278 = vadd.f32 %v236, %v262
  %v279 = vadd.f32 %v239, %v263
  %v280 = vadd.f32 %v244, %v264
  %v281 = vadd.f32 %v247, %v265
  %vm282 = vcmask 261120
  %283 = vst.msk [vmem:[%s4] sm:$0xff] %vm282, %v266
  %284 = vst.msk [vmem:[%s4 + $0x8] sm:$0xff] %vm282, %v267
  %285 = vst.msk [vmem:[%s4 + $0x10] sm:$0xff] %vm282, %v268
  %286 = vst.msk [vmem:[%s4 + $0x18] sm:$0xff] %vm282, %v269
  %287 = vst.msk [vmem:[%s4 + $0x20] sm:$0xff] %vm282, %v270
  %288 = vst.msk [vmem:[%s4 + $0x28] sm:$0xff] %vm282, %v271
  %289 = vst.msk [vmem:[%s4 + $0x30] sm:$0xff] %vm282, %v272
  %290 = vst.msk [vmem:[%s4 + $0x38] sm:$0xff] %vm282, %v273
  %291 = vst.msk [vmem:[%s4 + $0x40] sm:$0xff] %vm282, %v274
  %292 = vst.msk [vmem:[%s4 + $0x48] sm:$0xff] %vm282, %v275
  %293 = vst.msk [vmem:[%s4 + $0x50] sm:$0xff] %vm282, %v276
  %294 = vst.msk [vmem:[%s4 + $0x58] sm:$0xff] %vm282, %v277
  %295 = vst.msk [vmem:[%s4 + $0x60] sm:$0xff] %vm282, %v278
  %296 = vst.msk [vmem:[%s4 + $0x68] sm:$0xff] %vm282, %v279
  %297 = vst.msk [vmem:[%s4 + $0x70] sm:$0xff] %vm282, %v280
  %298 = vst.msk [vmem:[%s4 + $0x78] sm:$0xff] %vm282, %v281
  // Predicated region
  $region18: #{sam_v1_image_encoder.28} parent=0 // pred_check
    _
  $region19: #{sam_v1_image_encoder.28} parent=0 // pred_check_branch
    %300 = sbr.rel (0) target = $region21
  $region20: #{sam_v1_image_encoder.28} parent=0 // pred_region
    _
  $region21: #{sam_v1_image_encoder.28} parent=0 // pred_fallthru
    _
  // Predicated region
  $region22: #{sam_v1_image_encoder.28} parent=0 // pred_check
    _
  $region23: #{sam_v1_image_encoder.28} parent=0 // pred_check_branch
    %302 = sbr.rel (0) target = $region25
  $region24: #{sam_v1_image_encoder.28} parent=0 // pred_region
    _
  $region25: #{sam_v1_image_encoder.28} parent=0 // pred_fallthru
    _

// kernel: sam_v1_image_encoder.30
$region0: #{sam_v1_image_encoder.30}
  #allocation0 [shape = 'u32[]', space=smem, size = 0x4, offset = 0x4, fixed_abs, tag = 'smem constant byte address 0x4 - core index']
  #allocation1 [shape = 'u32[144,128]{1,0:T(1,128)}', space=vmem, size = 0x12000, scoped, tag = 'internal scratch']
  #allocation2 [shape = 'f32[64,1]{1,0:T(8,128)}', space=vmem, size = 0x8000, scoped, tag = 'scratch operand']
  #allocation3 [shape = 'f32[64,1]{1,0:T(8,128)}', space=vmem, size = 0x8000, scoped, tag = 'scratch operand']
  #allocation4 [shape = 'f32[64,8]{1,0:T(8,128)}', space=vmem, size = 0x8000, scoped, tag = 'scratch operand']
  %s0 = inlined_call_operand.vmem [shape: bf16[8,64,8], index: 0, kind: input, shape index: {}]
  %s1 = inlined_call_operand.vmem [shape: bf16[8,64,8], index: 1, kind: input, shape index: {}]
  %s2 = inlined_call_operand.vmem [shape: bf16[8,64,8], index: 2, kind: input, shape index: {}]
  %s3 = inlined_call_operand.vmem [shape: bf16[8,64,8], index: 3, kind: output, shape index: {}]
  %s4 = sld [smem:[#allocation0]]
  $region53: #{sam_v1_image_encoder.30} parent=0
    _
  %s6 = ssub.s32 1, %s4
  %s7 = scalar_select 0, %s6, %s4
  loop: start=0, step=1, limit=10
  $region2: #{sam_v1_image_encoder.30} parent=0 // loop_pre_header
    _
  $region3: #{sam_v1_image_encoder.30} parent=0 // loop_header
    %s9 = sphi 0, %s13
    %p10 = scmp.ge.s32.totalorder %s9, 10
    %s16 = sphi 0, %s35
    %s17 = sphi 0, %s31
    %s18 = sphi 0, %s27
    %s19 = sphi 0, %s16
    %s20 = sphi 0, %s17
    %s21 = sphi 0, %s18
    %s22 = sphi 0, %s19
    %s23 = sphi 0, %s20
    %s24 = sphi 0, %s21
    %s40 = sphi 0, %s42
    %s43 = sphi 0, %s40
    %s44 = sphi 0, %s43
    %s60 = sphi 0, %s44
    %s68 = sphi 0, %s70
    %s71 = sphi 0, %s68
    %s72 = sphi 0, %s71
    %s88 = sphi 0, %s72
    %s96 = sphi 0, %s98
    %s99 = sphi 0, %s96
    %s100 = sphi 0, %s99
    %s116 = sphi 0, %s100
    %s124 = sphi 0, %s126
    %s127 = sphi 0, %s124
    %s128 = sphi 0, %s127
    %s144 = sphi 0, %s128
  $region4: #{sam_v1_image_encoder.30} parent=0 // loop_header_branch
    %12 = sbr.rel (%p10) target = $region8
  $region5: #{sam_v1_image_encoder.30} parent=0 // loop_body
    %s14 = ssub.s32 %s9, 1
    %s15 = ssub.s32 %s9, 2
    %s25 = sadd.s32 1, %s18
    %p26 = scmp.ge.s32.totalorder %s25, 1
    %s27 = scalar_select %p26, 0, %s25
    %s28 = sadd.s32 1, %s17
    %s29 = scalar_select %p26, %s28, %s17
    %p30 = scmp.ge.s32.totalorder %s29, 1
    %s31 = scalar_select %p30, 0, %s29
    %s32 = sadd.s32 1, %s16
    %s33 = scalar_select %p30, %s32, %s16
    %p34 = scmp.ge.s32.totalorder %s33, 8
    %s35 = scalar_select %p34, 0, %s33
    %s36 = ssub.s32 %s16, %s35
    %s37 = ssub.s32 %s17, %s31
    %s38 = sor.u32 %s36, %s37
    %p39 = scmp.eq.s32.totalorder %s38, 0
    %s41 = sadd.s32 %s40, 1
    %s42 = scalar_select %p39, %s40, %s41
    %p45 = pneg %p39
    %p46 = scmp.eq.s32.totalorder %s9, 7
    %p47 = por %p45, %p46
    %p48 = scmp.ne.s32.totalorder %s40, %s43
    %p49 = scmp.eq.s32.totalorder %s9, 0
    %p50 = por %p48, %p49
    %p51 = scmp.ne.s32.totalorder %s40, %s43
    %p52 = scmp.eq.s32.totalorder %s14, 7
    %p53 = por %p51, %p52
    %p54 = scmp.ne.s32.totalorder %s43, %s44
    %p55 = scmp.eq.s32.totalorder %s14, 0
    %p56 = por %p54, %p55
    %p57 = scmp.ne.s32.totalorder %s43, %s44
    %p58 = scmp.eq.s32.totalorder %s15, 7
    %p59 = por %p57, %p58
    %p61 = scmp.ne.s32.totalorder %s44, %s60
    %p62 = scmp.eq.s32.totalorder %s15, 0
    %p63 = por %p61, %p62
    %s64 = ssub.s32 %s16, %s35
    %s65 = ssub.s32 %s18, %s27
    %s66 = sor.u32 %s64, %s65
    %p67 = scmp.eq.s32.totalorder %s66, 0
    %s69 = sadd.s32 %s68, 1
    %s70 = scalar_select %p67, %s68, %s69
    %p73 = pneg %p67
    %p74 = scmp.eq.s32.totalorder %s9, 7
    %p75 = por %p73, %p74
    %p76 = scmp.ne.s32.totalorder %s68, %s71
    %p77 = scmp.eq.s32.totalorder %s9, 0
    %p78 = por %p76, %p77
    %p79 = scmp.ne.s32.totalorder %s68, %s71
    %p80 = scmp.eq.s32.totalorder %s14, 7
    %p81 = por %p79, %p80
    %p82 = scmp.ne.s32.totalorder %s71, %s72
    %p83 = scmp.eq.s32.totalorder %s14, 0
    %p84 = por %p82, %p83
    %p85 = scmp.ne.s32.totalorder %s71, %s72
    %p86 = scmp.eq.s32.totalorder %s15, 7
    %p87 = por %p85, %p86
    %p89 = scmp.ne.s32.totalorder %s72, %s88
    %p90 = scmp.eq.s32.totalorder %s15, 0
    %p91 = por %p89, %p90
    %s92 = ssub.s32 %s16, %s35
    %s93 = ssub.s32 %s18, %s27
    %s94 = sor.u32 %s92, %s93
    %p95 = scmp.eq.s32.totalorder %s94, 0
    %s97 = sadd.s32 %s96, 1
    %s98 = scalar_select %p95, %s96, %s97
    %p101 = pneg %p95
    %p102 = scmp.eq.s32.totalorder %s9, 7
    %p103 = por %p101, %p102
    %p104 = scmp.ne.s32.totalorder %s96, %s99
    %p105 = scmp.eq.s32.totalorder %s9, 0
    %p106 = por %p104, %p105
    %p107 = scmp.ne.s32.totalorder %s96, %s99
    %p108 = scmp.eq.s32.totalorder %s14, 7
    %p109 = por %p107, %p108
    %p110 = scmp.ne.s32.totalorder %s99, %s100
    %p111 = scmp.eq.s32.totalorder %s14, 0
    %p112 = por %p110, %p111
    %p113 = scmp.ne.s32.totalorder %s99, %s100
    %p114 = scmp.eq.s32.totalorder %s15, 7
    %p115 = por %p113, %p114
    %p117 = scmp.ne.s32.totalorder %s100, %s116
    %p118 = scmp.eq.s32.totalorder %s15, 0
    %p119 = por %p117, %p118
    %s120 = ssub.s32 %s16, %s35
    %s121 = ssub.s32 %s17, %s31
    %s122 = sor.u32 %s120, %s121
    %p123 = scmp.eq.s32.totalorder %s122, 0
    %s125 = sadd.s32 %s124, 1
    %s126 = scalar_select %p123, %s124, %s125
    %p129 = pneg %p123
    %p130 = scmp.eq.s32.totalorder %s9, 7
    %p131 = por %p129, %p130
    %p132 = scmp.ne.s32.totalorder %s124, %s127
    %p133 = scmp.eq.s32.totalorder %s9, 0
    %p134 = por %p132, %p133
    %p135 = scmp.ne.s32.totalorder %s124, %s127
    %p136 = scmp.eq.s32.totalorder %s14, 7
    %p137 = por %p135, %p136
    %p138 = scmp.ne.s32.totalorder %s127, %s128
    %p139 = scmp.eq.s32.totalorder %s14, 0
    %p140 = por %p138, %p139
    %p141 = scmp.ne.s32.totalorder %s127, %s128
    %p142 = scmp.eq.s32.totalorder %s15, 7
    %p143 = por %p141, %p142
    %p145 = scmp.ne.s32.totalorder %s128, %s144
    %p146 = scmp.eq.s32.totalorder %s15, 0
    %p147 = por %p145, %p146
    %p148 = scmp.le.s32.totalorder 1, %s9
    %p149 = scmp.lt.s32.totalorder %s9, 9
    %p150 = pnand %p148, %p149
    %p151 = pneg %p150
    // Predicated region
    $region9: #{sam_v1_image_encoder.30} parent=5 // pred_check
      _
    $region10: #{sam_v1_image_encoder.30} parent=5 // pred_check_branch
      %153 = sbr.rel (%p150) target = $region12
    $region11: #{sam_v1_image_encoder.30} parent=5 // pred_region
      %s154 = ssub.s32 %s9, 1
    $region12: #{sam_v1_image_encoder.30} parent=5 // pred_fallthru
      _
    %p155 = scmp.lt.s32.totalorder %s9, 8
    // Predicated region
    $region13: #{sam_v1_image_encoder.30} parent=5 // pred_check
      %p156 = pneg %p155
    $region14: #{sam_v1_image_encoder.30} parent=5 // pred_check_branch
      %158 = sbr.rel (%p156) target = $region16
    $region15: #{sam_v1_image_encoder.30} parent=5 // pred_region
      // Predicated region
      $region17: #{sam_v1_image_encoder.30} parent=15 // pred_check
        %p159 = pneg %p50
      $region18: #{sam_v1_image_encoder.30} parent=15 // pred_check_branch
        %161 = sbr.rel (%p159) target = $region20
      $region19: #{sam_v1_image_encoder.30} parent=15 // pred_region
        %s162 = smul.u32 8, %s17
        %p163 = scmp.lt.s32.totalorder %s16, 7
        %s164 = scalar_select %p163, %s16, 7
        %p165 = scmp.lt.s32.totalorder %s162, 7
        %s166 = scalar_select %p165, %s162, 7
        %s167 = smul.addr %s164, 8
        %s168 = sadd.s32 %s166, %s167
        %s169 = smul.addr %s168, 4
        %s170 = scalar_lea.vmem %s0, %s169
        %s171 = smul.u32 8, %s17
      $region20: #{sam_v1_image_encoder.30} parent=15 // pred_fallthru
        _
      // Predicated region
      $region21: #{sam_v1_image_encoder.30} parent=15 // pred_check
        %p172 = pneg %p78
      $region22: #{sam_v1_image_encoder.30} parent=15 // pred_check_branch
        %174 = sbr.rel (%p172) target = $region24
      $region23: #{sam_v1_image_encoder.30} parent=15 // pred_region
        %s175 = smul.u32 8, %s18
        %p176 = scmp.lt.s32.totalorder %s16, 7
        %s177 = scalar_select %p176, %s16, 7
        %p178 = scmp.lt.s32.totalorder %s175, 7
        %s179 = scalar_select %p178, %s175, 7
        %s180 = smul.addr %s177, 8
        %s181 = sadd.s32 %s179, %s180
        %s182 = smul.addr %s181, 4
        %s183 = scalar_lea.vmem %s1, %s182
        %s184 = smul.u32 8, %s18
      $region24: #{sam_v1_image_encoder.30} parent=15 // pred_fallthru
        _
      // Predicated region
      $region25: #{sam_v1_image_encoder.30} parent=15 // pred_check
        %p185 = pneg %p106
      $region26: #{sam_v1_image_encoder.30} parent=15 // pred_check_branch
        %187 = sbr.rel (%p185) target = $region28
      $region27: #{sam_v1_image_encoder.30} parent=15 // pred_region
        %s188 = smul.u32 8, %s18
        %p189 = scmp.lt.s32.totalorder %s16, 7
        %s190 = scalar_select %p189, %s16, 7
        %p191 = scmp.lt.s32.totalorder %s188, 7
        %s192 = scalar_select %p191, %s188, 7
        %s193 = smul.addr %s190, 8
        %s194 = sadd.s32 %s192, %s193
        %s195 = smul.addr %s194, 4
        %s196 = scalar_lea.vmem %s2, %s195
        %s197 = smul.u32 8, %s18
      $region28: #{sam_v1_image_encoder.30} parent=15 // pred_fallthru
        _
    $region16: #{sam_v1_image_encoder.30} parent=5 // pred_fallthru
      _
    %p198 = scmp.le.s32.totalorder 1, %s9
    %p199 = scmp.lt.s32.totalorder %s9, 9
    %p200 = pnand %p198, %p199
    %p201 = pneg %p200
    // Predicated region
    $region29: #{sam_v1_image_encoder.30} parent=5 // pred_check
      _
    $region30: #{sam_v1_image_encoder.30} parent=5 // pred_check_branch
      %203 = sbr.rel (%p200) target = $region32
    $region31: #{sam_v1_image_encoder.30} parent=5 // pred_region
      %s204 = ssub.s32 %s9, 1
      %s205 = smul.u32 8, %s20
      %p206 = scmp.lt.s32.totalorder %s19, 7
      %s207 = scalar_select %p206, %s19, 7
      %p208 = scmp.lt.s32.totalorder %s205, 7
      %s209 = scalar_select %p208, %s205, 7
      %s210 = smul.addr %s207, 8
      %s211 = sadd.s32 %s209, %s210
      %s212 = smul.addr %s211, 4
      %s213 = scalar_lea.vmem %s0, %s212
      %p214 = pneg %p56
      %p215 = pneg %p53
      %s216 = smul.u32 8, %s21
      %p217 = scmp.lt.s32.totalorder %s19, 7
      %s218 = scalar_select %p217, %s19, 7
      %p219 = scmp.lt.s32.totalorder %s216, 7
      %s220 = scalar_select %p219, %s216, 7
      %s221 = smul.addr %s218, 8
      %s222 = sadd.s32 %s220, %s221
      %s223 = smul.addr %s222, 4
      %s224 = scalar_lea.vmem %s1, %s223
      %p225 = pneg %p84
      %p226 = pneg %p81
      %s227 = smul.u32 8, %s21
      %p228 = scmp.lt.s32.totalorder %s19, 7
      %s229 = scalar_select %p228, %s19, 7
      %p230 = scmp.lt.s32.totalorder %s227, 7
      %s231 = scalar_select %p230, %s227, 7
      %s232 = smul.addr %s229, 8
      %s233 = sadd.s32 %s231, %s232
      %s234 = smul.addr %s233, 4
      %s235 = scalar_lea.vmem %s2, %s234
      %p236 = pneg %p112
      %p237 = pneg %p109
      %p238 = pneg %p140
      %p239 = pneg %p137
      %s240 = smul.u32 8, %s20
      %p241 = scmp.lt.s32.totalorder %s19, 7
      %s242 = scalar_select %p241, %s19, 7
      %p243 = scmp.lt.s32.totalorder %s240, 7
      %s244 = scalar_select %p243, %s240, 7
      %s245 = smul.addr %s242, 8
      %s246 = sadd.s32 %s244, %s245
      %s247 = smul.addr %s246, 4
      %s248 = scalar_lea.vmem %s3, %s247
      %s249 = smul.u32 8, %s20
      %p250 = scmp.lt.s32.totalorder %s19, 7
      %s251 = scalar_select %p250, %s19, 7
      %p252 = scmp.lt.s32.totalorder %s249, 7
      %s253 = scalar_select %p252, %s249, 7
      %s254 = smul.addr %s251, 8
      %s255 = sadd.s32 %s253, %s254
      %s256 = smul.addr %s255, 4
      %s257 = scalar_lea.vmem %s0, %s256
      %s258 = smul.u32 8, %s20
      %s259 = smul.u32 8, %s21
      %p260 = scmp.lt.s32.totalorder %s19, 7
      %s261 = scalar_select %p260, %s19, 7
      %p262 = scmp.lt.s32.totalorder %s259, 7
      %s263 = scalar_select %p262, %s259, 7
      %s264 = smul.addr %s261, 8
      %s265 = sadd.s32 %s263, %s264
      %s266 = smul.addr %s265, 4
      %s267 = scalar_lea.vmem %s1, %s266
      %s268 = smul.u32 8, %s21
      %s269 = smul.u32 8, %s21
      %p270 = scmp.lt.s32.totalorder %s19, 7
      %s271 = scalar_select %p270, %s19, 7
      %p272 = scmp.lt.s32.totalorder %s269, 7
      %s273 = scalar_select %p272, %s269, 7
      %s274 = smul.addr %s271, 8
      %s275 = sadd.s32 %s273, %s274
      %s276 = smul.addr %s275, 4
      %s277 = scalar_lea.vmem %s2, %s276
      %s278 = smul.u32 8, %s21
      %s279 = smul.u32 8, %s20
      %p280 = scmp.lt.s32.totalorder %s19, 7
      %s281 = scalar_select %p280, %s19, 7
      %p282 = scmp.lt.s32.totalorder %s279, 7
      %s283 = scalar_select %p282, %s279, 7
      %s284 = smul.addr %s281, 8
      %s285 = sadd.s32 %s283, %s284
      %s286 = smul.addr %s285, 4
      %s287 = scalar_lea.vmem %s3, %s286
      %s288 = smul.u32 8, %s20
      %p290 = scmp.eq.s32.totalorder %s21, 0
      // Predicated region
      $region33: #{sam_v1_image_encoder.30} parent=31 // pred_check
        %p291 = pneg %p290
      $region34: #{sam_v1_image_encoder.30} parent=31 // pred_check_branch
        %293 = sbr.rel (%p291) target = $region36
      $region35: #{sam_v1_image_encoder.30} parent=31 // pred_region
        %vm294 = vcmask 7168
        %295 = vst.msk [vmem:[#allocation2] sm:$0xff] %vm294, -1e+30
        %296 = vst.msk [vmem:[#allocation2 + $0x8] sm:$0xff] %vm294, -1e+30
        %297 = vst.msk [vmem:[#allocation2 + $0x10] sm:$0xff] %vm294, -1e+30
        %298 = vst.msk [vmem:[#allocation2 + $0x18] sm:$0xff] %vm294, -1e+30
        %299 = vst.msk [vmem:[#allocation2 + $0x20] sm:$0xff] %vm294, -1e+30
        %300 = vst.msk [vmem:[#allocation2 + $0x28] sm:$0xff] %vm294, -1e+30
        %301 = vst.msk [vmem:[#allocation2 + $0x30] sm:$0xff] %vm294, -1e+30
        %302 = vst.msk [vmem:[#allocation2 + $0x38] sm:$0xff] %vm294, -1e+30
        %303 = vst.msk [vmem:[#allocation3] sm:$0xff] %vm294, 0.0
        %304 = vst.msk [vmem:[#allocation3 + $0x8] sm:$0xff] %vm294, 0.0
        %305 = vst.msk [vmem:[#allocation3 + $0x10] sm:$0xff] %vm294, 0.0
        %306 = vst.msk [vmem:[#allocation3 + $0x18] sm:$0xff] %vm294, 0.0
        %307 = vst.msk [vmem:[#allocation3 + $0x20] sm:$0xff] %vm294, 0.0
        %308 = vst.msk [vmem:[#allocation3 + $0x28] sm:$0xff] %vm294, 0.0
        %309 = vst.msk [vmem:[#allocation3 + $0x30] sm:$0xff] %vm294, 0.0
        %310 = vst.msk [vmem:[#allocation3 + $0x38] sm:$0xff] %vm294, 0.0
        %vm311 = vcmask 64512
        %312 = vst.msk [vmem:[#allocation4] sm:$0xff] %vm311, 0.0
        %313 = vst.msk [vmem:[#allocation4 + $0x8] sm:$0xff] %vm311, 0.0
        %314 = vst.msk [vmem:[#allocation4 + $0x10] sm:$0xff] %vm311, 0.0
        %315 = vst.msk [vmem:[#allocation4 + $0x18] sm:$0xff] %vm311, 0.0
        %316 = vst.msk [vmem:[#allocation4 + $0x20] sm:$0xff] %vm311, 0.0
        %317 = vst.msk [vmem:[#allocation4 + $0x28] sm:$0xff] %vm311, 0.0
        %318 = vst.msk [vmem:[#allocation4 + $0x30] sm:$0xff] %vm311, 0.0
        %319 = vst.msk [vmem:[#allocation4 + $0x38] sm:$0xff] %vm311, 0.0
      $region36: #{sam_v1_image_encoder.30} parent=31 // pred_fallthru
        _
      %v320 = vld [vmem:[%s257] sm:$0xf]
      %v321 = vld [vmem:[%s257 + $0x4] sm:$0xf]
      %v322 = vld [vmem:[%s257 + $0x8] sm:$0xf]
      %v323 = vld [vmem:[%s257 + $0xc] sm:$0xf]
      %v324 = vld [vmem:[%s257 + $0x10] sm:$0xf]
      %v325 = vld [vmem:[%s257 + $0x14] sm:$0xf]
      %v326 = vld [vmem:[%s257 + $0x18] sm:$0xf]
      %v327 = vld [vmem:[%s257 + $0x1c] sm:$0xf]
      %v328 = vld [vmem:[%s267] sm:$0xf]
      %v329 = vld [vmem:[%s267 + $0x4] sm:$0xf]
      %v330 = vld [vmem:[%s267 + $0x8] sm:$0xf]
      %v331 = vld [vmem:[%s267 + $0xc] sm:$0xf]
      %v332 = vld [vmem:[%s267 + $0x10] sm:$0xf]
      %v333 = vld [vmem:[%s267 + $0x14] sm:$0xf]
      %v334 = vld [vmem:[%s267 + $0x18] sm:$0xf]
      %v335 = vld [vmem:[%s267 + $0x1c] sm:$0xf]
      %v336 = vld [vmem:[%s277] sm:$0xf]
      %v337 = vld [vmem:[%s277 + $0x4] sm:$0xf]
      %v338 = vld [vmem:[%s277 + $0x8] sm:$0xf]
      %v339 = vld [vmem:[%s277 + $0xc] sm:$0xf]
      %v340 = vld [vmem:[%s277 + $0x10] sm:$0xf]
      %v341 = vld [vmem:[%s277 + $0x14] sm:$0xf]
      %v342 = vld [vmem:[%s277 + $0x18] sm:$0xf]
      %v343 = vld [vmem:[%s277 + $0x1c] sm:$0xf]
      %v352 = vunpack.c.l.b16 %v320
      %v353 = vunpack.c.l.b16 %v321
      %v354 = vunpack.c.l.b16 %v322
      %v355 = vunpack.c.l.b16 %v323
      %v356 = vunpack.c.l.b16 %v324
      %v357 = vunpack.c.l.b16 %v325
      %v358 = vunpack.c.l.b16 %v326
      %v359 = vunpack.c.l.b16 %v327
      %v360 = vpack.c.b16 %v353, %v352
      %v361 = vpack.c.b16 %v355, %v354
      %v362 = vpack.c.b16 %v357, %v356
      %v363 = vpack.c.b16 %v359, %v358
      %v372 = vunpack.c.l.b16 %v328
      %v373 = vunpack.c.l.b16 %v329
      %v374 = vunpack.c.l.b16 %v330
      %v375 = vunpack.c.l.b16 %v331
      %v376 = vunpack.c.l.b16 %v332
      %v377 = vunpack.c.l.b16 %v333
      %v378 = vunpack.c.l.b16 %v334
      %v379 = vunpack.c.l.b16 %v335
      %v380 = vpack.c.b16 %v373, %v372
      %v381 = vpack.c.b16 %v375, %v374
      %v382 = vpack.c.b16 %v377, %v376
      %v383 = vpack.c.b16 %v379, %v378
      %vm384 = vcmask 64512
      %v386 = vsel %vm384, %v360, 0
      %v389 = vsel %vm384, %v361, 0
      %v392 = vsel %vm384, %v362, 0
      %v395 = vsel %vm384, %v363, 0
      %v398 = vsel %vm384, %v380, 0
      %v401 = vsel %vm384, %v381, 0
      %v404 = vsel %vm384, %v382, 0
      %v407 = vsel %vm384, %v383, 0
      %409 = vmatprep.subr.bf16.mxu0 0
      %410 = vmatpush1.bf16.xpose.msra.mxu0 0
      %411 = vmatprep.subr.bf16.mxu0 0
      %412 = vmatpush1.bf16.xpose.msra.mxu0 0
      %413 = vmatprep.subr.bf16.mxu0 0
      %414 = vmatpush1.bf16.xpose.msra.mxu0 0
      %415 = vmatprep.subr.bf16.mxu0 0
      %416 = vmatpush1.bf16.xpose.msra.mxu0 0
      %417 = vmatprep.subr.bf16.mxu0 0
      %418 = vmatpush1.bf16.xpose.msra.mxu0 %v407
      %419 = vmatprep.subr.bf16.mxu0 0
      %420 = vmatpush1.bf16.xpose.msra.mxu0 %v404
      %421 = vmatprep.subr.bf16.mxu0 0
      %422 = vmatpush1.bf16.xpose.msra.mxu0 %v401
      %423 = vmatprep.subr.bf16.mxu0 0
      %424 = vmatpush1.bf16.xpose.msra.mxu0 %v398
      %425 = vmatprep.subr.bf16.mxu0 0
      %426 = vmatpush2.bf16.xpose.msra.mxu0 0
      %427 = vmatprep.subr.bf16.mxu0 0
      %428 = vmatpush2.bf16.xpose.msra.mxu0 0
      %429 = vmatprep.subr.bf16.mxu0 0
      %430 = vmatpush2.bf16.xpose.msra.mxu0 0
      %431 = vmatprep.subr.bf16.mxu0 0
      %432 = vmatpush2.bf16.xpose.msra.mxu0 0
      %433 = vmatprep.subr.bf16.mxu0 0
      %434 = vmatpush2.bf16.xpose.msra.mxu0 0
      %435 = vmatprep.subr.bf16.mxu0 0
      %436 = vmatpush2.bf16.xpose.msra.mxu0 0
      %437 = vmatprep.subr.bf16.mxu0 0
      %438 = vmatpush2.bf16.xpose.msra.mxu0 0
      %439 = vmatprep.subr.bf16.mxu0 0
      %440 = vmatpush2.bf16.xpose.msra.mxu0 0
      %441 = vmatprep.mubr.bf16.mxu0 0
      %442 = vmatmul.mubr.bf16.gmra.mxu0 %v386
      %v443 = vpop.f32.mrf.mxu0
      %v444 = vadd.f32 0.0, %v443
      %v445 = vpop.f32.mrf.mxu0
      %v446 = vpop.f32.mrf.mxu0
      %v447 = vadd.f32 0.0, %v446
      %v448 = vpop.f32.mrf.mxu0
      %449 = vmatprep.mubr.bf16.mxu0 0
      %450 = vmatmul.mubr.bf16.gmra.mxu0 %v389
      %v451 = vpop.f32.mrf.mxu0
      %v452 = vadd.f32 0.0, %v451
      %v453 = vpop.f32.mrf.mxu0
      %v454 = vpop.f32.mrf.mxu0
      %v455 = vadd.f32 0.0, %v454
      %v456 = vpop.f32.mrf.mxu0
      %457 = vmatprep.mubr.bf16.mxu0 0
      %458 = vmatmul.mubr.bf16.gmra.mxu0 %v392
      %v459 = vpop.f32.mrf.mxu0
      %v460 = vadd.f32 0.0, %v459
      %v461 = vpop.f32.mrf.mxu0
      %v462 = vpop.f32.mrf.mxu0
      %v463 = vadd.f32 0.0, %v462
      %v464 = vpop.f32.mrf.mxu0
      %465 = vmatprep.mubr.bf16.mxu0 0
      %466 = vmatmul.mubr.bf16.gmra.mxu0 %v395
      %v467 = vpop.f32.mrf.mxu0
      %v468 = vadd.f32 0.0, %v467
      %v469 = vpop.f32.mrf.mxu0
      %v470 = vpop.f32.mrf.mxu0
      %v471 = vadd.f32 0.0, %v470
      %v472 = vpop.f32.mrf.mxu0
      %473 = vdwg.mxu0
      %v474 = vld [vmem:[#allocation2] sm:$0xff]
      %v475 = vld [vmem:[#allocation2 + $0x8] sm:$0xff]
      %v476 = vld [vmem:[#allocation2 + $0x10] sm:$0xff]
      %v477 = vld [vmem:[#allocation2 + $0x18] sm:$0xff]
      %v478 = vld [vmem:[#allocation2 + $0x20] sm:$0xff]
      %v479 = vld [vmem:[#allocation2 + $0x28] sm:$0xff]
      %v480 = vld [vmem:[#allocation2 + $0x30] sm:$0xff]
      %v481 = vld [vmem:[#allocation2 + $0x38] sm:$0xff]
      %vm482 = vcmask 523264
      %v483 = vsel %vm482, %v444, -inf
      %484 = vmax.xlane.f32.xlu0 %v483
      %v485 = vpop.xlane.xlu0 %484
      %v486 = vsel %vm482, %v447, -inf
      %487 = vmax.xlane.f32.xlu0 %v486
      %v488 = vpop.xlane.xlu0 %487
      %v489 = vsel %vm482, %v452, -inf
      %490 = vmax.xlane.f32.xlu0 %v489
      %v491 = vpop.xlane.xlu0 %490
      %v492 = vsel %vm482, %v455, -inf
      %493 = vmax.xlane.f32.xlu0 %v492
      %v494 = vpop.xlane.xlu0 %493
      %v495 = vsel %vm482, %v460, -inf
      %496 = vmax.xlane.f32.xlu0 %v495
      %v497 = vpop.xlane.xlu0 %496
      %v498 = vsel %vm482, %v463, -inf
      %499 = vmax.xlane.f32.xlu0 %v498
      %v500 = vpop.xlane.xlu0 %499
      %v501 = vsel %vm482, %v468, -inf
      %502 = vmax.xlane.f32.xlu0 %v501
      %v503 = vpop.xlane.xlu0 %502
      %v504 = vsel %vm482, %v471, -inf
      %505 = vmax.xlane.f32.xlu0 %v504
      %v506 = vpop.xlane.xlu0 %505
      %v507 = vmax.f32 %v474, %v485
      %v508 = vmax.f32 %v475, %v488
      %v509 = vmax.f32 %v476, %v491
      %v510 = vmax.f32 %v477, %v494
      %v511 = vmax.f32 %v478, %v497
      %v512 = vmax.f32 %v479, %v500
      %v513 = vmax.f32 %v480, %v503
      %v514 = vmax.f32 %v481, %v506
      %v515 = vsub.f32 %v474, %v507
      %v516 = vsub.f32 %v475, %v508
      %v517 = vsub.f32 %v476, %v509
      %v518 = vsub.f32 %v477, %v510
      %v519 = vsub.f32 %v478, %v511
      %v520 = vsub.f32 %v479, %v512
      %v521 = vsub.f32 %v480, %v513
      %v522 = vsub.f32 %v481, %v514
      %v523 = vmul.f32 %v515, 1.442695
      %v524 = vpow.pop %v523
      %v525 = vmul.f32 %v516, 1.442695
      %v526 = vpow.pop %v525
      %v527 = vmul.f32 %v517, 1.442695
      %v528 = vpow.pop %v527
      %v529 = vmul.f32 %v518, 1.442695
      %v530 = vpow.pop %v529
      %v531 = vmul.f32 %v519, 1.442695
      %v532 = vpow.pop %v531
      %v533 = vmul.f32 %v520, 1.442695
      %v534 = vpow.pop %v533
      %v535 = vmul.f32 %v521, 1.442695
      %v536 = vpow.pop %v535
      %v537 = vmul.f32 %v522, 1.442695
      %v538 = vpow.pop %v537
      %540 = vset.pattern.permute.xlu0 0
      %541 = vperm.xlu0 %540, %v507
      %v542 = vpop.permute.xlu0 %541
      %545 = vset.pattern.permute.xlu0 0
      %546 = vperm.xlu0 %545, %v508
      %v547 = vpop.permute.xlu0 %546
      %550 = vset.pattern.permute.xlu0 0
      %551 = vperm.xlu0 %550, %v509
      %v552 = vpop.permute.xlu0 %551
      %555 = vset.pattern.permute.xlu0 0
      %556 = vperm.xlu0 %555, %v510
      %v557 = vpop.permute.xlu0 %556
      %560 = vset.pattern.permute.xlu0 0
      %561 = vperm.xlu0 %560, %v511
      %v562 = vpop.permute.xlu0 %561
      %565 = vset.pattern.permute.xlu0 0
      %566 = vperm.xlu0 %565, %v512
      %v567 = vpop.permute.xlu0 %566
      %570 = vset.pattern.permute.xlu0 0
      %571 = vperm.xlu0 %570, %v513
      %v572 = vpop.permute.xlu0 %571
      %575 = vset.pattern.permute.xlu0 0
      %576 = vperm.xlu0 %575, %v514
      %v577 = vpop.permute.xlu0 %576
      %v579 = vsub.f32 %v444, %v542
      %v580 = vsub.f32 %v447, %v547
      %v581 = vsub.f32 %v452, %v552
      %v582 = vsub.f32 %v455, %v557
      %v583 = vsub.f32 %v460, %v562
      %v584 = vsub.f32 %v463, %v567
      %v585 = vsub.f32 %v468, %v572
      %v586 = vsub.f32 %v471, %v577
      %v587 = vmul.f32 %v579, 1.442695
      %v588 = vpow.pop %v587
      %v589 = vmul.f32 %v580, 1.442695
      %v590 = vpow.pop %v589
      %v591 = vmul.f32 %v581, 1.442695
      %v592 = vpow.pop %v591
      %v593 = vmul.f32 %v582, 1.442695
      %v594 = vpow.pop %v593
      %v595 = vmul.f32 %v583, 1.442695
      %v596 = vpow.pop %v595
      %v597 = vmul.f32 %v584, 1.442695
      %v598 = vpow.pop %v597
      %v599 = vmul.f32 %v585, 1.442695
      %v600 = vpow.pop %v599
      %v601 = vmul.f32 %v586, 1.442695
      %v602 = vpow.pop %v601
      %v603 = vld [vmem:[#allocation3] sm:$0xff]
      %v604 = vld [vmem:[#allocation3 + $0x8] sm:$0xff]
      %v605 = vld [vmem:[#allocation3 + $0x10] sm:$0xff]
      %v606 = vld [vmem:[#allocation3 + $0x18] sm:$0xff]
      %v607 = vld [vmem:[#allocation3 + $0x20] sm:$0xff]
      %v608 = vld [vmem:[#allocation3 + $0x28] sm:$0xff]
      %v609 = vld [vmem:[#allocation3 + $0x30] sm:$0xff]
      %v610 = vld [vmem:[#allocation3 + $0x38] sm:$0xff]
      %v611 = vmul.f32 %v524, %v603
      %v612 = vmul.f32 %v526, %v604
      %v613 = vmul.f32 %v528, %v605
      %v614 = vmul.f32 %v530, %v606
      %v615 = vmul.f32 %v532, %v607
      %v616 = vmul.f32 %v534, %v608
      %v617 = vmul.f32 %v536, %v609
      %v618 = vmul.f32 %v538, %v610
      %v619 = vsel %vm482, %v588, 0.0
      %620 = vadd.xlane.f32.xlu0 %v619
      %v621 = vpop.xlane.xlu0 %620
      %v622 = vsel %vm482, %v590, 0.0
      %623 = vadd.xlane.f32.xlu0 %v622
      %v624 = vpop.xlane.xlu0 %623
      %v625 = vsel %vm482, %v592, 0.0
      %626 = vadd.xlane.f32.xlu0 %v625
      %v627 = vpop.xlane.xlu0 %626
      %v628 = vsel %vm482, %v594, 0.0
      %629 = vadd.xlane.f32.xlu0 %v628
      %v630 = vpop.xlane.xlu0 %629
      %v631 = vsel %vm482, %v596, 0.0
      %632 = vadd.xlane.f32.xlu0 %v631
      %v633 = vpop.xlane.xlu0 %632
      %v634 = vsel %vm482, %v598, 0.0
      %635 = vadd.xlane.f32.xlu0 %v634
      %v636 = vpop.xlane.xlu0 %635
      %v637 = vsel %vm482, %v600, 0.0
      %638 = vadd.xlane.f32.xlu0 %v637
      %v639 = vpop.xlane.xlu0 %638
      %v640 = vsel %vm482, %v602, 0.0
      %641 = vadd.xlane.f32.xlu0 %v640
      %v642 = vpop.xlane.xlu0 %641
      %v643 = vadd.f32 %v611, %v621
      %v644 = vadd.f32 %v612, %v624
      %v645 = vadd.f32 %v613, %v627
      %v646 = vadd.f32 %v614, %v630
      %v647 = vadd.f32 %v615, %v633
      %v648 = vadd.f32 %v616, %v636
      %v649 = vadd.f32 %v617, %v639
      %v650 = vadd.f32 %v618, %v642
      %vm651 = vcmask 7168
      %652 = vst.msk [vmem:[#allocation3] sm:$0xff] %vm651, %v643
      %653 = vst.msk [vmem:[#allocation3 + $0x8] sm:$0xff] %vm651, %v644
      %654 = vst.msk [vmem:[#allocation3 + $0x10] sm:$0xff] %vm651, %v645
      %655 = vst.msk [vmem:[#allocation3 + $0x18] sm:$0xff] %vm651, %v646
      %656 = vst.msk [vmem:[#allocation3 + $0x20] sm:$0xff] %vm651, %v647
      %657 = vst.msk [vmem:[#allocation3 + $0x28] sm:$0xff] %vm651, %v648
      %658 = vst.msk [vmem:[#allocation3 + $0x30] sm:$0xff] %vm651, %v649
      %659 = vst.msk [vmem:[#allocation3 + $0x38] sm:$0xff] %vm651, %v650
      %v660 = vld [vmem:[#allocation4] sm:$0xff]
      %v661 = vld [vmem:[#allocation4 + $0x8] sm:$0xff]
      %v662 = vld [vmem:[#allocation4 + $0x10] sm:$0xff]
      %v663 = vld [vmem:[#allocation4 + $0x18] sm:$0xff]
      %v664 = vld [vmem:[#allocation4 + $0x20] sm:$0xff]
      %v665 = vld [vmem:[#allocation4 + $0x28] sm:$0xff]
      %v666 = vld [vmem:[#allocation4 + $0x30] sm:$0xff]
      %v667 = vld [vmem:[#allocation4 + $0x38] sm:$0xff]
      %669 = vset.pattern.permute.xlu0 0
      %670 = vperm.xlu0 %669, %v524
      %v671 = vpop.permute.xlu0 %670
      %674 = vset.pattern.permute.xlu0 0
      %675 = vperm.xlu0 %674, %v526
      %v676 = vpop.permute.xlu0 %675
      %679 = vset.pattern.permute.xlu0 0
      %680 = vperm.xlu0 %679, %v528
      %v681 = vpop.permute.xlu0 %680
      %684 = vset.pattern.permute.xlu0 0
      %685 = vperm.xlu0 %684, %v530
      %v686 = vpop.permute.xlu0 %685
      %689 = vset.pattern.permute.xlu0 0
      %690 = vperm.xlu0 %689, %v532
      %v691 = vpop.permute.xlu0 %690
      %694 = vset.pattern.permute.xlu0 0
      %695 = vperm.xlu0 %694, %v534
      %v696 = vpop.permute.xlu0 %695
      %699 = vset.pattern.permute.xlu0 0
      %700 = vperm.xlu0 %699, %v536
      %v701 = vpop.permute.xlu0 %700
      %704 = vset.pattern.permute.xlu0 0
      %705 = vperm.xlu0 %704, %v538
      %v706 = vpop.permute.xlu0 %705
      %v708 = vmul.f32 %v671, %v660
      %v709 = vmul.f32 %v676, %v661
      %v710 = vmul.f32 %v681, %v662
      %v711 = vmul.f32 %v686, %v663
      %v712 = vmul.f32 %v691, %v664
      %v713 = vmul.f32 %v696, %v665
      %v714 = vmul.f32 %v701, %v666
      %v715 = vmul.f32 %v706, %v667
      %v716 = vpack.c.bf16 %v590, %v588
      %v717 = vpack.c.bf16 %v594, %v592
      %v718 = vpack.c.bf16 %v598, %v596
      %v719 = vpack.c.bf16 %v602, %v600
      %v728 = vunpack.c.l.b16 %v336
      %v729 = vunpack.c.l.b16 %v337
      %v730 = vunpack.c.l.b16 %v338
      %v731 = vunpack.c.l.b16 %v339
      %v732 = vunpack.c.l.b16 %v340
      %v733 = vunpack.c.l.b16 %v341
      %v734 = vunpack.c.l.b16 %v342
      %v735 = vunpack.c.l.b16 %v343
      %v736 = vpack.c.b16 %v729, %v728
      %v737 = vpack.c.b16 %v731, %v730
      %v738 = vpack.c.b16 %v733, %v732
      %v739 = vpack.c.b16 %v735, %v734
      %v745 = vsel %vm482, %v716, 0
      %v748 = vsel %vm482, %v717, 0
      %v751 = vsel %vm482, %v718, 0
      %v754 = vsel %vm482, %v719, 0
      %756 = vmatprep.subr.bf16.mxu0 0
      %757 = vmatpush1.bf16.msra.mxu0 0
      %758 = vmatprep.subr.bf16.mxu0 0
      %759 = vmatpush1.bf16.msra.mxu0 0
      %760 = vmatprep.subr.bf16.mxu0 0
      %761 = vmatpush1.bf16.msra.mxu0 0
      %762 = vmatprep.subr.bf16.mxu0 0
      %763 = vmatpush1.bf16.msra.mxu0 0
      %764 = vmatprep.subr.bf16.mxu0 0
      %765 = vmatpush1.bf16.msra.mxu0 %v739
      %766 = vmatprep.subr.bf16.mxu0 0
      %767 = vmatpush1.bf16.msra.mxu0 %v738
      %768 = vmatprep.subr.bf16.mxu0 0
      %769 = vmatpush1.bf16.msra.mxu0 %v737
      %770 = vmatprep.subr.bf16.mxu0 0
      %771 = vmatpush1.bf16.msra.mxu0 %v736
      %772 = vmatprep.subr.bf16.mxu0 0
      %773 = vmatpush2.bf16.msra.mxu0 0
      %774 = vmatprep.subr.bf16.mxu0 0
      %775 = vmatpush2.bf16.msra.mxu0 0
      %776 = vmatprep.subr.bf16.mxu0 0
      %777 = vmatpush2.bf16.msra.mxu0 0
      %778 = vmatprep.subr.bf16.mxu0 0
      %779 = vmatpush2.bf16.msra.mxu0 0
      %780 = vmatprep.subr.bf16.mxu0 0
      %781 = vmatpush2.bf16.msra.mxu0 0
      %782 = vmatprep.subr.bf16.mxu0 0
      %783 = vmatpush2.bf16.msra.mxu0 0
      %784 = vmatprep.subr.bf16.mxu0 0
      %785 = vmatpush2.bf16.msra.mxu0 0
      %786 = vmatprep.subr.bf16.mxu0 0
      %787 = vmatpush2.bf16.msra.mxu0 0
      %788 = vmatprep.mubr.bf16.mxu0 0
      %789 = vmatmul.mubr.bf16.gmra.mxu0 %v745
      %v790 = vpop.f32.mrf.mxu0
      %v791 = vadd.f32 0.0, %v790
      %v792 = vpop.f32.mrf.mxu0
      %v793 = vpop.f32.mrf.mxu0
      %v794 = vadd.f32 0.0, %v793
      %v795 = vpop.f32.mrf.mxu0
      %796 = vmatprep.mubr.bf16.mxu0 0
      %797 = vmatmul.mubr.bf16.gmra.mxu0 %v748
      %v798 = vpop.f32.mrf.mxu0
      %v799 = vadd.f32 0.0, %v798
      %v800 = vpop.f32.mrf.mxu0
      %v801 = vpop.f32.mrf.mxu0
      %v802 = vadd.f32 0.0, %v801
      %v803 = vpop.f32.mrf.mxu0
      %804 = vmatprep.mubr.bf16.mxu0 0
      %805 = vmatmul.mubr.bf16.gmra.mxu0 %v751
      %v806 = vpop.f32.mrf.mxu0
      %v807 = vadd.f32 0.0, %v806
      %v808 = vpop.f32.mrf.mxu0
      %v809 = vpop.f32.mrf.mxu0
      %v810 = vadd.f32 0.0, %v809
      %v811 = vpop.f32.mrf.mxu0
      %812 = vmatprep.mubr.bf16.mxu0 0
      %813 = vmatmul.mubr.bf16.gmra.mxu0 %v754
      %v814 = vpop.f32.mrf.mxu0
      %v815 = vadd.f32 0.0, %v814
      %v816 = vpop.f32.mrf.mxu0
      %v817 = vpop.f32.mrf.mxu0
      %v818 = vadd.f32 0.0, %v817
      %v819 = vpop.f32.mrf.mxu0
      %820 = vdwg.mxu0
      %v821 = vadd.f32 %v708, %v791
      %v822 = vadd.f32 %v709, %v794
      %v823 = vadd.f32 %v710, %v799
      %v824 = vadd.f32 %v711, %v802
      %v825 = vadd.f32 %v712, %v807
      %v826 = vadd.f32 %v713, %v810
      %v827 = vadd.f32 %v714, %v815
      %v828 = vadd.f32 %v715, %v818
      %829 = vst.msk [vmem:[#allocation4] sm:$0xff] %vm384, %v821
      %830 = vst.msk [vmem:[#allocation4 + $0x8] sm:$0xff] %vm384, %v822
      %831 = vst.msk [vmem:[#allocation4 + $0x10] sm:$0xff] %vm384, %v823
      %832 = vst.msk [vmem:[#allocation4 + $0x18] sm:$0xff] %vm384, %v824
      %833 = vst.msk [vmem:[#allocation4 + $0x20] sm:$0xff] %vm384, %v825
      %834 = vst.msk [vmem:[#allocation4 + $0x28] sm:$0xff] %vm384, %v826
      %835 = vst.msk [vmem:[#allocation4 + $0x30] sm:$0xff] %vm384, %v827
      %836 = vst.msk [vmem:[#allocation4 + $0x38] sm:$0xff] %vm384, %v828
      %837 = vst.msk [vmem:[#allocation2] sm:$0xff] %vm651, %v507
      %838 = vst.msk [vmem:[#allocation2 + $0x8] sm:$0xff] %vm651, %v508
      %839 = vst.msk [vmem:[#allocation2 + $0x10] sm:$0xff] %vm651, %v509
      %840 = vst.msk [vmem:[#allocation2 + $0x18] sm:$0xff] %vm651, %v510
      %841 = vst.msk [vmem:[#allocation2 + $0x20] sm:$0xff] %vm651, %v511
      %842 = vst.msk [vmem:[#allocation2 + $0x28] sm:$0xff] %vm651, %v512
      %843 = vst.msk [vmem:[#allocation2 + $0x30] sm:$0xff] %vm651, %v513
      %844 = vst.msk [vmem:[#allocation2 + $0x38] sm:$0xff] %vm651, %v514
      // Predicated region
      $region37: #{sam_v1_image_encoder.30} parent=31 // pred_check
        %p845 = pneg %p290
      $region38: #{sam_v1_image_encoder.30} parent=31 // pred_check_branch
        %847 = sbr.rel (%p845) target = $region40
      $region39: #{sam_v1_image_encoder.30} parent=31 // pred_region
        %v848 = vld [vmem:[#allocation4] sm:$0xff]
        %v849 = vld [vmem:[#allocation4 + $0x8] sm:$0xff]
        %v850 = vld [vmem:[#allocation4 + $0x10] sm:$0xff]
        %v851 = vld [vmem:[#allocation4 + $0x18] sm:$0xff]
        %v852 = vld [vmem:[#allocation4 + $0x20] sm:$0xff]
        %v853 = vld [vmem:[#allocation4 + $0x28] sm:$0xff]
        %v854 = vld [vmem:[#allocation4 + $0x30] sm:$0xff]
        %v855 = vld [vmem:[#allocation4 + $0x38] sm:$0xff]
        %v856 = vld [vmem:[#allocation3] sm:$0xff]
        %v857 = vld [vmem:[#allocation3 + $0x8] sm:$0xff]
        %v858 = vld [vmem:[#allocation3 + $0x10] sm:$0xff]
        %v859 = vld [vmem:[#allocation3 + $0x18] sm:$0xff]
        %v860 = vld [vmem:[#allocation3 + $0x20] sm:$0xff]
        %v861 = vld [vmem:[#allocation3 + $0x28] sm:$0xff]
        %v862 = vld [vmem:[#allocation3 + $0x30] sm:$0xff]
        %v863 = vld [vmem:[#allocation3 + $0x38] sm:$0xff]
        %v864 = vrcp.pop %v856
        %v865 = vrcp.pop %v857
        %v866 = vrcp.pop %v858
        %v867 = vrcp.pop %v859
        %v868 = vrcp.pop %v860
        %v869 = vrcp.pop %v861
        %v870 = vrcp.pop %v862
        %v871 = vrcp.pop %v863
        %873 = vset.pattern.permute.xlu0 0
        %874 = vperm.xlu0 %873, %v864
        %v875 = vpop.permute.xlu0 %874
        %878 = vset.pattern.permute.xlu0 0
        %879 = vperm.xlu0 %878, %v865
        %v880 = vpop.permute.xlu0 %879
        %883 = vset.pattern.permute.xlu0 0
        %884 = vperm.xlu0 %883, %v866
        %v885 = vpop.permute.xlu0 %884
        %888 = vset.pattern.permute.xlu0 0
        %889 = vperm.xlu0 %888, %v867
        %v890 = vpop.permute.xlu0 %889
        %893 = vset.pattern.permute.xlu0 0
        %894 = vperm.xlu0 %893, %v868
        %v895 = vpop.permute.xlu0 %894
        %898 = vset.pattern.permute.xlu0 0
        %899 = vperm.xlu0 %898, %v869
        %v900 = vpop.permute.xlu0 %899
        %903 = vset.pattern.permute.xlu0 0
        %904 = vperm.xlu0 %903, %v870
        %v905 = vpop.permute.xlu0 %904
        %908 = vset.pattern.permute.xlu0 0
        %909 = vperm.xlu0 %908, %v871
        %v910 = vpop.permute.xlu0 %909
        %v912 = vmul.f32 %v848, %v875
        %v913 = vmul.f32 %v849, %v880
        %v914 = vmul.f32 %v850, %v885
        %v915 = vmul.f32 %v851, %v890
        %v916 = vmul.f32 %v852, %v895
        %v917 = vmul.f32 %v853, %v900
        %v918 = vmul.f32 %v854, %v905
        %v919 = vmul.f32 %v855, %v910
        %v920 = vpack.c.bf16 %v913, %v912
        %v921 = vpack.c.bf16 %v915, %v914
        %v922 = vpack.c.bf16 %v917, %v916
        %v923 = vpack.c.bf16 %v919, %v918
        %v928 = vunpack.c.l.b16 %v920
        %v929 = vunpack.c.h.b16 %v920
        %v930 = vunpack.c.l.b16 %v921
        %v931 = vunpack.c.h.b16 %v921
        %v932 = vunpack.c.l.b16 %v922
        %v933 = vunpack.c.h.b16 %v922
        %v934 = vunpack.c.l.b16 %v923
        %v935 = vunpack.c.h.b16 %v923
        %v936 = vpack.c.b16 %v928, %v928
        %v937 = vpack.c.b16 %v929, %v929
        %v938 = vpack.c.b16 %v930, %v930
        %v939 = vpack.c.b16 %v931, %v931
        %v940 = vpack.c.b16 %v932, %v932
        %v941 = vpack.c.b16 %v933, %v933
        %v942 = vpack.c.b16 %v934, %v934
        %v943 = vpack.c.b16 %v935, %v935
        %vm952 = vcmask 60416
        %953 = vst.msk [vmem:[%s287] sm:$0xf] %vm952, %v936
        %954 = vst.msk [vmem:[%s287 + $0x4] sm:$0xf] %vm952, %v937
        %955 = vst.msk [vmem:[%s287 + $0x8] sm:$0xf] %vm952, %v938
        %956 = vst.msk [vmem:[%s287 + $0xc] sm:$0xf] %vm952, %v939
        %957 = vst.msk [vmem:[%s287 + $0x10] sm:$0xf] %vm952, %v940
        %958 = vst.msk [vmem:[%s287 + $0x14] sm:$0xf] %vm952, %v941
        %959 = vst.msk [vmem:[%s287 + $0x18] sm:$0xf] %vm952, %v942
        %960 = vst.msk [vmem:[%s287 + $0x1c] sm:$0xf] %vm952, %v943
      $region40: #{sam_v1_image_encoder.30} parent=31 // pred_fallthru
        _
      %s961 = smul.u32 8, %s20
      %p962 = scmp.lt.s32.totalorder %s19, 7
      %s963 = scalar_select %p962, %s19, 7
      %p964 = scmp.lt.s32.totalorder %s961, 7
      %s965 = scalar_select %p964, %s961, 7
      %s966 = smul.addr %s963, 8
      %s967 = sadd.s32 %s965, %s966
      %s968 = smul.addr %s967, 4
      %s969 = scalar_lea.vmem %s3, %s968
      // Predicated region
      $region41: #{sam_v1_image_encoder.30} parent=31 // pred_check
        %p970 = pneg %p137
      $region42: #{sam_v1_image_encoder.30} parent=31 // pred_check_branch
        %972 = sbr.rel (%p970) target = $region44
      $region43: #{sam_v1_image_encoder.30} parent=31 // pred_region
        %s973 = smul.u32 8, %s20
      $region44: #{sam_v1_image_encoder.30} parent=31 // pred_fallthru
        _
    $region32: #{sam_v1_image_encoder.30} parent=5 // pred_fallthru
      _
    %p974 = scmp.le.s32.totalorder 2, %s9
    // Predicated region
    $region45: #{sam_v1_image_encoder.30} parent=5 // pred_check
      %p975 = pneg %p974
    $region46: #{sam_v1_image_encoder.30} parent=5 // pred_check_branch
      %977 = sbr.rel (%p975) target = $region48
    $region47: #{sam_v1_image_encoder.30} parent=5 // pred_region
      %s978 = ssub.s32 %s9, 2
      // Predicated region
      $region49: #{sam_v1_image_encoder.30} parent=47 // pred_check
        %p979 = pneg %p143
      $region50: #{sam_v1_image_encoder.30} parent=47 // pred_check_branch
        %981 = sbr.rel (%p979) target = $region52
      $region51: #{sam_v1_image_encoder.30} parent=47 // pred_region
        %s982 = smul.u32 8, %s23
        %p983 = scmp.lt.s32.totalorder %s22, 7
        %s984 = scalar_select %p983, %s22, 7
        %p985 = scmp.lt.s32.totalorder %s982, 7
        %s986 = scalar_select %p985, %s982, 7
        %s987 = smul.addr %s984, 8
        %s988 = sadd.s32 %s986, %s987
        %s989 = smul.addr %s988, 4
        %s990 = scalar_lea.vmem %s3, %s989
      $region52: #{sam_v1_image_encoder.30} parent=47 // pred_fallthru
        _
    $region48: #{sam_v1_image_encoder.30} parent=5 // pred_fallthru
      _
  $region6: #{sam_v1_image_encoder.30} parent=0 // loop_footer
    %s13 = sadd.s32 1, %s9
  $region7: #{sam_v1_image_encoder.30} parent=0 // loop_footer_branch
    %8 = sbr.rel target = $region3
  $region8: #{sam_v1_image_encoder.30} parent=0 // loop_exit
    _

// kernel: sam_v1_image_encoder.44
$region0: #{sam_v1_image_encoder.44}
  #allocation0 [shape = 'u32[]', space=smem, size = 0x4, offset = 0x4, fixed_abs, tag = 'smem constant byte address 0x4 - core index']
  #allocation1 [shape = 'u32[144,128]{1,0:T(1,128)}', space=vmem, size = 0x12000, scoped, tag = 'internal scratch']
  %s0 = inlined_call_operand.vmem [shape: f32[128,32], index: 0, kind: input, shape index: {}]
  %s1 = inlined_call_operand.vmem [shape: bf16[32,16], index: 1, kind: input, shape index: {}]
  %s2 = inlined_call_operand.vmem [shape: f32[1,16], index: 2, kind: input, shape index: {}]
  %s3 = inlined_call_operand.vmem [shape: f32[1,16], index: 3, kind: input, shape index: {}]
  %s4 = inlined_call_operand.vmem [shape: bf16[128,16], index: 4, kind: output, shape index: {}]
  %s5 = sld [smem:[#allocation0]]
  $region26: #{sam_v1_image_encoder.44} parent=0
    _
  %s7 = ssub.s32 1, %s5
  %s8 = scalar_select 0, %s7, %s5
  // Predicated region
  $region2: #{sam_v1_image_encoder.44} parent=0 // pred_check
    _
  $region3: #{sam_v1_image_encoder.44} parent=0 // pred_check_branch
    %10 = sbr.rel (0) target = $region5
  $region4: #{sam_v1_image_encoder.44} parent=0 // pred_region
    _
  $region5: #{sam_v1_image_encoder.44} parent=0 // pred_fallthru
    _
  // Predicated region
  $region6: #{sam_v1_image_encoder.44} parent=0 // pred_check
    _
  $region7: #{sam_v1_image_encoder.44} parent=0 // pred_check_branch
    %12 = sbr.rel (0) target = $region9
  $region8: #{sam_v1_image_encoder.44} parent=0 // pred_region
    _
  $region9: #{sam_v1_image_encoder.44} parent=0 // pred_fallthru
    _
  // Predicated region
  $region10: #{sam_v1_image_encoder.44} parent=0 // pred_check
    _
  $region11: #{sam_v1_image_encoder.44} parent=0 // pred_check_branch
    %14 = sbr.rel (0) target = $region13
  $region12: #{sam_v1_image_encoder.44} parent=0 // pred_region
    _
  $region13: #{sam_v1_image_encoder.44} parent=0 // pred_fallthru
    _
  // Predicated region
  $region14: #{sam_v1_image_encoder.44} parent=0 // pred_check
    _
  $region15: #{sam_v1_image_encoder.44} parent=0 // pred_check_branch
    %16 = sbr.rel (0) target = $region17
  $region16: #{sam_v1_image_encoder.44} parent=0 // pred_region
    _
  $region17: #{sam_v1_image_encoder.44} parent=0 // pred_fallthru
    _
  %v18 = vld [vmem:[%s0] sm:$0xff]
  %v19 = vld [vmem:[%s0 + $0x8] sm:$0xff]
  %v20 = vld [vmem:[%s0 + $0x10] sm:$0xff]
  %v21 = vld [vmem:[%s0 + $0x18] sm:$0xff]
  %v22 = vld [vmem:[%s0 + $0x20] sm:$0xff]
  %v23 = vld [vmem:[%s0 + $0x28] sm:$0xff]
  %v24 = vld [vmem:[%s0 + $0x30] sm:$0xff]
  %v25 = vld [vmem:[%s0 + $0x38] sm:$0xff]
  %v26 = vld [vmem:[%s0 + $0x40] sm:$0xff]
  %v27 = vld [vmem:[%s0 + $0x48] sm:$0xff]
  %v28 = vld [vmem:[%s0 + $0x50] sm:$0xff]
  %v29 = vld [vmem:[%s0 + $0x58] sm:$0xff]
  %v30 = vld [vmem:[%s0 + $0x60] sm:$0xff]
  %v31 = vld [vmem:[%s0 + $0x68] sm:$0xff]
  %v32 = vld [vmem:[%s0 + $0x70] sm:$0xff]
  %v33 = vld [vmem:[%s0 + $0x78] sm:$0xff]
  %v34 = vpack.c.bf16 %v19, %v18
  %v35 = vpack.c.bf16 %v21, %v20
  %v36 = vpack.c.bf16 %v23, %v22
  %v37 = vpack.c.bf16 %v25, %v24
  %v38 = vpack.c.bf16 %v27, %v26
  %v39 = vpack.c.bf16 %v29, %v28
  %v40 = vpack.c.bf16 %v31, %v30
  %v41 = vpack.c.bf16 %v33, %v32
  %v42 = vld [vmem:[%s1] sm:$0xf]
  %v43 = vld [vmem:[%s1 + $0x4] sm:$0xf]
  %v44 = vld [vmem:[%s1 + $0x8] sm:$0xf]
  %v45 = vld [vmem:[%s1 + $0xc] sm:$0xf]
  %v50 = vunpack.c.l.b16 %v42
  %v51 = vunpack.c.l.b16 %v43
  %v52 = vunpack.c.l.b16 %v44
  %v53 = vunpack.c.l.b16 %v45
  %v54 = vpack.c.b16 %v51, %v50
  %v55 = vpack.c.b16 %v53, %v52
  %vm58 = vcmask 261120
  %v60 = vsel %vm58, %v34, 0
  %v63 = vsel %vm58, %v35, 0
  %v66 = vsel %vm58, %v36, 0
  %v69 = vsel %vm58, %v37, 0
  %v72 = vsel %vm58, %v38, 0
  %v75 = vsel %vm58, %v39, 0
  %v78 = vsel %vm58, %v40, 0
  %v81 = vsel %vm58, %v41, 0
  %83 = vmatprep.subr.bf16.mxu0 0
  %84 = vmatpush1.bf16.msra.mxu0 0
  %85 = vmatprep.subr.bf16.mxu0 0
  %86 = vmatpush1.bf16.msra.mxu0 0
  %87 = vmatprep.subr.bf16.mxu0 0
  %88 = vmatpush1.bf16.msra.mxu0 0
  %89 = vmatprep.subr.bf16.mxu0 0
  %90 = vmatpush1.bf16.msra.mxu0 0
  %91 = vmatprep.subr.bf16.mxu0 0
  %92 = vmatpush1.bf16.msra.mxu0 0
  %93 = vmatprep.subr.bf16.mxu0 0
  %94 = vmatpush1.bf16.msra.mxu0 0
  %95 = vmatprep.subr.bf16.mxu0 0
  %96 = vmatpush1.bf16.msra.mxu0 %v55
  %97 = vmatprep.subr.bf16.mxu0 0
  %98 = vmatpush1.bf16.msra.mxu0 %v54
  %99 = vmatprep.subr.bf16.mxu0 0
  %100 = vmatpush2.bf16.msra.mxu0 0
  %101 = vmatprep.subr.bf16.mxu0 0
  %102 = vmatpush2.bf16.msra.mxu0 0
  %103 = vmatprep.subr.bf16.mxu0 0
  %104 = vmatpush2.bf16.msra.mxu0 0
  %105 = vmatprep.subr.bf16.mxu0 0
  %106 = vmatpush2.bf16.msra.mxu0 0
  %107 = vmatprep.subr.bf16.mxu0 0
  %108 = vmatpush2.bf16.msra.mxu0 0
  %109 = vmatprep.subr.bf16.mxu0 0
  %110 = vmatpush2.bf16.msra.mxu0 0
  %111 = vmatprep.subr.bf16.mxu0 0
  %112 = vmatpush2.bf16.msra.mxu0 0
  %113 = vmatprep.subr.bf16.mxu0 0
  %114 = vmatpush2.bf16.msra.mxu0 0
  %115 = vmatprep.mubr.bf16.mxu0 0
  %116 = vmatmul.mubr.bf16.gmra.mxu0 %v60
  %v117 = vpop.f32.mrf.mxu0
  %v118 = vadd.f32 0.0, %v117
  %v119 = vpop.f32.mrf.mxu0
  %v120 = vpop.f32.mrf.mxu0
  %v121 = vadd.f32 0.0, %v120
  %v122 = vpop.f32.mrf.mxu0
  %123 = vmatprep.mubr.bf16.mxu0 0
  %124 = vmatmul.mubr.bf16.gmra.mxu0 %v63
  %v125 = vpop.f32.mrf.mxu0
  %v126 = vadd.f32 0.0, %v125
  %v127 = vpop.f32.mrf.mxu0
  %v128 = vpop.f32.mrf.mxu0
  %v129 = vadd.f32 0.0, %v128
  %v130 = vpop.f32.mrf.mxu0
  %131 = vmatprep.mubr.bf16.mxu0 0
  %132 = vmatmul.mubr.bf16.gmra.mxu0 %v66
  %v133 = vpop.f32.mrf.mxu0
  %v134 = vadd.f32 0.0, %v133
  %v135 = vpop.f32.mrf.mxu0
  %v136 = vpop.f32.mrf.mxu0
  %v137 = vadd.f32 0.0, %v136
  %v138 = vpop.f32.mrf.mxu0
  %139 = vmatprep.mubr.bf16.mxu0 0
  %140 = vmatmul.mubr.bf16.gmra.mxu0 %v69
  %v141 = vpop.f32.mrf.mxu0
  %v142 = vadd.f32 0.0, %v141
  %v143 = vpop.f32.mrf.mxu0
  %v144 = vpop.f32.mrf.mxu0
  %v145 = vadd.f32 0.0, %v144
  %v146 = vpop.f32.mrf.mxu0
  %147 = vmatprep.mubr.bf16.mxu0 0
  %148 = vmatmul.mubr.bf16.gmra.mxu0 %v72
  %v149 = vpop.f32.mrf.mxu0
  %v150 = vadd.f32 0.0, %v149
  %v151 = vpop.f32.mrf.mxu0
  %v152 = vpop.f32.mrf.mxu0
  %v153 = vadd.f32 0.0, %v152
  %v154 = vpop.f32.mrf.mxu0
  %155 = vmatprep.mubr.bf16.mxu0 0
  %156 = vmatmul.mubr.bf16.gmra.mxu0 %v75
  %v157 = vpop.f32.mrf.mxu0
  %v158 = vadd.f32 0.0, %v157
  %v159 = vpop.f32.mrf.mxu0
  %v160 = vpop.f32.mrf.mxu0
  %v161 = vadd.f32 0.0, %v160
  %v162 = vpop.f32.mrf.mxu0
  %163 = vmatprep.mubr.bf16.mxu0 0
  %164 = vmatmul.mubr.bf16.gmra.mxu0 %v78
  %v165 = vpop.f32.mrf.mxu0
  %v166 = vadd.f32 0.0, %v165
  %v167 = vpop.f32.mrf.mxu0
  %v168 = vpop.f32.mrf.mxu0
  %v169 = vadd.f32 0.0, %v168
  %v170 = vpop.f32.mrf.mxu0
  %171 = vmatprep.mubr.bf16.mxu0 0
  %172 = vmatmul.mubr.bf16.gmra.mxu0 %v81
  %v173 = vpop.f32.mrf.mxu0
  %v174 = vadd.f32 0.0, %v173
  %v175 = vpop.f32.mrf.mxu0
  %v176 = vpop.f32.mrf.mxu0
  %v177 = vadd.f32 0.0, %v176
  %v178 = vpop.f32.mrf.mxu0
  %179 = vdwg.mxu0
  %vm180 = vcmask 130048
  %v181 = vsel %vm180, %v118, 0.0
  %182 = vadd.xlane.f32.xlu0 %v181
  %v183 = vpop.xlane.xlu0 %182
  %v184 = vsel %vm180, %v121, 0.0
  %185 = vadd.xlane.f32.xlu0 %v184
  %v186 = vpop.xlane.xlu0 %185
  %v187 = vsel %vm180, %v126, 0.0
  %188 = vadd.xlane.f32.xlu0 %v187
  %v189 = vpop.xlane.xlu0 %188
  %v190 = vsel %vm180, %v129, 0.0
  %191 = vadd.xlane.f32.xlu0 %v190
  %v192 = vpop.xlane.xlu0 %191
  %v193 = vsel %vm180, %v134, 0.0
  %194 = vadd.xlane.f32.xlu0 %v193
  %v195 = vpop.xlane.xlu0 %194
  %v196 = vsel %vm180, %v137, 0.0
  %197 = vadd.xlane.f32.xlu0 %v196
  %v198 = vpop.xlane.xlu0 %197
  %v199 = vsel %vm180, %v142, 0.0
  %200 = vadd.xlane.f32.xlu0 %v199
  %v201 = vpop.xlane.xlu0 %200
  %v202 = vsel %vm180, %v145, 0.0
  %203 = vadd.xlane.f32.xlu0 %v202
  %v204 = vpop.xlane.xlu0 %203
  %v205 = vsel %vm180, %v150, 0.0
  %206 = vadd.xlane.f32.xlu0 %v205
  %v207 = vpop.xlane.xlu0 %206
  %v208 = vsel %vm180, %v153, 0.0
  %209 = vadd.xlane.f32.xlu0 %v208
  %v210 = vpop.xlane.xlu0 %209
  %v211 = vsel %vm180, %v158, 0.0
  %212 = vadd.xlane.f32.xlu0 %v211
  %v213 = vpop.xlane.xlu0 %212
  %v214 = vsel %vm180, %v161, 0.0
  %215 = vadd.xlane.f32.xlu0 %v214
  %v216 = vpop.xlane.xlu0 %215
  %v217 = vsel %vm180, %v166, 0.0
  %218 = vadd.xlane.f32.xlu0 %v217
  %v219 = vpop.xlane.xlu0 %218
  %v220 = vsel %vm180, %v169, 0.0
  %221 = vadd.xlane.f32.xlu0 %v220
  %v222 = vpop.xlane.xlu0 %221
  %v223 = vsel %vm180, %v174, 0.0
  %224 = vadd.xlane.f32.xlu0 %v223
  %v225 = vpop.xlane.xlu0 %224
  %v226 = vsel %vm180, %v177, 0.0
  %227 = vadd.xlane.f32.xlu0 %v226
  %v228 = vpop.xlane.xlu0 %227
  %v229 = vrcp.pop 16.0
  %v230 = vmul.f32 %v183, %v229
  %v231 = vmul.f32 %v186, %v229
  %v232 = vmul.f32 %v189, %v229
  %v233 = vmul.f32 %v192, %v229
  %v234 = vmul.f32 %v195, %v229
  %v235 = vmul.f32 %v198, %v229
  %v236 = vmul.f32 %v201, %v229
  %v237 = vmul.f32 %v204, %v229
  %v238 = vmul.f32 %v207, %v229
  %v239 = vmul.f32 %v210, %v229
  %v240 = vmul.f32 %v213, %v229
  %v241 = vmul.f32 %v216, %v229
  %v242 = vmul.f32 %v219, %v229
  %v243 = vmul.f32 %v222, %v229
  %v244 = vmul.f32 %v225, %v229
  %v245 = vmul.f32 %v228, %v229
  %v246 = vsub.f32 %v118, %v230
  %v247 = vsub.f32 %v121, %v231
  %v248 = vsub.f32 %v126, %v232
  %v249 = vsub.f32 %v129, %v233
  %v250 = vsub.f32 %v134, %v234
  %v251 = vsub.f32 %v137, %v235
  %v252 = vsub.f32 %v142, %v236
  %v253 = vsub.f32 %v145, %v237
  %v254 = vsub.f32 %v150, %v238
  %v255 = vsub.f32 %v153, %v239
  %v256 = vsub.f32 %v158, %v240
  %v257 = vsub.f32 %v161, %v241
  %v258 = vsub.f32 %v166, %v242
  %v259 = vsub.f32 %v169, %v243
  %v260 = vsub.f32 %v174, %v244
  %v261 = vsub.f32 %v177, %v245
  %v262 = vmul.f32 %v246, %v246
  %v263 = vmul.f32 %v247, %v247
  %v264 = vmul.f32 %v248, %v248
  %v265 = vmul.f32 %v249, %v249
  %v266 = vmul.f32 %v250, %v250
  %v267 = vmul.f32 %v251, %v251
  %v268 = vmul.f32 %v252, %v252
  %v269 = vmul.f32 %v253, %v253
  %v270 = vmul.f32 %v254, %v254
  %v271 = vmul.f32 %v255, %v255
  %v272 = vmul.f32 %v256, %v256
  %v273 = vmul.f32 %v257, %v257
  %v274 = vmul.f32 %v258, %v258
  %v275 = vmul.f32 %v259, %v259
  %v276 = vmul.f32 %v260, %v260
  %v277 = vmul.f32 %v261, %v261
  %v278 = vsel %vm180, %v262, 0.0
  %279 = vadd.xlane.f32.xlu0 %v278
  %v280 = vpop.xlane.xlu0 %279
  %v281 = vsel %vm180, %v263, 0.0
  %282 = vadd.xlane.f32.xlu0 %v281
  %v283 = vpop.xlane.xlu0 %282
  %v284 = vsel %vm180, %v264, 0.0
  %285 = vadd.xlane.f32.xlu0 %v284
  %v286 = vpop.xlane.xlu0 %285
  %v287 = vsel %vm180, %v265, 0.0
  %288 = vadd.xlane.f32.xlu0 %v287
  %v289 = vpop.xlane.xlu0 %288
  %v290 = vsel %vm180, %v266, 0.0
  %291 = vadd.xlane.f32.xlu0 %v290
  %v292 = vpop.xlane.xlu0 %291
  %v293 = vsel %vm180, %v267, 0.0
  %294 = vadd.xlane.f32.xlu0 %v293
  %v295 = vpop.xlane.xlu0 %294
  %v296 = vsel %vm180, %v268, 0.0
  %297 = vadd.xlane.f32.xlu0 %v296
  %v298 = vpop.xlane.xlu0 %297
  %v299 = vsel %vm180, %v269, 0.0
  %300 = vadd.xlane.f32.xlu0 %v299
  %v301 = vpop.xlane.xlu0 %300
  %v302 = vsel %vm180, %v270, 0.0
  %303 = vadd.xlane.f32.xlu0 %v302
  %v304 = vpop.xlane.xlu0 %303
  %v305 = vsel %vm180, %v271, 0.0
  %306 = vadd.xlane.f32.xlu0 %v305
  %v307 = vpop.xlane.xlu0 %306
  %v308 = vsel %vm180, %v272, 0.0
  %309 = vadd.xlane.f32.xlu0 %v308
  %v310 = vpop.xlane.xlu0 %309
  %v311 = vsel %vm180, %v273, 0.0
  %312 = vadd.xlane.f32.xlu0 %v311
  %v313 = vpop.xlane.xlu0 %312
  %v314 = vsel %vm180, %v274, 0.0
  %315 = vadd.xlane.f32.xlu0 %v314
  %v316 = vpop.xlane.xlu0 %315
  %v317 = vsel %vm180, %v275, 0.0
  %318 = vadd.xlane.f32.xlu0 %v317
  %v319 = vpop.xlane.xlu0 %318
  %v320 = vsel %vm180, %v276, 0.0
  %321 = vadd.xlane.f32.xlu0 %v320
  %v322 = vpop.xlane.xlu0 %321
  %v323 = vsel %vm180, %v277, 0.0
  %324 = vadd.xlane.f32.xlu0 %v323
  %v325 = vpop.xlane.xlu0 %324
  %v326 = vmul.f32 %v280, %v229
  %v327 = vmul.f32 %v283, %v229
  %v328 = vmul.f32 %v286, %v229
  %v329 = vmul.f32 %v289, %v229
  %v330 = vmul.f32 %v292, %v229
  %v331 = vmul.f32 %v295, %v229
  %v332 = vmul.f32 %v298, %v229
  %v333 = vmul.f32 %v301, %v229
  %v334 = vmul.f32 %v304, %v229
  %v335 = vmul.f32 %v307, %v229
  %v336 = vmul.f32 %v310, %v229
  %v337 = vmul.f32 %v313, %v229
  %v338 = vmul.f32 %v316, %v229
  %v339 = vmul.f32 %v319, %v229
  %v340 = vmul.f32 %v322, %v229
  %v341 = vmul.f32 %v325, %v229
  %v342 = vadd.f32 %v326, 1e-06
  %v343 = vadd.f32 %v327, 1e-06
  %v344 = vadd.f32 %v328, 1e-06
  %v345 = vadd.f32 %v329, 1e-06
  %v346 = vadd.f32 %v330, 1e-06
  %v347 = vadd.f32 %v331, 1e-06
  %v348 = vadd.f32 %v332, 1e-06
  %v349 = vadd.f32 %v333, 1e-06
  %v350 = vadd.f32 %v334, 1e-06
  %v351 = vadd.f32 %v335, 1e-06
  %v352 = vadd.f32 %v336, 1e-06
  %v353 = vadd.f32 %v337, 1e-06
  %v354 = vadd.f32 %v338, 1e-06
  %v355 = vadd.f32 %v339, 1e-06
  %v356 = vadd.f32 %v340, 1e-06
  %v357 = vadd.f32 %v341, 1e-06
  %v358 = vrsqrt.pop %v342
  %v359 = vrsqrt.pop %v343
  %v360 = vrsqrt.pop %v344
  %v361 = vrsqrt.pop %v345
  %v362 = vrsqrt.pop %v346
  %v363 = vrsqrt.pop %v347
  %v364 = vrsqrt.pop %v348
  %v365 = vrsqrt.pop %v349
  %v366 = vrsqrt.pop %v350
  %v367 = vrsqrt.pop %v351
  %v368 = vrsqrt.pop %v352
  %v369 = vrsqrt.pop %v353
  %v370 = vrsqrt.pop %v354
  %v371 = vrsqrt.pop %v355
  %v372 = vrsqrt.pop %v356
  %v373 = vrsqrt.pop %v357
  %v374 = vmul.f32 %v246, %v358
  %v375 = vmul.f32 %v247, %v359
  %v376 = vmul.f32 %v248, %v360
  %v377 = vmul.f32 %v249, %v361
  %v378 = vmul.f32 %v250, %v362
  %v379 = vmul.f32 %v251, %v363
  %v380 = vmul.f32 %v252, %v364
  %v381 = vmul.f32 %v253, %v365
  %v382 = vmul.f32 %v254, %v366
  %v383 = vmul.f32 %v255, %v367
  %v384 = vmul.f32 %v256, %v368
  %v385 = vmul.f32 %v257, %v369
  %v386 = vmul.f32 %v258, %v370
  %v387 = vmul.f32 %v259, %v371
  %v388 = vmul.f32 %v260, %v372
  %v389 = vmul.f32 %v261, %v373
  %v390 = vld [vmem:[%s2] sm:$0x1]
  %v392 = vlaneseq
  %v393 = vshrl.u32 %v392, 7
  %v394 = vsub.s32 0, %v393
  %v395 = vrot.slane %v390, %v394
  %v397 = vmul.f32 %v374, %v395
  %v398 = vmul.f32 %v375, %v395
  %v399 = vmul.f32 %v376, %v395
  %v400 = vmul.f32 %v377, %v395
  %v401 = vmul.f32 %v378, %v395
  %v402 = vmul.f32 %v379, %v395
  %v403 = vmul.f32 %v380, %v395
  %v404 = vmul.f32 %v381, %v395
  %v405 = vmul.f32 %v382, %v395
  %v406 = vmul.f32 %v383, %v395
  %v407 = vmul.f32 %v384, %v395
  %v408 = vmul.f32 %v385, %v395
  %v409 = vmul.f32 %v386, %v395
  %v410 = vmul.f32 %v387, %v395
  %v411 = vmul.f32 %v388, %v395
  %v412 = vmul.f32 %v389, %v395
  %v413 = vld [vmem:[%s3] sm:$0x1]
  %v415 = vlaneseq
  %v416 = vshrl.u32 %v415, 7
  %v417 = vsub.s32 0, %v416
  %v418 = vrot.slane %v413, %v417
  %v420 = vadd.f32 %v397, %v418
  %v421 = vadd.f32 %v398, %v418
  %v422 = vadd.f32 %v399, %v418
  %v423 = vadd.f32 %v400, %v418
  %v424 = vadd.f32 %v401, %v418
  %v425 = vadd.f32 %v402, %v418
  %v426 = vadd.f32 %v403, %v418
  %v427 = vadd.f32 %v404, %v418
  %v428 = vadd.f32 %v405, %v418
  %v429 = vadd.f32 %v406, %v418
  %v430 = vadd.f32 %v407, %v418
  %v431 = vadd.f32 %v408, %v418
  %v432 = vadd.f32 %v409, %v418
  %v433 = vadd.f32 %v410, %v418
  %v434 = vadd.f32 %v411, %v418
  %v435 = vadd.f32 %v412, %v418
  %v436 = vpack.c.bf16 %v421, %v420
  %v437 = vpack.c.bf16 %v423, %v422
  %v438 = vpack.c.bf16 %v425, %v424
  %v439 = vpack.c.bf16 %v427, %v426
  %v440 = vpack.c.bf16 %v429, %v428
  %v441 = vpack.c.bf16 %v431, %v430
  %v442 = vpack.c.bf16 %v433, %v432
  %v443 = vpack.c.bf16 %v435, %v434
  %v452 = vunpack.c.l.b16 %v436
  %v453 = vunpack.c.h.b16 %v436
  %v454 = vunpack.c.l.b16 %v437
  %v455 = vunpack.c.h.b16 %v437
  %v456 = vunpack.c.l.b16 %v438
  %v457 = vunpack.c.h.b16 %v438
  %v458 = vunpack.c.l.b16 %v439
  %v459 = vunpack.c.h.b16 %v439
  %v460 = vunpack.c.l.b16 %v440
  %v461 = vunpack.c.h.b16 %v440
  %v462 = vunpack.c.l.b16 %v441
  %v463 = vunpack.c.h.b16 %v441
  %v464 = vunpack.c.l.b16 %v442
  %v465 = vunpack.c.h.b16 %v442
  %v466 = vunpack.c.l.b16 %v443
  %v467 = vunpack.c.h.b16 %v443
  %v468 = vpack.c.b16 %v452, %v452
  %v469 = vpack.c.b16 %v453, %v453
  %v470 = vpack.c.b16 %v454, %v454
  %v471 = vpack.c.b16 %v455, %v455
  %v472 = vpack.c.b16 %v456, %v456
  %v473 = vpack.c.b16 %v457, %v457
  %v474 = vpack.c.b16 %v458, %v458
  %v475 = vpack.c.b16 %v459, %v459
  %v476 = vpack.c.b16 %v460, %v460
  %v477 = vpack.c.b16 %v461, %v461
  %v478 = vpack.c.b16 %v462, %v462
  %v479 = vpack.c.b16 %v463, %v463
  %v480 = vpack.c.b16 %v464, %v464
  %v481 = vpack.c.b16 %v465, %v465
  %v482 = vpack.c.b16 %v466, %v466
  %v483 = vpack.c.b16 %v467, %v467
  %vm500 = vcmask 125952
  %501 = vst.msk [vmem:[%s4] sm:$0xf] %vm500, %v468
  %502 = vst.msk [vmem:[%s4 + $0x4] sm:$0xf] %vm500, %v469
  %503 = vst.msk [vmem:[%s4 + $0x8] sm:$0xf] %vm500, %v470
  %504 = vst.msk [vmem:[%s4 + $0xc] sm:$0xf] %vm500, %v471
  %505 = vst.msk [vmem:[%s4 + $0x10] sm:$0xf] %vm500, %v472
  %506 = vst.msk [vmem:[%s4 + $0x14] sm:$0xf] %vm500, %v473
  %507 = vst.msk [vmem:[%s4 + $0x18] sm:$0xf] %vm500, %v474
  %508 = vst.msk [vmem:[%s4 + $0x1c] sm:$0xf] %vm500, %v475
  %509 = vst.msk [vmem:[%s4 + $0x20] sm:$0xf] %vm500, %v476
  %510 = vst.msk [vmem:[%s4 + $0x24] sm:$0xf] %vm500, %v477
  %511 = vst.msk [vmem:[%s4 + $0x28] sm:$0xf] %vm500, %v478
  %512 = vst.msk [vmem:[%s4 + $0x2c] sm:$0xf] %vm500, %v479
  %513 = vst.msk [vmem:[%s4 + $0x30] sm:$0xf] %vm500, %v480
  %514 = vst.msk [vmem:[%s4 + $0x34] sm:$0xf] %vm500, %v481
  %515 = vst.msk [vmem:[%s4 + $0x38] sm:$0xf] %vm500, %v482
  %516 = vst.msk [vmem:[%s4 + $0x3c] sm:$0xf] %vm500, %v483
  // Predicated region
  $region18: #{sam_v1_image_encoder.44} parent=0 // pred_check
    _
  $region19: #{sam_v1_image_encoder.44} parent=0 // pred_check_branch
    %518 = sbr.rel (0) target = $region21
  $region20: #{sam_v1_image_encoder.44} parent=0 // pred_region
    _
  $region21: #{sam_v1_image_encoder.44} parent=0 // pred_fallthru
    _
  // Predicated region
  $region22: #{sam_v1_image_encoder.44} parent=0 // pred_check
    _
  $region23: #{sam_v1_image_encoder.44} parent=0 // pred_check_branch
    %520 = sbr.rel (0) target = $region25
  $region24: #{sam_v1_image_encoder.44} parent=0 // pred_region
    _
  $region25: #{sam_v1_image_encoder.44} parent=0 // pred_fallthru
    _

// kernel: sam_v1_image_encoder.45
$region0: #{sam_v1_image_encoder.45}
  #allocation0 [shape = 'u32[]', space=smem, size = 0x4, offset = 0x4, fixed_abs, tag = 'smem constant byte address 0x4 - core index']
  #allocation1 [shape = 'u32[144,128]{1,0:T(1,128)}', space=vmem, size = 0x12000, scoped, tag = 'internal scratch']
  %s0 = inlined_call_operand.vmem [shape: bf16[2,8,10,16], index: 0, kind: input, shape index: {}]
  %s1 = inlined_call_operand.vmem [shape: bf16[2,8,10,16], index: 1, kind: input, shape index: {}]
  %s2 = inlined_call_operand.vmem [shape: bf16[2,8,10,16], index: 2, kind: input, shape index: {}]
  %s3 = inlined_call_operand.vmem [shape: bf16[144,16], index: 3, kind: input, shape index: {}]
  %s4 = inlined_call_operand.vmem [shape: f32[1,16], index: 4, kind: input, shape index: {}]
  %s5 = inlined_call_operand.vmem [shape: f32[1,16], index: 5, kind: input, shape index: {}]
  %s6 = inlined_call_operand.hbm [shape: f32[2,8,8,16], index: 6, kind: output, shape index: {}]
  %s7 = sld [smem:[#allocation0]]
  $region57: #{sam_v1_image_encoder.45} parent=0
    _
  %s9 = ssub.s32 1, %s7
  %s10 = scalar_select 0, %s9, %s7
  $region1: #{sam_v1_image_encoder.45} parent=0
    #allocation2 [shape = 'u8[65536]{0}', space=vmem, size = 0x10000, scoped, tag = 'output window, operand 0']
    #allocation3 [shape = 's32[2]{0}', space=sflag, size = 0x8, scoped, tag = 'scoped memory for sam_v1_image_encoder.45']
    %11 = vsyncpa [#allocation3], 0
    %s12 = scalar_lea.sflag [#allocation3], 1
    %13 = vsyncpa %s12, 0
    loop: start=0, step=1, limit=4
    $region2: #{sam_v1_image_encoder.45} parent=1 // loop_pre_header
      _
    $region3: #{sam_v1_image_encoder.45} parent=1 // loop_header
      %s15 = sphi 0, %s19
      %p16 = scmp.ge.s32.totalorder %s15, 4
      %s22 = sphi 0, %s34
      %s23 = sphi 0, %s30
      %s24 = sphi 0, %s22
      %s25 = sphi 0, %s23
      %s26 = sphi 0, %s24
      %s27 = sphi 0, %s25
      %s39 = sphi 0, %s41
      %s42 = sphi 0, %s39
      %s43 = sphi 0, %s42
      %s59 = sphi 0, %s43
      %s67 = sphi 0, %s69
      %s70 = sphi 0, %s67
      %s71 = sphi 0, %s70
      %s87 = sphi 0, %s71
      %s95 = sphi 0, %s97
      %s98 = sphi 0, %s95
      %s99 = sphi 0, %s98
      %s115 = sphi 0, %s99
      %s119 = sphi 0, %s119
      %s121 = sphi 0, %s119
      %s122 = sphi 0, %s121
      %s136 = sphi 0, %s122
      %s140 = sphi 0, %s140
      %s142 = sphi 0, %s140
      %s143 = sphi 0, %s142
      %s157 = sphi 0, %s143
      %s161 = sphi 0, %s161
      %s163 = sphi 0, %s161
      %s164 = sphi 0, %s163
      %s178 = sphi 0, %s164
      %s186 = sphi 0, %s188
      %s189 = sphi 0, %s186
      %s190 = sphi 0, %s189
      %s206 = sphi 0, %s190
    $region4: #{sam_v1_image_encoder.45} parent=1 // loop_header_branch
      %18 = sbr.rel (%p16) target = $region8
    $region5: #{sam_v1_image_encoder.45} parent=1 // loop_body
      %s20 = ssub.s32 %s15, 1
      %s21 = ssub.s32 %s15, 2
      %s28 = sadd.s32 1, %s23
      %p29 = scmp.ge.s32.totalorder %s28, 1
      %s30 = scalar_select %p29, 0, %s28
      %s31 = sadd.s32 1, %s22
      %s32 = scalar_select %p29, %s31, %s22
      %p33 = scmp.ge.s32.totalorder %s32, 2
      %s34 = scalar_select %p33, 0, %s32
      %s35 = ssub.s32 %s22, %s34
      %s36 = ssub.s32 %s23, %s30
      %s37 = sor.u32 %s35, %s36
      %p38 = scmp.eq.s32.totalorder %s37, 0
      %s40 = sadd.s32 %s39, 1
      %s41 = scalar_select %p38, %s39, %s40
      %p44 = pneg %p38
      %p45 = scmp.eq.s32.totalorder %s15, 1
      %p46 = por %p44, %p45
      %p47 = scmp.ne.s32.totalorder %s39, %s42
      %p48 = scmp.eq.s32.totalorder %s15, 0
      %p49 = por %p47, %p48
      %p50 = scmp.ne.s32.totalorder %s39, %s42
      %p51 = scmp.eq.s32.totalorder %s20, 1
      %p52 = por %p50, %p51
      %p53 = scmp.ne.s32.totalorder %s42, %s43
      %p54 = scmp.eq.s32.totalorder %s20, 0
      %p55 = por %p53, %p54
      %p56 = scmp.ne.s32.totalorder %s42, %s43
      %p57 = scmp.eq.s32.totalorder %s21, 1
      %p58 = por %p56, %p57
      %p60 = scmp.ne.s32.totalorder %s43, %s59
      %p61 = scmp.eq.s32.totalorder %s21, 0
      %p62 = por %p60, %p61
      %s63 = ssub.s32 %s22, %s34
      %s64 = ssub.s32 %s23, %s30
      %s65 = sor.u32 %s63, %s64
      %p66 = scmp.eq.s32.totalorder %s65, 0
      %s68 = sadd.s32 %s67, 1
      %s69 = scalar_select %p66, %s67, %s68
      %p72 = pneg %p66
      %p73 = scmp.eq.s32.totalorder %s15, 1
      %p74 = por %p72, %p73
      %p75 = scmp.ne.s32.totalorder %s67, %s70
      %p76 = scmp.eq.s32.totalorder %s15, 0
      %p77 = por %p75, %p76
      %p78 = scmp.ne.s32.totalorder %s67, %s70
      %p79 = scmp.eq.s32.totalorder %s20, 1
      %p80 = por %p78, %p79
      %p81 = scmp.ne.s32.totalorder %s70, %s71
      %p82 = scmp.eq.s32.totalorder %s20, 0
      %p83 = por %p81, %p82
      %p84 = scmp.ne.s32.totalorder %s70, %s71
      %p85 = scmp.eq.s32.totalorder %s21, 1
      %p86 = por %p84, %p85
      %p88 = scmp.ne.s32.totalorder %s71, %s87
      %p89 = scmp.eq.s32.totalorder %s21, 0
      %p90 = por %p88, %p89
      %s91 = ssub.s32 %s22, %s34
      %s92 = ssub.s32 %s23, %s30
      %s93 = sor.u32 %s91, %s92
      %p94 = scmp.eq.s32.totalorder %s93, 0
      %s96 = sadd.s32 %s95, 1
      %s97 = scalar_select %p94, %s95, %s96
      %p100 = pneg %p94
      %p101 = scmp.eq.s32.totalorder %s15, 1
      %p102 = por %p100, %p101
      %p103 = scmp.ne.s32.totalorder %s95, %s98
      %p104 = scmp.eq.s32.totalorder %s15, 0
      %p105 = por %p103, %p104
      %p106 = scmp.ne.s32.totalorder %s95, %s98
      %p107 = scmp.eq.s32.totalorder %s20, 1
      %p108 = por %p106, %p107
      %p109 = scmp.ne.s32.totalorder %s98, %s99
      %p110 = scmp.eq.s32.totalorder %s20, 0
      %p111 = por %p109, %p110
      %p112 = scmp.ne.s32.totalorder %s98, %s99
      %p113 = scmp.eq.s32.totalorder %s21, 1
      %p114 = por %p112, %p113
      %p116 = scmp.ne.s32.totalorder %s99, %s115
      %p117 = scmp.eq.s32.totalorder %s21, 0
      %p118 = por %p116, %p117
      %s120 = sadd.s32 %s119, 1
      %p123 = scmp.eq.s32.totalorder %s15, 1
      %p124 = scmp.ne.s32.totalorder %s119, %s121
      %p125 = scmp.eq.s32.totalorder %s15, 0
      %p126 = por %p124, %p125
      %p127 = scmp.ne.s32.totalorder %s119, %s121
      %p128 = scmp.eq.s32.totalorder %s20, 1
      %p129 = por %p127, %p128
      %p130 = scmp.ne.s32.totalorder %s121, %s122
      %p131 = scmp.eq.s32.totalorder %s20, 0
      %p132 = por %p130, %p131
      %p133 = scmp.ne.s32.totalorder %s121, %s122
      %p134 = scmp.eq.s32.totalorder %s21, 1
      %p135 = por %p133, %p134
      %p137 = scmp.ne.s32.totalorder %s122, %s136
      %p138 = scmp.eq.s32.totalorder %s21, 0
      %p139 = por %p137, %p138
      %s141 = sadd.s32 %s140, 1
      %p144 = scmp.eq.s32.totalorder %s15, 1
      %p145 = scmp.ne.s32.totalorder %s140, %s142
      %p146 = scmp.eq.s32.totalorder %s15, 0
      %p147 = por %p145, %p146
      %p148 = scmp.ne.s32.totalorder %s140, %s142
      %p149 = scmp.eq.s32.totalorder %s20, 1
      %p150 = por %p148, %p149
      %p151 = scmp.ne.s32.totalorder %s142, %s143
      %p152 = scmp.eq.s32.totalorder %s20, 0
      %p153 = por %p151, %p152
      %p154 = scmp.ne.s32.totalorder %s142, %s143
      %p155 = scmp.eq.s32.totalorder %s21, 1
      %p156 = por %p154, %p155
      %p158 = scmp.ne.s32.totalorder %s143, %s157
      %p159 = scmp.eq.s32.totalorder %s21, 0
      %p160 = por %p158, %p159
      %s162 = sadd.s32 %s161, 1
      %p165 = scmp.eq.s32.totalorder %s15, 1
      %p166 = scmp.ne.s32.totalorder %s161, %s163
      %p167 = scmp.eq.s32.totalorder %s15, 0
      %p168 = por %p166, %p167
      %p169 = scmp.ne.s32.totalorder %s161, %s163
      %p170 = scmp.eq.s32.totalorder %s20, 1
      %p171 = por %p169, %p170
      %p172 = scmp.ne.s32.totalorder %s163, %s164
      %p173 = scmp.eq.s32.totalorder %s20, 0
      %p174 = por %p172, %p173
      %p175 = scmp.ne.s32.totalorder %s163, %s164
      %p176 = scmp.eq.s32.totalorder %s21, 1
      %p177 = por %p175, %p176
      %p179 = scmp.ne.s32.totalorder %s164, %s178
      %p180 = scmp.eq.s32.totalorder %s21, 0
      %p181 = por %p179, %p180
      %s182 = ssub.s32 %s22, %s34
      %s183 = ssub.s32 %s23, %s30
      %s184 = sor.u32 %s182, %s183
      %p185 = scmp.eq.s32.totalorder %s184, 0
      %s187 = sadd.s32 %s186, 1
      %s188 = scalar_select %p185, %s186, %s187
      %p191 = pneg %p185
      %p192 = scmp.eq.s32.totalorder %s15, 1
      %p193 = por %p191, %p192
      %p194 = scmp.ne.s32.totalorder %s186, %s189
      %p195 = scmp.eq.s32.totalorder %s15, 0
      %p196 = por %p194, %p195
      %p197 = scmp.ne.s32.totalorder %s186, %s189
      %p198 = scmp.eq.s32.totalorder %s20, 1
      %p199 = por %p197, %p198
      %p200 = scmp.ne.s32.totalorder %s189, %s190
      %p201 = scmp.eq.s32.totalorder %s20, 0
      %p202 = por %p200, %p201
      %p203 = scmp.ne.s32.totalorder %s189, %s190
      %p204 = scmp.eq.s32.totalorder %s21, 1
      %p205 = por %p203, %p204
      %p207 = scmp.ne.s32.totalorder %s190, %s206
      %p208 = scmp.eq.s32.totalorder %s21, 0
      %p209 = por %p207, %p208
      %p210 = scmp.le.s32.totalorder 1, %s15
      %p211 = scmp.lt.s32.totalorder %s15, 3
      %p212 = pnand %p210, %p211
      %p213 = pneg %p212
      // Predicated region
      $region9: #{sam_v1_image_encoder.45} parent=5 // pred_check
        _
      $region10: #{sam_v1_image_encoder.45} parent=5 // pred_check_branch
        %215 = sbr.rel (%p212) target = $region12
      $region11: #{sam_v1_image_encoder.45} parent=5 // pred_region
        %s216 = ssub.s32 %s15, 1
        // Predicated region
        $region13: #{sam_v1_image_encoder.45} parent=11 // pred_check
          %p217 = pneg %p132
        $region14: #{sam_v1_image_encoder.45} parent=11 // pred_check_branch
          %219 = sbr.rel (%p217) target = $region16
        $region15: #{sam_v1_image_encoder.45} parent=11 // pred_region
          _
        $region16: #{sam_v1_image_encoder.45} parent=11 // pred_fallthru
          _
        // Predicated region
        $region17: #{sam_v1_image_encoder.45} parent=11 // pred_check
          %p220 = pneg %p153
        $region18: #{sam_v1_image_encoder.45} parent=11 // pred_check_branch
          %222 = sbr.rel (%p220) target = $region20
        $region19: #{sam_v1_image_encoder.45} parent=11 // pred_region
          _
        $region20: #{sam_v1_image_encoder.45} parent=11 // pred_fallthru
          _
        // Predicated region
        $region21: #{sam_v1_image_encoder.45} parent=11 // pred_check
          %p223 = pneg %p174
        $region22: #{sam_v1_image_encoder.45} parent=11 // pred_check_branch
          %225 = sbr.rel (%p223) target = $region24
        $region23: #{sam_v1_image_encoder.45} parent=11 // pred_region
          _
        $region24: #{sam_v1_image_encoder.45} parent=11 // pred_fallthru
          _
      $region12: #{sam_v1_image_encoder.45} parent=5 // pred_fallthru
        _
      %p226 = scmp.lt.s32.totalorder %s15, 2
      // Predicated region
      $region25: #{sam_v1_image_encoder.45} parent=5 // pred_check
        %p227 = pneg %p226
      $region26: #{sam_v1_image_encoder.45} parent=5 // pred_check_branch
        %229 = sbr.rel (%p227) target = $region28
      $region27: #{sam_v1_image_encoder.45} parent=5 // pred_region
        // Predicated region
        $region29: #{sam_v1_image_encoder.45} parent=27 // pred_check
          %p230 = pneg %p49
        $region30: #{sam_v1_image_encoder.45} parent=27 // pred_check_branch
          %232 = sbr.rel (%p230) target = $region32
        $region31: #{sam_v1_image_encoder.45} parent=27 // pred_region
          %s233 = smul.u32 8, %s23
          %p234 = scmp.lt.s32.totalorder %s22, 1
          %s235 = scalar_select %p234, %s22, 1
          %p236 = scmp.lt.s32.totalorder %s233, 7
          %s237 = scalar_select %p236, %s233, 7
          %s238 = smul.addr %s237, 2
          %s239 = smul.addr %s235, 16
          %s240 = sadd.s32 %s238, %s239
          %s241 = smul.addr %s240, 4
          %s242 = scalar_lea.vmem %s0, %s241
          %s243 = smul.u32 8, %s23
        $region32: #{sam_v1_image_encoder.45} parent=27 // pred_fallthru
          _
        // Predicated region
        $region33: #{sam_v1_image_encoder.45} parent=27 // pred_check
          %p244 = pneg %p77
        $region34: #{sam_v1_image_encoder.45} parent=27 // pred_check_branch
          %246 = sbr.rel (%p244) target = $region36
        $region35: #{sam_v1_image_encoder.45} parent=27 // pred_region
          %s247 = smul.u32 8, %s23
          %p248 = scmp.lt.s32.totalorder %s22, 1
          %s249 = scalar_select %p248, %s22, 1
          %p250 = scmp.lt.s32.totalorder %s247, 7
          %s251 = scalar_select %p250, %s247, 7
          %s252 = smul.addr %s251, 2
          %s253 = smul.addr %s249, 16
          %s254 = sadd.s32 %s252, %s253
          %s255 = smul.addr %s254, 4
          %s256 = scalar_lea.vmem %s1, %s255
          %s257 = smul.u32 8, %s23
        $region36: #{sam_v1_image_encoder.45} parent=27 // pred_fallthru
          _
        // Predicated region
        $region37: #{sam_v1_image_encoder.45} parent=27 // pred_check
          %p258 = pneg %p105
        $region38: #{sam_v1_image_encoder.45} parent=27 // pred_check_branch
          %260 = sbr.rel (%p258) target = $region40
        $region39: #{sam_v1_image_encoder.45} parent=27 // pred_region
          %s261 = smul.u32 8, %s23
          %p262 = scmp.lt.s32.totalorder %s22, 1
          %s263 = scalar_select %p262, %s22, 1
          %p264 = scmp.lt.s32.totalorder %s261, 7
          %s265 = scalar_select %p264, %s261, 7
          %s266 = smul.addr %s265, 2
          %s267 = smul.addr %s263, 16
          %s268 = sadd.s32 %s266, %s267
          %s269 = smul.addr %s268, 4
          %s270 = scalar_lea.vmem %s2, %s269
          %s271 = smul.u32 8, %s23
        $region40: #{sam_v1_image_encoder.45} parent=27 // pred_fallthru
          _
      $region28: #{sam_v1_image_encoder.45} parent=5 // pred_fallthru
        _
      %p272 = scmp.le.s32.totalorder 1, %s15
      %p273 = scmp.lt.s32.totalorder %s15, 3
      %p274 = pnand %p272, %p273
      %p275 = pneg %p274
      // Predicated region
      $region41: #{sam_v1_image_encoder.45} parent=5 // pred_check
        _
      $region42: #{sam_v1_image_encoder.45} parent=5 // pred_check_branch
        %277 = sbr.rel (%p274) target = $region44
      $region43: #{sam_v1_image_encoder.45} parent=5 // pred_region
        %s278 = ssub.s32 %s15, 1
        %s279 = smul.u32 8, %s25
        %p280 = scmp.lt.s32.totalorder %s24, 1
        %s281 = scalar_select %p280, %s24, 1
        %p282 = scmp.lt.s32.totalorder %s279, 7
        %s283 = scalar_select %p282, %s279, 7
        %s284 = smul.addr %s283, 2
        %s285 = smul.addr %s281, 16
        %s286 = sadd.s32 %s284, %s285
        %s287 = smul.addr %s286, 4
        %s288 = scalar_lea.vmem %s0, %s287
        %p289 = pneg %p55
        %p290 = pneg %p52
        %s291 = smul.u32 8, %s25
        %p292 = scmp.lt.s32.totalorder %s24, 1
        %s293 = scalar_select %p292, %s24, 1
        %p294 = scmp.lt.s32.totalorder %s291, 7
        %s295 = scalar_select %p294, %s291, 7
        %s296 = smul.addr %s295, 2
        %s297 = smul.addr %s293, 16
        %s298 = sadd.s32 %s296, %s297
        %s299 = smul.addr %s298, 4
        %s300 = scalar_lea.vmem %s1, %s299
        %p301 = pneg %p83
        %p302 = pneg %p80
        %s303 = smul.u32 8, %s25
        %p304 = scmp.lt.s32.totalorder %s24, 1
        %s305 = scalar_select %p304, %s24, 1
        %p306 = scmp.lt.s32.totalorder %s303, 7
        %s307 = scalar_select %p306, %s303, 7
        %s308 = smul.addr %s307, 2
        %s309 = smul.addr %s305, 16
        %s310 = sadd.s32 %s308, %s309
        %s311 = smul.addr %s310, 4
        %s312 = scalar_lea.vmem %s2, %s311
        %p313 = pneg %p111
        %p314 = pneg %p108
        %p315 = pneg %p132
        %p316 = pneg %p129
        %p317 = pneg %p153
        %p318 = pneg %p150
        %p319 = pneg %p174
        %p320 = pneg %p171
        %p321 = pneg %p202
        %p322 = pneg %p199
        %s323 = sand.u32 %s189, 1
        %s324 = scalar_lea.sflag [#allocation3], %s323
        %s325 = sand.u32 %s189, 1
        %s326 = smul.addr %s325, 64
        %s327 = scalar_lea.vmem [#allocation2], %s326
        %s328 = smul.u32 8, %s25
        %p329 = scmp.lt.s32.totalorder %s24, 1
        %s330 = scalar_select %p329, %s24, 1
        %p331 = scmp.lt.s32.totalorder %s328, 7
        %s332 = scalar_select %p331, %s328, 7
        %s333 = smul.addr %s332, 2
        %s334 = smul.addr %s330, 16
        %s335 = sadd.s32 %s333, %s334
        %s336 = smul.addr %s335, 4
        %s337 = scalar_lea.vmem %s0, %s336
        %s338 = smul.u32 8, %s25
        %s339 = smul.u32 8, %s25
        %p340 = scmp.lt.s32.totalorder %s24, 1
        %s341 = scalar_select %p340, %s24, 1
        %p342 = scmp.lt.s32.totalorder %s339, 7
        %s343 = scalar_select %p342, %s339, 7
        %s344 = smul.addr %s343, 2
        %s345 = smul.addr %s341, 16
        %s346 = sadd.s32 %s344, %s345
        %s347 = smul.addr %s346, 4
        %s348 = scalar_lea.vmem %s1, %s347
        %s349 = smul.u32 8, %s25
        %s350 = smul.u32 8, %s25
        %p351 = scmp.lt.s32.totalorder %s24, 1
        %s352 = scalar_select %p351, %s24, 1
        %p353 = scmp.lt.s32.totalorder %s350, 7
        %s354 = scalar_select %p353, %s350, 7
        %s355 = smul.addr %s354, 2
        %s356 = smul.addr %s352, 16
        %s357 = sadd.s32 %s355, %s356
        %s358 = smul.addr %s357, 4
        %s359 = scalar_lea.vmem %s2, %s358
        %s360 = smul.u32 8, %s25
        %s361 = smul.u32 8, %s25
        %v363 = vld [vmem:[%s3] sm:$0xf]
        %v364 = vld [vmem:[%s3 + $0x4] sm:$0xf]
        %v365 = vld [vmem:[%s3 + $0x8] sm:$0xf]
        %v366 = vld [vmem:[%s3 + $0xc] sm:$0xf]
        %v367 = vld [vmem:[%s3 + $0x10] sm:$0xf]
        %v368 = vld [vmem:[%s3 + $0x14] sm:$0xf]
        %v369 = vld [vmem:[%s3 + $0x18] sm:$0xf]
        %v370 = vld [vmem:[%s3 + $0x1c] sm:$0xf]
        %v371 = vld [vmem:[%s3 + $0x20] sm:$0xf]
        %v372 = vld [vmem:[%s3 + $0x24] sm:$0xf]
        %v373 = vld [vmem:[%s3 + $0x28] sm:$0xf]
        %v374 = vld [vmem:[%s3 + $0x2c] sm:$0xf]
        %v375 = vld [vmem:[%s3 + $0x30] sm:$0xf]
        %v376 = vld [vmem:[%s3 + $0x34] sm:$0xf]
        %v377 = vld [vmem:[%s3 + $0x38] sm:$0xf]
        %v378 = vld [vmem:[%s3 + $0x3c] sm:$0xf]
        %v379 = vld [vmem:[%s3 + $0x40] sm:$0xf]
        %v380 = vld [vmem:[%s3 + $0x44] sm:$0xf]
        %v381 = vld [vmem:[%s337] sm:$0xf]
        %v382 = vld [vmem:[%s337 + $0x4] sm:$0x1]
        %v383 = vld [vmem:[%s337 + $0x8] sm:$0xf]
        %v384 = vld [vmem:[%s337 + $0xc] sm:$0x1]
        %v385 = vld [vmem:[%s337 + $0x10] sm:$0xf]
        %v386 = vld [vmem:[%s337 + $0x14] sm:$0x1]
        %v387 = vld [vmem:[%s337 + $0x18] sm:$0xf]
        %v388 = vld [vmem:[%s337 + $0x1c] sm:$0x1]
        %v389 = vld [vmem:[%s337 + $0x20] sm:$0xf]
        %v390 = vld [vmem:[%s337 + $0x24] sm:$0x1]
        %v391 = vld [vmem:[%s337 + $0x28] sm:$0xf]
        %v392 = vld [vmem:[%s337 + $0x2c] sm:$0x1]
        %v393 = vld [vmem:[%s337 + $0x30] sm:$0xf]
        %v394 = vld [vmem:[%s337 + $0x34] sm:$0x1]
        %v395 = vld [vmem:[%s337 + $0x38] sm:$0xf]
        %v396 = vld [vmem:[%s337 + $0x3c] sm:$0x1]
        %vm397 = vsmask.f32 3328
        %vm398 = vsmask.f32 7440
        %vm399 = vmor %vm397, %vm398
        %v401 = vshrl.u32 %v381, 16
        %v403 = vrot.slane %v401, 4
        %v404 = vshll.u32 %v381, 16
        %v406 = vrot.slane %v404, 5
        %v407 = vor.u32 %v403, %v406
        %v408 = vrot.slane %v407, 4
        %v410 = vshll.u32 %v382, 16
        %v412 = vrot.slane %v410, 5
        %v413 = vsel %vm399, %v408, %v412
        %v415 = vshrl.u32 %v383, 16
        %v417 = vrot.slane %v415, 4
        %v418 = vshll.u32 %v383, 16
        %v420 = vrot.slane %v418, 5
        %v421 = vor.u32 %v417, %v420
        %v422 = vrot.slane %v421, 4
        %v424 = vshll.u32 %v384, 16
        %v426 = vrot.slane %v424, 5
        %v427 = vsel %vm399, %v422, %v426
        %v429 = vshrl.u32 %v385, 16
        %v431 = vrot.slane %v429, 4
        %v432 = vshll.u32 %v385, 16
        %v434 = vrot.slane %v432, 5
        %v435 = vor.u32 %v431, %v434
        %v436 = vrot.slane %v435, 4
        %v438 = vshll.u32 %v386, 16
        %v440 = vrot.slane %v438, 5
        %v441 = vsel %vm399, %v436, %v440
        %v443 = vshrl.u32 %v387, 16
        %v445 = vrot.slane %v443, 4
        %v446 = vshll.u32 %v387, 16
        %v448 = vrot.slane %v446, 5
        %v449 = vor.u32 %v445, %v448
        %v450 = vrot.slane %v449, 4
        %v452 = vshll.u32 %v388, 16
        %v454 = vrot.slane %v452, 5
        %v455 = vsel %vm399, %v450, %v454
        %v457 = vshrl.u32 %v389, 16
        %v459 = vrot.slane %v457, 4
        %v460 = vshll.u32 %v389, 16
        %v462 = vrot.slane %v460, 5
        %v463 = vor.u32 %v459, %v462
        %v464 = vrot.slane %v463, 4
        %v466 = vshll.u32 %v390, 16
        %v468 = vrot.slane %v466, 5
        %v469 = vsel %vm399, %v464, %v468
        %v471 = vshrl.u32 %v391, 16
        %v473 = vrot.slane %v471, 4
        %v474 = vshll.u32 %v391, 16
        %v476 = vrot.slane %v474, 5
        %v477 = vor.u32 %v473, %v476
        %v478 = vrot.slane %v477, 4
        %v480 = vshll.u32 %v392, 16
        %v482 = vrot.slane %v480, 5
        %v483 = vsel %vm399, %v478, %v482
        %v485 = vshrl.u32 %v393, 16
        %v487 = vrot.slane %v485, 4
        %v488 = vshll.u32 %v393, 16
        %v490 = vrot.slane %v488, 5
        %v491 = vor.u32 %v487, %v490
        %v492 = vrot.slane %v491, 4
        %v494 = vshll.u32 %v394, 16
        %v496 = vrot.slane %v494, 5
        %v497 = vsel %vm399, %v492, %v496
        %v499 = vshrl.u32 %v395, 16
        %v501 = vrot.slane %v499, 4
        %v502 = vshll.u32 %v395, 16
        %v504 = vrot.slane %v502, 5
        %v505 = vor.u32 %v501, %v504
        %v506 = vrot.slane %v505, 4
        %v508 = vshll.u32 %v396, 16
        %v510 = vrot.slane %v508, 5
        %v511 = vsel %vm399, %v506, %v510
        %v512 = vunpack.c.l.b16 %v413
        %v513 = vunpack.c.l.b16 %v427
        %v514 = vunpack.c.l.b16 %v441
        %v515 = vunpack.c.l.b16 %v455
        %v516 = vunpack.c.l.b16 %v469
        %v517 = vunpack.c.l.b16 %v483
        %v518 = vunpack.c.l.b16 %v497
        %v519 = vunpack.c.l.b16 %v511
        %v520 = vpack.c.b16 %v513, %v512
        %v521 = vpack.c.b16 %v515, %v514
        %v522 = vpack.c.b16 %v517, %v516
        %v523 = vpack.c.b16 %v519, %v518
        %v526 = vunpack.c.l.b16 %v365
        %v527 = vunpack.c.l.b16 %v366
        %v528 = vpack.c.b16 %v527, %v526
        %vm530 = vcmask 130048
        %v532 = vsel %vm530, %v520, 0
        %v535 = vsel %vm530, %v521, 0
        %v538 = vsel %vm530, %v522, 0
        %v541 = vsel %vm530, %v523, 0
        %543 = vmatprep.subr.bf16.mxu0 0
        %544 = vmatpush1.bf16.msra.mxu0 0
        %545 = vmatprep.subr.bf16.mxu0 0
        %546 = vmatpush1.bf16.msra.mxu0 0
        %547 = vmatprep.subr.bf16.mxu0 0
        %548 = vmatpush1.bf16.msra.mxu0 0
        %549 = vmatprep.subr.bf16.mxu0 0
        %550 = vmatpush1.bf16.msra.mxu0 0
        %551 = vmatprep.subr.bf16.mxu0 0
        %552 = vmatpush1.bf16.msra.mxu0 0
        %553 = vmatprep.subr.bf16.mxu0 0
        %554 = vmatpush1.bf16.msra.mxu0 0
        %555 = vmatprep.subr.bf16.mxu0 0
        %556 = vmatpush1.bf16.msra.mxu0 0
        %557 = vmatprep.subr.bf16.mxu0 0
        %558 = vmatpush1.bf16.msra.mxu0 %v528
        %559 = vmatprep.subr.bf16.mxu0 0
        %560 = vmatpush2.bf16.msra.mxu0 0
        %561 = vmatprep.subr.bf16.mxu0 0
        %562 = vmatpush2.bf16.msra.mxu0 0
        %563 = vmatprep.subr.bf16.mxu0 0
        %564 = vmatpush2.bf16.msra.mxu0 0
        %565 = vmatprep.subr.bf16.mxu0 0
        %566 = vmatpush2.bf16.msra.mxu0 0
        %567 = vmatprep.subr.bf16.mxu0 0
        %568 = vmatpush2.bf16.msra.mxu0 0
        %569 = vmatprep.subr.bf16.mxu0 0
        %570 = vmatpush2.bf16.msra.mxu0 0
        %571 = vmatprep.subr.bf16.mxu0 0
        %572 = vmatpush2.bf16.msra.mxu0 0
        %573 = vmatprep.subr.bf16.mxu0 0
        %574 = vmatpush2.bf16.msra.mxu0 0
        %575 = vmatprep.mubr.bf16.mxu0 0
        %576 = vmatmul.mubr.bf16.gmra.mxu0 %v532
        %v577 = vpop.f32.mrf.mxu0
        %v578 = vadd.f32 0.0, %v577
        %v579 = vpop.f32.mrf.mxu0
        %v580 = vpop.f32.mrf.mxu0
        %v581 = vadd.f32 0.0, %v580
        %v582 = vpop.f32.mrf.mxu0
        %583 = vmatprep.mubr.bf16.mxu0 0
        %584 = vmatmul.mubr.bf16.gmra.mxu0 %v535
        %v585 = vpop.f32.mrf.mxu0
        %v586 = vadd.f32 0.0, %v585
        %v587 = vpop.f32.mrf.mxu0
        %v588 = vpop.f32.mrf.mxu0
        %v589 = vadd.f32 0.0, %v588
        %v590 = vpop.f32.mrf.mxu0
        %591 = vmatprep.mubr.bf16.mxu0 0
        %592 = vmatmul.mubr.bf16.gmra.mxu0 %v538
        %v593 = vpop.f32.mrf.mxu0
        %v594 = vadd.f32 0.0, %v593
        %v595 = vpop.f32.mrf.mxu0
        %v596 = vpop.f32.mrf.mxu0
        %v597 = vadd.f32 0.0, %v596
        %v598 = vpop.f32.mrf.mxu0
        %599 = vmatprep.mubr.bf16.mxu0 0
        %600 = vmatmul.mubr.bf16.gmra.mxu0 %v541
        %v601 = vpop.f32.mrf.mxu0
        %v602 = vadd.f32 0.0, %v601
        %v603 = vpop.f32.mrf.mxu0
        %v604 = vpop.f32.mrf.mxu0
        %v605 = vadd.f32 0.0, %v604
        %v606 = vpop.f32.mrf.mxu0
        %607 = vdwg.mxu0
        %v616 = vunpack.c.l.b16 %v381
        %v617 = vunpack.c.l.b16 %v383
        %v618 = vunpack.c.l.b16 %v385
        %v619 = vunpack.c.l.b16 %v387
        %v620 = vunpack.c.l.b16 %v389
        %v621 = vunpack.c.l.b16 %v391
        %v622 = vunpack.c.l.b16 %v393
        %v623 = vunpack.c.l.b16 %v395
        %v624 = vpack.c.b16 %v617, %v616
        %v625 = vpack.c.b16 %v619, %v618
        %v626 = vpack.c.b16 %v621, %v620
        %v627 = vpack.c.b16 %v623, %v622
        %v630 = vunpack.c.l.b16 %v363
        %v631 = vunpack.c.l.b16 %v364
        %v632 = vpack.c.b16 %v631, %v630
        %v635 = vsel %vm530, %v624, 0
        %v638 = vsel %vm530, %v625, 0
        %v641 = vsel %vm530, %v626, 0
        %v644 = vsel %vm530, %v627, 0
        %646 = vmatprep.subr.bf16.mxu0 0
        %647 = vmatpush1.bf16.msra.mxu0 0
        %648 = vmatprep.subr.bf16.mxu0 0
        %649 = vmatpush1.bf16.msra.mxu0 0
        %650 = vmatprep.subr.bf16.mxu0 0
        %651 = vmatpush1.bf16.msra.mxu0 0
        %652 = vmatprep.subr.bf16.mxu0 0
        %653 = vmatpush1.bf16.msra.mxu0 0
        %654 = vmatprep.subr.bf16.mxu0 0
        %655 = vmatpush1.bf16.msra.mxu0 0
        %656 = vmatprep.subr.bf16.mxu0 0
        %657 = vmatpush1.bf16.msra.mxu0 0
        %658 = vmatprep.subr.bf16.mxu0 0
        %659 = vmatpush1.bf16.msra.mxu0 0
        %660 = vmatprep.subr.bf16.mxu0 0
        %661 = vmatpush1.bf16.msra.mxu0 %v632
        %662 = vmatprep.subr.bf16.mxu0 0
        %663 = vmatpush2.bf16.msra.mxu0 0
        %664 = vmatprep.subr.bf16.mxu0 0
        %665 = vmatpush2.bf16.msra.mxu0 0
        %666 = vmatprep.subr.bf16.mxu0 0
        %667 = vmatpush2.bf16.msra.mxu0 0
        %668 = vmatprep.subr.bf16.mxu0 0
        %669 = vmatpush2.bf16.msra.mxu0 0
        %670 = vmatprep.subr.bf16.mxu0 0
        %671 = vmatpush2.bf16.msra.mxu0 0
        %672 = vmatprep.subr.bf16.mxu0 0
        %673 = vmatpush2.bf16.msra.mxu0 0
        %674 = vmatprep.subr.bf16.mxu0 0
        %675 = vmatpush2.bf16.msra.mxu0 0
        %676 = vmatprep.subr.bf16.mxu0 0
        %677 = vmatpush2.bf16.msra.mxu0 0
        %678 = vmatprep.mubr.bf16.mxu0 0
        %679 = vmatmul.mubr.bf16.gmra.mxu0 %v635
        %v680 = vpop.f32.mrf.mxu0
        %v681 = vadd.f32 %v578, %v680
        %v682 = vpop.f32.mrf.mxu0
        %v683 = vpop.f32.mrf.mxu0
        %v684 = vadd.f32 %v581, %v683
        %v685 = vpop.f32.mrf.mxu0
        %686 = vmatprep.mubr.bf16.mxu0 0
        %687 = vmatmul.mubr.bf16.gmra.mxu0 %v638
        %v688 = vpop.f32.mrf.mxu0
        %v689 = vadd.f32 %v586, %v688
        %v690 = vpop.f32.mrf.mxu0
        %v691 = vpop.f32.mrf.mxu0
        %v692 = vadd.f32 %v589, %v691
        %v693 = vpop.f32.mrf.mxu0
        %694 = vmatprep.mubr.bf16.mxu0 0
        %695 = vmatmul.mubr.bf16.gmra.mxu0 %v641
        %v696 = vpop.f32.mrf.mxu0
        %v697 = vadd.f32 %v594, %v696
        %v698 = vpop.f32.mrf.mxu0
        %v699 = vpop.f32.mrf.mxu0
        %v700 = vadd.f32 %v597, %v699
        %v701 = vpop.f32.mrf.mxu0
        %702 = vmatprep.mubr.bf16.mxu0 0
        %703 = vmatmul.mubr.bf16.gmra.mxu0 %v644
        %v704 = vpop.f32.mrf.mxu0
        %v705 = vadd.f32 %v602, %v704
        %v706 = vpop.f32.mrf.mxu0
        %v707 = vpop.f32.mrf.mxu0
        %v708 = vadd.f32 %v605, %v707
        %v709 = vpop.f32.mrf.mxu0
        %710 = vdwg.mxu0
        %vm719 = vcmask 1042432
        %vm720 = vcmask 1046532
        %vm721 = vmor %vm719, %vm720
        %v722 = vrot.slane %v381, 5
        %v723 = vrot.slane %v722, 4
        %v724 = vrot.slane %v382, 5
        %v725 = vsel %vm721, %v723, %v724
        %v726 = vrot.slane %v383, 5
        %v727 = vrot.slane %v726, 4
        %v728 = vrot.slane %v384, 5
        %v729 = vsel %vm721, %v727, %v728
        %v730 = vrot.slane %v385, 5
        %v731 = vrot.slane %v730, 4
        %v732 = vrot.slane %v386, 5
        %v733 = vsel %vm721, %v731, %v732
        %v734 = vrot.slane %v387, 5
        %v735 = vrot.slane %v734, 4
        %v736 = vrot.slane %v388, 5
        %v737 = vsel %vm721, %v735, %v736
        %v738 = vrot.slane %v389, 5
        %v739 = vrot.slane %v738, 4
        %v740 = vrot.slane %v390, 5
        %v741 = vsel %vm721, %v739, %v740
        %v742 = vrot.slane %v391, 5
        %v743 = vrot.slane %v742, 4
        %v744 = vrot.slane %v392, 5
        %v745 = vsel %vm721, %v743, %v744
        %v746 = vrot.slane %v393, 5
        %v747 = vrot.slane %v746, 4
        %v748 = vrot.slane %v394, 5
        %v749 = vsel %vm721, %v747, %v748
        %v750 = vrot.slane %v395, 5
        %v751 = vrot.slane %v750, 4
        %v752 = vrot.slane %v396, 5
        %v753 = vsel %vm721, %v751, %v752
        %v754 = vunpack.c.l.b16 %v725
        %v755 = vunpack.c.l.b16 %v729
        %v756 = vunpack.c.l.b16 %v733
        %v757 = vunpack.c.l.b16 %v737
        %v758 = vunpack.c.l.b16 %v741
        %v759 = vunpack.c.l.b16 %v745
        %v760 = vunpack.c.l.b16 %v749
        %v761 = vunpack.c.l.b16 %v753
        %v762 = vpack.c.b16 %v755, %v754
        %v763 = vpack.c.b16 %v757, %v756
        %v764 = vpack.c.b16 %v759, %v758
        %v765 = vpack.c.b16 %v761, %v760
        %v768 = vunpack.c.l.b16 %v367
        %v769 = vunpack.c.l.b16 %v368
        %v770 = vpack.c.b16 %v769, %v768
        %v773 = vsel %vm530, %v762, 0
        %v776 = vsel %vm530, %v763, 0
        %v779 = vsel %vm530, %v764, 0
        %v782 = vsel %vm530, %v765, 0
        %784 = vmatprep.subr.bf16.mxu0 0
        %785 = vmatpush1.bf16.msra.mxu0 0
        %786 = vmatprep.subr.bf16.mxu0 0
        %787 = vmatpush1.bf16.msra.mxu0 0
        %788 = vmatprep.subr.bf16.mxu0 0
        %789 = vmatpush1.bf16.msra.mxu0 0
        %790 = vmatprep.subr.bf16.mxu0 0
        %791 = vmatpush1.bf16.msra.mxu0 0
        %792 = vmatprep.subr.bf16.mxu0 0
        %793 = vmatpush1.bf16.msra.mxu0 0
        %794 = vmatprep.subr.bf16.mxu0 0
        %795 = vmatpush1.bf16.msra.mxu0 0
        %796 = vmatprep.subr.bf16.mxu0 0
        %797 = vmatpush1.bf16.msra.mxu0 0
        %798 = vmatprep.subr.bf16.mxu0 0
        %799 = vmatpush1.bf16.msra.mxu0 %v770
        %800 = vmatprep.subr.bf16.mxu0 0
        %801 = vmatpush2.bf16.msra.mxu0 0
        %802 = vmatprep.subr.bf16.mxu0 0
        %803 = vmatpush2.bf16.msra.mxu0 0
        %804 = vmatprep.subr.bf16.mxu0 0
        %805 = vmatpush2.bf16.msra.mxu0 0
        %806 = vmatprep.subr.bf16.mxu0 0
        %807 = vmatpush2.bf16.msra.mxu0 0
        %808 = vmatprep.subr.bf16.mxu0 0
        %809 = vmatpush2.bf16.msra.mxu0 0
        %810 = vmatprep.subr.bf16.mxu0 0
        %811 = vmatpush2.bf16.msra.mxu0 0
        %812 = vmatprep.subr.bf16.mxu0 0
        %813 = vmatpush2.bf16.msra.mxu0 0
        %814 = vmatprep.subr.bf16.mxu0 0
        %815 = vmatpush2.bf16.msra.mxu0 0
        %816 = vmatprep.mubr.bf16.mxu0 0
        %817 = vmatmul.mubr.bf16.gmra.mxu0 %v773
        %v818 = vpop.f32.mrf.mxu0
        %v819 = vadd.f32 0.0, %v818
        %v820 = vpop.f32.mrf.mxu0
        %v821 = vpop.f32.mrf.mxu0
        %v822 = vadd.f32 0.0, %v821
        %v823 = vpop.f32.mrf.mxu0
        %824 = vmatprep.mubr.bf16.mxu0 0
        %825 = vmatmul.mubr.bf16.gmra.mxu0 %v776
        %v826 = vpop.f32.mrf.mxu0
        %v827 = vadd.f32 0.0, %v826
        %v828 = vpop.f32.mrf.mxu0
        %v829 = vpop.f32.mrf.mxu0
        %v830 = vadd.f32 0.0, %v829
        %v831 = vpop.f32.mrf.mxu0
        %832 = vmatprep.mubr.bf16.mxu0 0
        %833 = vmatmul.mubr.bf16.gmra.mxu0 %v779
        %v834 = vpop.f32.mrf.mxu0
        %v835 = vadd.f32 0.0, %v834
        %v836 = vpop.f32.mrf.mxu0
        %v837 = vpop.f32.mrf.mxu0
        %v838 = vadd.f32 0.0, %v837
        %v839 = vpop.f32.mrf.mxu0
        %840 = vmatprep.mubr.bf16.mxu0 0
        %841 = vmatmul.mubr.bf16.gmra.mxu0 %v782
        %v842 = vpop.f32.mrf.mxu0
        %v843 = vadd.f32 0.0, %v842
        %v844 = vpop.f32.mrf.mxu0
        %v845 = vpop.f32.mrf.mxu0
        %v846 = vadd.f32 0.0, %v845
        %v847 = vpop.f32.mrf.mxu0
        %848 = vdwg.mxu0
        %v849 = vadd.f32 %v681, %v819
        %v850 = vadd.f32 %v684, %v822
        %v851 = vadd.f32 %v689, %v827
        %v852 = vadd.f32 %v692, %v830
        %v853 = vadd.f32 %v697, %v835
        %v854 = vadd.f32 %v700, %v838
        %v855 = vadd.f32 %v705, %v843
        %v856 = vadd.f32 %v708, %v846
        %v857 = vld [vmem:[%s348] sm:$0xf]
        %v858 = vld [vmem:[%s348 + $0x4] sm:$0x1]
        %v859 = vld [vmem:[%s348 + $0x8] sm:$0xf]
        %v860 = vld [vmem:[%s348 + $0xc] sm:$0x1]
        %v861 = vld [vmem:[%s348 + $0x10] sm:$0xf]
        %v862 = vld [vmem:[%s348 + $0x14] sm:$0x1]
        %v863 = vld [vmem:[%s348 + $0x18] sm:$0xf]
        %v864 = vld [vmem:[%s348 + $0x1c] sm:$0x1]
        %v865 = vld [vmem:[%s348 + $0x20] sm:$0xf]
        %v866 = vld [vmem:[%s348 + $0x24] sm:$0x1]
        %v867 = vld [vmem:[%s348 + $0x28] sm:$0xf]
        %v868 = vld [vmem:[%s348 + $0x2c] sm:$0x1]
        %v869 = vld [vmem:[%s348 + $0x30] sm:$0xf]
        %v870 = vld [vmem:[%s348 + $0x34] sm:$0x1]
        %v871 = vld [vmem:[%s348 + $0x38] sm:$0xf]
        %v872 = vld [vmem:[%s348 + $0x3c] sm:$0x1]
        %v881 = vunpack.c.l.b16 %v857
        %v882 = vunpack.c.l.b16 %v859
        %v883 = vunpack.c.l.b16 %v861
        %v884 = vunpack.c.l.b16 %v863
        %v885 = vunpack.c.l.b16 %v865
        %v886 = vunpack.c.l.b16 %v867
        %v887 = vunpack.c.l.b16 %v869
        %v888 = vunpack.c.l.b16 %v871
        %v889 = vpack.c.b16 %v882, %v881
        %v890 = vpack.c.b16 %v884, %v883
        %v891 = vpack.c.b16 %v886, %v885
        %v892 = vpack.c.b16 %v888, %v887
        %v895 = vunpack.c.l.b16 %v369
        %v896 = vunpack.c.l.b16 %v370
        %v897 = vpack.c.b16 %v896, %v895
        %v900 = vsel %vm530, %v889, 0
        %v903 = vsel %vm530, %v890, 0
        %v906 = vsel %vm530, %v891, 0
        %v909 = vsel %vm530, %v892, 0
        %911 = vmatprep.subr.bf16.mxu0 0
        %912 = vmatpush1.bf16.msra.mxu0 0
        %913 = vmatprep.subr.bf16.mxu0 0
        %914 = vmatpush1.bf16.msra.mxu0 0
        %915 = vmatprep.subr.bf16.mxu0 0
        %916 = vmatpush1.bf16.msra.mxu0 0
        %917 = vmatprep.subr.bf16.mxu0 0
        %918 = vmatpush1.bf16.msra.mxu0 0
        %919 = vmatprep.subr.bf16.mxu0 0
        %920 = vmatpush1.bf16.msra.mxu0 0
        %921 = vmatprep.subr.bf16.mxu0 0
        %922 = vmatpush1.bf16.msra.mxu0 0
        %923 = vmatprep.subr.bf16.mxu0 0
        %924 = vmatpush1.bf16.msra.mxu0 0
        %925 = vmatprep.subr.bf16.mxu0 0
        %926 = vmatpush1.bf16.msra.mxu0 %v897
        %927 = vmatprep.subr.bf16.mxu0 0
        %928 = vmatpush2.bf16.msra.mxu0 0
        %929 = vmatprep.subr.bf16.mxu0 0
        %930 = vmatpush2.bf16.msra.mxu0 0
        %931 = vmatprep.subr.bf16.mxu0 0
        %932 = vmatpush2.bf16.msra.mxu0 0
        %933 = vmatprep.subr.bf16.mxu0 0
        %934 = vmatpush2.bf16.msra.mxu0 0
        %935 = vmatprep.subr.bf16.mxu0 0
        %936 = vmatpush2.bf16.msra.mxu0 0
        %937 = vmatprep.subr.bf16.mxu0 0
        %938 = vmatpush2.bf16.msra.mxu0 0
        %939 = vmatprep.subr.bf16.mxu0 0
        %940 = vmatpush2.bf16.msra.mxu0 0
        %941 = vmatprep.subr.bf16.mxu0 0
        %942 = vmatpush2.bf16.msra.mxu0 0
        %943 = vmatprep.mubr.bf16.mxu0 0
        %944 = vmatmul.mubr.bf16.gmra.mxu0 %v900
        %v945 = vpop.f32.mrf.mxu0
        %v946 = vadd.f32 0.0, %v945
        %v947 = vpop.f32.mrf.mxu0
        %v948 = vpop.f32.mrf.mxu0
        %v949 = vadd.f32 0.0, %v948
        %v950 = vpop.f32.mrf.mxu0
        %951 = vmatprep.mubr.bf16.mxu0 0
        %952 = vmatmul.mubr.bf16.gmra.mxu0 %v903
        %v953 = vpop.f32.mrf.mxu0
        %v954 = vadd.f32 0.0, %v953
        %v955 = vpop.f32.mrf.mxu0
        %v956 = vpop.f32.mrf.mxu0
        %v957 = vadd.f32 0.0, %v956
        %v958 = vpop.f32.mrf.mxu0
        %959 = vmatprep.mubr.bf16.mxu0 0
        %960 = vmatmul.mubr.bf16.gmra.mxu0 %v906
        %v961 = vpop.f32.mrf.mxu0
        %v962 = vadd.f32 0.0, %v961
        %v963 = vpop.f32.mrf.mxu0
        %v964 = vpop.f32.mrf.mxu0
        %v965 = vadd.f32 0.0, %v964
        %v966 = vpop.f32.mrf.mxu0
        %967 = vmatprep.mubr.bf16.mxu0 0
        %968 = vmatmul.mubr.bf16.gmra.mxu0 %v909
        %v969 = vpop.f32.mrf.mxu0
        %v970 = vadd.f32 0.0, %v969
        %v971 = vpop.f32.mrf.mxu0
        %v972 = vpop.f32.mrf.mxu0
        %v973 = vadd.f32 0.0, %v972
        %v974 = vpop.f32.mrf.mxu0
        %975 = vdwg.mxu0
        %v976 = vadd.f32 %v849, %v946
        %v977 = vadd.f32 %v850, %v949
        %v978 = vadd.f32 %v851, %v954
        %v979 = vadd.f32 %v852, %v957
        %v980 = vadd.f32 %v853, %v962
        %v981 = vadd.f32 %v854, %v965
        %v982 = vadd.f32 %v855, %v970
        %v983 = vadd.f32 %v856, %v973
        %v985 = vshrl.u32 %v857, 16
        %v987 = vrot.slane %v985, 4
        %v988 = vshll.u32 %v857, 16
        %v990 = vrot.slane %v988, 5
        %v991 = vor.u32 %v987, %v990
        %v992 = vrot.slane %v991, 4
        %v994 = vshll.u32 %v858, 16
        %v996 = vrot.slane %v994, 5
        %v997 = vsel %vm399, %v992, %v996
        %v999 = vshrl.u32 %v859, 16
        %v1001 = vrot.slane %v999, 4
        %v1002 = vshll.u32 %v859, 16
        %v1004 = vrot.slane %v1002, 5
        %v1005 = vor.u32 %v1001, %v1004
        %v1006 = vrot.slane %v1005, 4
        %v1008 = vshll.u32 %v860, 16
        %v1010 = vrot.slane %v1008, 5
        %v1011 = vsel %vm399, %v1006, %v1010
        %v1013 = vshrl.u32 %v861, 16
        %v1015 = vrot.slane %v1013, 4
        %v1016 = vshll.u32 %v861, 16
        %v1018 = vrot.slane %v1016, 5
        %v1019 = vor.u32 %v1015, %v1018
        %v1020 = vrot.slane %v1019, 4
        %v1022 = vshll.u32 %v862, 16
        %v1024 = vrot.slane %v1022, 5
        %v1025 = vsel %vm399, %v1020, %v1024
        %v1027 = vshrl.u32 %v863, 16
        %v1029 = vrot.slane %v1027, 4
        %v1030 = vshll.u32 %v863, 16
        %v1032 = vrot.slane %v1030, 5
        %v1033 = vor.u32 %v1029, %v1032
        %v1034 = vrot.slane %v1033, 4
        %v1036 = vshll.u32 %v864, 16
        %v1038 = vrot.slane %v1036, 5
        %v1039 = vsel %vm399, %v1034, %v1038
        %v1041 = vshrl.u32 %v865, 16
        %v1043 = vrot.slane %v1041, 4
        %v1044 = vshll.u32 %v865, 16
        %v1046 = vrot.slane %v1044, 5
        %v1047 = vor.u32 %v1043, %v1046
        %v1048 = vrot.slane %v1047, 4
        %v1050 = vshll.u32 %v866, 16
        %v1052 = vrot.slane %v1050, 5
        %v1053 = vsel %vm399, %v1048, %v1052
        %v1055 = vshrl.u32 %v867, 16
        %v1057 = vrot.slane %v1055, 4
        %v1058 = vshll.u32 %v867, 16
        %v1060 = vrot.slane %v1058, 5
        %v1061 = vor.u32 %v1057, %v1060
        %v1062 = vrot.slane %v1061, 4
        %v1064 = vshll.u32 %v868, 16
        %v1066 = vrot.slane %v1064, 5
        %v1067 = vsel %vm399, %v1062, %v1066
        %v1069 = vshrl.u32 %v869, 16
        %v1071 = vrot.slane %v1069, 4
        %v1072 = vshll.u32 %v869, 16
        %v1074 = vrot.slane %v1072, 5
        %v1075 = vor.u32 %v1071, %v1074
        %v1076 = vrot.slane %v1075, 4
        %v1078 = vshll.u32 %v870, 16
        %v1080 = vrot.slane %v1078, 5
        %v1081 = vsel %vm399, %v1076, %v1080
        %v1083 = vshrl.u32 %v871, 16
        %v1085 = vrot.slane %v1083, 4
        %v1086 = vshll.u32 %v871, 16
        %v1088 = vrot.slane %v1086, 5
        %v1089 = vor.u32 %v1085, %v1088
        %v1090 = vrot.slane %v1089, 4
        %v1092 = vshll.u32 %v872, 16
        %v1094 = vrot.slane %v1092, 5
        %v1095 = vsel %vm399, %v1090, %v1094
        %v1096 = vunpack.c.l.b16 %v997
        %v1097 = vunpack.c.l.b16 %v1011
        %v1098 = vunpack.c.l.b16 %v1025
        %v1099 = vunpack.c.l.b16 %v1039
        %v1100 = vunpack.c.l.b16 %v1053
        %v1101 = vunpack.c.l.b16 %v1067
        %v1102 = vunpack.c.l.b16 %v1081
        %v1103 = vunpack.c.l.b16 %v1095
        %v1104 = vpack.c.b16 %v1097, %v1096
        %v1105 = vpack.c.b16 %v1099, %v1098
        %v1106 = vpack.c.b16 %v1101, %v1100
        %v1107 = vpack.c.b16 %v1103, %v1102
        %v1110 = vunpack.c.l.b16 %v371
        %v1111 = vunpack.c.l.b16 %v372
        %v1112 = vpack.c.b16 %v1111, %v1110
        %v1115 = vsel %vm530, %v1104, 0
        %v1118 = vsel %vm530, %v1105, 0
        %v1121 = vsel %vm530, %v1106, 0
        %v1124 = vsel %vm530, %v1107, 0
        %1126 = vmatprep.subr.bf16.mxu0 0
        %1127 = vmatpush1.bf16.msra.mxu0 0
        %1128 = vmatprep.subr.bf16.mxu0 0
        %1129 = vmatpush1.bf16.msra.mxu0 0
        %1130 = vmatprep.subr.bf16.mxu0 0
        %1131 = vmatpush1.bf16.msra.mxu0 0
        %1132 = vmatprep.subr.bf16.mxu0 0
        %1133 = vmatpush1.bf16.msra.mxu0 0
        %1134 = vmatprep.subr.bf16.mxu0 0
        %1135 = vmatpush1.bf16.msra.mxu0 0
        %1136 = vmatprep.subr.bf16.mxu0 0
        %1137 = vmatpush1.bf16.msra.mxu0 0
        %1138 = vmatprep.subr.bf16.mxu0 0
        %1139 = vmatpush1.bf16.msra.mxu0 0
        %1140 = vmatprep.subr.bf16.mxu0 0
        %1141 = vmatpush1.bf16.msra.mxu0 %v1112
        %1142 = vmatprep.subr.bf16.mxu0 0
        %1143 = vmatpush2.bf16.msra.mxu0 0
        %1144 = vmatprep.subr.bf16.mxu0 0
        %1145 = vmatpush2.bf16.msra.mxu0 0
        %1146 = vmatprep.subr.bf16.mxu0 0
        %1147 = vmatpush2.bf16.msra.mxu0 0
        %1148 = vmatprep.subr.bf16.mxu0 0
        %1149 = vmatpush2.bf16.msra.mxu0 0
        %1150 = vmatprep.subr.bf16.mxu0 0
        %1151 = vmatpush2.bf16.msra.mxu0 0
        %1152 = vmatprep.subr.bf16.mxu0 0
        %1153 = vmatpush2.bf16.msra.mxu0 0
        %1154 = vmatprep.subr.bf16.mxu0 0
        %1155 = vmatpush2.bf16.msra.mxu0 0
        %1156 = vmatprep.subr.bf16.mxu0 0
        %1157 = vmatpush2.bf16.msra.mxu0 0
        %1158 = vmatprep.mubr.bf16.mxu0 0
        %1159 = vmatmul.mubr.bf16.gmra.mxu0 %v1115
        %v1160 = vpop.f32.mrf.mxu0
        %v1161 = vadd.f32 0.0, %v1160
        %v1162 = vpop.f32.mrf.mxu0
        %v1163 = vpop.f32.mrf.mxu0
        %v1164 = vadd.f32 0.0, %v1163
        %v1165 = vpop.f32.mrf.mxu0
        %1166 = vmatprep.mubr.bf16.mxu0 0
        %1167 = vmatmul.mubr.bf16.gmra.mxu0 %v1118
        %v1168 = vpop.f32.mrf.mxu0
        %v1169 = vadd.f32 0.0, %v1168
        %v1170 = vpop.f32.mrf.mxu0
        %v1171 = vpop.f32.mrf.mxu0
        %v1172 = vadd.f32 0.0, %v1171
        %v1173 = vpop.f32.mrf.mxu0
        %1174 = vmatprep.mubr.bf16.mxu0 0
        %1175 = vmatmul.mubr.bf16.gmra.mxu0 %v1121
        %v1176 = vpop.f32.mrf.mxu0
        %v1177 = vadd.f32 0.0, %v1176
        %v1178 = vpop.f32.mrf.mxu0
        %v1179 = vpop.f32.mrf.mxu0
        %v1180 = vadd.f32 0.0, %v1179
        %v1181 = vpop.f32.mrf.mxu0
        %1182 = vmatprep.mubr.bf16.mxu0 0
        %1183 = vmatmul.mubr.bf16.gmra.mxu0 %v1124
        %v1184 = vpop.f32.mrf.mxu0
        %v1185 = vadd.f32 0.0, %v1184
        %v1186 = vpop.f32.mrf.mxu0
        %v1187 = vpop.f32.mrf.mxu0
        %v1188 = vadd.f32 0.0, %v1187
        %v1189 = vpop.f32.mrf.mxu0
        %1190 = vdwg.mxu0
        %v1191 = vadd.f32 %v976, %v1161
        %v1192 = vadd.f32 %v977, %v1164
        %v1193 = vadd.f32 %v978, %v1169
        %v1194 = vadd.f32 %v979, %v1172
        %v1195 = vadd.f32 %v980, %v1177
        %v1196 = vadd.f32 %v981, %v1180
        %v1197 = vadd.f32 %v982, %v1185
        %v1198 = vadd.f32 %v983, %v1188
        %v1207 = vrot.slane %v857, 5
        %v1208 = vrot.slane %v1207, 4
        %v1209 = vrot.slane %v858, 5
        %v1210 = vsel %vm721, %v1208, %v1209
        %v1211 = vrot.slane %v859, 5
        %v1212 = vrot.slane %v1211, 4
        %v1213 = vrot.slane %v860, 5
        %v1214 = vsel %vm721, %v1212, %v1213
        %v1215 = vrot.slane %v861, 5
        %v1216 = vrot.slane %v1215, 4
        %v1217 = vrot.slane %v862, 5
        %v1218 = vsel %vm721, %v1216, %v1217
        %v1219 = vrot.slane %v863, 5
        %v1220 = vrot.slane %v1219, 4
        %v1221 = vrot.slane %v864, 5
        %v1222 = vsel %vm721, %v1220, %v1221
        %v1223 = vrot.slane %v865, 5
        %v1224 = vrot.slane %v1223, 4
        %v1225 = vrot.slane %v866, 5
        %v1226 = vsel %vm721, %v1224, %v1225
        %v1227 = vrot.slane %v867, 5
        %v1228 = vrot.slane %v1227, 4
        %v1229 = vrot.slane %v868, 5
        %v1230 = vsel %vm721, %v1228, %v1229
        %v1231 = vrot.slane %v869, 5
        %v1232 = vrot.slane %v1231, 4
        %v1233 = vrot.slane %v870, 5
        %v1234 = vsel %vm721, %v1232, %v1233
        %v1235 = vrot.slane %v871, 5
        %v1236 = vrot.slane %v1235, 4
        %v1237 = vrot.slane %v872, 5
        %v1238 = vsel %vm721, %v1236, %v1237
        %v1239 = vunpack.c.l.b16 %v1210
        %v1240 = vunpack.c.l.b16 %v1214
        %v1241 = vunpack.c.l.b16 %v1218
        %v1242 = vunpack.c.l.b16 %v1222
        %v1243 = vunpack.c.l.b16 %v1226
        %v1244 = vunpack.c.l.b16 %v1230
        %v1245 = vunpack.c.l.b16 %v1234
        %v1246 = vunpack.c.l.b16 %v1238
        %v1247 = vpack.c.b16 %v1240, %v1239
        %v1248 = vpack.c.b16 %v1242, %v1241
        %v1249 = vpack.c.b16 %v1244, %v1243
        %v1250 = vpack.c.b16 %v1246, %v1245
        %v1253 = vunpack.c.l.b16 %v373
        %v1254 = vunpack.c.l.b16 %v374
        %v1255 = vpack.c.b16 %v1254, %v1253
        %v1258 = vsel %vm530, %v1247, 0
        %v1261 = vsel %vm530, %v1248, 0
        %v1264 = vsel %vm530, %v1249, 0
        %v1267 = vsel %vm530, %v1250, 0
        %1269 = vmatprep.subr.bf16.mxu0 0
        %1270 = vmatpush1.bf16.msra.mxu0 0
        %1271 = vmatprep.subr.bf16.mxu0 0
        %1272 = vmatpush1.bf16.msra.mxu0 0
        %1273 = vmatprep.subr.bf16.mxu0 0
        %1274 = vmatpush1.bf16.msra.mxu0 0
        %1275 = vmatprep.subr.bf16.mxu0 0
        %1276 = vmatpush1.bf16.msra.mxu0 0
        %1277 = vmatprep.subr.bf16.mxu0 0
        %1278 = vmatpush1.bf16.msra.mxu0 0
        %1279 = vmatprep.subr.bf16.mxu0 0
        %1280 = vmatpush1.bf16.msra.mxu0 0
        %1281 = vmatprep.subr.bf16.mxu0 0
        %1282 = vmatpush1.bf16.msra.mxu0 0
        %1283 = vmatprep.subr.bf16.mxu0 0
        %1284 = vmatpush1.bf16.msra.mxu0 %v1255
        %1285 = vmatprep.subr.bf16.mxu0 0
        %1286 = vmatpush2.bf16.msra.mxu0 0
        %1287 = vmatprep.subr.bf16.mxu0 0
        %1288 = vmatpush2.bf16.msra.mxu0 0
        %1289 = vmatprep.subr.bf16.mxu0 0
        %1290 = vmatpush2.bf16.msra.mxu0 0
        %1291 = vmatprep.subr.bf16.mxu0 0
        %1292 = vmatpush2.bf16.msra.mxu0 0
        %1293 = vmatprep.subr.bf16.mxu0 0
        %1294 = vmatpush2.bf16.msra.mxu0 0
        %1295 = vmatprep.subr.bf16.mxu0 0
        %1296 = vmatpush2.bf16.msra.mxu0 0
        %1297 = vmatprep.subr.bf16.mxu0 0
        %1298 = vmatpush2.bf16.msra.mxu0 0
        %1299 = vmatprep.subr.bf16.mxu0 0
        %1300 = vmatpush2.bf16.msra.mxu0 0
        %1301 = vmatprep.mubr.bf16.mxu0 0
        %1302 = vmatmul.mubr.bf16.gmra.mxu0 %v1258
        %v1303 = vpop.f32.mrf.mxu0
        %v1304 = vadd.f32 0.0, %v1303
        %v1305 = vpop.f32.mrf.mxu0
        %v1306 = vpop.f32.mrf.mxu0
        %v1307 = vadd.f32 0.0, %v1306
        %v1308 = vpop.f32.mrf.mxu0
        %1309 = vmatprep.mubr.bf16.mxu0 0
        %1310 = vmatmul.mubr.bf16.gmra.mxu0 %v1261
        %v1311 = vpop.f32.mrf.mxu0
        %v1312 = vadd.f32 0.0, %v1311
        %v1313 = vpop.f32.mrf.mxu0
        %v1314 = vpop.f32.mrf.mxu0
        %v1315 = vadd.f32 0.0, %v1314
        %v1316 = vpop.f32.mrf.mxu0
        %1317 = vmatprep.mubr.bf16.mxu0 0
        %1318 = vmatmul.mubr.bf16.gmra.mxu0 %v1264
        %v1319 = vpop.f32.mrf.mxu0
        %v1320 = vadd.f32 0.0, %v1319
        %v1321 = vpop.f32.mrf.mxu0
        %v1322 = vpop.f32.mrf.mxu0
        %v1323 = vadd.f32 0.0, %v1322
        %v1324 = vpop.f32.mrf.mxu0
        %1325 = vmatprep.mubr.bf16.mxu0 0
        %1326 = vmatmul.mubr.bf16.gmra.mxu0 %v1267
        %v1327 = vpop.f32.mrf.mxu0
        %v1328 = vadd.f32 0.0, %v1327
        %v1329 = vpop.f32.mrf.mxu0
        %v1330 = vpop.f32.mrf.mxu0
        %v1331 = vadd.f32 0.0, %v1330
        %v1332 = vpop.f32.mrf.mxu0
        %1333 = vdwg.mxu0
        %v1334 = vadd.f32 %v1191, %v1304
        %v1335 = vadd.f32 %v1192, %v1307
        %v1336 = vadd.f32 %v1193, %v1312
        %v1337 = vadd.f32 %v1194, %v1315
        %v1338 = vadd.f32 %v1195, %v1320
        %v1339 = vadd.f32 %v1196, %v1323
        %v1340 = vadd.f32 %v1197, %v1328
        %v1341 = vadd.f32 %v1198, %v1331
        %v1342 = vld [vmem:[%s359] sm:$0xf]
        %v1343 = vld [vmem:[%s359 + $0x4] sm:$0x1]
        %v1344 = vld [vmem:[%s359 + $0x8] sm:$0xf]
        %v1345 = vld [vmem:[%s359 + $0xc] sm:$0x1]
        %v1346 = vld [vmem:[%s359 + $0x10] sm:$0xf]
        %v1347 = vld [vmem:[%s359 + $0x14] sm:$0x1]
        %v1348 = vld [vmem:[%s359 + $0x18] sm:$0xf]
        %v1349 = vld [vmem:[%s359 + $0x1c] sm:$0x1]
        %v1350 = vld [vmem:[%s359 + $0x20] sm:$0xf]
        %v1351 = vld [vmem:[%s359 + $0x24] sm:$0x1]
        %v1352 = vld [vmem:[%s359 + $0x28] sm:$0xf]
        %v1353 = vld [vmem:[%s359 + $0x2c] sm:$0x1]
        %v1354 = vld [vmem:[%s359 + $0x30] sm:$0xf]
        %v1355 = vld [vmem:[%s359 + $0x34] sm:$0x1]
        %v1356 = vld [vmem:[%s359 + $0x38] sm:$0xf]
        %v1357 = vld [vmem:[%s359 + $0x3c] sm:$0x1]
        %v1366 = vunpack.c.l.b16 %v1342
        %v1367 = vunpack.c.l.b16 %v1344
        %v1368 = vunpack.c.l.b16 %v1346
        %v1369 = vunpack.c.l.b16 %v1348
        %v1370 = vunpack.c.l.b16 %v1350
        %v1371 = vunpack.c.l.b16 %v1352
        %v1372 = vunpack.c.l.b16 %v1354
        %v1373 = vunpack.c.l.b16 %v1356
        %v1374 = vpack.c.b16 %v1367, %v1366
        %v1375 = vpack.c.b16 %v1369, %v1368
        %v1376 = vpack.c.b16 %v1371, %v1370
        %v1377 = vpack.c.b16 %v1373, %v1372
        %v1380 = vunpack.c.l.b16 %v375
        %v1381 = vunpack.c.l.b16 %v376
        %v1382 = vpack.c.b16 %v1381, %v1380
        %v1385 = vsel %vm530, %v1374, 0
        %v1388 = vsel %vm530, %v1375, 0
        %v1391 = vsel %vm530, %v1376, 0
        %v1394 = vsel %vm530, %v1377, 0
        %1396 = vmatprep.subr.bf16.mxu0 0
        %1397 = vmatpush1.bf16.msra.mxu0 0
        %1398 = vmatprep.subr.bf16.mxu0 0
        %1399 = vmatpush1.bf16.msra.mxu0 0
        %1400 = vmatprep.subr.bf16.mxu0 0
        %1401 = vmatpush1.bf16.msra.mxu0 0
        %1402 = vmatprep.subr.bf16.mxu0 0
        %1403 = vmatpush1.bf16.msra.mxu0 0
        %1404 = vmatprep.subr.bf16.mxu0 0
        %1405 = vmatpush1.bf16.msra.mxu0 0
        %1406 = vmatprep.subr.bf16.mxu0 0
        %1407 = vmatpush1.bf16.msra.mxu0 0
        %1408 = vmatprep.subr.bf16.mxu0 0
        %1409 = vmatpush1.bf16.msra.mxu0 0
        %1410 = vmatprep.subr.bf16.mxu0 0
        %1411 = vmatpush1.bf16.msra.mxu0 %v1382
        %1412 = vmatprep.subr.bf16.mxu0 0
        %1413 = vmatpush2.bf16.msra.mxu0 0
        %1414 = vmatprep.subr.bf16.mxu0 0
        %1415 = vmatpush2.bf16.msra.mxu0 0
        %1416 = vmatprep.subr.bf16.mxu0 0
        %1417 = vmatpush2.bf16.msra.mxu0 0
        %1418 = vmatprep.subr.bf16.mxu0 0
        %1419 = vmatpush2.bf16.msra.mxu0 0
        %1420 = vmatprep.subr.bf16.mxu0 0
        %1421 = vmatpush2.bf16.msra.mxu0 0
        %1422 = vmatprep.subr.bf16.mxu0 0
        %1423 = vmatpush2.bf16.msra.mxu0 0
        %1424 = vmatprep.subr.bf16.mxu0 0
        %1425 = vmatpush2.bf16.msra.mxu0 0
        %1426 = vmatprep.subr.bf16.mxu0 0
        %1427 = vmatpush2.bf16.msra.mxu0 0
        %1428 = vmatprep.mubr.bf16.mxu0 0
        %1429 = vmatmul.mubr.bf16.gmra.mxu0 %v1385
        %v1430 = vpop.f32.mrf.mxu0
        %v1431 = vadd.f32 0.0, %v1430
        %v1432 = vpop.f32.mrf.mxu0
        %v1433 = vpop.f32.mrf.mxu0
        %v1434 = vadd.f32 0.0, %v1433
        %v1435 = vpop.f32.mrf.mxu0
        %1436 = vmatprep.mubr.bf16.mxu0 0
        %1437 = vmatmul.mubr.bf16.gmra.mxu0 %v1388
        %v1438 = vpop.f32.mrf.mxu0
        %v1439 = vadd.f32 0.0, %v1438
        %v1440 = vpop.f32.mrf.mxu0
        %v1441 = vpop.f32.mrf.mxu0
        %v1442 = vadd.f32 0.0, %v1441
        %v1443 = vpop.f32.mrf.mxu0
        %1444 = vmatprep.mubr.bf16.mxu0 0
        %1445 = vmatmul.mubr.bf16.gmra.mxu0 %v1391
        %v1446 = vpop.f32.mrf.mxu0
        %v1447 = vadd.f32 0.0, %v1446
        %v1448 = vpop.f32.mrf.mxu0
        %v1449 = vpop.f32.mrf.mxu0
        %v1450 = vadd.f32 0.0, %v1449
        %v1451 = vpop.f32.mrf.mxu0
        %1452 = vmatprep.mubr.bf16.mxu0 0
        %1453 = vmatmul.mubr.bf16.gmra.mxu0 %v1394
        %v1454 = vpop.f32.mrf.mxu0
        %v1455 = vadd.f32 0.0, %v1454
        %v1456 = vpop.f32.mrf.mxu0
        %v1457 = vpop.f32.mrf.mxu0
        %v1458 = vadd.f32 0.0, %v1457
        %v1459 = vpop.f32.mrf.mxu0
        %1460 = vdwg.mxu0
        %v1461 = vadd.f32 %v1334, %v1431
        %v1462 = vadd.f32 %v1335, %v1434
        %v1463 = vadd.f32 %v1336, %v1439
        %v1464 = vadd.f32 %v1337, %v1442
        %v1465 = vadd.f32 %v1338, %v1447
        %v1466 = vadd.f32 %v1339, %v1450
        %v1467 = vadd.f32 %v1340, %v1455
        %v1468 = vadd.f32 %v1341, %v1458
        %v1470 = vshrl.u32 %v1342, 16
        %v1472 = vrot.slane %v1470, 4
        %v1473 = vshll.u32 %v1342, 16
        %v1475 = vrot.slane %v1473, 5
        %v1476 = vor.u32 %v1472, %v1475
        %v1477 = vrot.slane %v1476, 4
        %v1479 = vshll.u32 %v1343, 16
        %v1481 = vrot.slane %v1479, 5
        %v1482 = vsel %vm399, %v1477, %v1481
        %v1484 = vshrl.u32 %v1344, 16
        %v1486 = vrot.slane %v1484, 4
        %v1487 = vshll.u32 %v1344, 16
        %v1489 = vrot.slane %v1487, 5
        %v1490 = vor.u32 %v1486, %v1489
        %v1491 = vrot.slane %v1490, 4
        %v1493 = vshll.u32 %v1345, 16
        %v1495 = vrot.slane %v1493, 5
        %v1496 = vsel %vm399, %v1491, %v1495
        %v1498 = vshrl.u32 %v1346, 16
        %v1500 = vrot.slane %v1498, 4
        %v1501 = vshll.u32 %v1346, 16
        %v1503 = vrot.slane %v1501, 5
        %v1504 = vor.u32 %v1500, %v1503
        %v1505 = vrot.slane %v1504, 4
        %v1507 = vshll.u32 %v1347, 16
        %v1509 = vrot.slane %v1507, 5
        %v1510 = vsel %vm399, %v1505, %v1509
        %v1512 = vshrl.u32 %v1348, 16
        %v1514 = vrot.slane %v1512, 4
        %v1515 = vshll.u32 %v1348, 16
        %v1517 = vrot.slane %v1515, 5
        %v1518 = vor.u32 %v1514, %v1517
        %v1519 = vrot.slane %v1518, 4
        %v1521 = vshll.u32 %v1349, 16
        %v1523 = vrot.slane %v1521, 5
        %v1524 = vsel %vm399, %v1519, %v1523
        %v1526 = vshrl.u32 %v1350, 16
        %v1528 = vrot.slane %v1526, 4
        %v1529 = vshll.u32 %v1350, 16
        %v1531 = vrot.slane %v1529, 5
        %v1532 = vor.u32 %v1528, %v1531
        %v1533 = vrot.slane %v1532, 4
        %v1535 = vshll.u32 %v1351, 16
        %v1537 = vrot.slane %v1535, 5
        %v1538 = vsel %vm399, %v1533, %v1537
        %v1540 = vshrl.u32 %v1352, 16
        %v1542 = vrot.slane %v1540, 4
        %v1543 = vshll.u32 %v1352, 16
        %v1545 = vrot.slane %v1543, 5
        %v1546 = vor.u32 %v1542, %v1545
        %v1547 = vrot.slane %v1546, 4
        %v1549 = vshll.u32 %v1353, 16
        %v1551 = vrot.slane %v1549, 5
        %v1552 = vsel %vm399, %v1547, %v1551
        %v1554 = vshrl.u32 %v1354, 16
        %v1556 = vrot.slane %v1554, 4
        %v1557 = vshll.u32 %v1354, 16
        %v1559 = vrot.slane %v1557, 5
        %v1560 = vor.u32 %v1556, %v1559
        %v1561 = vrot.slane %v1560, 4
        %v1563 = vshll.u32 %v1355, 16
        %v1565 = vrot.slane %v1563, 5
        %v1566 = vsel %vm399, %v1561, %v1565
        %v1568 = vshrl.u32 %v1356, 16
        %v1570 = vrot.slane %v1568, 4
        %v1571 = vshll.u32 %v1356, 16
        %v1573 = vrot.slane %v1571, 5
        %v1574 = vor.u32 %v1570, %v1573
        %v1575 = vrot.slane %v1574, 4
        %v1577 = vshll.u32 %v1357, 16
        %v1579 = vrot.slane %v1577, 5
        %v1580 = vsel %vm399, %v1575, %v1579
        %v1581 = vunpack.c.l.b16 %v1482
        %v1582 = vunpack.c.l.b16 %v1496
        %v1583 = vunpack.c.l.b16 %v1510
        %v1584 = vunpack.c.l.b16 %v1524
        %v1585 = vunpack.c.l.b16 %v1538
        %v1586 = vunpack.c.l.b16 %v1552
        %v1587 = vunpack.c.l.b16 %v1566
        %v1588 = vunpack.c.l.b16 %v1580
        %v1589 = vpack.c.b16 %v1582, %v1581
        %v1590 = vpack.c.b16 %v1584, %v1583
        %v1591 = vpack.c.b16 %v1586, %v1585
        %v1592 = vpack.c.b16 %v1588, %v1587
        %v1595 = vunpack.c.l.b16 %v377
        %v1596 = vunpack.c.l.b16 %v378
        %v1597 = vpack.c.b16 %v1596, %v1595
        %v1600 = vsel %vm530, %v1589, 0
        %v1603 = vsel %vm530, %v1590, 0
        %v1606 = vsel %vm530, %v1591, 0
        %v1609 = vsel %vm530, %v1592, 0
        %1611 = vmatprep.subr.bf16.mxu0 0
        %1612 = vmatpush1.bf16.msra.mxu0 0
        %1613 = vmatprep.subr.bf16.mxu0 0
        %1614 = vmatpush1.bf16.msra.mxu0 0
        %1615 = vmatprep.subr.bf16.mxu0 0
        %1616 = vmatpush1.bf16.msra.mxu0 0
        %1617 = vmatprep.subr.bf16.mxu0 0
        %1618 = vmatpush1.bf16.msra.mxu0 0
        %1619 = vmatprep.subr.bf16.mxu0 0
        %1620 = vmatpush1.bf16.msra.mxu0 0
        %1621 = vmatprep.subr.bf16.mxu0 0
        %1622 = vmatpush1.bf16.msra.mxu0 0
        %1623 = vmatprep.subr.bf16.mxu0 0
        %1624 = vmatpush1.bf16.msra.mxu0 0
        %1625 = vmatprep.subr.bf16.mxu0 0
        %1626 = vmatpush1.bf16.msra.mxu0 %v1597
        %1627 = vmatprep.subr.bf16.mxu0 0
        %1628 = vmatpush2.bf16.msra.mxu0 0
        %1629 = vmatprep.subr.bf16.mxu0 0
        %1630 = vmatpush2.bf16.msra.mxu0 0
        %1631 = vmatprep.subr.bf16.mxu0 0
        %1632 = vmatpush2.bf16.msra.mxu0 0
        %1633 = vmatprep.subr.bf16.mxu0 0
        %1634 = vmatpush2.bf16.msra.mxu0 0
        %1635 = vmatprep.subr.bf16.mxu0 0
        %1636 = vmatpush2.bf16.msra.mxu0 0
        %1637 = vmatprep.subr.bf16.mxu0 0
        %1638 = vmatpush2.bf16.msra.mxu0 0
        %1639 = vmatprep.subr.bf16.mxu0 0
        %1640 = vmatpush2.bf16.msra.mxu0 0
        %1641 = vmatprep.subr.bf16.mxu0 0
        %1642 = vmatpush2.bf16.msra.mxu0 0
        %1643 = vmatprep.mubr.bf16.mxu0 0
        %1644 = vmatmul.mubr.bf16.gmra.mxu0 %v1600
        %v1645 = vpop.f32.mrf.mxu0
        %v1646 = vadd.f32 0.0, %v1645
        %v1647 = vpop.f32.mrf.mxu0
        %v1648 = vpop.f32.mrf.mxu0
        %v1649 = vadd.f32 0.0, %v1648
        %v1650 = vpop.f32.mrf.mxu0
        %1651 = vmatprep.mubr.bf16.mxu0 0
        %1652 = vmatmul.mubr.bf16.gmra.mxu0 %v1603
        %v1653 = vpop.f32.mrf.mxu0
        %v1654 = vadd.f32 0.0, %v1653
        %v1655 = vpop.f32.mrf.mxu0
        %v1656 = vpop.f32.mrf.mxu0
        %v1657 = vadd.f32 0.0, %v1656
        %v1658 = vpop.f32.mrf.mxu0
        %1659 = vmatprep.mubr.bf16.mxu0 0
        %1660 = vmatmul.mubr.bf16.gmra.mxu0 %v1606
        %v1661 = vpop.f32.mrf.mxu0
        %v1662 = vadd.f32 0.0, %v1661
        %v1663 = vpop.f32.mrf.mxu0
        %v1664 = vpop.f32.mrf.mxu0
        %v1665 = vadd.f32 0.0, %v1664
        %v1666 = vpop.f32.mrf.mxu0
        %1667 = vmatprep.mubr.bf16.mxu0 0
        %1668 = vmatmul.mubr.bf16.gmra.mxu0 %v1609
        %v1669 = vpop.f32.mrf.mxu0
        %v1670 = vadd.f32 0.0, %v1669
        %v1671 = vpop.f32.mrf.mxu0
        %v1672 = vpop.f32.mrf.mxu0
        %v1673 = vadd.f32 0.0, %v1672
        %v1674 = vpop.f32.mrf.mxu0
        %1675 = vdwg.mxu0
        %v1676 = vadd.f32 %v1461, %v1646
        %v1677 = vadd.f32 %v1462, %v1649
        %v1678 = vadd.f32 %v1463, %v1654
        %v1679 = vadd.f32 %v1464, %v1657
        %v1680 = vadd.f32 %v1465, %v1662
        %v1681 = vadd.f32 %v1466, %v1665
        %v1682 = vadd.f32 %v1467, %v1670
        %v1683 = vadd.f32 %v1468, %v1673
        %v1692 = vrot.slane %v1342, 5
        %v1693 = vrot.slane %v1692, 4
        %v1694 = vrot.slane %v1343, 5
        %v1695 = vsel %vm721, %v1693, %v1694
        %v1696 = vrot.slane %v1344, 5
        %v1697 = vrot.slane %v1696, 4
        %v1698 = vrot.slane %v1345, 5
        %v1699 = vsel %vm721, %v1697, %v1698
        %v1700 = vrot.slane %v1346, 5
        %v1701 = vrot.slane %v1700, 4
        %v1702 = vrot.slane %v1347, 5
        %v1703 = vsel %vm721, %v1701, %v1702
        %v1704 = vrot.slane %v1348, 5
        %v1705 = vrot.slane %v1704, 4
        %v1706 = vrot.slane %v1349, 5
        %v1707 = vsel %vm721, %v1705, %v1706
        %v1708 = vrot.slane %v1350, 5
        %v1709 = vrot.slane %v1708, 4
        %v1710 = vrot.slane %v1351, 5
        %v1711 = vsel %vm721, %v1709, %v1710
        %v1712 = vrot.slane %v1352, 5
        %v1713 = vrot.slane %v1712, 4
        %v1714 = vrot.slane %v1353, 5
        %v1715 = vsel %vm721, %v1713, %v1714
        %v1716 = vrot.slane %v1354, 5
        %v1717 = vrot.slane %v1716, 4
        %v1718 = vrot.slane %v1355, 5
        %v1719 = vsel %vm721, %v1717, %v1718
        %v1720 = vrot.slane %v1356, 5
        %v1721 = vrot.slane %v1720, 4
        %v1722 = vrot.slane %v1357, 5
        %v1723 = vsel %vm721, %v1721, %v1722
        %v1724 = vunpack.c.l.b16 %v1695
        %v1725 = vunpack.c.l.b16 %v1699
        %v1726 = vunpack.c.l.b16 %v1703
        %v1727 = vunpack.c.l.b16 %v1707
        %v1728 = vunpack.c.l.b16 %v1711
        %v1729 = vunpack.c.l.b16 %v1715
        %v1730 = vunpack.c.l.b16 %v1719
        %v1731 = vunpack.c.l.b16 %v1723
        %v1732 = vpack.c.b16 %v1725, %v1724
        %v1733 = vpack.c.b16 %v1727, %v1726
        %v1734 = vpack.c.b16 %v1729, %v1728
        %v1735 = vpack.c.b16 %v1731, %v1730
        %v1738 = vunpack.c.l.b16 %v379
        %v1739 = vunpack.c.l.b16 %v380
        %v1740 = vpack.c.b16 %v1739, %v1738
        %v1743 = vsel %vm530, %v1732, 0
        %v1746 = vsel %vm530, %v1733, 0
        %v1749 = vsel %vm530, %v1734, 0
        %v1752 = vsel %vm530, %v1735, 0
        %1754 = vmatprep.subr.bf16.mxu0 0
        %1755 = vmatpush1.bf16.msra.mxu0 0
        %1756 = vmatprep.subr.bf16.mxu0 0
        %1757 = vmatpush1.bf16.msra.mxu0 0
        %1758 = vmatprep.subr.bf16.mxu0 0
        %1759 = vmatpush1.bf16.msra.mxu0 0
        %1760 = vmatprep.subr.bf16.mxu0 0
        %1761 = vmatpush1.bf16.msra.mxu0 0
        %1762 = vmatprep.subr.bf16.mxu0 0
        %1763 = vmatpush1.bf16.msra.mxu0 0
        %1764 = vmatprep.subr.bf16.mxu0 0
        %1765 = vmatpush1.bf16.msra.mxu0 0
        %1766 = vmatprep.subr.bf16.mxu0 0
        %1767 = vmatpush1.bf16.msra.mxu0 0
        %1768 = vmatprep.subr.bf16.mxu0 0
        %1769 = vmatpush1.bf16.msra.mxu0 %v1740
        %1770 = vmatprep.subr.bf16.mxu0 0
        %1771 = vmatpush2.bf16.msra.mxu0 0
        %1772 = vmatprep.subr.bf16.mxu0 0
        %1773 = vmatpush2.bf16.msra.mxu0 0
        %1774 = vmatprep.subr.bf16.mxu0 0
        %1775 = vmatpush2.bf16.msra.mxu0 0
        %1776 = vmatprep.subr.bf16.mxu0 0
        %1777 = vmatpush2.bf16.msra.mxu0 0
        %1778 = vmatprep.subr.bf16.mxu0 0
        %1779 = vmatpush2.bf16.msra.mxu0 0
        %1780 = vmatprep.subr.bf16.mxu0 0
        %1781 = vmatpush2.bf16.msra.mxu0 0
        %1782 = vmatprep.subr.bf16.mxu0 0
        %1783 = vmatpush2.bf16.msra.mxu0 0
        %1784 = vmatprep.subr.bf16.mxu0 0
        %1785 = vmatpush2.bf16.msra.mxu0 0
        %1786 = vmatprep.mubr.bf16.mxu0 0
        %1787 = vmatmul.mubr.bf16.gmra.mxu0 %v1743
        %v1788 = vpop.f32.mrf.mxu0
        %v1789 = vadd.f32 0.0, %v1788
        %v1790 = vpop.f32.mrf.mxu0
        %v1791 = vpop.f32.mrf.mxu0
        %v1792 = vadd.f32 0.0, %v1791
        %v1793 = vpop.f32.mrf.mxu0
        %1794 = vmatprep.mubr.bf16.mxu0 0
        %1795 = vmatmul.mubr.bf16.gmra.mxu0 %v1746
        %v1796 = vpop.f32.mrf.mxu0
        %v1797 = vadd.f32 0.0, %v1796
        %v1798 = vpop.f32.mrf.mxu0
        %v1799 = vpop.f32.mrf.mxu0
        %v1800 = vadd.f32 0.0, %v1799
        %v1801 = vpop.f32.mrf.mxu0
        %1802 = vmatprep.mubr.bf16.mxu0 0
        %1803 = vmatmul.mubr.bf16.gmra.mxu0 %v1749
        %v1804 = vpop.f32.mrf.mxu0
        %v1805 = vadd.f32 0.0, %v1804
        %v1806 = vpop.f32.mrf.mxu0
        %v1807 = vpop.f32.mrf.mxu0
        %v1808 = vadd.f32 0.0, %v1807
        %v1809 = vpop.f32.mrf.mxu0
        %1810 = vmatprep.mubr.bf16.mxu0 0
        %1811 = vmatmul.mubr.bf16.gmra.mxu0 %v1752
        %v1812 = vpop.f32.mrf.mxu0
        %v1813 = vadd.f32 0.0, %v1812
        %v1814 = vpop.f32.mrf.mxu0
        %v1815 = vpop.f32.mrf.mxu0
        %v1816 = vadd.f32 0.0, %v1815
        %v1817 = vpop.f32.mrf.mxu0
        %1818 = vdwg.mxu0
        %v1819 = vadd.f32 %v1676, %v1789
        %v1820 = vadd.f32 %v1677, %v1792
        %v1821 = vadd.f32 %v1678, %v1797
        %v1822 = vadd.f32 %v1679, %v1800
        %v1823 = vadd.f32 %v1680, %v1805
        %v1824 = vadd.f32 %v1681, %v1808
        %v1825 = vadd.f32 %v1682, %v1813
        %v1826 = vadd.f32 %v1683, %v1816
        %v1827 = vsel %vm530, %v1819, 0.0
        %1828 = vadd.xlane.f32.xlu0 %v1827
        %v1829 = vpop.xlane.xlu0 %1828
        %v1830 = vsel %vm530, %v1820, 0.0
        %1831 = vadd.xlane.f32.xlu0 %v1830
        %v1832 = vpop.xlane.xlu0 %1831
        %v1833 = vsel %vm530, %v1821, 0.0
        %1834 = vadd.xlane.f32.xlu0 %v1833
        %v1835 = vpop.xlane.xlu0 %1834
        %v1836 = vsel %vm530, %v1822, 0.0
        %1837 = vadd.xlane.f32.xlu0 %v1836
        %v1838 = vpop.xlane.xlu0 %1837
        %v1839 = vsel %vm530, %v1823, 0.0
        %1840 = vadd.xlane.f32.xlu0 %v1839
        %v1841 = vpop.xlane.xlu0 %1840
        %v1842 = vsel %vm530, %v1824, 0.0
        %1843 = vadd.xlane.f32.xlu0 %v1842
        %v1844 = vpop.xlane.xlu0 %1843
        %v1845 = vsel %vm530, %v1825, 0.0
        %1846 = vadd.xlane.f32.xlu0 %v1845
        %v1847 = vpop.xlane.xlu0 %1846
        %v1848 = vsel %vm530, %v1826, 0.0
        %1849 = vadd.xlane.f32.xlu0 %v1848
        %v1850 = vpop.xlane.xlu0 %1849
        %v1851 = vrcp.pop 16.0
        %v1852 = vmul.f32 %v1829, %v1851
        %v1853 = vmul.f32 %v1832, %v1851
        %v1854 = vmul.f32 %v1835, %v1851
        %v1855 = vmul.f32 %v1838, %v1851
        %v1856 = vmul.f32 %v1841, %v1851
        %v1857 = vmul.f32 %v1844, %v1851
        %v1858 = vmul.f32 %v1847, %v1851
        %v1859 = vmul.f32 %v1850, %v1851
        %v1860 = vsub.f32 %v1819, %v1852
        %v1861 = vsub.f32 %v1820, %v1853
        %v1862 = vsub.f32 %v1821, %v1854
        %v1863 = vsub.f32 %v1822, %v1855
        %v1864 = vsub.f32 %v1823, %v1856
        %v1865 = vsub.f32 %v1824, %v1857
        %v1866 = vsub.f32 %v1825, %v1858
        %v1867 = vsub.f32 %v1826, %v1859
        %v1868 = vmul.f32 %v1860, %v1860
        %v1869 = vmul.f32 %v1861, %v1861
        %v1870 = vmul.f32 %v1862, %v1862
        %v1871 = vmul.f32 %v1863, %v1863
        %v1872 = vmul.f32 %v1864, %v1864
        %v1873 = vmul.f32 %v1865, %v1865
        %v1874 = vmul.f32 %v1866, %v1866
        %v1875 = vmul.f32 %v1867, %v1867
        %v1876 = vsel %vm530, %v1868, 0.0
        %1877 = vadd.xlane.f32.xlu0 %v1876
        %v1878 = vpop.xlane.xlu0 %1877
        %v1879 = vsel %vm530, %v1869, 0.0
        %1880 = vadd.xlane.f32.xlu0 %v1879
        %v1881 = vpop.xlane.xlu0 %1880
        %v1882 = vsel %vm530, %v1870, 0.0
        %1883 = vadd.xlane.f32.xlu0 %v1882
        %v1884 = vpop.xlane.xlu0 %1883
        %v1885 = vsel %vm530, %v1871, 0.0
        %1886 = vadd.xlane.f32.xlu0 %v1885
        %v1887 = vpop.xlane.xlu0 %1886
        %v1888 = vsel %vm530, %v1872, 0.0
        %1889 = vadd.xlane.f32.xlu0 %v1888
        %v1890 = vpop.xlane.xlu0 %1889
        %v1891 = vsel %vm530, %v1873, 0.0
        %1892 = vadd.xlane.f32.xlu0 %v1891
        %v1893 = vpop.xlane.xlu0 %1892
        %v1894 = vsel %vm530, %v1874, 0.0
        %1895 = vadd.xlane.f32.xlu0 %v1894
        %v1896 = vpop.xlane.xlu0 %1895
        %v1897 = vsel %vm530, %v1875, 0.0
        %1898 = vadd.xlane.f32.xlu0 %v1897
        %v1899 = vpop.xlane.xlu0 %1898
        %v1900 = vmul.f32 %v1878, %v1851
        %v1901 = vmul.f32 %v1881, %v1851
        %v1902 = vmul.f32 %v1884, %v1851
        %v1903 = vmul.f32 %v1887, %v1851
        %v1904 = vmul.f32 %v1890, %v1851
        %v1905 = vmul.f32 %v1893, %v1851
        %v1906 = vmul.f32 %v1896, %v1851
        %v1907 = vmul.f32 %v1899, %v1851
        %v1908 = vadd.f32 %v1900, 1e-06
        %v1909 = vadd.f32 %v1901, 1e-06
        %v1910 = vadd.f32 %v1902, 1e-06
        %v1911 = vadd.f32 %v1903, 1e-06
        %v1912 = vadd.f32 %v1904, 1e-06
        %v1913 = vadd.f32 %v1905, 1e-06
        %v1914 = vadd.f32 %v1906, 1e-06
        %v1915 = vadd.f32 %v1907, 1e-06
        %v1916 = vrsqrt.pop %v1908
        %v1917 = vrsqrt.pop %v1909
        %v1918 = vrsqrt.pop %v1910
        %v1919 = vrsqrt.pop %v1911
        %v1920 = vrsqrt.pop %v1912
        %v1921 = vrsqrt.pop %v1913
        %v1922 = vrsqrt.pop %v1914
        %v1923 = vrsqrt.pop %v1915
        %v1924 = vmul.f32 %v1860, %v1916
        %v1925 = vmul.f32 %v1861, %v1917
        %v1926 = vmul.f32 %v1862, %v1918
        %v1927 = vmul.f32 %v1863, %v1919
        %v1928 = vmul.f32 %v1864, %v1920
        %v1929 = vmul.f32 %v1865, %v1921
        %v1930 = vmul.f32 %v1866, %v1922
        %v1931 = vmul.f32 %v1867, %v1923
        %v1932 = vld [vmem:[%s4] sm:$0x1]
        %v1934 = vlaneseq
        %v1935 = vshrl.u32 %v1934, 7
        %v1936 = vsub.s32 0, %v1935
        %v1937 = vrot.slane %v1932, %v1936
        %v1939 = vmul.f32 %v1924, %v1937
        %v1940 = vmul.f32 %v1925, %v1937
        %v1941 = vmul.f32 %v1926, %v1937
        %v1942 = vmul.f32 %v1927, %v1937
        %v1943 = vmul.f32 %v1928, %v1937
        %v1944 = vmul.f32 %v1929, %v1937
        %v1945 = vmul.f32 %v1930, %v1937
        %v1946 = vmul.f32 %v1931, %v1937
        %v1947 = vld [vmem:[%s5] sm:$0x1]
        %v1949 = vlaneseq
        %v1950 = vshrl.u32 %v1949, 7
        %v1951 = vsub.s32 0, %v1950
        %v1952 = vrot.slane %v1947, %v1951
        %v1954 = vadd.f32 %v1939, %v1952
        %v1955 = vadd.f32 %v1940, %v1952
        %v1956 = vadd.f32 %v1941, %v1952
        %v1957 = vadd.f32 %v1942, %v1952
        %v1958 = vadd.f32 %v1943, %v1952
        %v1959 = vadd.f32 %v1944, %v1952
        %v1960 = vadd.f32 %v1945, %v1952
        %v1961 = vadd.f32 %v1946, %v1952
        %1962 = vst.msk [vmem:[%s327] sm:$0xff] %vm530, %v1954
        %1963 = vst.msk [vmem:[%s327 + $0x8] sm:$0xff] %vm530, %v1955
        %1964 = vst.msk [vmem:[%s327 + $0x10] sm:$0xff] %vm530, %v1956
        %1965 = vst.msk [vmem:[%s327 + $0x18] sm:$0xff] %vm530, %v1957
        %1966 = vst.msk [vmem:[%s327 + $0x20] sm:$0xff] %vm530, %v1958
        %1967 = vst.msk [vmem:[%s327 + $0x28] sm:$0xff] %vm530, %v1959
        %1968 = vst.msk [vmem:[%s327 + $0x30] sm:$0xff] %vm530, %v1960
        %1969 = vst.msk [vmem:[%s327 + $0x38] sm:$0xff] %vm530, %v1961
        %s1970 = sand.u32 %s189, 1
        %s1971 = scalar_lea.sflag [#allocation3], %s1970
        %s1972 = sand.u32 %s189, 1
        %s1973 = smul.addr %s1972, 64
        %s1974 = scalar_lea.vmem [#allocation2], %s1973
        // Predicated region
        $region45: #{sam_v1_image_encoder.45} parent=43 // pred_check
          %p1975 = pneg %p199
        $region46: #{sam_v1_image_encoder.45} parent=43 // pred_check_branch
          %1977 = sbr.rel (%p1975) target = $region48
        $region47: #{sam_v1_image_encoder.45} parent=43 // pred_region
          %s1978 = smul.u32 8, %s25
          %s1980 = ssub.s32 1024, 1024
          %1981 = vsyncadd %s1971, %s1980
          %s1982 = smul.addr %s24, 8
          %s1983 = sadd.s32 %s1978, %s1982
          %s1984 = smul.addr %s1983, 128
          %s1985 = scalar_lea.hbm %s6, %s1984
          %s1986 = sshll.u32 %s1974, 4
          %s1987 = int_to_ptr.vmem [resolvable:$true] %s1986
          %1992 = dma.vmem_to_hbm [thread:$0]  %s1987, 1024, %s1985, %s1971, 128, 128, 8
        $region48: #{sam_v1_image_encoder.45} parent=43 // pred_fallthru
          _
      $region44: #{sam_v1_image_encoder.45} parent=5 // pred_fallthru
        _
      %p1993 = scmp.le.s32.totalorder 2, %s15
      // Predicated region
      $region49: #{sam_v1_image_encoder.45} parent=5 // pred_check
        %p1994 = pneg %p1993
      $region50: #{sam_v1_image_encoder.45} parent=5 // pred_check_branch
        %1996 = sbr.rel (%p1994) target = $region52
      $region51: #{sam_v1_image_encoder.45} parent=5 // pred_region
        %s1997 = ssub.s32 %s15, 2
        // Predicated region
        $region53: #{sam_v1_image_encoder.45} parent=51 // pred_check
          %p1998 = pneg %p205
        $region54: #{sam_v1_image_encoder.45} parent=51 // pred_check_branch
          %2000 = sbr.rel (%p1998) target = $region56
        $region55: #{sam_v1_image_encoder.45} parent=51 // pred_region
          %s2001 = sand.u32 %s190, 1
          %s2002 = scalar_lea.sflag [#allocation3], %s2001
          %s2003 = sand.u32 %s190, 1
          %s2004 = smul.addr %s2003, 64
          %s2005 = scalar_lea.vmem [#allocation2], %s2004
          %2006 = dma.done %s2002, 1024
        $region56: #{sam_v1_image_encoder.45} parent=51 // pred_fallthru
          _
      $region52: #{sam_v1_image_encoder.45} parent=5 // pred_fallthru
        _
    $region6: #{sam_v1_image_encoder.45} parent=1 // loop_footer
      %s19 = sadd.s32 1, %s15
    $region7: #{sam_v1_image_encoder.45} parent=1 // loop_footer_branch
      %14 = sbr.rel target = $region3
    $region8: #{sam_v1_image_encoder.45} parent=1 // loop_exit
      _
    %2007 = vsyncpa [#allocation3], 1
    %s2008 = scalar_lea.sflag [#allocation3], 1
    %2009 = vsyncpa %s2008, 1

</llo_original>
